<compile_context>
chip_gen: v7x
topology: tpu7x:2x2x1
jax: 0.10.0
libtpu: 0.0.40
codegen_flags: <defaults>
</compile_context>

<pallas_src>
import functools

import numpy as np
import jax
import jax.numpy as jnp
from jax.experimental import pallas as pl
from jax.experimental.pallas import tpu as pltpu

# ----------------------------- model hyper-params -----------------------------
IN_CHANNELS = 32       # = Cf + T*C after concat
OUT_CHANNELS = 3
FREQ_DIM = 20
MODES = 8
DEPTH = 3
PROJ_HIDDEN = 128
CF = 4                 # forcing channels (IN_CHANNELS - T*C)


# ---------------------------------------------------------------------------
# Truncated 2-D DFT / inverse matrices (compile-time constants, numpy-built).
#   forward:  Xft[c, j1*m+j2] = sum_s x[c, s] * exp(-2*pi*i*(k1[j1]*w/W + j2*h/H))
#   inverse:  reproduces irfft2 applied to a spectrum that is zero outside the
#             retained modes (scale 2 for j2>0, scale 1 for the j2==0 column).
# Returned in bfloat16: these feed the MXU only (f32 accumulation).
# ---------------------------------------------------------------------------
@functools.lru_cache(maxsize=None)
def _dft_matrices(W, H, modes):
    assert 2 * modes <= W and modes <= H // 2
    k1 = np.concatenate([np.arange(modes), np.arange(W - modes, W)])      # (2m,)
    k2 = np.arange(modes)                                                 # (m,)
    tw = 2.0 * np.pi * np.outer(np.arange(W), k1) / W                     # (W, 2m)
    th = 2.0 * np.pi * np.outer(np.arange(H), k2) / H                     # (H, m)
    theta = tw[:, None, :, None] + th[None, :, None, :]                   # (W,H,2m,m)
    theta = theta.reshape(W * H, 2 * modes * modes)      # rows s=w*H+h, cols j=j1*m+j2
    dr = np.cos(theta)
    di = -np.sin(theta)
    scale = np.tile(np.where(k2 == 0, 1.0, 2.0), 2 * modes) / float(W * H)
    gt = theta.T                                                          # (2m*m, W*H)
    gr = scale[:, None] * np.cos(gt)
    gi = -scale[:, None] * np.sin(gt)
    cast = lambda a: jnp.asarray(a.astype(np.float32), dtype=jnp.bfloat16)
    return cast(dr), cast(di), cast(gr), cast(gi)


# ------------------------------- fused kernel ---------------------------------
def _fno_fused_kernel(x_ref, f_ref, wlx_ref, wlf_ref, lb_ref,
                      dr_ref, di_ref, gr_ref, gi_ref,
                      swr_ref, swi_ref, pww_ref, pwb_ref,
                      p1w_ref, p1b_ref, p2w_ref, p2b_ref,
                      o_ref,
                      xr_scr, xi_scr):
    """One batch element per grid step; all activations/weights VMEM resident.

    Activations are channels-first (channels, W*H): the lane axis is always a
    dense multiple of 128 (256 spatial points or 128 Fourier modes).
    """
    depth = swr_ref.shape[0]
    n_cin = swr_ref.shape[1]

    # ---- fused preprocessing: F.normalize(f) folded into a rank-1 lift bias --
    frow = f_ref[...]                                              # (1, Cf)
    nrm = jnp.sqrt(jnp.sum(frow * frow, axis=1, keepdims=True))    # (1, 1)
    fn = frow / jnp.maximum(nrm, 1e-12)                            # (1, Cf)
    fbias = jnp.sum(wlf_ref[...] * fn, axis=1, keepdims=True)      # (F, 1)

    # ---- lift ---------------------------------------------------------------
    h = (jnp.dot(wlx_ref[...], x_ref[...], preferred_element_type=jnp.float32)
         + fbias + lb_ref[...])                                    # (F, S) f32

    dr = dr_ref[...]; di = di_ref[...]                             # (S, K) bf16
    gr = gr_ref[...]; gi = gi_ref[...]                             # (K, S) bf16

    for d in range(depth):                                         # static unroll
        # -- forward truncated 2-D DFT: one bf16 matmul per real/imag part ----
        hb = h.astype(jnp.bfloat16)
        xr_scr[...] = jnp.dot(hb, dr, preferred_element_type=jnp.float32)  # (F, K)
        xi_scr[...] = jnp.dot(hb, di, preferred_element_type=jnp.float32)  # (F, K)

        # -- per-mode complex channel mixing: accumulate over c_in -------------
        # acc_{r,i} are (F_out, K) = (20, 128) -> 3 vregs each; per c_in we
        # load one (1, K) spectrum row (broadcast over sublanes in the VPU
        # multiply) and one (F_out, K) weight slab.  No (F, F, K) temporaries,
        # no cross-sublane reductions, no spills.
        acc_r = None
        acc_i = None
        for ci in range(n_cin):
            xr_row = xr_scr[pl.ds(ci, 1), :]                       # (1, K)
            xi_row = xi_scr[pl.ds(ci, 1), :]                       # (1, K)
            wr_c = swr_ref[d, ci]                                  # (F_out, K)
            wi_c = swi_ref[d, ci]                                  # (F_out, K)
            tr = xr_row * wr_c - xi_row * wi_c
            ti = xr_row * wi_c + xi_row * wr_c
            acc_r = tr if acc_r is None else acc_r + tr
            acc_i = ti if acc_i is None else acc_i + ti

        # -- inverse real 2-D DFT back to the grid (bf16 matmuls) --------------
        x1 = (jnp.dot(acc_r.astype(jnp.bfloat16), gr,
                      preferred_element_type=jnp.float32)
              + jnp.dot(acc_i.astype(jnp.bfloat16), gi,
                        preferred_element_type=jnp.float32))       # (F, S)

        # -- fused 1x1 conv + residual add (+ GELU except the last block) ------
        x2 = jnp.dot(pww_ref[d], h, preferred_element_type=jnp.float32) + pwb_ref[d]
        h = x1 + x2
        if d < depth - 1:
            # TODO(synk): torch F.gelu defaults to the exact erf form; the tanh
            # approximation is used here.
            h = jax.nn.gelu(h, approximate=True)

    # ---- fused projection head: p2(gelu(p1(h))) ------------------------------
    z = jnp.dot(p1w_ref[...], h, preferred_element_type=jnp.float32) + p1b_ref[...]
    z = jax.nn.gelu(z, approximate=True)
    o_ref[...] = (jnp.dot(p2w_ref[...], z, preferred_element_type=jnp.float32)
                  + p2b_ref[...])


# --------------------------------- Net.forward --------------------------------
def net_forward(x, f, params):
    """x: (B, T, C, W, H), f: (B, Cf) -> (B, 1, OUT_CHANNELS, W, H)."""
    B, T, C, W, H = x.shape
    Cf = f.shape[1]
    S = W * H
    K = 2 * MODES * MODES
    assert T * C + Cf == IN_CHANNELS

    # 'b t c w h -> b (t c) (w h)' is a pure reshape; the original NCHW->NHWC
    # permute disappears because the kernel works channels-first natively.
    x_cf = x.reshape(B, T * C, S).astype(jnp.float32)
    f_in = f.reshape(B, 1, Cf).astype(jnp.float32)
    dr, di, gr, gi = _dft_matrices(W, H, MODES)

    def full(shape):
        return pl.BlockSpec(shape, lambda b: (0,) * len(shape))

    out = pl.pallas_call(
        _fno_fused_kernel,
        out_shape=jax.ShapeDtypeStruct((B, OUT_CHANNELS, S), jnp.float32),
        grid=(B,),
        in_specs=[
            pl.BlockSpec((None, T * C, S), lambda b: (b, 0, 0)),   # x (per batch)
            pl.BlockSpec((None, 1, Cf), lambda b: (b, 0, 0)),      # f (per batch)
            full((FREQ_DIM, T * C)),                               # lift W (x part)
            full((FREQ_DIM, Cf)),                                  # lift W (f part)
            full((FREQ_DIM, 1)),                                   # lift bias
            full((S, K)), full((S, K)),                            # forward DFT (re, im)
            full((K, S)), full((K, S)),                            # inverse DFT (re, im)
            full((DEPTH, FREQ_DIM, FREQ_DIM, K)),                  # spectral W (re)
            full((DEPTH, FREQ_DIM, FREQ_DIM, K)),                  # spectral W (im)
            full((DEPTH, FREQ_DIM, FREQ_DIM)),                     # 1x1 conv W
            full((DEPTH, FREQ_DIM, 1)),                            # 1x1 conv b
            full((PROJ_HIDDEN, FREQ_DIM)), full((PROJ_HIDDEN, 1)), # proj1
            full((OUT_CHANNELS, PROJ_HIDDEN)), full((OUT_CHANNELS, 1)),  # proj2
        ],
        out_specs=pl.BlockSpec((None, OUT_CHANNELS, S), lambda b: (b, 0, 0)),
        scratch_shapes=[pltpu.VMEM((FREQ_DIM, K), jnp.float32),    # xr spectrum
                        pltpu.VMEM((FREQ_DIM, K), jnp.float32)],   # xi spectrum
        compiler_params=pltpu.CompilerParams(
            dimension_semantics=("parallel",)),   # v7x: 2 TensorCores split the batch
    )(x_cf, f_in,
      params["wlx"], params["wlf"], params["lb"],
      dr, di, gr, gi,
      params["spec_wr"], params["spec_wi"],
      params["pw_w"], params["pw_b"],
      params["p1_w"], params["p1_b"],
      params["p2_w"], params["p2_b"])

    return out.reshape(B, OUT_CHANNELS, W, H)[:, None]


# ------------------------------ parameter creation -----------------------------
def init_params(key):
    ks = jax.random.split(key, 8)
    K = 2 * MODES * MODES
    p = {}

    lift_w = 0.02 * jax.random.normal(ks[0], (IN_CHANNELS, FREQ_DIM), jnp.float32)
    p["wlf"] = lift_w[:CF].T                                    # (F, Cf)
    p["wlx"] = lift_w[CF:].T                                    # (F, T*C)
    p["lb"] = jnp.zeros((FREQ_DIM, 1), jnp.float32)

    spec_scale = 1.0 / (FREQ_DIM * FREQ_DIM)
    wr = spec_scale * jax.random.uniform(
        ks[1], (DEPTH, 2 * MODES, MODES, FREQ_DIM, FREQ_DIM), jnp.float32)
    wi = spec_scale * jax.random.uniform(
        ks[2], (DEPTH, 2 * MODES, MODES, FREQ_DIM, FREQ_DIM), jnp.float32)
    # kernel layout: (depth, c_in, c_out, flattened mode j1*m+j2)
    p["spec_wr"] = jnp.transpose(wr, (0, 3, 4, 1, 2)).reshape(DEPTH, FREQ_DIM, FREQ_DIM, K)
    p["spec_wi"] = jnp.transpose(wi, (0, 3, 4, 1, 2)).reshape(DEPTH, FREQ_DIM, FREQ_DIM, K)

    pw = 0.02 * jax.random.normal(ks[3], (DEPTH, FREQ_DIM, FREQ_DIM), jnp.float32)
    p["pw_w"] = jnp.transpose(pw, (0, 2, 1))                    # (D, c_out, c_in)
    p["pw_b"] = jnp.zeros((DEPTH, FREQ_DIM, 1), jnp.float32)

    p1 = 0.02 * jax.random.normal(ks[4], (FREQ_DIM, PROJ_HIDDEN), jnp.float32)
    p["p1_w"] = p1.T                                            # (128, F)
    p["p1_b"] = jnp.zeros((PROJ_HIDDEN, 1), jnp.float32)
    p2 = 0.02 * jax.random.normal(ks[5], (PROJ_HIDDEN, OUT_CHANNELS), jnp.float32)
    p["p2_w"] = p2.T                                            # (3, 128)
    p["p2_b"] = jnp.zeros((OUT_CHANNELS, 1), jnp.float32)
    return p


# ------------------------------------ main -------------------------------------
if __name__ == "__main__":
    key = jax.random.PRNGKey(0)
    kx, kf, kp = jax.random.split(key, 3)

    B, T, C, W, H = 2, 7, 4, 16, 16      # Cf + T*C = 4 + 28 = 32 = FNO in_channels
    x = jax.random.normal(kx, (B, T, C, W, H), jnp.float32)
    f = jax.random.normal(kf, (B, CF), jnp.float32)
    params = init_params(kp)

    fwd = jax.jit(net_forward)
    out = fwd(x, f, params)
    out = jax.block_until_ready(out)
    assert out.shape == (B, 1, OUT_CHANNELS, W, H), out.shape
    print("KERNEL_OK")
</pallas_src>

<mosaic_0001>
module attributes {stable_mosaic.version = 11 : i64} {
  func.func @_fno_fused_kernel(%arg0: i32, %arg1: memref<1x28x256xf32, #tpu.memory_space<vmem>>, %arg2: memref<1x1x4xf32, #tpu.memory_space<vmem>>, %arg3: memref<20x28xf32, #tpu.memory_space<vmem>>, %arg4: memref<20x4xf32, #tpu.memory_space<vmem>>, %arg5: memref<20x1xf32, #tpu.memory_space<vmem>>, %arg6: memref<256x128xbf16, #tpu.memory_space<vmem>>, %arg7: memref<256x128xbf16, #tpu.memory_space<vmem>>, %arg8: memref<128x256xbf16, #tpu.memory_space<vmem>>, %arg9: memref<128x256xbf16, #tpu.memory_space<vmem>>, %arg10: memref<3x20x20x128xf32, #tpu.memory_space<vmem>>, %arg11: memref<3x20x20x128xf32, #tpu.memory_space<vmem>>, %arg12: memref<3x20x20xf32, #tpu.memory_space<vmem>>, %arg13: memref<3x20x1xf32, #tpu.memory_space<vmem>>, %arg14: memref<128x20xf32, #tpu.memory_space<vmem>>, %arg15: memref<128x1xf32, #tpu.memory_space<vmem>>, %arg16: memref<3x128xf32, #tpu.memory_space<vmem>>, %arg17: memref<3x1xf32, #tpu.memory_space<vmem>>, %arg18: memref<1x3x256xf32, #tpu.memory_space<vmem>>, %arg19: memref<20x128xf32, #tpu.memory_space<vmem>>, %arg20: memref<20x128xf32, #tpu.memory_space<vmem>>) attributes {dimension_semantics = [#tpu.dimension_semantics<parallel>], iteration_bounds = array<i64: 2>, scalar_prefetch = 0 : i64, scratch_operands = 2 : i64, tpu.core_type = #tpu.core_type<tc>, window_params = [{transform_indices = @transform_0, window_bounds = array<i64: 1, 28, 256>}, {transform_indices = @transform_1, window_bounds = array<i64: 1, 1, 4>}, {pipeline_mode = #tpu.pipeline_mode<synchronous>, transform_indices = @transform_2, window_bounds = array<i64: 20, 28>}, {pipeline_mode = #tpu.pipeline_mode<synchronous>, transform_indices = @transform_3, window_bounds = array<i64: 20, 4>}, {pipeline_mode = #tpu.pipeline_mode<synchronous>, transform_indices = @transform_4, window_bounds = array<i64: 20, 1>}, {pipeline_mode = #tpu.pipeline_mode<synchronous>, transform_indices = @transform_5, window_bounds = array<i64: 256, 128>}, {pipeline_mode = #tpu.pipeline_mode<synchronous>, transform_indices = @transform_6, window_bounds = array<i64: 256, 128>}, {pipeline_mode = #tpu.pipeline_mode<synchronous>, transform_indices = @transform_7, window_bounds = array<i64: 128, 256>}, {pipeline_mode = #tpu.pipeline_mode<synchronous>, transform_indices = @transform_8, window_bounds = array<i64: 128, 256>}, {pipeline_mode = #tpu.pipeline_mode<synchronous>, transform_indices = @transform_9, window_bounds = array<i64: 3, 20, 20, 128>}, {pipeline_mode = #tpu.pipeline_mode<synchronous>, transform_indices = @transform_10, window_bounds = array<i64: 3, 20, 20, 128>}, {pipeline_mode = #tpu.pipeline_mode<synchronous>, transform_indices = @transform_11, window_bounds = array<i64: 3, 20, 20>}, {pipeline_mode = #tpu.pipeline_mode<synchronous>, transform_indices = @transform_12, window_bounds = array<i64: 3, 20, 1>}, {pipeline_mode = #tpu.pipeline_mode<synchronous>, transform_indices = @transform_13, window_bounds = array<i64: 128, 20>}, {pipeline_mode = #tpu.pipeline_mode<synchronous>, transform_indices = @transform_14, window_bounds = array<i64: 128, 1>}, {pipeline_mode = #tpu.pipeline_mode<synchronous>, transform_indices = @transform_15, window_bounds = array<i64: 3, 128>}, {pipeline_mode = #tpu.pipeline_mode<synchronous>, transform_indices = @transform_16, window_bounds = array<i64: 3, 1>}, {transform_indices = @transform_17, window_bounds = array<i64: 1, 3, 256>}]} {
    %c0 = arith.constant 0 : index
    %c0_0 = arith.constant 0 : index
    %c0_1 = arith.constant 0 : index
    %0 = vector.load %arg2[%c0, %c0_0, %c0_1] : memref<1x1x4xf32, #tpu.memory_space<vmem>>, vector<1x1x4xf32>
    %1 = vector.shape_cast %0 : vector<1x1x4xf32> to vector<1x4xf32>
    %2 = arith.mulf %1, %1 : vector<1x4xf32>
    %cst = arith.constant dense<0.000000e+00> : vector<1xf32>
    %3 = vector.multi_reduction <add>, %2, %cst [1] : vector<1x4xf32> to vector<1xf32>
    %4 = vector.shape_cast %3 : vector<1xf32> to vector<1x1xf32>
    %5 = math.sqrt %4 : vector<1x1xf32>
    %cst_2 = arith.constant 9.99999996E-13 : f32
    %6 = vector.broadcast %cst_2 : f32 to vector<1x1xf32>
    %7 = arith.maximumf %5, %6 : vector<1x1xf32>
    %8 = vector.broadcast %7 : vector<1x1xf32> to vector<1x4xf32>
    %9 = arith.divf %1, %8 : vector<1x4xf32>
    %c0_3 = arith.constant 0 : index
    %c0_4 = arith.constant 0 : index
    %10 = vector.load %arg4[%c0_3, %c0_4] : memref<20x4xf32, #tpu.memory_space<vmem>>, vector<20x4xf32>
    %11 = vector.broadcast %9 : vector<1x4xf32> to vector<20x4xf32>
    %12 = arith.mulf %10, %11 : vector<20x4xf32>
    %cst_5 = arith.constant dense<0.000000e+00> : vector<20xf32>
    %13 = vector.multi_reduction <add>, %12, %cst_5 [1] : vector<20x4xf32> to vector<20xf32>
    %14 = vector.shape_cast %13 : vector<20xf32> to vector<20x1xf32>
    %c0_6 = arith.constant 0 : index
    %c0_7 = arith.constant 0 : index
    %15 = vector.load %arg3[%c0_6, %c0_7] : memref<20x28xf32, #tpu.memory_space<vmem>>, vector<20x28xf32>
    %c0_8 = arith.constant 0 : index
    %c0_9 = arith.constant 0 : index
    %c0_10 = arith.constant 0 : index
    %16 = vector.load %arg1[%c0_8, %c0_9, %c0_10] : memref<1x28x256xf32, #tpu.memory_space<vmem>>, vector<1x28x256xf32>
    %17 = vector.shape_cast %16 : vector<1x28x256xf32> to vector<28x256xf32>
    %cst_11 = arith.constant dense<0.000000e+00> : vector<20x256xf32>
    %18 = tpu.matmul %15, %17, %cst_11 {dimension_numbers = #tpu.dot_dimension_numbers<[1], [0], [0], [1], [0, 0, 1, 1], [], []>} : vector<20x28xf32>, vector<28x256xf32>, vector<20x256xf32> -> vector<20x256xf32>
    %19 = vector.broadcast %14 : vector<20x1xf32> to vector<20x256xf32>
    %20 = arith.addf %18, %19 : vector<20x256xf32>
    %c0_12 = arith.constant 0 : index
    %c0_13 = arith.constant 0 : index
    %21 = vector.load %arg5[%c0_12, %c0_13] : memref<20x1xf32, #tpu.memory_space<vmem>>, vector<20x1xf32>
    %22 = vector.broadcast %21 : vector<20x1xf32> to vector<20x256xf32>
    %23 = arith.addf %20, %22 : vector<20x256xf32>
    %c0_14 = arith.constant 0 : index
    %c0_15 = arith.constant 0 : index
    %24 = vector.load %arg6[%c0_14, %c0_15] : memref<256x128xbf16, #tpu.memory_space<vmem>>, vector<256x128xbf16>
    %c0_16 = arith.constant 0 : index
    %c0_17 = arith.constant 0 : index
    %25 = vector.load %arg7[%c0_16, %c0_17] : memref<256x128xbf16, #tpu.memory_space<vmem>>, vector<256x128xbf16>
    %c0_18 = arith.constant 0 : index
    %c0_19 = arith.constant 0 : index
    %26 = vector.load %arg8[%c0_18, %c0_19] : memref<128x256xbf16, #tpu.memory_space<vmem>>, vector<128x256xbf16>
    %c0_20 = arith.constant 0 : index
    %c0_21 = arith.constant 0 : index
    %27 = vector.load %arg9[%c0_20, %c0_21] : memref<128x256xbf16, #tpu.memory_space<vmem>>, vector<128x256xbf16>
    %28 = arith.truncf %23 : vector<20x256xf32> to vector<20x256xbf16>
    %cst_22 = arith.constant dense<0.000000e+00> : vector<20x128xf32>
    %29 = tpu.matmul %28, %24, %cst_22 {dimension_numbers = #tpu.dot_dimension_numbers<[1], [0], [0], [1], [0, 0, 1, 1], [], []>} : vector<20x256xbf16>, vector<256x128xbf16>, vector<20x128xf32> -> vector<20x128xf32>
    %c0_23 = arith.constant 0 : index
    %c0_24 = arith.constant 0 : index
    %30 = vector.load %arg19[%c0_23, %c0_24] : memref<20x128xf32, #tpu.memory_space<vmem>>, vector<20x128xf32>
    tpu.vector_store %arg19[%c0_23, %c0_24], %29 {strides = array<i32>} : memref<20x128xf32, #tpu.memory_space<vmem>>, vector<20x128xf32>,
    %cst_25 = arith.constant dense<0.000000e+00> : vector<20x128xf32>
    %31 = tpu.matmul %28, %25, %cst_25 {dimension_numbers = #tpu.dot_dimension_numbers<[1], [0], [0], [1], [0, 0, 1, 1], [], []>} : vector<20x256xbf16>, vector<256x128xbf16>, vector<20x128xf32> -> vector<20x128xf32>
    %c0_26 = arith.constant 0 : index
    %c0_27 = arith.constant 0 : index
    %32 = vector.load %arg20[%c0_26, %c0_27] : memref<20x128xf32, #tpu.memory_space<vmem>>, vector<20x128xf32>
    tpu.vector_store %arg20[%c0_26, %c0_27], %31 {strides = array<i32>} : memref<20x128xf32, #tpu.memory_space<vmem>>, vector<20x128xf32>,
    %c0_28 = arith.constant 0 : index
    %c0_29 = arith.constant 0 : index
    %33 = vector.load %arg19[%c0_28, %c0_29] : memref<20x128xf32, #tpu.memory_space<vmem>>, vector<1x128xf32>
    %c0_30 = arith.constant 0 : index
    %c0_31 = arith.constant 0 : index
    %34 = vector.load %arg20[%c0_30, %c0_31] : memref<20x128xf32, #tpu.memory_space<vmem>>, vector<1x128xf32>
    %c0_32 = arith.constant 0 : index
    %c0_33 = arith.constant 0 : index
    %c0_34 = arith.constant 0 : index
    %c0_35 = arith.constant 0 : index
    %35 = vector.load %arg10[%c0_32, %c0_33, %c0_34, %c0_35] : memref<3x20x20x128xf32, #tpu.memory_space<vmem>>, vector<1x1x20x128xf32>
    %36 = vector.shape_cast %35 : vector<1x1x20x128xf32> to vector<20x128xf32>
    %c0_36 = arith.constant 0 : index
    %c0_37 = arith.constant 0 : index
    %c0_38 = arith.constant 0 : index
    %c0_39 = arith.constant 0 : index
    %37 = vector.load %arg11[%c0_36, %c0_37, %c0_38, %c0_39] : memref<3x20x20x128xf32, #tpu.memory_space<vmem>>, vector<1x1x20x128xf32>
    %38 = vector.shape_cast %37 : vector<1x1x20x128xf32> to vector<20x128xf32>
    %39 = vector.broadcast %33 : vector<1x128xf32> to vector<20x128xf32>
    %40 = arith.mulf %39, %36 : vector<20x128xf32>
    %41 = vector.broadcast %34 : vector<1x128xf32> to vector<20x128xf32>
    %42 = arith.mulf %41, %38 : vector<20x128xf32>
    %43 = arith.subf %40, %42 : vector<20x128xf32>
    %44 = vector.broadcast %33 : vector<1x128xf32> to vector<20x128xf32>
    %45 = arith.mulf %44, %38 : vector<20x128xf32>
    %46 = vector.broadcast %34 : vector<1x128xf32> to vector<20x128xf32>
    %47 = arith.mulf %46, %36 : vector<20x128xf32>
    %48 = arith.addf %45, %47 : vector<20x128xf32>
    %c1 = arith.constant 1 : index
    %c0_40 = arith.constant 0 : index
    %49 = vector.load %arg19[%c1, %c0_40] : memref<20x128xf32, #tpu.memory_space<vmem>>, vector<1x128xf32>
    %c1_41 = arith.constant 1 : index
    %c0_42 = arith.constant 0 : index
    %50 = vector.load %arg20[%c1_41, %c0_42] : memref<20x128xf32, #tpu.memory_space<vmem>>, vector<1x128xf32>
    %c0_43 = arith.constant 0 : index
    %c1_44 = arith.constant 1 : index
    %c0_45 = arith.constant 0 : index
    %c0_46 = arith.constant 0 : index
    %51 = vector.load %arg10[%c0_43, %c1_44, %c0_45, %c0_46] : memref<3x20x20x128xf32, #tpu.memory_space<vmem>>, vector<1x1x20x128xf32>
    %52 = vector.shape_cast %51 : vector<1x1x20x128xf32> to vector<20x128xf32>
    %c0_47 = arith.constant 0 : index
    %c1_48 = arith.constant 1 : index
    %c0_49 = arith.constant 0 : index
    %c0_50 = arith.constant 0 : index
    %53 = vector.load %arg11[%c0_47, %c1_48, %c0_49, %c0_50] : memref<3x20x20x128xf32, #tpu.memory_space<vmem>>, vector<1x1x20x128xf32>
    %54 = vector.shape_cast %53 : vector<1x1x20x128xf32> to vector<20x128xf32>
    %55 = vector.broadcast %49 : vector<1x128xf32> to vector<20x128xf32>
    %56 = arith.mulf %55, %52 : vector<20x128xf32>
    %57 = vector.broadcast %50 : vector<1x128xf32> to vector<20x128xf32>
    %58 = arith.mulf %57, %54 : vector<20x128xf32>
    %59 = arith.subf %56, %58 : vector<20x128xf32>
    %60 = vector.broadcast %49 : vector<1x128xf32> to vector<20x128xf32>
    %61 = arith.mulf %60, %54 : vector<20x128xf32>
    %62 = vector.broadcast %50 : vector<1x128xf32> to vector<20x128xf32>
    %63 = arith.mulf %62, %52 : vector<20x128xf32>
    %64 = arith.addf %61, %63 : vector<20x128xf32>
    %65 = arith.addf %43, %59 : vector<20x128xf32>
    %66 = arith.addf %48, %64 : vector<20x128xf32>
    %c2 = arith.constant 2 : index
    %c0_51 = arith.constant 0 : index
    %67 = vector.load %arg19[%c2, %c0_51] : memref<20x128xf32, #tpu.memory_space<vmem>>, vector<1x128xf32>
    %c2_52 = arith.constant 2 : index
    %c0_53 = arith.constant 0 : index
    %68 = vector.load %arg20[%c2_52, %c0_53] : memref<20x128xf32, #tpu.memory_space<vmem>>, vector<1x128xf32>
    %c0_54 = arith.constant 0 : index
    %c2_55 = arith.constant 2 : index
    %c0_56 = arith.constant 0 : index
    %c0_57 = arith.constant 0 : index
    %69 = vector.load %arg10[%c0_54, %c2_55, %c0_56, %c0_57] : memref<3x20x20x128xf32, #tpu.memory_space<vmem>>, vector<1x1x20x128xf32>
    %70 = vector.shape_cast %69 : vector<1x1x20x128xf32> to vector<20x128xf32>
    %c0_58 = arith.constant 0 : index
    %c2_59 = arith.constant 2 : index
    %c0_60 = arith.constant 0 : index
    %c0_61 = arith.constant 0 : index
    %71 = vector.load %arg11[%c0_58, %c2_59, %c0_60, %c0_61] : memref<3x20x20x128xf32, #tpu.memory_space<vmem>>, vector<1x1x20x128xf32>
    %72 = vector.shape_cast %71 : vector<1x1x20x128xf32> to vector<20x128xf32>
    %73 = vector.broadcast %67 : vector<1x128xf32> to vector<20x128xf32>
    %74 = arith.mulf %73, %70 : vector<20x128xf32>
    %75 = vector.broadcast %68 : vector<1x128xf32> to vector<20x128xf32>
    %76 = arith.mulf %75, %72 : vector<20x128xf32>
    %77 = arith.subf %74, %76 : vector<20x128xf32>
    %78 = vector.broadcast %67 : vector<1x128xf32> to vector<20x128xf32>
    %79 = arith.mulf %78, %72 : vector<20x128xf32>
    %80 = vector.broadcast %68 : vector<1x128xf32> to vector<20x128xf32>
    %81 = arith.mulf %80, %70 : vector<20x128xf32>
    %82 = arith.addf %79, %81 : vector<20x128xf32>
    %83 = arith.addf %65, %77 : vector<20x128xf32>
    %84 = arith.addf %66, %82 : vector<20x128xf32>
    %c3 = arith.constant 3 : index
    %c0_62 = arith.constant 0 : index
    %85 = vector.load %arg19[%c3, %c0_62] : memref<20x128xf32, #tpu.memory_space<vmem>>, vector<1x128xf32>
    %c3_63 = arith.constant 3 : index
    %c0_64 = arith.constant 0 : index
    %86 = vector.load %arg20[%c3_63, %c0_64] : memref<20x128xf32, #tpu.memory_space<vmem>>, vector<1x128xf32>
    %c0_65 = arith.constant 0 : index
    %c3_66 = arith.constant 3 : index
    %c0_67 = arith.constant 0 : index
    %c0_68 = arith.constant 0 : index
    %87 = vector.load %arg10[%c0_65, %c3_66, %c0_67, %c0_68] : memref<3x20x20x128xf32, #tpu.memory_space<vmem>>, vector<1x1x20x128xf32>
    %88 = vector.shape_cast %87 : vector<1x1x20x128xf32> to vector<20x128xf32>
    %c0_69 = arith.constant 0 : index
    %c3_70 = arith.constant 3 : index
    %c0_71 = arith.constant 0 : index
    %c0_72 = arith.constant 0 : index
    %89 = vector.load %arg11[%c0_69, %c3_70, %c0_71, %c0_72] : memref<3x20x20x128xf32, #tpu.memory_space<vmem>>, vector<1x1x20x128xf32>
    %90 = vector.shape_cast %89 : vector<1x1x20x128xf32> to vector<20x128xf32>
    %91 = vector.broadcast %85 : vector<1x128xf32> to vector<20x128xf32>
    %92 = arith.mulf %91, %88 : vector<20x128xf32>
    %93 = vector.broadcast %86 : vector<1x128xf32> to vector<20x128xf32>
    %94 = arith.mulf %93, %90 : vector<20x128xf32>
    %95 = arith.subf %92, %94 : vector<20x128xf32>
    %96 = vector.broadcast %85 : vector<1x128xf32> to vector<20x128xf32>
    %97 = arith.mulf %96, %90 : vector<20x128xf32>
    %98 = vector.broadcast %86 : vector<1x128xf32> to vector<20x128xf32>
    %99 = arith.mulf %98, %88 : vector<20x128xf32>
    %100 = arith.addf %97, %99 : vector<20x128xf32>
    %101 = arith.addf %83, %95 : vector<20x128xf32>
    %102 = arith.addf %84, %100 : vector<20x128xf32>
    %c4 = arith.constant 4 : index
    %c0_73 = arith.constant 0 : index
    %103 = vector.load %arg19[%c4, %c0_73] : memref<20x128xf32, #tpu.memory_space<vmem>>, vector<1x128xf32>
    %c4_74 = arith.constant 4 : index
    %c0_75 = arith.constant 0 : index
    %104 = vector.load %arg20[%c4_74, %c0_75] : memref<20x128xf32, #tpu.memory_space<vmem>>, vector<1x128xf32>
    %c0_76 = arith.constant 0 : index
    %c4_77 = arith.constant 4 : index
    %c0_78 = arith.constant 0 : index
    %c0_79 = arith.constant 0 : index
    %105 = vector.load %arg10[%c0_76, %c4_77, %c0_78, %c0_79] : memref<3x20x20x128xf32, #tpu.memory_space<vmem>>, vector<1x1x20x128xf32>
    %106 = vector.shape_cast %105 : vector<1x1x20x128xf32> to vector<20x128xf32>
    %c0_80 = arith.constant 0 : index
    %c4_81 = arith.constant 4 : index
    %c0_82 = arith.constant 0 : index
    %c0_83 = arith.constant 0 : index
    %107 = vector.load %arg11[%c0_80, %c4_81, %c0_82, %c0_83] : memref<3x20x20x128xf32, #tpu.memory_space<vmem>>, vector<1x1x20x128xf32>
    %108 = vector.shape_cast %107 : vector<1x1x20x128xf32> to vector<20x128xf32>
    %109 = vector.broadcast %103 : vector<1x128xf32> to vector<20x128xf32>
    %110 = arith.mulf %109, %106 : vector<20x128xf32>
    %111 = vector.broadcast %104 : vector<1x128xf32> to vector<20x128xf32>
    %112 = arith.mulf %111, %108 : vector<20x128xf32>
    %113 = arith.subf %110, %112 : vector<20x128xf32>
    %114 = vector.broadcast %103 : vector<1x128xf32> to vector<20x128xf32>
    %115 = arith.mulf %114, %108 : vector<20x128xf32>
    %116 = vector.broadcast %104 : vector<1x128xf32> to vector<20x128xf32>
    %117 = arith.mulf %116, %106 : vector<20x128xf32>
    %118 = arith.addf %115, %117 : vector<20x128xf32>
    %119 = arith.addf %101, %113 : vector<20x128xf32>
    %120 = arith.addf %102, %118 : vector<20x128xf32>
    %c5 = arith.constant 5 : index
    %c0_84 = arith.constant 0 : index
    %121 = vector.load %arg19[%c5, %c0_84] : memref<20x128xf32, #tpu.memory_space<vmem>>, vector<1x128xf32>
    %c5_85 = arith.constant 5 : index
    %c0_86 = arith.constant 0 : index
    %122 = vector.load %arg20[%c5_85, %c0_86] : memref<20x128xf32, #tpu.memory_space<vmem>>, vector<1x128xf32>
    %c0_87 = arith.constant 0 : index
    %c5_88 = arith.constant 5 : index
    %c0_89 = arith.constant 0 : index
    %c0_90 = arith.constant 0 : index
    %123 = vector.load %arg10[%c0_87, %c5_88, %c0_89, %c0_90] : memref<3x20x20x128xf32, #tpu.memory_space<vmem>>, vector<1x1x20x128xf32>
    %124 = vector.shape_cast %123 : vector<1x1x20x128xf32> to vector<20x128xf32>
    %c0_91 = arith.constant 0 : index
    %c5_92 = arith.constant 5 : index
    %c0_93 = arith.constant 0 : index
    %c0_94 = arith.constant 0 : index
    %125 = vector.load %arg11[%c0_91, %c5_92, %c0_93, %c0_94] : memref<3x20x20x128xf32, #tpu.memory_space<vmem>>, vector<1x1x20x128xf32>
    %126 = vector.shape_cast %125 : vector<1x1x20x128xf32> to vector<20x128xf32>
    %127 = vector.broadcast %121 : vector<1x128xf32> to vector<20x128xf32>
    %128 = arith.mulf %127, %124 : vector<20x128xf32>
    %129 = vector.broadcast %122 : vector<1x128xf32> to vector<20x128xf32>
    %130 = arith.mulf %129, %126 : vector<20x128xf32>
    %131 = arith.subf %128, %130 : vector<20x128xf32>
    %132 = vector.broadcast %121 : vector<1x128xf32> to vector<20x128xf32>
    %133 = arith.mulf %132, %126 : vector<20x128xf32>
    %134 = vector.broadcast %122 : vector<1x128xf32> to vector<20x128xf32>
    %135 = arith.mulf %134, %124 : vector<20x128xf32>
    %136 = arith.addf %133, %135 : vector<20x128xf32>
    %137 = arith.addf %119, %131 : vector<20x128xf32>
    %138 = arith.addf %120, %136 : vector<20x128xf32>
    %c6 = arith.constant 6 : index
    %c0_95 = arith.constant 0 : index
    %139 = vector.load %arg19[%c6, %c0_95] : memref<20x128xf32, #tpu.memory_space<vmem>>, vector<1x128xf32>
    %c6_96 = arith.constant 6 : index
    %c0_97 = arith.constant 0 : index
    %140 = vector.load %arg20[%c6_96, %c0_97] : memref<20x128xf32, #tpu.memory_space<vmem>>, vector<1x128xf32>
    %c0_98 = arith.constant 0 : index
    %c6_99 = arith.constant 6 : index
    %c0_100 = arith.constant 0 : index
    %c0_101 = arith.constant 0 : index
    %141 = vector.load %arg10[%c0_98, %c6_99, %c0_100, %c0_101] : memref<3x20x20x128xf32, #tpu.memory_space<vmem>>, vector<1x1x20x128xf32>
    %142 = vector.shape_cast %141 : vector<1x1x20x128xf32> to vector<20x128xf32>
    %c0_102 = arith.constant 0 : index
    %c6_103 = arith.constant 6 : index
    %c0_104 = arith.constant 0 : index
    %c0_105 = arith.constant 0 : index
    %143 = vector.load %arg11[%c0_102, %c6_103, %c0_104, %c0_105] : memref<3x20x20x128xf32, #tpu.memory_space<vmem>>, vector<1x1x20x128xf32>
    %144 = vector.shape_cast %143 : vector<1x1x20x128xf32> to vector<20x128xf32>
    %145 = vector.broadcast %139 : vector<1x128xf32> to vector<20x128xf32>
    %146 = arith.mulf %145, %142 : vector<20x128xf32>
    %147 = vector.broadcast %140 : vector<1x128xf32> to vector<20x128xf32>
    %148 = arith.mulf %147, %144 : vector<20x128xf32>
    %149 = arith.subf %146, %148 : vector<20x128xf32>
    %150 = vector.broadcast %139 : vector<1x128xf32> to vector<20x128xf32>
    %151 = arith.mulf %150, %144 : vector<20x128xf32>
    %152 = vector.broadcast %140 : vector<1x128xf32> to vector<20x128xf32>
    %153 = arith.mulf %152, %142 : vector<20x128xf32>
    %154 = arith.addf %151, %153 : vector<20x128xf32>
    %155 = arith.addf %137, %149 : vector<20x128xf32>
    %156 = arith.addf %138, %154 : vector<20x128xf32>
    %c7 = arith.constant 7 : index
    %c0_106 = arith.constant 0 : index
    %157 = vector.load %arg19[%c7, %c0_106] : memref<20x128xf32, #tpu.memory_space<vmem>>, vector<1x128xf32>
    %c7_107 = arith.constant 7 : index
    %c0_108 = arith.constant 0 : index
    %158 = vector.load %arg20[%c7_107, %c0_108] : memref<20x128xf32, #tpu.memory_space<vmem>>, vector<1x128xf32>
    %c0_109 = arith.constant 0 : index
    %c7_110 = arith.constant 7 : index
    %c0_111 = arith.constant 0 : index
    %c0_112 = arith.constant 0 : index
    %159 = vector.load %arg10[%c0_109, %c7_110, %c0_111, %c0_112] : memref<3x20x20x128xf32, #tpu.memory_space<vmem>>, vector<1x1x20x128xf32>
    %160 = vector.shape_cast %159 : vector<1x1x20x128xf32> to vector<20x128xf32>
    %c0_113 = arith.constant 0 : index
    %c7_114 = arith.constant 7 : index
    %c0_115 = arith.constant 0 : index
    %c0_116 = arith.constant 0 : index
    %161 = vector.load %arg11[%c0_113, %c7_114, %c0_115, %c0_116] : memref<3x20x20x128xf32, #tpu.memory_space<vmem>>, vector<1x1x20x128xf32>
    %162 = vector.shape_cast %161 : vector<1x1x20x128xf32> to vector<20x128xf32>
    %163 = vector.broadcast %157 : vector<1x128xf32> to vector<20x128xf32>
    %164 = arith.mulf %163, %160 : vector<20x128xf32>
    %165 = vector.broadcast %158 : vector<1x128xf32> to vector<20x128xf32>
    %166 = arith.mulf %165, %162 : vector<20x128xf32>
    %167 = arith.subf %164, %166 : vector<20x128xf32>
    %168 = vector.broadcast %157 : vector<1x128xf32> to vector<20x128xf32>
    %169 = arith.mulf %168, %162 : vector<20x128xf32>
    %170 = vector.broadcast %158 : vector<1x128xf32> to vector<20x128xf32>
    %171 = arith.mulf %170, %160 : vector<20x128xf32>
    %172 = arith.addf %169, %171 : vector<20x128xf32>
    %173 = arith.addf %155, %167 : vector<20x128xf32>
    %174 = arith.addf %156, %172 : vector<20x128xf32>
    %c8 = arith.constant 8 : index
    %c0_117 = arith.constant 0 : index
    %175 = vector.load %arg19[%c8, %c0_117] : memref<20x128xf32, #tpu.memory_space<vmem>>, vector<1x128xf32>
    %c8_118 = arith.constant 8 : index
    %c0_119 = arith.constant 0 : index
    %176 = vector.load %arg20[%c8_118, %c0_119] : memref<20x128xf32, #tpu.memory_space<vmem>>, vector<1x128xf32>
    %c0_120 = arith.constant 0 : index
    %c8_121 = arith.constant 8 : index
    %c0_122 = arith.constant 0 : index
    %c0_123 = arith.constant 0 : index
    %177 = vector.load %arg10[%c0_120, %c8_121, %c0_122, %c0_123] : memref<3x20x20x128xf32, #tpu.memory_space<vmem>>, vector<1x1x20x128xf32>
    %178 = vector.shape_cast %177 : vector<1x1x20x128xf32> to vector<20x128xf32>
    %c0_124 = arith.constant 0 : index
    %c8_125 = arith.constant 8 : index
    %c0_126 = arith.constant 0 : index
    %c0_127 = arith.constant 0 : index
    %179 = vector.load %arg11[%c0_124, %c8_125, %c0_126, %c0_127] : memref<3x20x20x128xf32, #tpu.memory_space<vmem>>, vector<1x1x20x128xf32>
    %180 = vector.shape_cast %179 : vector<1x1x20x128xf32> to vector<20x128xf32>
    %181 = vector.broadcast %175 : vector<1x128xf32> to vector<20x128xf32>
    %182 = arith.mulf %181, %178 : vector<20x128xf32>
    %183 = vector.broadcast %176 : vector<1x128xf32> to vector<20x128xf32>
    %184 = arith.mulf %183, %180 : vector<20x128xf32>
    %185 = arith.subf %182, %184 : vector<20x128xf32>
    %186 = vector.broadcast %175 : vector<1x128xf32> to vector<20x128xf32>
    %187 = arith.mulf %186, %180 : vector<20x128xf32>
    %188 = vector.broadcast %176 : vector<1x128xf32> to vector<20x128xf32>
    %189 = arith.mulf %188, %178 : vector<20x128xf32>
    %190 = arith.addf %187, %189 : vector<20x128xf32>
    %191 = arith.addf %173, %185 : vector<20x128xf32>
    %192 = arith.addf %174, %190 : vector<20x128xf32>
    %c9 = arith.constant 9 : index
    %c0_128 = arith.constant 0 : index
    %193 = vector.load %arg19[%c9, %c0_128] : memref<20x128xf32, #tpu.memory_space<vmem>>, vector<1x128xf32>
    %c9_129 = arith.constant 9 : index
    %c0_130 = arith.constant 0 : index
    %194 = vector.load %arg20[%c9_129, %c0_130] : memref<20x128xf32, #tpu.memory_space<vmem>>, vector<1x128xf32>
    %c0_131 = arith.constant 0 : index
    %c9_132 = arith.constant 9 : index
    %c0_133 = arith.constant 0 : index
    %c0_134 = arith.constant 0 : index
    %195 = vector.load %arg10[%c0_131, %c9_132, %c0_133, %c0_134] : memref<3x20x20x128xf32, #tpu.memory_space<vmem>>, vector<1x1x20x128xf32>
    %196 = vector.shape_cast %195 : vector<1x1x20x128xf32> to vector<20x128xf32>
    %c0_135 = arith.constant 0 : index
    %c9_136 = arith.constant 9 : index
    %c0_137 = arith.constant 0 : index
    %c0_138 = arith.constant 0 : index
    %197 = vector.load %arg11[%c0_135, %c9_136, %c0_137, %c0_138] : memref<3x20x20x128xf32, #tpu.memory_space<vmem>>, vector<1x1x20x128xf32>
    %198 = vector.shape_cast %197 : vector<1x1x20x128xf32> to vector<20x128xf32>
    %199 = vector.broadcast %193 : vector<1x128xf32> to vector<20x128xf32>
    %200 = arith.mulf %199, %196 : vector<20x128xf32>
    %201 = vector.broadcast %194 : vector<1x128xf32> to vector<20x128xf32>
    %202 = arith.mulf %201, %198 : vector<20x128xf32>
    %203 = arith.subf %200, %202 : vector<20x128xf32>
    %204 = vector.broadcast %193 : vector<1x128xf32> to vector<20x128xf32>
    %205 = arith.mulf %204, %198 : vector<20x128xf32>
    %206 = vector.broadcast %194 : vector<1x128xf32> to vector<20x128xf32>
    %207 = arith.mulf %206, %196 : vector<20x128xf32>
    %208 = arith.addf %205, %207 : vector<20x128xf32>
    %209 = arith.addf %191, %203 : vector<20x128xf32>
    %210 = arith.addf %192, %208 : vector<20x128xf32>
    %c10 = arith.constant 10 : index
    %c0_139 = arith.constant 0 : index
    %211 = vector.load %arg19[%c10, %c0_139] : memref<20x128xf32, #tpu.memory_space<vmem>>, vector<1x128xf32>
    %c10_140 = arith.constant 10 : index
    %c0_141 = arith.constant 0 : index
    %212 = vector.load %arg20[%c10_140, %c0_141] : memref<20x128xf32, #tpu.memory_space<vmem>>, vector<1x128xf32>
    %c0_142 = arith.constant 0 : index
    %c10_143 = arith.constant 10 : index
    %c0_144 = arith.constant 0 : index
    %c0_145 = arith.constant 0 : index
    %213 = vector.load %arg10[%c0_142, %c10_143, %c0_144, %c0_145] : memref<3x20x20x128xf32, #tpu.memory_space<vmem>>, vector<1x1x20x128xf32>
    %214 = vector.shape_cast %213 : vector<1x1x20x128xf32> to vector<20x128xf32>
    %c0_146 = arith.constant 0 : index
    %c10_147 = arith.constant 10 : index
    %c0_148 = arith.constant 0 : index
    %c0_149 = arith.constant 0 : index
    %215 = vector.load %arg11[%c0_146, %c10_147, %c0_148, %c0_149] : memref<3x20x20x128xf32, #tpu.memory_space<vmem>>, vector<1x1x20x128xf32>
    %216 = vector.shape_cast %215 : vector<1x1x20x128xf32> to vector<20x128xf32>
    %217 = vector.broadcast %211 : vector<1x128xf32> to vector<20x128xf32>
    %218 = arith.mulf %217, %214 : vector<20x128xf32>
    %219 = vector.broadcast %212 : vector<1x128xf32> to vector<20x128xf32>
    %220 = arith.mulf %219, %216 : vector<20x128xf32>
    %221 = arith.subf %218, %220 : vector<20x128xf32>
    %222 = vector.broadcast %211 : vector<1x128xf32> to vector<20x128xf32>
    %223 = arith.mulf %222, %216 : vector<20x128xf32>
    %224 = vector.broadcast %212 : vector<1x128xf32> to vector<20x128xf32>
    %225 = arith.mulf %224, %214 : vector<20x128xf32>
    %226 = arith.addf %223, %225 : vector<20x128xf32>
    %227 = arith.addf %209, %221 : vector<20x128xf32>
    %228 = arith.addf %210, %226 : vector<20x128xf32>
    %c11 = arith.constant 11 : index
    %c0_150 = arith.constant 0 : index
    %229 = vector.load %arg19[%c11, %c0_150] : memref<20x128xf32, #tpu.memory_space<vmem>>, vector<1x128xf32>
    %c11_151 = arith.constant 11 : index
    %c0_152 = arith.constant 0 : index
    %230 = vector.load %arg20[%c11_151, %c0_152] : memref<20x128xf32, #tpu.memory_space<vmem>>, vector<1x128xf32>
    %c0_153 = arith.constant 0 : index
    %c11_154 = arith.constant 11 : index
    %c0_155 = arith.constant 0 : index
    %c0_156 = arith.constant 0 : index
    %231 = vector.load %arg10[%c0_153, %c11_154, %c0_155, %c0_156] : memref<3x20x20x128xf32, #tpu.memory_space<vmem>>, vector<1x1x20x128xf32>
    %232 = vector.shape_cast %231 : vector<1x1x20x128xf32> to vector<20x128xf32>
    %c0_157 = arith.constant 0 : index
    %c11_158 = arith.constant 11 : index
    %c0_159 = arith.constant 0 : index
    %c0_160 = arith.constant 0 : index
    %233 = vector.load %arg11[%c0_157, %c11_158, %c0_159, %c0_160] : memref<3x20x20x128xf32, #tpu.memory_space<vmem>>, vector<1x1x20x128xf32>
    %234 = vector.shape_cast %233 : vector<1x1x20x128xf32> to vector<20x128xf32>
    %235 = vector.broadcast %229 : vector<1x128xf32> to vector<20x128xf32>
    %236 = arith.mulf %235, %232 : vector<20x128xf32>
    %237 = vector.broadcast %230 : vector<1x128xf32> to vector<20x128xf32>
    %238 = arith.mulf %237, %234 : vector<20x128xf32>
    %239 = arith.subf %236, %238 : vector<20x128xf32>
    %240 = vector.broadcast %229 : vector<1x128xf32> to vector<20x128xf32>
    %241 = arith.mulf %240, %234 : vector<20x128xf32>
    %242 = vector.broadcast %230 : vector<1x128xf32> to vector<20x128xf32>
    %243 = arith.mulf %242, %232 : vector<20x128xf32>
    %244 = arith.addf %241, %243 : vector<20x128xf32>
    %245 = arith.addf %227, %239 : vector<20x128xf32>
    %246 = arith.addf %228, %244 : vector<20x128xf32>
    %c12 = arith.constant 12 : index
    %c0_161 = arith.constant 0 : index
    %247 = vector.load %arg19[%c12, %c0_161] : memref<20x128xf32, #tpu.memory_space<vmem>>, vector<1x128xf32>
    %c12_162 = arith.constant 12 : index
    %c0_163 = arith.constant 0 : index
    %248 = vector.load %arg20[%c12_162, %c0_163] : memref<20x128xf32, #tpu.memory_space<vmem>>, vector<1x128xf32>
    %c0_164 = arith.constant 0 : index
    %c12_165 = arith.constant 12 : index
    %c0_166 = arith.constant 0 : index
    %c0_167 = arith.constant 0 : index
    %249 = vector.load %arg10[%c0_164, %c12_165, %c0_166, %c0_167] : memref<3x20x20x128xf32, #tpu.memory_space<vmem>>, vector<1x1x20x128xf32>
    %250 = vector.shape_cast %249 : vector<1x1x20x128xf32> to vector<20x128xf32>
    %c0_168 = arith.constant 0 : index
    %c12_169 = arith.constant 12 : index
    %c0_170 = arith.constant 0 : index
    %c0_171 = arith.constant 0 : index
    %251 = vector.load %arg11[%c0_168, %c12_169, %c0_170, %c0_171] : memref<3x20x20x128xf32, #tpu.memory_space<vmem>>, vector<1x1x20x128xf32>
    %252 = vector.shape_cast %251 : vector<1x1x20x128xf32> to vector<20x128xf32>
    %253 = vector.broadcast %247 : vector<1x128xf32> to vector<20x128xf32>
    %254 = arith.mulf %253, %250 : vector<20x128xf32>
    %255 = vector.broadcast %248 : vector<1x128xf32> to vector<20x128xf32>
    %256 = arith.mulf %255, %252 : vector<20x128xf32>
    %257 = arith.subf %254, %256 : vector<20x128xf32>
    %258 = vector.broadcast %247 : vector<1x128xf32> to vector<20x128xf32>
    %259 = arith.mulf %258, %252 : vector<20x128xf32>
    %260 = vector.broadcast %248 : vector<1x128xf32> to vector<20x128xf32>
    %261 = arith.mulf %260, %250 : vector<20x128xf32>
    %262 = arith.addf %259, %261 : vector<20x128xf32>
    %263 = arith.addf %245, %257 : vector<20x128xf32>
    %264 = arith.addf %246, %262 : vector<20x128xf32>
    %c13 = arith.constant 13 : index
    %c0_172 = arith.constant 0 : index
    %265 = vector.load %arg19[%c13, %c0_172] : memref<20x128xf32, #tpu.memory_space<vmem>>, vector<1x128xf32>
    %c13_173 = arith.constant 13 : index
    %c0_174 = arith.constant 0 : index
    %266 = vector.load %arg20[%c13_173, %c0_174] : memref<20x128xf32, #tpu.memory_space<vmem>>, vector<1x128xf32>
    %c0_175 = arith.constant 0 : index
    %c13_176 = arith.constant 13 : index
    %c0_177 = arith.constant 0 : index
    %c0_178 = arith.constant 0 : index
    %267 = vector.load %arg10[%c0_175, %c13_176, %c0_177, %c0_178] : memref<3x20x20x128xf32, #tpu.memory_space<vmem>>, vector<1x1x20x128xf32>
    %268 = vector.shape_cast %267 : vector<1x1x20x128xf32> to vector<20x128xf32>
    %c0_179 = arith.constant 0 : index
    %c13_180 = arith.constant 13 : index
    %c0_181 = arith.constant 0 : index
    %c0_182 = arith.constant 0 : index
    %269 = vector.load %arg11[%c0_179, %c13_180, %c0_181, %c0_182] : memref<3x20x20x128xf32, #tpu.memory_space<vmem>>, vector<1x1x20x128xf32>
    %270 = vector.shape_cast %269 : vector<1x1x20x128xf32> to vector<20x128xf32>
    %271 = vector.broadcast %265 : vector<1x128xf32> to vector<20x128xf32>
    %272 = arith.mulf %271, %268 : vector<20x128xf32>
    %273 = vector.broadcast %266 : vector<1x128xf32> to vector<20x128xf32>
    %274 = arith.mulf %273, %270 : vector<20x128xf32>
    %275 = arith.subf %272, %274 : vector<20x128xf32>
    %276 = vector.broadcast %265 : vector<1x128xf32> to vector<20x128xf32>
    %277 = arith.mulf %276, %270 : vector<20x128xf32>
    %278 = vector.broadcast %266 : vector<1x128xf32> to vector<20x128xf32>
    %279 = arith.mulf %278, %268 : vector<20x128xf32>
    %280 = arith.addf %277, %279 : vector<20x128xf32>
    %281 = arith.addf %263, %275 : vector<20x128xf32>
    %282 = arith.addf %264, %280 : vector<20x128xf32>
    %c14 = arith.constant 14 : index
    %c0_183 = arith.constant 0 : index
    %283 = vector.load %arg19[%c14, %c0_183] : memref<20x128xf32, #tpu.memory_space<vmem>>, vector<1x128xf32>
    %c14_184 = arith.constant 14 : index
    %c0_185 = arith.constant 0 : index
    %284 = vector.load %arg20[%c14_184, %c0_185] : memref<20x128xf32, #tpu.memory_space<vmem>>, vector<1x128xf32>
    %c0_186 = arith.constant 0 : index
    %c14_187 = arith.constant 14 : index
    %c0_188 = arith.constant 0 : index
    %c0_189 = arith.constant 0 : index
    %285 = vector.load %arg10[%c0_186, %c14_187, %c0_188, %c0_189] : memref<3x20x20x128xf32, #tpu.memory_space<vmem>>, vector<1x1x20x128xf32>
    %286 = vector.shape_cast %285 : vector<1x1x20x128xf32> to vector<20x128xf32>
    %c0_190 = arith.constant 0 : index
    %c14_191 = arith.constant 14 : index
    %c0_192 = arith.constant 0 : index
    %c0_193 = arith.constant 0 : index
    %287 = vector.load %arg11[%c0_190, %c14_191, %c0_192, %c0_193] : memref<3x20x20x128xf32, #tpu.memory_space<vmem>>, vector<1x1x20x128xf32>
    %288 = vector.shape_cast %287 : vector<1x1x20x128xf32> to vector<20x128xf32>
    %289 = vector.broadcast %283 : vector<1x128xf32> to vector<20x128xf32>
    %290 = arith.mulf %289, %286 : vector<20x128xf32>
    %291 = vector.broadcast %284 : vector<1x128xf32> to vector<20x128xf32>
    %292 = arith.mulf %291, %288 : vector<20x128xf32>
    %293 = arith.subf %290, %292 : vector<20x128xf32>
    %294 = vector.broadcast %283 : vector<1x128xf32> to vector<20x128xf32>
    %295 = arith.mulf %294, %288 : vector<20x128xf32>
    %296 = vector.broadcast %284 : vector<1x128xf32> to vector<20x128xf32>
    %297 = arith.mulf %296, %286 : vector<20x128xf32>
    %298 = arith.addf %295, %297 : vector<20x128xf32>
    %299 = arith.addf %281, %293 : vector<20x128xf32>
    %300 = arith.addf %282, %298 : vector<20x128xf32>
    %c15 = arith.constant 15 : index
    %c0_194 = arith.constant 0 : index
    %301 = vector.load %arg19[%c15, %c0_194] : memref<20x128xf32, #tpu.memory_space<vmem>>, vector<1x128xf32>
    %c15_195 = arith.constant 15 : index
    %c0_196 = arith.constant 0 : index
    %302 = vector.load %arg20[%c15_195, %c0_196] : memref<20x128xf32, #tpu.memory_space<vmem>>, vector<1x128xf32>
    %c0_197 = arith.constant 0 : index
    %c15_198 = arith.constant 15 : index
    %c0_199 = arith.constant 0 : index
    %c0_200 = arith.constant 0 : index
    %303 = vector.load %arg10[%c0_197, %c15_198, %c0_199, %c0_200] : memref<3x20x20x128xf32, #tpu.memory_space<vmem>>, vector<1x1x20x128xf32>
    %304 = vector.shape_cast %303 : vector<1x1x20x128xf32> to vector<20x128xf32>
    %c0_201 = arith.constant 0 : index
    %c15_202 = arith.constant 15 : index
    %c0_203 = arith.constant 0 : index
    %c0_204 = arith.constant 0 : index
    %305 = vector.load %arg11[%c0_201, %c15_202, %c0_203, %c0_204] : memref<3x20x20x128xf32, #tpu.memory_space<vmem>>, vector<1x1x20x128xf32>
    %306 = vector.shape_cast %305 : vector<1x1x20x128xf32> to vector<20x128xf32>
    %307 = vector.broadcast %301 : vector<1x128xf32> to vector<20x128xf32>
    %308 = arith.mulf %307, %304 : vector<20x128xf32>
    %309 = vector.broadcast %302 : vector<1x128xf32> to vector<20x128xf32>
    %310 = arith.mulf %309, %306 : vector<20x128xf32>
    %311 = arith.subf %308, %310 : vector<20x128xf32>
    %312 = vector.broadcast %301 : vector<1x128xf32> to vector<20x128xf32>
    %313 = arith.mulf %312, %306 : vector<20x128xf32>
    %314 = vector.broadcast %302 : vector<1x128xf32> to vector<20x128xf32>
    %315 = arith.mulf %314, %304 : vector<20x128xf32>
    %316 = arith.addf %313, %315 : vector<20x128xf32>
    %317 = arith.addf %299, %311 : vector<20x128xf32>
    %318 = arith.addf %300, %316 : vector<20x128xf32>
    %c16 = arith.constant 16 : index
    %c0_205 = arith.constant 0 : index
    %319 = vector.load %arg19[%c16, %c0_205] : memref<20x128xf32, #tpu.memory_space<vmem>>, vector<1x128xf32>
    %c16_206 = arith.constant 16 : index
    %c0_207 = arith.constant 0 : index
    %320 = vector.load %arg20[%c16_206, %c0_207] : memref<20x128xf32, #tpu.memory_space<vmem>>, vector<1x128xf32>
    %c0_208 = arith.constant 0 : index
    %c16_209 = arith.constant 16 : index
    %c0_210 = arith.constant 0 : index
    %c0_211 = arith.constant 0 : index
    %321 = vector.load %arg10[%c0_208, %c16_209, %c0_210, %c0_211] : memref<3x20x20x128xf32, #tpu.memory_space<vmem>>, vector<1x1x20x128xf32>
    %322 = vector.shape_cast %321 : vector<1x1x20x128xf32> to vector<20x128xf32>
    %c0_212 = arith.constant 0 : index
    %c16_213 = arith.constant 16 : index
    %c0_214 = arith.constant 0 : index
    %c0_215 = arith.constant 0 : index
    %323 = vector.load %arg11[%c0_212, %c16_213, %c0_214, %c0_215] : memref<3x20x20x128xf32, #tpu.memory_space<vmem>>, vector<1x1x20x128xf32>
    %324 = vector.shape_cast %323 : vector<1x1x20x128xf32> to vector<20x128xf32>
    %325 = vector.broadcast %319 : vector<1x128xf32> to vector<20x128xf32>
    %326 = arith.mulf %325, %322 : vector<20x128xf32>
    %327 = vector.broadcast %320 : vector<1x128xf32> to vector<20x128xf32>
    %328 = arith.mulf %327, %324 : vector<20x128xf32>
    %329 = arith.subf %326, %328 : vector<20x128xf32>
    %330 = vector.broadcast %319 : vector<1x128xf32> to vector<20x128xf32>
    %331 = arith.mulf %330, %324 : vector<20x128xf32>
    %332 = vector.broadcast %320 : vector<1x128xf32> to vector<20x128xf32>
    %333 = arith.mulf %332, %322 : vector<20x128xf32>
    %334 = arith.addf %331, %333 : vector<20x128xf32>
    %335 = arith.addf %317, %329 : vector<20x128xf32>
    %336 = arith.addf %318, %334 : vector<20x128xf32>
    %c17 = arith.constant 17 : index
    %c0_216 = arith.constant 0 : index
    %337 = vector.load %arg19[%c17, %c0_216] : memref<20x128xf32, #tpu.memory_space<vmem>>, vector<1x128xf32>
    %c17_217 = arith.constant 17 : index
    %c0_218 = arith.constant 0 : index
    %338 = vector.load %arg20[%c17_217, %c0_218] : memref<20x128xf32, #tpu.memory_space<vmem>>, vector<1x128xf32>
    %c0_219 = arith.constant 0 : index
    %c17_220 = arith.constant 17 : index
    %c0_221 = arith.constant 0 : index
    %c0_222 = arith.constant 0 : index
    %339 = vector.load %arg10[%c0_219, %c17_220, %c0_221, %c0_222] : memref<3x20x20x128xf32, #tpu.memory_space<vmem>>, vector<1x1x20x128xf32>
    %340 = vector.shape_cast %339 : vector<1x1x20x128xf32> to vector<20x128xf32>
    %c0_223 = arith.constant 0 : index
    %c17_224 = arith.constant 17 : index
    %c0_225 = arith.constant 0 : index
    %c0_226 = arith.constant 0 : index
    %341 = vector.load %arg11[%c0_223, %c17_224, %c0_225, %c0_226] : memref<3x20x20x128xf32, #tpu.memory_space<vmem>>, vector<1x1x20x128xf32>
    %342 = vector.shape_cast %341 : vector<1x1x20x128xf32> to vector<20x128xf32>
    %343 = vector.broadcast %337 : vector<1x128xf32> to vector<20x128xf32>
    %344 = arith.mulf %343, %340 : vector<20x128xf32>
    %345 = vector.broadcast %338 : vector<1x128xf32> to vector<20x128xf32>
    %346 = arith.mulf %345, %342 : vector<20x128xf32>
    %347 = arith.subf %344, %346 : vector<20x128xf32>
    %348 = vector.broadcast %337 : vector<1x128xf32> to vector<20x128xf32>
    %349 = arith.mulf %348, %342 : vector<20x128xf32>
    %350 = vector.broadcast %338 : vector<1x128xf32> to vector<20x128xf32>
    %351 = arith.mulf %350, %340 : vector<20x128xf32>
    %352 = arith.addf %349, %351 : vector<20x128xf32>
    %353 = arith.addf %335, %347 : vector<20x128xf32>
    %354 = arith.addf %336, %352 : vector<20x128xf32>
    %c18 = arith.constant 18 : index
    %c0_227 = arith.constant 0 : index
    %355 = vector.load %arg19[%c18, %c0_227] : memref<20x128xf32, #tpu.memory_space<vmem>>, vector<1x128xf32>
    %c18_228 = arith.constant 18 : index
    %c0_229 = arith.constant 0 : index
    %356 = vector.load %arg20[%c18_228, %c0_229] : memref<20x128xf32, #tpu.memory_space<vmem>>, vector<1x128xf32>
    %c0_230 = arith.constant 0 : index
    %c18_231 = arith.constant 18 : index
    %c0_232 = arith.constant 0 : index
    %c0_233 = arith.constant 0 : index
    %357 = vector.load %arg10[%c0_230, %c18_231, %c0_232, %c0_233] : memref<3x20x20x128xf32, #tpu.memory_space<vmem>>, vector<1x1x20x128xf32>
    %358 = vector.shape_cast %357 : vector<1x1x20x128xf32> to vector<20x128xf32>
    %c0_234 = arith.constant 0 : index
    %c18_235 = arith.constant 18 : index
    %c0_236 = arith.constant 0 : index
    %c0_237 = arith.constant 0 : index
    %359 = vector.load %arg11[%c0_234, %c18_235, %c0_236, %c0_237] : memref<3x20x20x128xf32, #tpu.memory_space<vmem>>, vector<1x1x20x128xf32>
    %360 = vector.shape_cast %359 : vector<1x1x20x128xf32> to vector<20x128xf32>
    %361 = vector.broadcast %355 : vector<1x128xf32> to vector<20x128xf32>
    %362 = arith.mulf %361, %358 : vector<20x128xf32>
    %363 = vector.broadcast %356 : vector<1x128xf32> to vector<20x128xf32>
    %364 = arith.mulf %363, %360 : vector<20x128xf32>
    %365 = arith.subf %362, %364 : vector<20x128xf32>
    %366 = vector.broadcast %355 : vector<1x128xf32> to vector<20x128xf32>
    %367 = arith.mulf %366, %360 : vector<20x128xf32>
    %368 = vector.broadcast %356 : vector<1x128xf32> to vector<20x128xf32>
    %369 = arith.mulf %368, %358 : vector<20x128xf32>
    %370 = arith.addf %367, %369 : vector<20x128xf32>
    %371 = arith.addf %353, %365 : vector<20x128xf32>
    %372 = arith.addf %354, %370 : vector<20x128xf32>
    %c19 = arith.constant 19 : index
    %c0_238 = arith.constant 0 : index
    %373 = vector.load %arg19[%c19, %c0_238] : memref<20x128xf32, #tpu.memory_space<vmem>>, vector<1x128xf32>
    %c19_239 = arith.constant 19 : index
    %c0_240 = arith.constant 0 : index
    %374 = vector.load %arg20[%c19_239, %c0_240] : memref<20x128xf32, #tpu.memory_space<vmem>>, vector<1x128xf32>
    %c0_241 = arith.constant 0 : index
    %c19_242 = arith.constant 19 : index
    %c0_243 = arith.constant 0 : index
    %c0_244 = arith.constant 0 : index
    %375 = vector.load %arg10[%c0_241, %c19_242, %c0_243, %c0_244] : memref<3x20x20x128xf32, #tpu.memory_space<vmem>>, vector<1x1x20x128xf32>
    %376 = vector.shape_cast %375 : vector<1x1x20x128xf32> to vector<20x128xf32>
    %c0_245 = arith.constant 0 : index
    %c19_246 = arith.constant 19 : index
    %c0_247 = arith.constant 0 : index
    %c0_248 = arith.constant 0 : index
    %377 = vector.load %arg11[%c0_245, %c19_246, %c0_247, %c0_248] : memref<3x20x20x128xf32, #tpu.memory_space<vmem>>, vector<1x1x20x128xf32>
    %378 = vector.shape_cast %377 : vector<1x1x20x128xf32> to vector<20x128xf32>
    %379 = vector.broadcast %373 : vector<1x128xf32> to vector<20x128xf32>
    %380 = arith.mulf %379, %376 : vector<20x128xf32>
    %381 = vector.broadcast %374 : vector<1x128xf32> to vector<20x128xf32>
    %382 = arith.mulf %381, %378 : vector<20x128xf32>
    %383 = arith.subf %380, %382 : vector<20x128xf32>
    %384 = vector.broadcast %373 : vector<1x128xf32> to vector<20x128xf32>
    %385 = arith.mulf %384, %378 : vector<20x128xf32>
    %386 = vector.broadcast %374 : vector<1x128xf32> to vector<20x128xf32>
    %387 = arith.mulf %386, %376 : vector<20x128xf32>
    %388 = arith.addf %385, %387 : vector<20x128xf32>
    %389 = arith.addf %371, %383 : vector<20x128xf32>
    %390 = arith.addf %372, %388 : vector<20x128xf32>
    %391 = arith.truncf %389 : vector<20x128xf32> to vector<20x128xbf16>
    %cst_249 = arith.constant dense<0.000000e+00> : vector<20x256xf32>
    %392 = tpu.matmul %391, %26, %cst_249 {dimension_numbers = #tpu.dot_dimension_numbers<[1], [0], [0], [1], [0, 0, 1, 1], [], []>} : vector<20x128xbf16>, vector<128x256xbf16>, vector<20x256xf32> -> vector<20x256xf32>
    %393 = arith.truncf %390 : vector<20x128xf32> to vector<20x128xbf16>
    %cst_250 = arith.constant dense<0.000000e+00> : vector<20x256xf32>
    %394 = tpu.matmul %393, %27, %cst_250 {dimension_numbers = #tpu.dot_dimension_numbers<[1], [0], [0], [1], [0, 0, 1, 1], [], []>} : vector<20x128xbf16>, vector<128x256xbf16>, vector<20x256xf32> -> vector<20x256xf32>
    %395 = arith.addf %392, %394 : vector<20x256xf32>
    %c0_251 = arith.constant 0 : index
    %c0_252 = arith.constant 0 : index
    %c0_253 = arith.constant 0 : index
    %396 = vector.load %arg12[%c0_251, %c0_252, %c0_253] : memref<3x20x20xf32, #tpu.memory_space<vmem>>, vector<1x20x20xf32>
    %397 = vector.shape_cast %396 : vector<1x20x20xf32> to vector<20x20xf32>
    %cst_254 = arith.constant dense<0.000000e+00> : vector<20x256xf32>
    %398 = tpu.matmul %397, %23, %cst_254 {dimension_numbers = #tpu.dot_dimension_numbers<[1], [0], [0], [1], [0, 0, 1, 1], [], []>} : vector<20x20xf32>, vector<20x256xf32>, vector<20x256xf32> -> vector<20x256xf32>
    %c0_255 = arith.constant 0 : index
    %c0_256 = arith.constant 0 : index
    %c0_257 = arith.constant 0 : index
    %399 = vector.load %arg13[%c0_255, %c0_256, %c0_257] : memref<3x20x1xf32, #tpu.memory_space<vmem>>, vector<1x20x1xf32>
    %400 = vector.shape_cast %399 : vector<1x20x1xf32> to vector<20x1xf32>
    %401 = vector.broadcast %400 : vector<20x1xf32> to vector<20x256xf32>
    %402 = arith.addf %398, %401 : vector<20x256xf32>
    %403 = arith.addf %395, %402 : vector<20x256xf32>
    %404 = arith.mulf %403, %403 : vector<20x256xf32>
    %405 = arith.mulf %403, %404 : vector<20x256xf32>
    %cst_258 = arith.constant 4.471500e-02 : f32
    %406 = vector.broadcast %cst_258 : f32 to vector<20x256xf32>
    %407 = arith.mulf %406, %405 : vector<20x256xf32>
    %408 = arith.addf %403, %407 : vector<20x256xf32>
    %cst_259 = arith.constant 0.797884583 : f32
    %409 = vector.broadcast %cst_259 : f32 to vector<20x256xf32>
    %410 = arith.mulf %409, %408 : vector<20x256xf32>
    %411 = math.tanh %410 : vector<20x256xf32>
    %cst_260 = arith.constant 1.000000e+00 : f32
    %412 = vector.broadcast %cst_260 : f32 to vector<20x256xf32>
    %413 = arith.addf %412, %411 : vector<20x256xf32>
    %cst_261 = arith.constant 5.000000e-01 : f32
    %414 = vector.broadcast %cst_261 : f32 to vector<20x256xf32>
    %415 = arith.mulf %414, %413 : vector<20x256xf32>
    %416 = arith.mulf %403, %415 : vector<20x256xf32>
    %417 = arith.truncf %416 : vector<20x256xf32> to vector<20x256xbf16>
    %cst_262 = arith.constant dense<0.000000e+00> : vector<20x128xf32>
    %418 = tpu.matmul %417, %24, %cst_262 {dimension_numbers = #tpu.dot_dimension_numbers<[1], [0], [0], [1], [0, 0, 1, 1], [], []>} : vector<20x256xbf16>, vector<256x128xbf16>, vector<20x128xf32> -> vector<20x128xf32>
    %c0_263 = arith.constant 0 : index
    %c0_264 = arith.constant 0 : index
    %419 = vector.load %arg19[%c0_263, %c0_264] : memref<20x128xf32, #tpu.memory_space<vmem>>, vector<20x128xf32>
    tpu.vector_store %arg19[%c0_263, %c0_264], %418 {strides = array<i32>} : memref<20x128xf32, #tpu.memory_space<vmem>>, vector<20x128xf32>,
    %cst_265 = arith.constant dense<0.000000e+00> : vector<20x128xf32>
    %420 = tpu.matmul %417, %25, %cst_265 {dimension_numbers = #tpu.dot_dimension_numbers<[1], [0], [0], [1], [0, 0, 1, 1], [], []>} : vector<20x256xbf16>, vector<256x128xbf16>, vector<20x128xf32> -> vector<20x128xf32>
    %c0_266 = arith.constant 0 : index
    %c0_267 = arith.constant 0 : index
    %421 = vector.load %arg20[%c0_266, %c0_267] : memref<20x128xf32, #tpu.memory_space<vmem>>, vector<20x128xf32>
    tpu.vector_store %arg20[%c0_266, %c0_267], %420 {strides = array<i32>} : memref<20x128xf32, #tpu.memory_space<vmem>>, vector<20x128xf32>,
    %c0_268 = arith.constant 0 : index
    %c0_269 = arith.constant 0 : index
    %422 = vector.load %arg19[%c0_268, %c0_269] : memref<20x128xf32, #tpu.memory_space<vmem>>, vector<1x128xf32>
    %c0_270 = arith.constant 0 : index
    %c0_271 = arith.constant 0 : index
    %423 = vector.load %arg20[%c0_270, %c0_271] : memref<20x128xf32, #tpu.memory_space<vmem>>, vector<1x128xf32>
    %c1_272 = arith.constant 1 : index
    %c0_273 = arith.constant 0 : index
    %c0_274 = arith.constant 0 : index
    %c0_275 = arith.constant 0 : index
    %424 = vector.load %arg10[%c1_272, %c0_273, %c0_274, %c0_275] : memref<3x20x20x128xf32, #tpu.memory_space<vmem>>, vector<1x1x20x128xf32>
    %425 = vector.shape_cast %424 : vector<1x1x20x128xf32> to vector<20x128xf32>
    %c1_276 = arith.constant 1 : index
    %c0_277 = arith.constant 0 : index
    %c0_278 = arith.constant 0 : index
    %c0_279 = arith.constant 0 : index
    %426 = vector.load %arg11[%c1_276, %c0_277, %c0_278, %c0_279] : memref<3x20x20x128xf32, #tpu.memory_space<vmem>>, vector<1x1x20x128xf32>
    %427 = vector.shape_cast %426 : vector<1x1x20x128xf32> to vector<20x128xf32>
    %428 = vector.broadcast %422 : vector<1x128xf32> to vector<20x128xf32>
    %429 = arith.mulf %428, %425 : vector<20x128xf32>
    %430 = vector.broadcast %423 : vector<1x128xf32> to vector<20x128xf32>
    %431 = arith.mulf %430, %427 : vector<20x128xf32>
    %432 = arith.subf %429, %431 : vector<20x128xf32>
    %433 = vector.broadcast %422 : vector<1x128xf32> to vector<20x128xf32>
    %434 = arith.mulf %433, %427 : vector<20x128xf32>
    %435 = vector.broadcast %423 : vector<1x128xf32> to vector<20x128xf32>
    %436 = arith.mulf %435, %425 : vector<20x128xf32>
    %437 = arith.addf %434, %436 : vector<20x128xf32>
    %c1_280 = arith.constant 1 : index
    %c0_281 = arith.constant 0 : index
    %438 = vector.load %arg19[%c1_280, %c0_281] : memref<20x128xf32, #tpu.memory_space<vmem>>, vector<1x128xf32>
    %c1_282 = arith.constant 1 : index
    %c0_283 = arith.constant 0 : index
    %439 = vector.load %arg20[%c1_282, %c0_283] : memref<20x128xf32, #tpu.memory_space<vmem>>, vector<1x128xf32>
    %c1_284 = arith.constant 1 : index
    %c1_285 = arith.constant 1 : index
    %c0_286 = arith.constant 0 : index
    %c0_287 = arith.constant 0 : index
    %440 = vector.load %arg10[%c1_284, %c1_285, %c0_286, %c0_287] : memref<3x20x20x128xf32, #tpu.memory_space<vmem>>, vector<1x1x20x128xf32>
    %441 = vector.shape_cast %440 : vector<1x1x20x128xf32> to vector<20x128xf32>
    %c1_288 = arith.constant 1 : index
    %c1_289 = arith.constant 1 : index
    %c0_290 = arith.constant 0 : index
    %c0_291 = arith.constant 0 : index
    %442 = vector.load %arg11[%c1_288, %c1_289, %c0_290, %c0_291] : memref<3x20x20x128xf32, #tpu.memory_space<vmem>>, vector<1x1x20x128xf32>
    %443 = vector.shape_cast %442 : vector<1x1x20x128xf32> to vector<20x128xf32>
    %444 = vector.broadcast %438 : vector<1x128xf32> to vector<20x128xf32>
    %445 = arith.mulf %444, %441 : vector<20x128xf32>
    %446 = vector.broadcast %439 : vector<1x128xf32> to vector<20x128xf32>
    %447 = arith.mulf %446, %443 : vector<20x128xf32>
    %448 = arith.subf %445, %447 : vector<20x128xf32>
    %449 = vector.broadcast %438 : vector<1x128xf32> to vector<20x128xf32>
    %450 = arith.mulf %449, %443 : vector<20x128xf32>
    %451 = vector.broadcast %439 : vector<1x128xf32> to vector<20x128xf32>
    %452 = arith.mulf %451, %441 : vector<20x128xf32>
    %453 = arith.addf %450, %452 : vector<20x128xf32>
    %454 = arith.addf %432, %448 : vector<20x128xf32>
    %455 = arith.addf %437, %453 : vector<20x128xf32>
    %c2_292 = arith.constant 2 : index
    %c0_293 = arith.constant 0 : index
    %456 = vector.load %arg19[%c2_292, %c0_293] : memref<20x128xf32, #tpu.memory_space<vmem>>, vector<1x128xf32>
    %c2_294 = arith.constant 2 : index
    %c0_295 = arith.constant 0 : index
    %457 = vector.load %arg20[%c2_294, %c0_295] : memref<20x128xf32, #tpu.memory_space<vmem>>, vector<1x128xf32>
    %c1_296 = arith.constant 1 : index
    %c2_297 = arith.constant 2 : index
    %c0_298 = arith.constant 0 : index
    %c0_299 = arith.constant 0 : index
    %458 = vector.load %arg10[%c1_296, %c2_297, %c0_298, %c0_299] : memref<3x20x20x128xf32, #tpu.memory_space<vmem>>, vector<1x1x20x128xf32>
    %459 = vector.shape_cast %458 : vector<1x1x20x128xf32> to vector<20x128xf32>
    %c1_300 = arith.constant 1 : index
    %c2_301 = arith.constant 2 : index
    %c0_302 = arith.constant 0 : index
    %c0_303 = arith.constant 0 : index
    %460 = vector.load %arg11[%c1_300, %c2_301, %c0_302, %c0_303] : memref<3x20x20x128xf32, #tpu.memory_space<vmem>>, vector<1x1x20x128xf32>
    %461 = vector.shape_cast %460 : vector<1x1x20x128xf32> to vector<20x128xf32>
    %462 = vector.broadcast %456 : vector<1x128xf32> to vector<20x128xf32>
    %463 = arith.mulf %462, %459 : vector<20x128xf32>
    %464 = vector.broadcast %457 : vector<1x128xf32> to vector<20x128xf32>
    %465 = arith.mulf %464, %461 : vector<20x128xf32>
    %466 = arith.subf %463, %465 : vector<20x128xf32>
    %467 = vector.broadcast %456 : vector<1x128xf32> to vector<20x128xf32>
    %468 = arith.mulf %467, %461 : vector<20x128xf32>
    %469 = vector.broadcast %457 : vector<1x128xf32> to vector<20x128xf32>
    %470 = arith.mulf %469, %459 : vector<20x128xf32>
    %471 = arith.addf %468, %470 : vector<20x128xf32>
    %472 = arith.addf %454, %466 : vector<20x128xf32>
    %473 = arith.addf %455, %471 : vector<20x128xf32>
    %c3_304 = arith.constant 3 : index
    %c0_305 = arith.constant 0 : index
    %474 = vector.load %arg19[%c3_304, %c0_305] : memref<20x128xf32, #tpu.memory_space<vmem>>, vector<1x128xf32>
    %c3_306 = arith.constant 3 : index
    %c0_307 = arith.constant 0 : index
    %475 = vector.load %arg20[%c3_306, %c0_307] : memref<20x128xf32, #tpu.memory_space<vmem>>, vector<1x128xf32>
    %c1_308 = arith.constant 1 : index
    %c3_309 = arith.constant 3 : index
    %c0_310 = arith.constant 0 : index
    %c0_311 = arith.constant 0 : index
    %476 = vector.load %arg10[%c1_308, %c3_309, %c0_310, %c0_311] : memref<3x20x20x128xf32, #tpu.memory_space<vmem>>, vector<1x1x20x128xf32>
    %477 = vector.shape_cast %476 : vector<1x1x20x128xf32> to vector<20x128xf32>
    %c1_312 = arith.constant 1 : index
    %c3_313 = arith.constant 3 : index
    %c0_314 = arith.constant 0 : index
    %c0_315 = arith.constant 0 : index
    %478 = vector.load %arg11[%c1_312, %c3_313, %c0_314, %c0_315] : memref<3x20x20x128xf32, #tpu.memory_space<vmem>>, vector<1x1x20x128xf32>
    %479 = vector.shape_cast %478 : vector<1x1x20x128xf32> to vector<20x128xf32>
    %480 = vector.broadcast %474 : vector<1x128xf32> to vector<20x128xf32>
    %481 = arith.mulf %480, %477 : vector<20x128xf32>
    %482 = vector.broadcast %475 : vector<1x128xf32> to vector<20x128xf32>
    %483 = arith.mulf %482, %479 : vector<20x128xf32>
    %484 = arith.subf %481, %483 : vector<20x128xf32>
    %485 = vector.broadcast %474 : vector<1x128xf32> to vector<20x128xf32>
    %486 = arith.mulf %485, %479 : vector<20x128xf32>
    %487 = vector.broadcast %475 : vector<1x128xf32> to vector<20x128xf32>
    %488 = arith.mulf %487, %477 : vector<20x128xf32>
    %489 = arith.addf %486, %488 : vector<20x128xf32>
    %490 = arith.addf %472, %484 : vector<20x128xf32>
    %491 = arith.addf %473, %489 : vector<20x128xf32>
    %c4_316 = arith.constant 4 : index
    %c0_317 = arith.constant 0 : index
    %492 = vector.load %arg19[%c4_316, %c0_317] : memref<20x128xf32, #tpu.memory_space<vmem>>, vector<1x128xf32>
    %c4_318 = arith.constant 4 : index
    %c0_319 = arith.constant 0 : index
    %493 = vector.load %arg20[%c4_318, %c0_319] : memref<20x128xf32, #tpu.memory_space<vmem>>, vector<1x128xf32>
    %c1_320 = arith.constant 1 : index
    %c4_321 = arith.constant 4 : index
    %c0_322 = arith.constant 0 : index
    %c0_323 = arith.constant 0 : index
    %494 = vector.load %arg10[%c1_320, %c4_321, %c0_322, %c0_323] : memref<3x20x20x128xf32, #tpu.memory_space<vmem>>, vector<1x1x20x128xf32>
    %495 = vector.shape_cast %494 : vector<1x1x20x128xf32> to vector<20x128xf32>
    %c1_324 = arith.constant 1 : index
    %c4_325 = arith.constant 4 : index
    %c0_326 = arith.constant 0 : index
    %c0_327 = arith.constant 0 : index
    %496 = vector.load %arg11[%c1_324, %c4_325, %c0_326, %c0_327] : memref<3x20x20x128xf32, #tpu.memory_space<vmem>>, vector<1x1x20x128xf32>
    %497 = vector.shape_cast %496 : vector<1x1x20x128xf32> to vector<20x128xf32>
    %498 = vector.broadcast %492 : vector<1x128xf32> to vector<20x128xf32>
    %499 = arith.mulf %498, %495 : vector<20x128xf32>
    %500 = vector.broadcast %493 : vector<1x128xf32> to vector<20x128xf32>
    %501 = arith.mulf %500, %497 : vector<20x128xf32>
    %502 = arith.subf %499, %501 : vector<20x128xf32>
    %503 = vector.broadcast %492 : vector<1x128xf32> to vector<20x128xf32>
    %504 = arith.mulf %503, %497 : vector<20x128xf32>
    %505 = vector.broadcast %493 : vector<1x128xf32> to vector<20x128xf32>
    %506 = arith.mulf %505, %495 : vector<20x128xf32>
    %507 = arith.addf %504, %506 : vector<20x128xf32>
    %508 = arith.addf %490, %502 : vector<20x128xf32>
    %509 = arith.addf %491, %507 : vector<20x128xf32>
    %c5_328 = arith.constant 5 : index
    %c0_329 = arith.constant 0 : index
    %510 = vector.load %arg19[%c5_328, %c0_329] : memref<20x128xf32, #tpu.memory_space<vmem>>, vector<1x128xf32>
    %c5_330 = arith.constant 5 : index
    %c0_331 = arith.constant 0 : index
    %511 = vector.load %arg20[%c5_330, %c0_331] : memref<20x128xf32, #tpu.memory_space<vmem>>, vector<1x128xf32>
    %c1_332 = arith.constant 1 : index
    %c5_333 = arith.constant 5 : index
    %c0_334 = arith.constant 0 : index
    %c0_335 = arith.constant 0 : index
    %512 = vector.load %arg10[%c1_332, %c5_333, %c0_334, %c0_335] : memref<3x20x20x128xf32, #tpu.memory_space<vmem>>, vector<1x1x20x128xf32>
    %513 = vector.shape_cast %512 : vector<1x1x20x128xf32> to vector<20x128xf32>
    %c1_336 = arith.constant 1 : index
    %c5_337 = arith.constant 5 : index
    %c0_338 = arith.constant 0 : index
    %c0_339 = arith.constant 0 : index
    %514 = vector.load %arg11[%c1_336, %c5_337, %c0_338, %c0_339] : memref<3x20x20x128xf32, #tpu.memory_space<vmem>>, vector<1x1x20x128xf32>
    %515 = vector.shape_cast %514 : vector<1x1x20x128xf32> to vector<20x128xf32>
    %516 = vector.broadcast %510 : vector<1x128xf32> to vector<20x128xf32>
    %517 = arith.mulf %516, %513 : vector<20x128xf32>
    %518 = vector.broadcast %511 : vector<1x128xf32> to vector<20x128xf32>
    %519 = arith.mulf %518, %515 : vector<20x128xf32>
    %520 = arith.subf %517, %519 : vector<20x128xf32>
    %521 = vector.broadcast %510 : vector<1x128xf32> to vector<20x128xf32>
    %522 = arith.mulf %521, %515 : vector<20x128xf32>
    %523 = vector.broadcast %511 : vector<1x128xf32> to vector<20x128xf32>
    %524 = arith.mulf %523, %513 : vector<20x128xf32>
    %525 = arith.addf %522, %524 : vector<20x128xf32>
    %526 = arith.addf %508, %520 : vector<20x128xf32>
    %527 = arith.addf %509, %525 : vector<20x128xf32>
    %c6_340 = arith.constant 6 : index
    %c0_341 = arith.constant 0 : index
    %528 = vector.load %arg19[%c6_340, %c0_341] : memref<20x128xf32, #tpu.memory_space<vmem>>, vector<1x128xf32>
    %c6_342 = arith.constant 6 : index
    %c0_343 = arith.constant 0 : index
    %529 = vector.load %arg20[%c6_342, %c0_343] : memref<20x128xf32, #tpu.memory_space<vmem>>, vector<1x128xf32>
    %c1_344 = arith.constant 1 : index
    %c6_345 = arith.constant 6 : index
    %c0_346 = arith.constant 0 : index
    %c0_347 = arith.constant 0 : index
    %530 = vector.load %arg10[%c1_344, %c6_345, %c0_346, %c0_347] : memref<3x20x20x128xf32, #tpu.memory_space<vmem>>, vector<1x1x20x128xf32>
    %531 = vector.shape_cast %530 : vector<1x1x20x128xf32> to vector<20x128xf32>
    %c1_348 = arith.constant 1 : index
    %c6_349 = arith.constant 6 : index
    %c0_350 = arith.constant 0 : index
    %c0_351 = arith.constant 0 : index
    %532 = vector.load %arg11[%c1_348, %c6_349, %c0_350, %c0_351] : memref<3x20x20x128xf32, #tpu.memory_space<vmem>>, vector<1x1x20x128xf32>
    %533 = vector.shape_cast %532 : vector<1x1x20x128xf32> to vector<20x128xf32>
    %534 = vector.broadcast %528 : vector<1x128xf32> to vector<20x128xf32>
    %535 = arith.mulf %534, %531 : vector<20x128xf32>
    %536 = vector.broadcast %529 : vector<1x128xf32> to vector<20x128xf32>
    %537 = arith.mulf %536, %533 : vector<20x128xf32>
    %538 = arith.subf %535, %537 : vector<20x128xf32>
    %539 = vector.broadcast %528 : vector<1x128xf32> to vector<20x128xf32>
    %540 = arith.mulf %539, %533 : vector<20x128xf32>
    %541 = vector.broadcast %529 : vector<1x128xf32> to vector<20x128xf32>
    %542 = arith.mulf %541, %531 : vector<20x128xf32>
    %543 = arith.addf %540, %542 : vector<20x128xf32>
    %544 = arith.addf %526, %538 : vector<20x128xf32>
    %545 = arith.addf %527, %543 : vector<20x128xf32>
    %c7_352 = arith.constant 7 : index
    %c0_353 = arith.constant 0 : index
    %546 = vector.load %arg19[%c7_352, %c0_353] : memref<20x128xf32, #tpu.memory_space<vmem>>, vector<1x128xf32>
    %c7_354 = arith.constant 7 : index
    %c0_355 = arith.constant 0 : index
    %547 = vector.load %arg20[%c7_354, %c0_355] : memref<20x128xf32, #tpu.memory_space<vmem>>, vector<1x128xf32>
    %c1_356 = arith.constant 1 : index
    %c7_357 = arith.constant 7 : index
    %c0_358 = arith.constant 0 : index
    %c0_359 = arith.constant 0 : index
    %548 = vector.load %arg10[%c1_356, %c7_357, %c0_358, %c0_359] : memref<3x20x20x128xf32, #tpu.memory_space<vmem>>, vector<1x1x20x128xf32>
    %549 = vector.shape_cast %548 : vector<1x1x20x128xf32> to vector<20x128xf32>
    %c1_360 = arith.constant 1 : index
    %c7_361 = arith.constant 7 : index
    %c0_362 = arith.constant 0 : index
    %c0_363 = arith.constant 0 : index
    %550 = vector.load %arg11[%c1_360, %c7_361, %c0_362, %c0_363] : memref<3x20x20x128xf32, #tpu.memory_space<vmem>>, vector<1x1x20x128xf32>
    %551 = vector.shape_cast %550 : vector<1x1x20x128xf32> to vector<20x128xf32>
    %552 = vector.broadcast %546 : vector<1x128xf32> to vector<20x128xf32>
    %553 = arith.mulf %552, %549 : vector<20x128xf32>
    %554 = vector.broadcast %547 : vector<1x128xf32> to vector<20x128xf32>
    %555 = arith.mulf %554, %551 : vector<20x128xf32>
    %556 = arith.subf %553, %555 : vector<20x128xf32>
    %557 = vector.broadcast %546 : vector<1x128xf32> to vector<20x128xf32>
    %558 = arith.mulf %557, %551 : vector<20x128xf32>
    %559 = vector.broadcast %547 : vector<1x128xf32> to vector<20x128xf32>
    %560 = arith.mulf %559, %549 : vector<20x128xf32>
    %561 = arith.addf %558, %560 : vector<20x128xf32>
    %562 = arith.addf %544, %556 : vector<20x128xf32>
    %563 = arith.addf %545, %561 : vector<20x128xf32>
    %c8_364 = arith.constant 8 : index
    %c0_365 = arith.constant 0 : index
    %564 = vector.load %arg19[%c8_364, %c0_365] : memref<20x128xf32, #tpu.memory_space<vmem>>, vector<1x128xf32>
    %c8_366 = arith.constant 8 : index
    %c0_367 = arith.constant 0 : index
    %565 = vector.load %arg20[%c8_366, %c0_367] : memref<20x128xf32, #tpu.memory_space<vmem>>, vector<1x128xf32>
    %c1_368 = arith.constant 1 : index
    %c8_369 = arith.constant 8 : index
    %c0_370 = arith.constant 0 : index
    %c0_371 = arith.constant 0 : index
    %566 = vector.load %arg10[%c1_368, %c8_369, %c0_370, %c0_371] : memref<3x20x20x128xf32, #tpu.memory_space<vmem>>, vector<1x1x20x128xf32>
    %567 = vector.shape_cast %566 : vector<1x1x20x128xf32> to vector<20x128xf32>
    %c1_372 = arith.constant 1 : index
    %c8_373 = arith.constant 8 : index
    %c0_374 = arith.constant 0 : index
    %c0_375 = arith.constant 0 : index
    %568 = vector.load %arg11[%c1_372, %c8_373, %c0_374, %c0_375] : memref<3x20x20x128xf32, #tpu.memory_space<vmem>>, vector<1x1x20x128xf32>
    %569 = vector.shape_cast %568 : vector<1x1x20x128xf32> to vector<20x128xf32>
    %570 = vector.broadcast %564 : vector<1x128xf32> to vector<20x128xf32>
    %571 = arith.mulf %570, %567 : vector<20x128xf32>
    %572 = vector.broadcast %565 : vector<1x128xf32> to vector<20x128xf32>
    %573 = arith.mulf %572, %569 : vector<20x128xf32>
    %574 = arith.subf %571, %573 : vector<20x128xf32>
    %575 = vector.broadcast %564 : vector<1x128xf32> to vector<20x128xf32>
    %576 = arith.mulf %575, %569 : vector<20x128xf32>
    %577 = vector.broadcast %565 : vector<1x128xf32> to vector<20x128xf32>
    %578 = arith.mulf %577, %567 : vector<20x128xf32>
    %579 = arith.addf %576, %578 : vector<20x128xf32>
    %580 = arith.addf %562, %574 : vector<20x128xf32>
    %581 = arith.addf %563, %579 : vector<20x128xf32>
    %c9_376 = arith.constant 9 : index
    %c0_377 = arith.constant 0 : index
    %582 = vector.load %arg19[%c9_376, %c0_377] : memref<20x128xf32, #tpu.memory_space<vmem>>, vector<1x128xf32>
    %c9_378 = arith.constant 9 : index
    %c0_379 = arith.constant 0 : index
    %583 = vector.load %arg20[%c9_378, %c0_379] : memref<20x128xf32, #tpu.memory_space<vmem>>, vector<1x128xf32>
    %c1_380 = arith.constant 1 : index
    %c9_381 = arith.constant 9 : index
    %c0_382 = arith.constant 0 : index
    %c0_383 = arith.constant 0 : index
    %584 = vector.load %arg10[%c1_380, %c9_381, %c0_382, %c0_383] : memref<3x20x20x128xf32, #tpu.memory_space<vmem>>, vector<1x1x20x128xf32>
    %585 = vector.shape_cast %584 : vector<1x1x20x128xf32> to vector<20x128xf32>
    %c1_384 = arith.constant 1 : index
    %c9_385 = arith.constant 9 : index
    %c0_386 = arith.constant 0 : index
    %c0_387 = arith.constant 0 : index
    %586 = vector.load %arg11[%c1_384, %c9_385, %c0_386, %c0_387] : memref<3x20x20x128xf32, #tpu.memory_space<vmem>>, vector<1x1x20x128xf32>
    %587 = vector.shape_cast %586 : vector<1x1x20x128xf32> to vector<20x128xf32>
    %588 = vector.broadcast %582 : vector<1x128xf32> to vector<20x128xf32>
    %589 = arith.mulf %588, %585 : vector<20x128xf32>
    %590 = vector.broadcast %583 : vector<1x128xf32> to vector<20x128xf32>
    %591 = arith.mulf %590, %587 : vector<20x128xf32>
    %592 = arith.subf %589, %591 : vector<20x128xf32>
    %593 = vector.broadcast %582 : vector<1x128xf32> to vector<20x128xf32>
    %594 = arith.mulf %593, %587 : vector<20x128xf32>
    %595 = vector.broadcast %583 : vector<1x128xf32> to vector<20x128xf32>
    %596 = arith.mulf %595, %585 : vector<20x128xf32>
    %597 = arith.addf %594, %596 : vector<20x128xf32>
    %598 = arith.addf %580, %592 : vector<20x128xf32>
    %599 = arith.addf %581, %597 : vector<20x128xf32>
    %c10_388 = arith.constant 10 : index
    %c0_389 = arith.constant 0 : index
    %600 = vector.load %arg19[%c10_388, %c0_389] : memref<20x128xf32, #tpu.memory_space<vmem>>, vector<1x128xf32>
    %c10_390 = arith.constant 10 : index
    %c0_391 = arith.constant 0 : index
    %601 = vector.load %arg20[%c10_390, %c0_391] : memref<20x128xf32, #tpu.memory_space<vmem>>, vector<1x128xf32>
    %c1_392 = arith.constant 1 : index
    %c10_393 = arith.constant 10 : index
    %c0_394 = arith.constant 0 : index
    %c0_395 = arith.constant 0 : index
    %602 = vector.load %arg10[%c1_392, %c10_393, %c0_394, %c0_395] : memref<3x20x20x128xf32, #tpu.memory_space<vmem>>, vector<1x1x20x128xf32>
    %603 = vector.shape_cast %602 : vector<1x1x20x128xf32> to vector<20x128xf32>
    %c1_396 = arith.constant 1 : index
    %c10_397 = arith.constant 10 : index
    %c0_398 = arith.constant 0 : index
    %c0_399 = arith.constant 0 : index
    %604 = vector.load %arg11[%c1_396, %c10_397, %c0_398, %c0_399] : memref<3x20x20x128xf32, #tpu.memory_space<vmem>>, vector<1x1x20x128xf32>
    %605 = vector.shape_cast %604 : vector<1x1x20x128xf32> to vector<20x128xf32>
    %606 = vector.broadcast %600 : vector<1x128xf32> to vector<20x128xf32>
    %607 = arith.mulf %606, %603 : vector<20x128xf32>
    %608 = vector.broadcast %601 : vector<1x128xf32> to vector<20x128xf32>
    %609 = arith.mulf %608, %605 : vector<20x128xf32>
    %610 = arith.subf %607, %609 : vector<20x128xf32>
    %611 = vector.broadcast %600 : vector<1x128xf32> to vector<20x128xf32>
    %612 = arith.mulf %611, %605 : vector<20x128xf32>
    %613 = vector.broadcast %601 : vector<1x128xf32> to vector<20x128xf32>
    %614 = arith.mulf %613, %603 : vector<20x128xf32>
    %615 = arith.addf %612, %614 : vector<20x128xf32>
    %616 = arith.addf %598, %610 : vector<20x128xf32>
    %617 = arith.addf %599, %615 : vector<20x128xf32>
    %c11_400 = arith.constant 11 : index
    %c0_401 = arith.constant 0 : index
    %618 = vector.load %arg19[%c11_400, %c0_401] : memref<20x128xf32, #tpu.memory_space<vmem>>, vector<1x128xf32>
    %c11_402 = arith.constant 11 : index
    %c0_403 = arith.constant 0 : index
    %619 = vector.load %arg20[%c11_402, %c0_403] : memref<20x128xf32, #tpu.memory_space<vmem>>, vector<1x128xf32>
    %c1_404 = arith.constant 1 : index
    %c11_405 = arith.constant 11 : index
    %c0_406 = arith.constant 0 : index
    %c0_407 = arith.constant 0 : index
    %620 = vector.load %arg10[%c1_404, %c11_405, %c0_406, %c0_407] : memref<3x20x20x128xf32, #tpu.memory_space<vmem>>, vector<1x1x20x128xf32>
    %621 = vector.shape_cast %620 : vector<1x1x20x128xf32> to vector<20x128xf32>
    %c1_408 = arith.constant 1 : index
    %c11_409 = arith.constant 11 : index
    %c0_410 = arith.constant 0 : index
    %c0_411 = arith.constant 0 : index
    %622 = vector.load %arg11[%c1_408, %c11_409, %c0_410, %c0_411] : memref<3x20x20x128xf32, #tpu.memory_space<vmem>>, vector<1x1x20x128xf32>
    %623 = vector.shape_cast %622 : vector<1x1x20x128xf32> to vector<20x128xf32>
    %624 = vector.broadcast %618 : vector<1x128xf32> to vector<20x128xf32>
    %625 = arith.mulf %624, %621 : vector<20x128xf32>
    %626 = vector.broadcast %619 : vector<1x128xf32> to vector<20x128xf32>
    %627 = arith.mulf %626, %623 : vector<20x128xf32>
    %628 = arith.subf %625, %627 : vector<20x128xf32>
    %629 = vector.broadcast %618 : vector<1x128xf32> to vector<20x128xf32>
    %630 = arith.mulf %629, %623 : vector<20x128xf32>
    %631 = vector.broadcast %619 : vector<1x128xf32> to vector<20x128xf32>
    %632 = arith.mulf %631, %621 : vector<20x128xf32>
    %633 = arith.addf %630, %632 : vector<20x128xf32>
    %634 = arith.addf %616, %628 : vector<20x128xf32>
    %635 = arith.addf %617, %633 : vector<20x128xf32>
    %c12_412 = arith.constant 12 : index
    %c0_413 = arith.constant 0 : index
    %636 = vector.load %arg19[%c12_412, %c0_413] : memref<20x128xf32, #tpu.memory_space<vmem>>, vector<1x128xf32>
    %c12_414 = arith.constant 12 : index
    %c0_415 = arith.constant 0 : index
    %637 = vector.load %arg20[%c12_414, %c0_415] : memref<20x128xf32, #tpu.memory_space<vmem>>, vector<1x128xf32>
    %c1_416 = arith.constant 1 : index
    %c12_417 = arith.constant 12 : index
    %c0_418 = arith.constant 0 : index
    %c0_419 = arith.constant 0 : index
    %638 = vector.load %arg10[%c1_416, %c12_417, %c0_418, %c0_419] : memref<3x20x20x128xf32, #tpu.memory_space<vmem>>, vector<1x1x20x128xf32>
    %639 = vector.shape_cast %638 : vector<1x1x20x128xf32> to vector<20x128xf32>
    %c1_420 = arith.constant 1 : index
    %c12_421 = arith.constant 12 : index
    %c0_422 = arith.constant 0 : index
    %c0_423 = arith.constant 0 : index
    %640 = vector.load %arg11[%c1_420, %c12_421, %c0_422, %c0_423] : memref<3x20x20x128xf32, #tpu.memory_space<vmem>>, vector<1x1x20x128xf32>
    %641 = vector.shape_cast %640 : vector<1x1x20x128xf32> to vector<20x128xf32>
    %642 = vector.broadcast %636 : vector<1x128xf32> to vector<20x128xf32>
    %643 = arith.mulf %642, %639 : vector<20x128xf32>
    %644 = vector.broadcast %637 : vector<1x128xf32> to vector<20x128xf32>
    %645 = arith.mulf %644, %641 : vector<20x128xf32>
    %646 = arith.subf %643, %645 : vector<20x128xf32>
    %647 = vector.broadcast %636 : vector<1x128xf32> to vector<20x128xf32>
    %648 = arith.mulf %647, %641 : vector<20x128xf32>
    %649 = vector.broadcast %637 : vector<1x128xf32> to vector<20x128xf32>
    %650 = arith.mulf %649, %639 : vector<20x128xf32>
    %651 = arith.addf %648, %650 : vector<20x128xf32>
    %652 = arith.addf %634, %646 : vector<20x128xf32>
    %653 = arith.addf %635, %651 : vector<20x128xf32>
    %c13_424 = arith.constant 13 : index
    %c0_425 = arith.constant 0 : index
    %654 = vector.load %arg19[%c13_424, %c0_425] : memref<20x128xf32, #tpu.memory_space<vmem>>, vector<1x128xf32>
    %c13_426 = arith.constant 13 : index
    %c0_427 = arith.constant 0 : index
    %655 = vector.load %arg20[%c13_426, %c0_427] : memref<20x128xf32, #tpu.memory_space<vmem>>, vector<1x128xf32>
    %c1_428 = arith.constant 1 : index
    %c13_429 = arith.constant 13 : index
    %c0_430 = arith.constant 0 : index
    %c0_431 = arith.constant 0 : index
    %656 = vector.load %arg10[%c1_428, %c13_429, %c0_430, %c0_431] : memref<3x20x20x128xf32, #tpu.memory_space<vmem>>, vector<1x1x20x128xf32>
    %657 = vector.shape_cast %656 : vector<1x1x20x128xf32> to vector<20x128xf32>
    %c1_432 = arith.constant 1 : index
    %c13_433 = arith.constant 13 : index
    %c0_434 = arith.constant 0 : index
    %c0_435 = arith.constant 0 : index
    %658 = vector.load %arg11[%c1_432, %c13_433, %c0_434, %c0_435] : memref<3x20x20x128xf32, #tpu.memory_space<vmem>>, vector<1x1x20x128xf32>
    %659 = vector.shape_cast %658 : vector<1x1x20x128xf32> to vector<20x128xf32>
    %660 = vector.broadcast %654 : vector<1x128xf32> to vector<20x128xf32>
    %661 = arith.mulf %660, %657 : vector<20x128xf32>
    %662 = vector.broadcast %655 : vector<1x128xf32> to vector<20x128xf32>
    %663 = arith.mulf %662, %659 : vector<20x128xf32>
    %664 = arith.subf %661, %663 : vector<20x128xf32>
    %665 = vector.broadcast %654 : vector<1x128xf32> to vector<20x128xf32>
    %666 = arith.mulf %665, %659 : vector<20x128xf32>
    %667 = vector.broadcast %655 : vector<1x128xf32> to vector<20x128xf32>
    %668 = arith.mulf %667, %657 : vector<20x128xf32>
    %669 = arith.addf %666, %668 : vector<20x128xf32>
    %670 = arith.addf %652, %664 : vector<20x128xf32>
    %671 = arith.addf %653, %669 : vector<20x128xf32>
    %c14_436 = arith.constant 14 : index
    %c0_437 = arith.constant 0 : index
    %672 = vector.load %arg19[%c14_436, %c0_437] : memref<20x128xf32, #tpu.memory_space<vmem>>, vector<1x128xf32>
    %c14_438 = arith.constant 14 : index
    %c0_439 = arith.constant 0 : index
    %673 = vector.load %arg20[%c14_438, %c0_439] : memref<20x128xf32, #tpu.memory_space<vmem>>, vector<1x128xf32>
    %c1_440 = arith.constant 1 : index
    %c14_441 = arith.constant 14 : index
    %c0_442 = arith.constant 0 : index
    %c0_443 = arith.constant 0 : index
    %674 = vector.load %arg10[%c1_440, %c14_441, %c0_442, %c0_443] : memref<3x20x20x128xf32, #tpu.memory_space<vmem>>, vector<1x1x20x128xf32>
    %675 = vector.shape_cast %674 : vector<1x1x20x128xf32> to vector<20x128xf32>
    %c1_444 = arith.constant 1 : index
    %c14_445 = arith.constant 14 : index
    %c0_446 = arith.constant 0 : index
    %c0_447 = arith.constant 0 : index
    %676 = vector.load %arg11[%c1_444, %c14_445, %c0_446, %c0_447] : memref<3x20x20x128xf32, #tpu.memory_space<vmem>>, vector<1x1x20x128xf32>
    %677 = vector.shape_cast %676 : vector<1x1x20x128xf32> to vector<20x128xf32>
    %678 = vector.broadcast %672 : vector<1x128xf32> to vector<20x128xf32>
    %679 = arith.mulf %678, %675 : vector<20x128xf32>
    %680 = vector.broadcast %673 : vector<1x128xf32> to vector<20x128xf32>
    %681 = arith.mulf %680, %677 : vector<20x128xf32>
    %682 = arith.subf %679, %681 : vector<20x128xf32>
    %683 = vector.broadcast %672 : vector<1x128xf32> to vector<20x128xf32>
    %684 = arith.mulf %683, %677 : vector<20x128xf32>
    %685 = vector.broadcast %673 : vector<1x128xf32> to vector<20x128xf32>
    %686 = arith.mulf %685, %675 : vector<20x128xf32>
    %687 = arith.addf %684, %686 : vector<20x128xf32>
    %688 = arith.addf %670, %682 : vector<20x128xf32>
    %689 = arith.addf %671, %687 : vector<20x128xf32>
    %c15_448 = arith.constant 15 : index
    %c0_449 = arith.constant 0 : index
    %690 = vector.load %arg19[%c15_448, %c0_449] : memref<20x128xf32, #tpu.memory_space<vmem>>, vector<1x128xf32>
    %c15_450 = arith.constant 15 : index
    %c0_451 = arith.constant 0 : index
    %691 = vector.load %arg20[%c15_450, %c0_451] : memref<20x128xf32, #tpu.memory_space<vmem>>, vector<1x128xf32>
    %c1_452 = arith.constant 1 : index
    %c15_453 = arith.constant 15 : index
    %c0_454 = arith.constant 0 : index
    %c0_455 = arith.constant 0 : index
    %692 = vector.load %arg10[%c1_452, %c15_453, %c0_454, %c0_455] : memref<3x20x20x128xf32, #tpu.memory_space<vmem>>, vector<1x1x20x128xf32>
    %693 = vector.shape_cast %692 : vector<1x1x20x128xf32> to vector<20x128xf32>
    %c1_456 = arith.constant 1 : index
    %c15_457 = arith.constant 15 : index
    %c0_458 = arith.constant 0 : index
    %c0_459 = arith.constant 0 : index
    %694 = vector.load %arg11[%c1_456, %c15_457, %c0_458, %c0_459] : memref<3x20x20x128xf32, #tpu.memory_space<vmem>>, vector<1x1x20x128xf32>
    %695 = vector.shape_cast %694 : vector<1x1x20x128xf32> to vector<20x128xf32>
    %696 = vector.broadcast %690 : vector<1x128xf32> to vector<20x128xf32>
    %697 = arith.mulf %696, %693 : vector<20x128xf32>
    %698 = vector.broadcast %691 : vector<1x128xf32> to vector<20x128xf32>
    %699 = arith.mulf %698, %695 : vector<20x128xf32>
    %700 = arith.subf %697, %699 : vector<20x128xf32>
    %701 = vector.broadcast %690 : vector<1x128xf32> to vector<20x128xf32>
    %702 = arith.mulf %701, %695 : vector<20x128xf32>
    %703 = vector.broadcast %691 : vector<1x128xf32> to vector<20x128xf32>
    %704 = arith.mulf %703, %693 : vector<20x128xf32>
    %705 = arith.addf %702, %704 : vector<20x128xf32>
    %706 = arith.addf %688, %700 : vector<20x128xf32>
    %707 = arith.addf %689, %705 : vector<20x128xf32>
    %c16_460 = arith.constant 16 : index
    %c0_461 = arith.constant 0 : index
    %708 = vector.load %arg19[%c16_460, %c0_461] : memref<20x128xf32, #tpu.memory_space<vmem>>, vector<1x128xf32>
    %c16_462 = arith.constant 16 : index
    %c0_463 = arith.constant 0 : index
    %709 = vector.load %arg20[%c16_462, %c0_463] : memref<20x128xf32, #tpu.memory_space<vmem>>, vector<1x128xf32>
    %c1_464 = arith.constant 1 : index
    %c16_465 = arith.constant 16 : index
    %c0_466 = arith.constant 0 : index
    %c0_467 = arith.constant 0 : index
    %710 = vector.load %arg10[%c1_464, %c16_465, %c0_466, %c0_467] : memref<3x20x20x128xf32, #tpu.memory_space<vmem>>, vector<1x1x20x128xf32>
    %711 = vector.shape_cast %710 : vector<1x1x20x128xf32> to vector<20x128xf32>
    %c1_468 = arith.constant 1 : index
    %c16_469 = arith.constant 16 : index
    %c0_470 = arith.constant 0 : index
    %c0_471 = arith.constant 0 : index
    %712 = vector.load %arg11[%c1_468, %c16_469, %c0_470, %c0_471] : memref<3x20x20x128xf32, #tpu.memory_space<vmem>>, vector<1x1x20x128xf32>
    %713 = vector.shape_cast %712 : vector<1x1x20x128xf32> to vector<20x128xf32>
    %714 = vector.broadcast %708 : vector<1x128xf32> to vector<20x128xf32>
    %715 = arith.mulf %714, %711 : vector<20x128xf32>
    %716 = vector.broadcast %709 : vector<1x128xf32> to vector<20x128xf32>
    %717 = arith.mulf %716, %713 : vector<20x128xf32>
    %718 = arith.subf %715, %717 : vector<20x128xf32>
    %719 = vector.broadcast %708 : vector<1x128xf32> to vector<20x128xf32>
    %720 = arith.mulf %719, %713 : vector<20x128xf32>
    %721 = vector.broadcast %709 : vector<1x128xf32> to vector<20x128xf32>
    %722 = arith.mulf %721, %711 : vector<20x128xf32>
    %723 = arith.addf %720, %722 : vector<20x128xf32>
    %724 = arith.addf %706, %718 : vector<20x128xf32>
    %725 = arith.addf %707, %723 : vector<20x128xf32>
    %c17_472 = arith.constant 17 : index
    %c0_473 = arith.constant 0 : index
    %726 = vector.load %arg19[%c17_472, %c0_473] : memref<20x128xf32, #tpu.memory_space<vmem>>, vector<1x128xf32>
    %c17_474 = arith.constant 17 : index
    %c0_475 = arith.constant 0 : index
    %727 = vector.load %arg20[%c17_474, %c0_475] : memref<20x128xf32, #tpu.memory_space<vmem>>, vector<1x128xf32>
    %c1_476 = arith.constant 1 : index
    %c17_477 = arith.constant 17 : index
    %c0_478 = arith.constant 0 : index
    %c0_479 = arith.constant 0 : index
    %728 = vector.load %arg10[%c1_476, %c17_477, %c0_478, %c0_479] : memref<3x20x20x128xf32, #tpu.memory_space<vmem>>, vector<1x1x20x128xf32>
    %729 = vector.shape_cast %728 : vector<1x1x20x128xf32> to vector<20x128xf32>
    %c1_480 = arith.constant 1 : index
    %c17_481 = arith.constant 17 : index
    %c0_482 = arith.constant 0 : index
    %c0_483 = arith.constant 0 : index
    %730 = vector.load %arg11[%c1_480, %c17_481, %c0_482, %c0_483] : memref<3x20x20x128xf32, #tpu.memory_space<vmem>>, vector<1x1x20x128xf32>
    %731 = vector.shape_cast %730 : vector<1x1x20x128xf32> to vector<20x128xf32>
    %732 = vector.broadcast %726 : vector<1x128xf32> to vector<20x128xf32>
    %733 = arith.mulf %732, %729 : vector<20x128xf32>
    %734 = vector.broadcast %727 : vector<1x128xf32> to vector<20x128xf32>
    %735 = arith.mulf %734, %731 : vector<20x128xf32>
    %736 = arith.subf %733, %735 : vector<20x128xf32>
    %737 = vector.broadcast %726 : vector<1x128xf32> to vector<20x128xf32>
    %738 = arith.mulf %737, %731 : vector<20x128xf32>
    %739 = vector.broadcast %727 : vector<1x128xf32> to vector<20x128xf32>
    %740 = arith.mulf %739, %729 : vector<20x128xf32>
    %741 = arith.addf %738, %740 : vector<20x128xf32>
    %742 = arith.addf %724, %736 : vector<20x128xf32>
    %743 = arith.addf %725, %741 : vector<20x128xf32>
    %c18_484 = arith.constant 18 : index
    %c0_485 = arith.constant 0 : index
    %744 = vector.load %arg19[%c18_484, %c0_485] : memref<20x128xf32, #tpu.memory_space<vmem>>, vector<1x128xf32>
    %c18_486 = arith.constant 18 : index
    %c0_487 = arith.constant 0 : index
    %745 = vector.load %arg20[%c18_486, %c0_487] : memref<20x128xf32, #tpu.memory_space<vmem>>, vector<1x128xf32>
    %c1_488 = arith.constant 1 : index
    %c18_489 = arith.constant 18 : index
    %c0_490 = arith.constant 0 : index
    %c0_491 = arith.constant 0 : index
    %746 = vector.load %arg10[%c1_488, %c18_489, %c0_490, %c0_491] : memref<3x20x20x128xf32, #tpu.memory_space<vmem>>, vector<1x1x20x128xf32>
    %747 = vector.shape_cast %746 : vector<1x1x20x128xf32> to vector<20x128xf32>
    %c1_492 = arith.constant 1 : index
    %c18_493 = arith.constant 18 : index
    %c0_494 = arith.constant 0 : index
    %c0_495 = arith.constant 0 : index
    %748 = vector.load %arg11[%c1_492, %c18_493, %c0_494, %c0_495] : memref<3x20x20x128xf32, #tpu.memory_space<vmem>>, vector<1x1x20x128xf32>
    %749 = vector.shape_cast %748 : vector<1x1x20x128xf32> to vector<20x128xf32>
    %750 = vector.broadcast %744 : vector<1x128xf32> to vector<20x128xf32>
    %751 = arith.mulf %750, %747 : vector<20x128xf32>
    %752 = vector.broadcast %745 : vector<1x128xf32> to vector<20x128xf32>
    %753 = arith.mulf %752, %749 : vector<20x128xf32>
    %754 = arith.subf %751, %753 : vector<20x128xf32>
    %755 = vector.broadcast %744 : vector<1x128xf32> to vector<20x128xf32>
    %756 = arith.mulf %755, %749 : vector<20x128xf32>
    %757 = vector.broadcast %745 : vector<1x128xf32> to vector<20x128xf32>
    %758 = arith.mulf %757, %747 : vector<20x128xf32>
    %759 = arith.addf %756, %758 : vector<20x128xf32>
    %760 = arith.addf %742, %754 : vector<20x128xf32>
    %761 = arith.addf %743, %759 : vector<20x128xf32>
    %c19_496 = arith.constant 19 : index
    %c0_497 = arith.constant 0 : index
    %762 = vector.load %arg19[%c19_496, %c0_497] : memref<20x128xf32, #tpu.memory_space<vmem>>, vector<1x128xf32>
    %c19_498 = arith.constant 19 : index
    %c0_499 = arith.constant 0 : index
    %763 = vector.load %arg20[%c19_498, %c0_499] : memref<20x128xf32, #tpu.memory_space<vmem>>, vector<1x128xf32>
    %c1_500 = arith.constant 1 : index
    %c19_501 = arith.constant 19 : index
    %c0_502 = arith.constant 0 : index
    %c0_503 = arith.constant 0 : index
    %764 = vector.load %arg10[%c1_500, %c19_501, %c0_502, %c0_503] : memref<3x20x20x128xf32, #tpu.memory_space<vmem>>, vector<1x1x20x128xf32>
    %765 = vector.shape_cast %764 : vector<1x1x20x128xf32> to vector<20x128xf32>
    %c1_504 = arith.constant 1 : index
    %c19_505 = arith.constant 19 : index
    %c0_506 = arith.constant 0 : index
    %c0_507 = arith.constant 0 : index
    %766 = vector.load %arg11[%c1_504, %c19_505, %c0_506, %c0_507] : memref<3x20x20x128xf32, #tpu.memory_space<vmem>>, vector<1x1x20x128xf32>
    %767 = vector.shape_cast %766 : vector<1x1x20x128xf32> to vector<20x128xf32>
    %768 = vector.broadcast %762 : vector<1x128xf32> to vector<20x128xf32>
    %769 = arith.mulf %768, %765 : vector<20x128xf32>
    %770 = vector.broadcast %763 : vector<1x128xf32> to vector<20x128xf32>
    %771 = arith.mulf %770, %767 : vector<20x128xf32>
    %772 = arith.subf %769, %771 : vector<20x128xf32>
    %773 = vector.broadcast %762 : vector<1x128xf32> to vector<20x128xf32>
    %774 = arith.mulf %773, %767 : vector<20x128xf32>
    %775 = vector.broadcast %763 : vector<1x128xf32> to vector<20x128xf32>
    %776 = arith.mulf %775, %765 : vector<20x128xf32>
    %777 = arith.addf %774, %776 : vector<20x128xf32>
    %778 = arith.addf %760, %772 : vector<20x128xf32>
    %779 = arith.addf %761, %777 : vector<20x128xf32>
    %780 = arith.truncf %778 : vector<20x128xf32> to vector<20x128xbf16>
    %cst_508 = arith.constant dense<0.000000e+00> : vector<20x256xf32>
    %781 = tpu.matmul %780, %26, %cst_508 {dimension_numbers = #tpu.dot_dimension_numbers<[1], [0], [0], [1], [0, 0, 1, 1], [], []>} : vector<20x128xbf16>, vector<128x256xbf16>, vector<20x256xf32> -> vector<20x256xf32>
    %782 = arith.truncf %779 : vector<20x128xf32> to vector<20x128xbf16>
    %cst_509 = arith.constant dense<0.000000e+00> : vector<20x256xf32>
    %783 = tpu.matmul %782, %27, %cst_509 {dimension_numbers = #tpu.dot_dimension_numbers<[1], [0], [0], [1], [0, 0, 1, 1], [], []>} : vector<20x128xbf16>, vector<128x256xbf16>, vector<20x256xf32> -> vector<20x256xf32>
    %784 = arith.addf %781, %783 : vector<20x256xf32>
    %c1_510 = arith.constant 1 : index
    %c0_511 = arith.constant 0 : index
    %c0_512 = arith.constant 0 : index
    %785 = vector.load %arg12[%c1_510, %c0_511, %c0_512] : memref<3x20x20xf32, #tpu.memory_space<vmem>>, vector<1x20x20xf32>
    %786 = vector.shape_cast %785 : vector<1x20x20xf32> to vector<20x20xf32>
    %cst_513 = arith.constant dense<0.000000e+00> : vector<20x256xf32>
    %787 = tpu.matmul %786, %416, %cst_513 {dimension_numbers = #tpu.dot_dimension_numbers<[1], [0], [0], [1], [0, 0, 1, 1], [], []>} : vector<20x20xf32>, vector<20x256xf32>, vector<20x256xf32> -> vector<20x256xf32>
    %c1_514 = arith.constant 1 : index
    %c0_515 = arith.constant 0 : index
    %c0_516 = arith.constant 0 : index
    %788 = vector.load %arg13[%c1_514, %c0_515, %c0_516] : memref<3x20x1xf32, #tpu.memory_space<vmem>>, vector<1x20x1xf32>
    %789 = vector.shape_cast %788 : vector<1x20x1xf32> to vector<20x1xf32>
    %790 = vector.broadcast %789 : vector<20x1xf32> to vector<20x256xf32>
    %791 = arith.addf %787, %790 : vector<20x256xf32>
    %792 = arith.addf %784, %791 : vector<20x256xf32>
    %793 = arith.mulf %792, %792 : vector<20x256xf32>
    %794 = arith.mulf %792, %793 : vector<20x256xf32>
    %cst_517 = arith.constant 4.471500e-02 : f32
    %795 = vector.broadcast %cst_517 : f32 to vector<20x256xf32>
    %796 = arith.mulf %795, %794 : vector<20x256xf32>
    %797 = arith.addf %792, %796 : vector<20x256xf32>
    %cst_518 = arith.constant 0.797884583 : f32
    %798 = vector.broadcast %cst_518 : f32 to vector<20x256xf32>
    %799 = arith.mulf %798, %797 : vector<20x256xf32>
    %800 = math.tanh %799 : vector<20x256xf32>
    %cst_519 = arith.constant 1.000000e+00 : f32
    %801 = vector.broadcast %cst_519 : f32 to vector<20x256xf32>
    %802 = arith.addf %801, %800 : vector<20x256xf32>
    %cst_520 = arith.constant 5.000000e-01 : f32
    %803 = vector.broadcast %cst_520 : f32 to vector<20x256xf32>
    %804 = arith.mulf %803, %802 : vector<20x256xf32>
    %805 = arith.mulf %792, %804 : vector<20x256xf32>
    %806 = arith.truncf %805 : vector<20x256xf32> to vector<20x256xbf16>
    %cst_521 = arith.constant dense<0.000000e+00> : vector<20x128xf32>
    %807 = tpu.matmul %806, %24, %cst_521 {dimension_numbers = #tpu.dot_dimension_numbers<[1], [0], [0], [1], [0, 0, 1, 1], [], []>} : vector<20x256xbf16>, vector<256x128xbf16>, vector<20x128xf32> -> vector<20x128xf32>
    %c0_522 = arith.constant 0 : index
    %c0_523 = arith.constant 0 : index
    %808 = vector.load %arg19[%c0_522, %c0_523] : memref<20x128xf32, #tpu.memory_space<vmem>>, vector<20x128xf32>
    tpu.vector_store %arg19[%c0_522, %c0_523], %807 {strides = array<i32>} : memref<20x128xf32, #tpu.memory_space<vmem>>, vector<20x128xf32>,
    %cst_524 = arith.constant dense<0.000000e+00> : vector<20x128xf32>
    %809 = tpu.matmul %806, %25, %cst_524 {dimension_numbers = #tpu.dot_dimension_numbers<[1], [0], [0], [1], [0, 0, 1, 1], [], []>} : vector<20x256xbf16>, vector<256x128xbf16>, vector<20x128xf32> -> vector<20x128xf32>
    %c0_525 = arith.constant 0 : index
    %c0_526 = arith.constant 0 : index
    %810 = vector.load %arg20[%c0_525, %c0_526] : memref<20x128xf32, #tpu.memory_space<vmem>>, vector<20x128xf32>
    tpu.vector_store %arg20[%c0_525, %c0_526], %809 {strides = array<i32>} : memref<20x128xf32, #tpu.memory_space<vmem>>, vector<20x128xf32>,
    %c0_527 = arith.constant 0 : index
    %c0_528 = arith.constant 0 : index
    %811 = vector.load %arg19[%c0_527, %c0_528] : memref<20x128xf32, #tpu.memory_space<vmem>>, vector<1x128xf32>
    %c0_529 = arith.constant 0 : index
    %c0_530 = arith.constant 0 : index
    %812 = vector.load %arg20[%c0_529, %c0_530] : memref<20x128xf32, #tpu.memory_space<vmem>>, vector<1x128xf32>
    %c2_531 = arith.constant 2 : index
    %c0_532 = arith.constant 0 : index
    %c0_533 = arith.constant 0 : index
    %c0_534 = arith.constant 0 : index
    %813 = vector.load %arg10[%c2_531, %c0_532, %c0_533, %c0_534] : memref<3x20x20x128xf32, #tpu.memory_space<vmem>>, vector<1x1x20x128xf32>
    %814 = vector.shape_cast %813 : vector<1x1x20x128xf32> to vector<20x128xf32>
    %c2_535 = arith.constant 2 : index
    %c0_536 = arith.constant 0 : index
    %c0_537 = arith.constant 0 : index
    %c0_538 = arith.constant 0 : index
    %815 = vector.load %arg11[%c2_535, %c0_536, %c0_537, %c0_538] : memref<3x20x20x128xf32, #tpu.memory_space<vmem>>, vector<1x1x20x128xf32>
    %816 = vector.shape_cast %815 : vector<1x1x20x128xf32> to vector<20x128xf32>
    %817 = vector.broadcast %811 : vector<1x128xf32> to vector<20x128xf32>
    %818 = arith.mulf %817, %814 : vector<20x128xf32>
    %819 = vector.broadcast %812 : vector<1x128xf32> to vector<20x128xf32>
    %820 = arith.mulf %819, %816 : vector<20x128xf32>
    %821 = arith.subf %818, %820 : vector<20x128xf32>
    %822 = vector.broadcast %811 : vector<1x128xf32> to vector<20x128xf32>
    %823 = arith.mulf %822, %816 : vector<20x128xf32>
    %824 = vector.broadcast %812 : vector<1x128xf32> to vector<20x128xf32>
    %825 = arith.mulf %824, %814 : vector<20x128xf32>
    %826 = arith.addf %823, %825 : vector<20x128xf32>
    %c1_539 = arith.constant 1 : index
    %c0_540 = arith.constant 0 : index
    %827 = vector.load %arg19[%c1_539, %c0_540] : memref<20x128xf32, #tpu.memory_space<vmem>>, vector<1x128xf32>
    %c1_541 = arith.constant 1 : index
    %c0_542 = arith.constant 0 : index
    %828 = vector.load %arg20[%c1_541, %c0_542] : memref<20x128xf32, #tpu.memory_space<vmem>>, vector<1x128xf32>
    %c2_543 = arith.constant 2 : index
    %c1_544 = arith.constant 1 : index
    %c0_545 = arith.constant 0 : index
    %c0_546 = arith.constant 0 : index
    %829 = vector.load %arg10[%c2_543, %c1_544, %c0_545, %c0_546] : memref<3x20x20x128xf32, #tpu.memory_space<vmem>>, vector<1x1x20x128xf32>
    %830 = vector.shape_cast %829 : vector<1x1x20x128xf32> to vector<20x128xf32>
    %c2_547 = arith.constant 2 : index
    %c1_548 = arith.constant 1 : index
    %c0_549 = arith.constant 0 : index
    %c0_550 = arith.constant 0 : index
    %831 = vector.load %arg11[%c2_547, %c1_548, %c0_549, %c0_550] : memref<3x20x20x128xf32, #tpu.memory_space<vmem>>, vector<1x1x20x128xf32>
    %832 = vector.shape_cast %831 : vector<1x1x20x128xf32> to vector<20x128xf32>
    %833 = vector.broadcast %827 : vector<1x128xf32> to vector<20x128xf32>
    %834 = arith.mulf %833, %830 : vector<20x128xf32>
    %835 = vector.broadcast %828 : vector<1x128xf32> to vector<20x128xf32>
    %836 = arith.mulf %835, %832 : vector<20x128xf32>
    %837 = arith.subf %834, %836 : vector<20x128xf32>
    %838 = vector.broadcast %827 : vector<1x128xf32> to vector<20x128xf32>
    %839 = arith.mulf %838, %832 : vector<20x128xf32>
    %840 = vector.broadcast %828 : vector<1x128xf32> to vector<20x128xf32>
    %841 = arith.mulf %840, %830 : vector<20x128xf32>
    %842 = arith.addf %839, %841 : vector<20x128xf32>
    %843 = arith.addf %821, %837 : vector<20x128xf32>
    %844 = arith.addf %826, %842 : vector<20x128xf32>
    %c2_551 = arith.constant 2 : index
    %c0_552 = arith.constant 0 : index
    %845 = vector.load %arg19[%c2_551, %c0_552] : memref<20x128xf32, #tpu.memory_space<vmem>>, vector<1x128xf32>
    %c2_553 = arith.constant 2 : index
    %c0_554 = arith.constant 0 : index
    %846 = vector.load %arg20[%c2_553, %c0_554] : memref<20x128xf32, #tpu.memory_space<vmem>>, vector<1x128xf32>
    %c2_555 = arith.constant 2 : index
    %c2_556 = arith.constant 2 : index
    %c0_557 = arith.constant 0 : index
    %c0_558 = arith.constant 0 : index
    %847 = vector.load %arg10[%c2_555, %c2_556, %c0_557, %c0_558] : memref<3x20x20x128xf32, #tpu.memory_space<vmem>>, vector<1x1x20x128xf32>
    %848 = vector.shape_cast %847 : vector<1x1x20x128xf32> to vector<20x128xf32>
    %c2_559 = arith.constant 2 : index
    %c2_560 = arith.constant 2 : index
    %c0_561 = arith.constant 0 : index
    %c0_562 = arith.constant 0 : index
    %849 = vector.load %arg11[%c2_559, %c2_560, %c0_561, %c0_562] : memref<3x20x20x128xf32, #tpu.memory_space<vmem>>, vector<1x1x20x128xf32>
    %850 = vector.shape_cast %849 : vector<1x1x20x128xf32> to vector<20x128xf32>
    %851 = vector.broadcast %845 : vector<1x128xf32> to vector<20x128xf32>
    %852 = arith.mulf %851, %848 : vector<20x128xf32>
    %853 = vector.broadcast %846 : vector<1x128xf32> to vector<20x128xf32>
    %854 = arith.mulf %853, %850 : vector<20x128xf32>
    %855 = arith.subf %852, %854 : vector<20x128xf32>
    %856 = vector.broadcast %845 : vector<1x128xf32> to vector<20x128xf32>
    %857 = arith.mulf %856, %850 : vector<20x128xf32>
    %858 = vector.broadcast %846 : vector<1x128xf32> to vector<20x128xf32>
    %859 = arith.mulf %858, %848 : vector<20x128xf32>
    %860 = arith.addf %857, %859 : vector<20x128xf32>
    %861 = arith.addf %843, %855 : vector<20x128xf32>
    %862 = arith.addf %844, %860 : vector<20x128xf32>
    %c3_563 = arith.constant 3 : index
    %c0_564 = arith.constant 0 : index
    %863 = vector.load %arg19[%c3_563, %c0_564] : memref<20x128xf32, #tpu.memory_space<vmem>>, vector<1x128xf32>
    %c3_565 = arith.constant 3 : index
    %c0_566 = arith.constant 0 : index
    %864 = vector.load %arg20[%c3_565, %c0_566] : memref<20x128xf32, #tpu.memory_space<vmem>>, vector<1x128xf32>
    %c2_567 = arith.constant 2 : index
    %c3_568 = arith.constant 3 : index
    %c0_569 = arith.constant 0 : index
    %c0_570 = arith.constant 0 : index
    %865 = vector.load %arg10[%c2_567, %c3_568, %c0_569, %c0_570] : memref<3x20x20x128xf32, #tpu.memory_space<vmem>>, vector<1x1x20x128xf32>
    %866 = vector.shape_cast %865 : vector<1x1x20x128xf32> to vector<20x128xf32>
    %c2_571 = arith.constant 2 : index
    %c3_572 = arith.constant 3 : index
    %c0_573 = arith.constant 0 : index
    %c0_574 = arith.constant 0 : index
    %867 = vector.load %arg11[%c2_571, %c3_572, %c0_573, %c0_574] : memref<3x20x20x128xf32, #tpu.memory_space<vmem>>, vector<1x1x20x128xf32>
    %868 = vector.shape_cast %867 : vector<1x1x20x128xf32> to vector<20x128xf32>
    %869 = vector.broadcast %863 : vector<1x128xf32> to vector<20x128xf32>
    %870 = arith.mulf %869, %866 : vector<20x128xf32>
    %871 = vector.broadcast %864 : vector<1x128xf32> to vector<20x128xf32>
    %872 = arith.mulf %871, %868 : vector<20x128xf32>
    %873 = arith.subf %870, %872 : vector<20x128xf32>
    %874 = vector.broadcast %863 : vector<1x128xf32> to vector<20x128xf32>
    %875 = arith.mulf %874, %868 : vector<20x128xf32>
    %876 = vector.broadcast %864 : vector<1x128xf32> to vector<20x128xf32>
    %877 = arith.mulf %876, %866 : vector<20x128xf32>
    %878 = arith.addf %875, %877 : vector<20x128xf32>
    %879 = arith.addf %861, %873 : vector<20x128xf32>
    %880 = arith.addf %862, %878 : vector<20x128xf32>
    %c4_575 = arith.constant 4 : index
    %c0_576 = arith.constant 0 : index
    %881 = vector.load %arg19[%c4_575, %c0_576] : memref<20x128xf32, #tpu.memory_space<vmem>>, vector<1x128xf32>
    %c4_577 = arith.constant 4 : index
    %c0_578 = arith.constant 0 : index
    %882 = vector.load %arg20[%c4_577, %c0_578] : memref<20x128xf32, #tpu.memory_space<vmem>>, vector<1x128xf32>
    %c2_579 = arith.constant 2 : index
    %c4_580 = arith.constant 4 : index
    %c0_581 = arith.constant 0 : index
    %c0_582 = arith.constant 0 : index
    %883 = vector.load %arg10[%c2_579, %c4_580, %c0_581, %c0_582] : memref<3x20x20x128xf32, #tpu.memory_space<vmem>>, vector<1x1x20x128xf32>
    %884 = vector.shape_cast %883 : vector<1x1x20x128xf32> to vector<20x128xf32>
    %c2_583 = arith.constant 2 : index
    %c4_584 = arith.constant 4 : index
    %c0_585 = arith.constant 0 : index
    %c0_586 = arith.constant 0 : index
    %885 = vector.load %arg11[%c2_583, %c4_584, %c0_585, %c0_586] : memref<3x20x20x128xf32, #tpu.memory_space<vmem>>, vector<1x1x20x128xf32>
    %886 = vector.shape_cast %885 : vector<1x1x20x128xf32> to vector<20x128xf32>
    %887 = vector.broadcast %881 : vector<1x128xf32> to vector<20x128xf32>
    %888 = arith.mulf %887, %884 : vector<20x128xf32>
    %889 = vector.broadcast %882 : vector<1x128xf32> to vector<20x128xf32>
    %890 = arith.mulf %889, %886 : vector<20x128xf32>
    %891 = arith.subf %888, %890 : vector<20x128xf32>
    %892 = vector.broadcast %881 : vector<1x128xf32> to vector<20x128xf32>
    %893 = arith.mulf %892, %886 : vector<20x128xf32>
    %894 = vector.broadcast %882 : vector<1x128xf32> to vector<20x128xf32>
    %895 = arith.mulf %894, %884 : vector<20x128xf32>
    %896 = arith.addf %893, %895 : vector<20x128xf32>
    %897 = arith.addf %879, %891 : vector<20x128xf32>
    %898 = arith.addf %880, %896 : vector<20x128xf32>
    %c5_587 = arith.constant 5 : index
    %c0_588 = arith.constant 0 : index
    %899 = vector.load %arg19[%c5_587, %c0_588] : memref<20x128xf32, #tpu.memory_space<vmem>>, vector<1x128xf32>
    %c5_589 = arith.constant 5 : index
    %c0_590 = arith.constant 0 : index
    %900 = vector.load %arg20[%c5_589, %c0_590] : memref<20x128xf32, #tpu.memory_space<vmem>>, vector<1x128xf32>
    %c2_591 = arith.constant 2 : index
    %c5_592 = arith.constant 5 : index
    %c0_593 = arith.constant 0 : index
    %c0_594 = arith.constant 0 : index
    %901 = vector.load %arg10[%c2_591, %c5_592, %c0_593, %c0_594] : memref<3x20x20x128xf32, #tpu.memory_space<vmem>>, vector<1x1x20x128xf32>
    %902 = vector.shape_cast %901 : vector<1x1x20x128xf32> to vector<20x128xf32>
    %c2_595 = arith.constant 2 : index
    %c5_596 = arith.constant 5 : index
    %c0_597 = arith.constant 0 : index
    %c0_598 = arith.constant 0 : index
    %903 = vector.load %arg11[%c2_595, %c5_596, %c0_597, %c0_598] : memref<3x20x20x128xf32, #tpu.memory_space<vmem>>, vector<1x1x20x128xf32>
    %904 = vector.shape_cast %903 : vector<1x1x20x128xf32> to vector<20x128xf32>
    %905 = vector.broadcast %899 : vector<1x128xf32> to vector<20x128xf32>
    %906 = arith.mulf %905, %902 : vector<20x128xf32>
    %907 = vector.broadcast %900 : vector<1x128xf32> to vector<20x128xf32>
    %908 = arith.mulf %907, %904 : vector<20x128xf32>
    %909 = arith.subf %906, %908 : vector<20x128xf32>
    %910 = vector.broadcast %899 : vector<1x128xf32> to vector<20x128xf32>
    %911 = arith.mulf %910, %904 : vector<20x128xf32>
    %912 = vector.broadcast %900 : vector<1x128xf32> to vector<20x128xf32>
    %913 = arith.mulf %912, %902 : vector<20x128xf32>
    %914 = arith.addf %911, %913 : vector<20x128xf32>
    %915 = arith.addf %897, %909 : vector<20x128xf32>
    %916 = arith.addf %898, %914 : vector<20x128xf32>
    %c6_599 = arith.constant 6 : index
    %c0_600 = arith.constant 0 : index
    %917 = vector.load %arg19[%c6_599, %c0_600] : memref<20x128xf32, #tpu.memory_space<vmem>>, vector<1x128xf32>
    %c6_601 = arith.constant 6 : index
    %c0_602 = arith.constant 0 : index
    %918 = vector.load %arg20[%c6_601, %c0_602] : memref<20x128xf32, #tpu.memory_space<vmem>>, vector<1x128xf32>
    %c2_603 = arith.constant 2 : index
    %c6_604 = arith.constant 6 : index
    %c0_605 = arith.constant 0 : index
    %c0_606 = arith.constant 0 : index
    %919 = vector.load %arg10[%c2_603, %c6_604, %c0_605, %c0_606] : memref<3x20x20x128xf32, #tpu.memory_space<vmem>>, vector<1x1x20x128xf32>
    %920 = vector.shape_cast %919 : vector<1x1x20x128xf32> to vector<20x128xf32>
    %c2_607 = arith.constant 2 : index
    %c6_608 = arith.constant 6 : index
    %c0_609 = arith.constant 0 : index
    %c0_610 = arith.constant 0 : index
    %921 = vector.load %arg11[%c2_607, %c6_608, %c0_609, %c0_610] : memref<3x20x20x128xf32, #tpu.memory_space<vmem>>, vector<1x1x20x128xf32>
    %922 = vector.shape_cast %921 : vector<1x1x20x128xf32> to vector<20x128xf32>
    %923 = vector.broadcast %917 : vector<1x128xf32> to vector<20x128xf32>
    %924 = arith.mulf %923, %920 : vector<20x128xf32>
    %925 = vector.broadcast %918 : vector<1x128xf32> to vector<20x128xf32>
    %926 = arith.mulf %925, %922 : vector<20x128xf32>
    %927 = arith.subf %924, %926 : vector<20x128xf32>
    %928 = vector.broadcast %917 : vector<1x128xf32> to vector<20x128xf32>
    %929 = arith.mulf %928, %922 : vector<20x128xf32>
    %930 = vector.broadcast %918 : vector<1x128xf32> to vector<20x128xf32>
    %931 = arith.mulf %930, %920 : vector<20x128xf32>
    %932 = arith.addf %929, %931 : vector<20x128xf32>
    %933 = arith.addf %915, %927 : vector<20x128xf32>
    %934 = arith.addf %916, %932 : vector<20x128xf32>
    %c7_611 = arith.constant 7 : index
    %c0_612 = arith.constant 0 : index
    %935 = vector.load %arg19[%c7_611, %c0_612] : memref<20x128xf32, #tpu.memory_space<vmem>>, vector<1x128xf32>
    %c7_613 = arith.constant 7 : index
    %c0_614 = arith.constant 0 : index
    %936 = vector.load %arg20[%c7_613, %c0_614] : memref<20x128xf32, #tpu.memory_space<vmem>>, vector<1x128xf32>
    %c2_615 = arith.constant 2 : index
    %c7_616 = arith.constant 7 : index
    %c0_617 = arith.constant 0 : index
    %c0_618 = arith.constant 0 : index
    %937 = vector.load %arg10[%c2_615, %c7_616, %c0_617, %c0_618] : memref<3x20x20x128xf32, #tpu.memory_space<vmem>>, vector<1x1x20x128xf32>
    %938 = vector.shape_cast %937 : vector<1x1x20x128xf32> to vector<20x128xf32>
    %c2_619 = arith.constant 2 : index
    %c7_620 = arith.constant 7 : index
    %c0_621 = arith.constant 0 : index
    %c0_622 = arith.constant 0 : index
    %939 = vector.load %arg11[%c2_619, %c7_620, %c0_621, %c0_622] : memref<3x20x20x128xf32, #tpu.memory_space<vmem>>, vector<1x1x20x128xf32>
    %940 = vector.shape_cast %939 : vector<1x1x20x128xf32> to vector<20x128xf32>
    %941 = vector.broadcast %935 : vector<1x128xf32> to vector<20x128xf32>
    %942 = arith.mulf %941, %938 : vector<20x128xf32>
    %943 = vector.broadcast %936 : vector<1x128xf32> to vector<20x128xf32>
    %944 = arith.mulf %943, %940 : vector<20x128xf32>
    %945 = arith.subf %942, %944 : vector<20x128xf32>
    %946 = vector.broadcast %935 : vector<1x128xf32> to vector<20x128xf32>
    %947 = arith.mulf %946, %940 : vector<20x128xf32>
    %948 = vector.broadcast %936 : vector<1x128xf32> to vector<20x128xf32>
    %949 = arith.mulf %948, %938 : vector<20x128xf32>
    %950 = arith.addf %947, %949 : vector<20x128xf32>
    %951 = arith.addf %933, %945 : vector<20x128xf32>
    %952 = arith.addf %934, %950 : vector<20x128xf32>
    %c8_623 = arith.constant 8 : index
    %c0_624 = arith.constant 0 : index
    %953 = vector.load %arg19[%c8_623, %c0_624] : memref<20x128xf32, #tpu.memory_space<vmem>>, vector<1x128xf32>
    %c8_625 = arith.constant 8 : index
    %c0_626 = arith.constant 0 : index
    %954 = vector.load %arg20[%c8_625, %c0_626] : memref<20x128xf32, #tpu.memory_space<vmem>>, vector<1x128xf32>
    %c2_627 = arith.constant 2 : index
    %c8_628 = arith.constant 8 : index
    %c0_629 = arith.constant 0 : index
    %c0_630 = arith.constant 0 : index
    %955 = vector.load %arg10[%c2_627, %c8_628, %c0_629, %c0_630] : memref<3x20x20x128xf32, #tpu.memory_space<vmem>>, vector<1x1x20x128xf32>
    %956 = vector.shape_cast %955 : vector<1x1x20x128xf32> to vector<20x128xf32>
    %c2_631 = arith.constant 2 : index
    %c8_632 = arith.constant 8 : index
    %c0_633 = arith.constant 0 : index
    %c0_634 = arith.constant 0 : index
    %957 = vector.load %arg11[%c2_631, %c8_632, %c0_633, %c0_634] : memref<3x20x20x128xf32, #tpu.memory_space<vmem>>, vector<1x1x20x128xf32>
    %958 = vector.shape_cast %957 : vector<1x1x20x128xf32> to vector<20x128xf32>
    %959 = vector.broadcast %953 : vector<1x128xf32> to vector<20x128xf32>
    %960 = arith.mulf %959, %956 : vector<20x128xf32>
    %961 = vector.broadcast %954 : vector<1x128xf32> to vector<20x128xf32>
    %962 = arith.mulf %961, %958 : vector<20x128xf32>
    %963 = arith.subf %960, %962 : vector<20x128xf32>
    %964 = vector.broadcast %953 : vector<1x128xf32> to vector<20x128xf32>
    %965 = arith.mulf %964, %958 : vector<20x128xf32>
    %966 = vector.broadcast %954 : vector<1x128xf32> to vector<20x128xf32>
    %967 = arith.mulf %966, %956 : vector<20x128xf32>
    %968 = arith.addf %965, %967 : vector<20x128xf32>
    %969 = arith.addf %951, %963 : vector<20x128xf32>
    %970 = arith.addf %952, %968 : vector<20x128xf32>
    %c9_635 = arith.constant 9 : index
    %c0_636 = arith.constant 0 : index
    %971 = vector.load %arg19[%c9_635, %c0_636] : memref<20x128xf32, #tpu.memory_space<vmem>>, vector<1x128xf32>
    %c9_637 = arith.constant 9 : index
    %c0_638 = arith.constant 0 : index
    %972 = vector.load %arg20[%c9_637, %c0_638] : memref<20x128xf32, #tpu.memory_space<vmem>>, vector<1x128xf32>
    %c2_639 = arith.constant 2 : index
    %c9_640 = arith.constant 9 : index
    %c0_641 = arith.constant 0 : index
    %c0_642 = arith.constant 0 : index
    %973 = vector.load %arg10[%c2_639, %c9_640, %c0_641, %c0_642] : memref<3x20x20x128xf32, #tpu.memory_space<vmem>>, vector<1x1x20x128xf32>
    %974 = vector.shape_cast %973 : vector<1x1x20x128xf32> to vector<20x128xf32>
    %c2_643 = arith.constant 2 : index
    %c9_644 = arith.constant 9 : index
    %c0_645 = arith.constant 0 : index
    %c0_646 = arith.constant 0 : index
    %975 = vector.load %arg11[%c2_643, %c9_644, %c0_645, %c0_646] : memref<3x20x20x128xf32, #tpu.memory_space<vmem>>, vector<1x1x20x128xf32>
    %976 = vector.shape_cast %975 : vector<1x1x20x128xf32> to vector<20x128xf32>
    %977 = vector.broadcast %971 : vector<1x128xf32> to vector<20x128xf32>
    %978 = arith.mulf %977, %974 : vector<20x128xf32>
    %979 = vector.broadcast %972 : vector<1x128xf32> to vector<20x128xf32>
    %980 = arith.mulf %979, %976 : vector<20x128xf32>
    %981 = arith.subf %978, %980 : vector<20x128xf32>
    %982 = vector.broadcast %971 : vector<1x128xf32> to vector<20x128xf32>
    %983 = arith.mulf %982, %976 : vector<20x128xf32>
    %984 = vector.broadcast %972 : vector<1x128xf32> to vector<20x128xf32>
    %985 = arith.mulf %984, %974 : vector<20x128xf32>
    %986 = arith.addf %983, %985 : vector<20x128xf32>
    %987 = arith.addf %969, %981 : vector<20x128xf32>
    %988 = arith.addf %970, %986 : vector<20x128xf32>
    %c10_647 = arith.constant 10 : index
    %c0_648 = arith.constant 0 : index
    %989 = vector.load %arg19[%c10_647, %c0_648] : memref<20x128xf32, #tpu.memory_space<vmem>>, vector<1x128xf32>
    %c10_649 = arith.constant 10 : index
    %c0_650 = arith.constant 0 : index
    %990 = vector.load %arg20[%c10_649, %c0_650] : memref<20x128xf32, #tpu.memory_space<vmem>>, vector<1x128xf32>
    %c2_651 = arith.constant 2 : index
    %c10_652 = arith.constant 10 : index
    %c0_653 = arith.constant 0 : index
    %c0_654 = arith.constant 0 : index
    %991 = vector.load %arg10[%c2_651, %c10_652, %c0_653, %c0_654] : memref<3x20x20x128xf32, #tpu.memory_space<vmem>>, vector<1x1x20x128xf32>
    %992 = vector.shape_cast %991 : vector<1x1x20x128xf32> to vector<20x128xf32>
    %c2_655 = arith.constant 2 : index
    %c10_656 = arith.constant 10 : index
    %c0_657 = arith.constant 0 : index
    %c0_658 = arith.constant 0 : index
    %993 = vector.load %arg11[%c2_655, %c10_656, %c0_657, %c0_658] : memref<3x20x20x128xf32, #tpu.memory_space<vmem>>, vector<1x1x20x128xf32>
    %994 = vector.shape_cast %993 : vector<1x1x20x128xf32> to vector<20x128xf32>
    %995 = vector.broadcast %989 : vector<1x128xf32> to vector<20x128xf32>
    %996 = arith.mulf %995, %992 : vector<20x128xf32>
    %997 = vector.broadcast %990 : vector<1x128xf32> to vector<20x128xf32>
    %998 = arith.mulf %997, %994 : vector<20x128xf32>
    %999 = arith.subf %996, %998 : vector<20x128xf32>
    %1000 = vector.broadcast %989 : vector<1x128xf32> to vector<20x128xf32>
    %1001 = arith.mulf %1000, %994 : vector<20x128xf32>
    %1002 = vector.broadcast %990 : vector<1x128xf32> to vector<20x128xf32>
    %1003 = arith.mulf %1002, %992 : vector<20x128xf32>
    %1004 = arith.addf %1001, %1003 : vector<20x128xf32>
    %1005 = arith.addf %987, %999 : vector<20x128xf32>
    %1006 = arith.addf %988, %1004 : vector<20x128xf32>
    %c11_659 = arith.constant 11 : index
    %c0_660 = arith.constant 0 : index
    %1007 = vector.load %arg19[%c11_659, %c0_660] : memref<20x128xf32, #tpu.memory_space<vmem>>, vector<1x128xf32>
    %c11_661 = arith.constant 11 : index
    %c0_662 = arith.constant 0 : index
    %1008 = vector.load %arg20[%c11_661, %c0_662] : memref<20x128xf32, #tpu.memory_space<vmem>>, vector<1x128xf32>
    %c2_663 = arith.constant 2 : index
    %c11_664 = arith.constant 11 : index
    %c0_665 = arith.constant 0 : index
    %c0_666 = arith.constant 0 : index
    %1009 = vector.load %arg10[%c2_663, %c11_664, %c0_665, %c0_666] : memref<3x20x20x128xf32, #tpu.memory_space<vmem>>, vector<1x1x20x128xf32>
    %1010 = vector.shape_cast %1009 : vector<1x1x20x128xf32> to vector<20x128xf32>
    %c2_667 = arith.constant 2 : index
    %c11_668 = arith.constant 11 : index
    %c0_669 = arith.constant 0 : index
    %c0_670 = arith.constant 0 : index
    %1011 = vector.load %arg11[%c2_667, %c11_668, %c0_669, %c0_670] : memref<3x20x20x128xf32, #tpu.memory_space<vmem>>, vector<1x1x20x128xf32>
    %1012 = vector.shape_cast %1011 : vector<1x1x20x128xf32> to vector<20x128xf32>
    %1013 = vector.broadcast %1007 : vector<1x128xf32> to vector<20x128xf32>
    %1014 = arith.mulf %1013, %1010 : vector<20x128xf32>
    %1015 = vector.broadcast %1008 : vector<1x128xf32> to vector<20x128xf32>
    %1016 = arith.mulf %1015, %1012 : vector<20x128xf32>
    %1017 = arith.subf %1014, %1016 : vector<20x128xf32>
    %1018 = vector.broadcast %1007 : vector<1x128xf32> to vector<20x128xf32>
    %1019 = arith.mulf %1018, %1012 : vector<20x128xf32>
    %1020 = vector.broadcast %1008 : vector<1x128xf32> to vector<20x128xf32>
    %1021 = arith.mulf %1020, %1010 : vector<20x128xf32>
    %1022 = arith.addf %1019, %1021 : vector<20x128xf32>
    %1023 = arith.addf %1005, %1017 : vector<20x128xf32>
    %1024 = arith.addf %1006, %1022 : vector<20x128xf32>
    %c12_671 = arith.constant 12 : index
    %c0_672 = arith.constant 0 : index
    %1025 = vector.load %arg19[%c12_671, %c0_672] : memref<20x128xf32, #tpu.memory_space<vmem>>, vector<1x128xf32>
    %c12_673 = arith.constant 12 : index
    %c0_674 = arith.constant 0 : index
    %1026 = vector.load %arg20[%c12_673, %c0_674] : memref<20x128xf32, #tpu.memory_space<vmem>>, vector<1x128xf32>
    %c2_675 = arith.constant 2 : index
    %c12_676 = arith.constant 12 : index
    %c0_677 = arith.constant 0 : index
    %c0_678 = arith.constant 0 : index
    %1027 = vector.load %arg10[%c2_675, %c12_676, %c0_677, %c0_678] : memref<3x20x20x128xf32, #tpu.memory_space<vmem>>, vector<1x1x20x128xf32>
    %1028 = vector.shape_cast %1027 : vector<1x1x20x128xf32> to vector<20x128xf32>
    %c2_679 = arith.constant 2 : index
    %c12_680 = arith.constant 12 : index
    %c0_681 = arith.constant 0 : index
    %c0_682 = arith.constant 0 : index
    %1029 = vector.load %arg11[%c2_679, %c12_680, %c0_681, %c0_682] : memref<3x20x20x128xf32, #tpu.memory_space<vmem>>, vector<1x1x20x128xf32>
    %1030 = vector.shape_cast %1029 : vector<1x1x20x128xf32> to vector<20x128xf32>
    %1031 = vector.broadcast %1025 : vector<1x128xf32> to vector<20x128xf32>
    %1032 = arith.mulf %1031, %1028 : vector<20x128xf32>
    %1033 = vector.broadcast %1026 : vector<1x128xf32> to vector<20x128xf32>
    %1034 = arith.mulf %1033, %1030 : vector<20x128xf32>
    %1035 = arith.subf %1032, %1034 : vector<20x128xf32>
    %1036 = vector.broadcast %1025 : vector<1x128xf32> to vector<20x128xf32>
    %1037 = arith.mulf %1036, %1030 : vector<20x128xf32>
    %1038 = vector.broadcast %1026 : vector<1x128xf32> to vector<20x128xf32>
    %1039 = arith.mulf %1038, %1028 : vector<20x128xf32>
    %1040 = arith.addf %1037, %1039 : vector<20x128xf32>
    %1041 = arith.addf %1023, %1035 : vector<20x128xf32>
    %1042 = arith.addf %1024, %1040 : vector<20x128xf32>
    %c13_683 = arith.constant 13 : index
    %c0_684 = arith.constant 0 : index
    %1043 = vector.load %arg19[%c13_683, %c0_684] : memref<20x128xf32, #tpu.memory_space<vmem>>, vector<1x128xf32>
    %c13_685 = arith.constant 13 : index
    %c0_686 = arith.constant 0 : index
    %1044 = vector.load %arg20[%c13_685, %c0_686] : memref<20x128xf32, #tpu.memory_space<vmem>>, vector<1x128xf32>
    %c2_687 = arith.constant 2 : index
    %c13_688 = arith.constant 13 : index
    %c0_689 = arith.constant 0 : index
    %c0_690 = arith.constant 0 : index
    %1045 = vector.load %arg10[%c2_687, %c13_688, %c0_689, %c0_690] : memref<3x20x20x128xf32, #tpu.memory_space<vmem>>, vector<1x1x20x128xf32>
    %1046 = vector.shape_cast %1045 : vector<1x1x20x128xf32> to vector<20x128xf32>
    %c2_691 = arith.constant 2 : index
    %c13_692 = arith.constant 13 : index
    %c0_693 = arith.constant 0 : index
    %c0_694 = arith.constant 0 : index
    %1047 = vector.load %arg11[%c2_691, %c13_692, %c0_693, %c0_694] : memref<3x20x20x128xf32, #tpu.memory_space<vmem>>, vector<1x1x20x128xf32>
    %1048 = vector.shape_cast %1047 : vector<1x1x20x128xf32> to vector<20x128xf32>
    %1049 = vector.broadcast %1043 : vector<1x128xf32> to vector<20x128xf32>
    %1050 = arith.mulf %1049, %1046 : vector<20x128xf32>
    %1051 = vector.broadcast %1044 : vector<1x128xf32> to vector<20x128xf32>
    %1052 = arith.mulf %1051, %1048 : vector<20x128xf32>
    %1053 = arith.subf %1050, %1052 : vector<20x128xf32>
    %1054 = vector.broadcast %1043 : vector<1x128xf32> to vector<20x128xf32>
    %1055 = arith.mulf %1054, %1048 : vector<20x128xf32>
    %1056 = vector.broadcast %1044 : vector<1x128xf32> to vector<20x128xf32>
    %1057 = arith.mulf %1056, %1046 : vector<20x128xf32>
    %1058 = arith.addf %1055, %1057 : vector<20x128xf32>
    %1059 = arith.addf %1041, %1053 : vector<20x128xf32>
    %1060 = arith.addf %1042, %1058 : vector<20x128xf32>
    %c14_695 = arith.constant 14 : index
    %c0_696 = arith.constant 0 : index
    %1061 = vector.load %arg19[%c14_695, %c0_696] : memref<20x128xf32, #tpu.memory_space<vmem>>, vector<1x128xf32>
    %c14_697 = arith.constant 14 : index
    %c0_698 = arith.constant 0 : index
    %1062 = vector.load %arg20[%c14_697, %c0_698] : memref<20x128xf32, #tpu.memory_space<vmem>>, vector<1x128xf32>
    %c2_699 = arith.constant 2 : index
    %c14_700 = arith.constant 14 : index
    %c0_701 = arith.constant 0 : index
    %c0_702 = arith.constant 0 : index
    %1063 = vector.load %arg10[%c2_699, %c14_700, %c0_701, %c0_702] : memref<3x20x20x128xf32, #tpu.memory_space<vmem>>, vector<1x1x20x128xf32>
    %1064 = vector.shape_cast %1063 : vector<1x1x20x128xf32> to vector<20x128xf32>
    %c2_703 = arith.constant 2 : index
    %c14_704 = arith.constant 14 : index
    %c0_705 = arith.constant 0 : index
    %c0_706 = arith.constant 0 : index
    %1065 = vector.load %arg11[%c2_703, %c14_704, %c0_705, %c0_706] : memref<3x20x20x128xf32, #tpu.memory_space<vmem>>, vector<1x1x20x128xf32>
    %1066 = vector.shape_cast %1065 : vector<1x1x20x128xf32> to vector<20x128xf32>
    %1067 = vector.broadcast %1061 : vector<1x128xf32> to vector<20x128xf32>
    %1068 = arith.mulf %1067, %1064 : vector<20x128xf32>
    %1069 = vector.broadcast %1062 : vector<1x128xf32> to vector<20x128xf32>
    %1070 = arith.mulf %1069, %1066 : vector<20x128xf32>
    %1071 = arith.subf %1068, %1070 : vector<20x128xf32>
    %1072 = vector.broadcast %1061 : vector<1x128xf32> to vector<20x128xf32>
    %1073 = arith.mulf %1072, %1066 : vector<20x128xf32>
    %1074 = vector.broadcast %1062 : vector<1x128xf32> to vector<20x128xf32>
    %1075 = arith.mulf %1074, %1064 : vector<20x128xf32>
    %1076 = arith.addf %1073, %1075 : vector<20x128xf32>
    %1077 = arith.addf %1059, %1071 : vector<20x128xf32>
    %1078 = arith.addf %1060, %1076 : vector<20x128xf32>
    %c15_707 = arith.constant 15 : index
    %c0_708 = arith.constant 0 : index
    %1079 = vector.load %arg19[%c15_707, %c0_708] : memref<20x128xf32, #tpu.memory_space<vmem>>, vector<1x128xf32>
    %c15_709 = arith.constant 15 : index
    %c0_710 = arith.constant 0 : index
    %1080 = vector.load %arg20[%c15_709, %c0_710] : memref<20x128xf32, #tpu.memory_space<vmem>>, vector<1x128xf32>
    %c2_711 = arith.constant 2 : index
    %c15_712 = arith.constant 15 : index
    %c0_713 = arith.constant 0 : index
    %c0_714 = arith.constant 0 : index
    %1081 = vector.load %arg10[%c2_711, %c15_712, %c0_713, %c0_714] : memref<3x20x20x128xf32, #tpu.memory_space<vmem>>, vector<1x1x20x128xf32>
    %1082 = vector.shape_cast %1081 : vector<1x1x20x128xf32> to vector<20x128xf32>
    %c2_715 = arith.constant 2 : index
    %c15_716 = arith.constant 15 : index
    %c0_717 = arith.constant 0 : index
    %c0_718 = arith.constant 0 : index
    %1083 = vector.load %arg11[%c2_715, %c15_716, %c0_717, %c0_718] : memref<3x20x20x128xf32, #tpu.memory_space<vmem>>, vector<1x1x20x128xf32>
    %1084 = vector.shape_cast %1083 : vector<1x1x20x128xf32> to vector<20x128xf32>
    %1085 = vector.broadcast %1079 : vector<1x128xf32> to vector<20x128xf32>
    %1086 = arith.mulf %1085, %1082 : vector<20x128xf32>
    %1087 = vector.broadcast %1080 : vector<1x128xf32> to vector<20x128xf32>
    %1088 = arith.mulf %1087, %1084 : vector<20x128xf32>
    %1089 = arith.subf %1086, %1088 : vector<20x128xf32>
    %1090 = vector.broadcast %1079 : vector<1x128xf32> to vector<20x128xf32>
    %1091 = arith.mulf %1090, %1084 : vector<20x128xf32>
    %1092 = vector.broadcast %1080 : vector<1x128xf32> to vector<20x128xf32>
    %1093 = arith.mulf %1092, %1082 : vector<20x128xf32>
    %1094 = arith.addf %1091, %1093 : vector<20x128xf32>
    %1095 = arith.addf %1077, %1089 : vector<20x128xf32>
    %1096 = arith.addf %1078, %1094 : vector<20x128xf32>
    %c16_719 = arith.constant 16 : index
    %c0_720 = arith.constant 0 : index
    %1097 = vector.load %arg19[%c16_719, %c0_720] : memref<20x128xf32, #tpu.memory_space<vmem>>, vector<1x128xf32>
    %c16_721 = arith.constant 16 : index
    %c0_722 = arith.constant 0 : index
    %1098 = vector.load %arg20[%c16_721, %c0_722] : memref<20x128xf32, #tpu.memory_space<vmem>>, vector<1x128xf32>
    %c2_723 = arith.constant 2 : index
    %c16_724 = arith.constant 16 : index
    %c0_725 = arith.constant 0 : index
    %c0_726 = arith.constant 0 : index
    %1099 = vector.load %arg10[%c2_723, %c16_724, %c0_725, %c0_726] : memref<3x20x20x128xf32, #tpu.memory_space<vmem>>, vector<1x1x20x128xf32>
    %1100 = vector.shape_cast %1099 : vector<1x1x20x128xf32> to vector<20x128xf32>
    %c2_727 = arith.constant 2 : index
    %c16_728 = arith.constant 16 : index
    %c0_729 = arith.constant 0 : index
    %c0_730 = arith.constant 0 : index
    %1101 = vector.load %arg11[%c2_727, %c16_728, %c0_729, %c0_730] : memref<3x20x20x128xf32, #tpu.memory_space<vmem>>, vector<1x1x20x128xf32>
    %1102 = vector.shape_cast %1101 : vector<1x1x20x128xf32> to vector<20x128xf32>
    %1103 = vector.broadcast %1097 : vector<1x128xf32> to vector<20x128xf32>
    %1104 = arith.mulf %1103, %1100 : vector<20x128xf32>
    %1105 = vector.broadcast %1098 : vector<1x128xf32> to vector<20x128xf32>
    %1106 = arith.mulf %1105, %1102 : vector<20x128xf32>
    %1107 = arith.subf %1104, %1106 : vector<20x128xf32>
    %1108 = vector.broadcast %1097 : vector<1x128xf32> to vector<20x128xf32>
    %1109 = arith.mulf %1108, %1102 : vector<20x128xf32>
    %1110 = vector.broadcast %1098 : vector<1x128xf32> to vector<20x128xf32>
    %1111 = arith.mulf %1110, %1100 : vector<20x128xf32>
    %1112 = arith.addf %1109, %1111 : vector<20x128xf32>
    %1113 = arith.addf %1095, %1107 : vector<20x128xf32>
    %1114 = arith.addf %1096, %1112 : vector<20x128xf32>
    %c17_731 = arith.constant 17 : index
    %c0_732 = arith.constant 0 : index
    %1115 = vector.load %arg19[%c17_731, %c0_732] : memref<20x128xf32, #tpu.memory_space<vmem>>, vector<1x128xf32>
    %c17_733 = arith.constant 17 : index
    %c0_734 = arith.constant 0 : index
    %1116 = vector.load %arg20[%c17_733, %c0_734] : memref<20x128xf32, #tpu.memory_space<vmem>>, vector<1x128xf32>
    %c2_735 = arith.constant 2 : index
    %c17_736 = arith.constant 17 : index
    %c0_737 = arith.constant 0 : index
    %c0_738 = arith.constant 0 : index
    %1117 = vector.load %arg10[%c2_735, %c17_736, %c0_737, %c0_738] : memref<3x20x20x128xf32, #tpu.memory_space<vmem>>, vector<1x1x20x128xf32>
    %1118 = vector.shape_cast %1117 : vector<1x1x20x128xf32> to vector<20x128xf32>
    %c2_739 = arith.constant 2 : index
    %c17_740 = arith.constant 17 : index
    %c0_741 = arith.constant 0 : index
    %c0_742 = arith.constant 0 : index
    %1119 = vector.load %arg11[%c2_739, %c17_740, %c0_741, %c0_742] : memref<3x20x20x128xf32, #tpu.memory_space<vmem>>, vector<1x1x20x128xf32>
    %1120 = vector.shape_cast %1119 : vector<1x1x20x128xf32> to vector<20x128xf32>
    %1121 = vector.broadcast %1115 : vector<1x128xf32> to vector<20x128xf32>
    %1122 = arith.mulf %1121, %1118 : vector<20x128xf32>
    %1123 = vector.broadcast %1116 : vector<1x128xf32> to vector<20x128xf32>
    %1124 = arith.mulf %1123, %1120 : vector<20x128xf32>
    %1125 = arith.subf %1122, %1124 : vector<20x128xf32>
    %1126 = vector.broadcast %1115 : vector<1x128xf32> to vector<20x128xf32>
    %1127 = arith.mulf %1126, %1120 : vector<20x128xf32>
    %1128 = vector.broadcast %1116 : vector<1x128xf32> to vector<20x128xf32>
    %1129 = arith.mulf %1128, %1118 : vector<20x128xf32>
    %1130 = arith.addf %1127, %1129 : vector<20x128xf32>
    %1131 = arith.addf %1113, %1125 : vector<20x128xf32>
    %1132 = arith.addf %1114, %1130 : vector<20x128xf32>
    %c18_743 = arith.constant 18 : index
    %c0_744 = arith.constant 0 : index
    %1133 = vector.load %arg19[%c18_743, %c0_744] : memref<20x128xf32, #tpu.memory_space<vmem>>, vector<1x128xf32>
    %c18_745 = arith.constant 18 : index
    %c0_746 = arith.constant 0 : index
    %1134 = vector.load %arg20[%c18_745, %c0_746] : memref<20x128xf32, #tpu.memory_space<vmem>>, vector<1x128xf32>
    %c2_747 = arith.constant 2 : index
    %c18_748 = arith.constant 18 : index
    %c0_749 = arith.constant 0 : index
    %c0_750 = arith.constant 0 : index
    %1135 = vector.load %arg10[%c2_747, %c18_748, %c0_749, %c0_750] : memref<3x20x20x128xf32, #tpu.memory_space<vmem>>, vector<1x1x20x128xf32>
    %1136 = vector.shape_cast %1135 : vector<1x1x20x128xf32> to vector<20x128xf32>
    %c2_751 = arith.constant 2 : index
    %c18_752 = arith.constant 18 : index
    %c0_753 = arith.constant 0 : index
    %c0_754 = arith.constant 0 : index
    %1137 = vector.load %arg11[%c2_751, %c18_752, %c0_753, %c0_754] : memref<3x20x20x128xf32, #tpu.memory_space<vmem>>, vector<1x1x20x128xf32>
    %1138 = vector.shape_cast %1137 : vector<1x1x20x128xf32> to vector<20x128xf32>
    %1139 = vector.broadcast %1133 : vector<1x128xf32> to vector<20x128xf32>
    %1140 = arith.mulf %1139, %1136 : vector<20x128xf32>
    %1141 = vector.broadcast %1134 : vector<1x128xf32> to vector<20x128xf32>
    %1142 = arith.mulf %1141, %1138 : vector<20x128xf32>
    %1143 = arith.subf %1140, %1142 : vector<20x128xf32>
    %1144 = vector.broadcast %1133 : vector<1x128xf32> to vector<20x128xf32>
    %1145 = arith.mulf %1144, %1138 : vector<20x128xf32>
    %1146 = vector.broadcast %1134 : vector<1x128xf32> to vector<20x128xf32>
    %1147 = arith.mulf %1146, %1136 : vector<20x128xf32>
    %1148 = arith.addf %1145, %1147 : vector<20x128xf32>
    %1149 = arith.addf %1131, %1143 : vector<20x128xf32>
    %1150 = arith.addf %1132, %1148 : vector<20x128xf32>
    %c19_755 = arith.constant 19 : index
    %c0_756 = arith.constant 0 : index
    %1151 = vector.load %arg19[%c19_755, %c0_756] : memref<20x128xf32, #tpu.memory_space<vmem>>, vector<1x128xf32>
    %c19_757 = arith.constant 19 : index
    %c0_758 = arith.constant 0 : index
    %1152 = vector.load %arg20[%c19_757, %c0_758] : memref<20x128xf32, #tpu.memory_space<vmem>>, vector<1x128xf32>
    %c2_759 = arith.constant 2 : index
    %c19_760 = arith.constant 19 : index
    %c0_761 = arith.constant 0 : index
    %c0_762 = arith.constant 0 : index
    %1153 = vector.load %arg10[%c2_759, %c19_760, %c0_761, %c0_762] : memref<3x20x20x128xf32, #tpu.memory_space<vmem>>, vector<1x1x20x128xf32>
    %1154 = vector.shape_cast %1153 : vector<1x1x20x128xf32> to vector<20x128xf32>
    %c2_763 = arith.constant 2 : index
    %c19_764 = arith.constant 19 : index
    %c0_765 = arith.constant 0 : index
    %c0_766 = arith.constant 0 : index
    %1155 = vector.load %arg11[%c2_763, %c19_764, %c0_765, %c0_766] : memref<3x20x20x128xf32, #tpu.memory_space<vmem>>, vector<1x1x20x128xf32>
    %1156 = vector.shape_cast %1155 : vector<1x1x20x128xf32> to vector<20x128xf32>
    %1157 = vector.broadcast %1151 : vector<1x128xf32> to vector<20x128xf32>
    %1158 = arith.mulf %1157, %1154 : vector<20x128xf32>
    %1159 = vector.broadcast %1152 : vector<1x128xf32> to vector<20x128xf32>
    %1160 = arith.mulf %1159, %1156 : vector<20x128xf32>
    %1161 = arith.subf %1158, %1160 : vector<20x128xf32>
    %1162 = vector.broadcast %1151 : vector<1x128xf32> to vector<20x128xf32>
    %1163 = arith.mulf %1162, %1156 : vector<20x128xf32>
    %1164 = vector.broadcast %1152 : vector<1x128xf32> to vector<20x128xf32>
    %1165 = arith.mulf %1164, %1154 : vector<20x128xf32>
    %1166 = arith.addf %1163, %1165 : vector<20x128xf32>
    %1167 = arith.addf %1149, %1161 : vector<20x128xf32>
    %1168 = arith.addf %1150, %1166 : vector<20x128xf32>
    %1169 = arith.truncf %1167 : vector<20x128xf32> to vector<20x128xbf16>
    %cst_767 = arith.constant dense<0.000000e+00> : vector<20x256xf32>
    %1170 = tpu.matmul %1169, %26, %cst_767 {dimension_numbers = #tpu.dot_dimension_numbers<[1], [0], [0], [1], [0, 0, 1, 1], [], []>} : vector<20x128xbf16>, vector<128x256xbf16>, vector<20x256xf32> -> vector<20x256xf32>
    %1171 = arith.truncf %1168 : vector<20x128xf32> to vector<20x128xbf16>
    %cst_768 = arith.constant dense<0.000000e+00> : vector<20x256xf32>
    %1172 = tpu.matmul %1171, %27, %cst_768 {dimension_numbers = #tpu.dot_dimension_numbers<[1], [0], [0], [1], [0, 0, 1, 1], [], []>} : vector<20x128xbf16>, vector<128x256xbf16>, vector<20x256xf32> -> vector<20x256xf32>
    %1173 = arith.addf %1170, %1172 : vector<20x256xf32>
    %c2_769 = arith.constant 2 : index
    %c0_770 = arith.constant 0 : index
    %c0_771 = arith.constant 0 : index
    %1174 = vector.load %arg12[%c2_769, %c0_770, %c0_771] : memref<3x20x20xf32, #tpu.memory_space<vmem>>, vector<1x20x20xf32>
    %1175 = vector.shape_cast %1174 : vector<1x20x20xf32> to vector<20x20xf32>
    %cst_772 = arith.constant dense<0.000000e+00> : vector<20x256xf32>
    %1176 = tpu.matmul %1175, %805, %cst_772 {dimension_numbers = #tpu.dot_dimension_numbers<[1], [0], [0], [1], [0, 0, 1, 1], [], []>} : vector<20x20xf32>, vector<20x256xf32>, vector<20x256xf32> -> vector<20x256xf32>
    %c2_773 = arith.constant 2 : index
    %c0_774 = arith.constant 0 : index
    %c0_775 = arith.constant 0 : index
    %1177 = vector.load %arg13[%c2_773, %c0_774, %c0_775] : memref<3x20x1xf32, #tpu.memory_space<vmem>>, vector<1x20x1xf32>
    %1178 = vector.shape_cast %1177 : vector<1x20x1xf32> to vector<20x1xf32>
    %1179 = vector.broadcast %1178 : vector<20x1xf32> to vector<20x256xf32>
    %1180 = arith.addf %1176, %1179 : vector<20x256xf32>
    %1181 = arith.addf %1173, %1180 : vector<20x256xf32>
    %c0_776 = arith.constant 0 : index
    %c0_777 = arith.constant 0 : index
    %1182 = vector.load %arg14[%c0_776, %c0_777] : memref<128x20xf32, #tpu.memory_space<vmem>>, vector<128x20xf32>
    %cst_778 = arith.constant dense<0.000000e+00> : vector<128x256xf32>
    %1183 = tpu.matmul %1182, %1181, %cst_778 {dimension_numbers = #tpu.dot_dimension_numbers<[1], [0], [0], [1], [0, 0, 1, 1], [], []>} : vector<128x20xf32>, vector<20x256xf32>, vector<128x256xf32> -> vector<128x256xf32>
    %c0_779 = arith.constant 0 : index
    %c0_780 = arith.constant 0 : index
    %1184 = vector.load %arg15[%c0_779, %c0_780] : memref<128x1xf32, #tpu.memory_space<vmem>>, vector<128x1xf32>
    %1185 = vector.broadcast %1184 : vector<128x1xf32> to vector<128x256xf32>
    %1186 = arith.addf %1183, %1185 : vector<128x256xf32>
    %1187 = arith.mulf %1186, %1186 : vector<128x256xf32>
    %1188 = arith.mulf %1186, %1187 : vector<128x256xf32>
    %cst_781 = arith.constant 4.471500e-02 : f32
    %1189 = vector.broadcast %cst_781 : f32 to vector<128x256xf32>
    %1190 = arith.mulf %1189, %1188 : vector<128x256xf32>
    %1191 = arith.addf %1186, %1190 : vector<128x256xf32>
    %cst_782 = arith.constant 0.797884583 : f32
    %1192 = vector.broadcast %cst_782 : f32 to vector<128x256xf32>
    %1193 = arith.mulf %1192, %1191 : vector<128x256xf32>
    %1194 = math.tanh %1193 : vector<128x256xf32>
    %cst_783 = arith.constant 1.000000e+00 : f32
    %1195 = vector.broadcast %cst_783 : f32 to vector<128x256xf32>
    %1196 = arith.addf %1195, %1194 : vector<128x256xf32>
    %cst_784 = arith.constant 5.000000e-01 : f32
    %1197 = vector.broadcast %cst_784 : f32 to vector<128x256xf32>
    %1198 = arith.mulf %1197, %1196 : vector<128x256xf32>
    %1199 = arith.mulf %1186, %1198 : vector<128x256xf32>
    %c0_785 = arith.constant 0 : index
    %c0_786 = arith.constant 0 : index
    %1200 = vector.load %arg16[%c0_785, %c0_786] : memref<3x128xf32, #tpu.memory_space<vmem>>, vector<3x128xf32>
    %cst_787 = arith.constant dense<0.000000e+00> : vector<3x256xf32>
    %1201 = tpu.matmul %1200, %1199, %cst_787 {dimension_numbers = #tpu.dot_dimension_numbers<[1], [0], [0], [1], [0, 0, 1, 1], [], []>} : vector<3x128xf32>, vector<128x256xf32>, vector<3x256xf32> -> vector<3x256xf32>
    %c0_788 = arith.constant 0 : index
    %c0_789 = arith.constant 0 : index
    %1202 = vector.load %arg17[%c0_788, %c0_789] : memref<3x1xf32, #tpu.memory_space<vmem>>, vector<3x1xf32>
    %1203 = vector.broadcast %1202 : vector<3x1xf32> to vector<3x256xf32>
    %1204 = arith.addf %1201, %1203 : vector<3x256xf32>
    %c0_790 = arith.constant 0 : index
    %c0_791 = arith.constant 0 : index
    %c0_792 = arith.constant 0 : index
    %1205 = vector.load %arg18[%c0_790, %c0_791, %c0_792] : memref<1x3x256xf32, #tpu.memory_space<vmem>>, vector<1x3x256xf32>
    %1206 = vector.shape_cast %1205 : vector<1x3x256xf32> to vector<3x256xf32>
    %1207 = vector.shape_cast %1204 : vector<3x256xf32> to vector<1x3x256xf32>
    tpu.vector_store %arg18[%c0_790, %c0_791, %c0_792], %1207 {strides = array<i32>} : memref<1x3x256xf32, #tpu.memory_space<vmem>>, vector<1x3x256xf32>,
    return
  }
  func.func @transform_0(%arg0: i32) -> (i32, i32, i32) {
    %c0_i32 = arith.constant 0 : i32
    %c0_i32_0 = arith.constant 0 : i32
    %c0_i32_1 = arith.constant 0 : i32
    return %arg0, %c0_i32, %c0_i32_0 : i32, i32, i32
  }
  func.func @transform_1(%arg0: i32) -> (i32, i32, i32) {
    %c0_i32 = arith.constant 0 : i32
    %c0_i32_0 = arith.constant 0 : i32
    %c0_i32_1 = arith.constant 0 : i32
    return %arg0, %c0_i32, %c0_i32_0 : i32, i32, i32
  }
  func.func @transform_2(%arg0: i32) -> (i32, i32) {
    %c0_i32 = arith.constant 0 : i32
    %c0_i32_0 = arith.constant 0 : i32
    %c0_i32_1 = arith.constant 0 : i32
    return %c0_i32, %c0_i32_0 : i32, i32
  }
  func.func @transform_3(%arg0: i32) -> (i32, i32) {
    %c0_i32 = arith.constant 0 : i32
    %c0_i32_0 = arith.constant 0 : i32
    %c0_i32_1 = arith.constant 0 : i32
    return %c0_i32, %c0_i32_0 : i32, i32
  }
  func.func @transform_4(%arg0: i32) -> (i32, i32) {
    %c0_i32 = arith.constant 0 : i32
    %c0_i32_0 = arith.constant 0 : i32
    %c0_i32_1 = arith.constant 0 : i32
    return %c0_i32, %c0_i32_0 : i32, i32
  }
  func.func @transform_5(%arg0: i32) -> (i32, i32) {
    %c0_i32 = arith.constant 0 : i32
    %c0_i32_0 = arith.constant 0 : i32
    %c0_i32_1 = arith.constant 0 : i32
    return %c0_i32, %c0_i32_0 : i32, i32
  }
  func.func @transform_6(%arg0: i32) -> (i32, i32) {
    %c0_i32 = arith.constant 0 : i32
    %c0_i32_0 = arith.constant 0 : i32
    %c0_i32_1 = arith.constant 0 : i32
    return %c0_i32, %c0_i32_0 : i32, i32
  }
  func.func @transform_7(%arg0: i32) -> (i32, i32) {
    %c0_i32 = arith.constant 0 : i32
    %c0_i32_0 = arith.constant 0 : i32
    %c0_i32_1 = arith.constant 0 : i32
    return %c0_i32, %c0_i32_0 : i32, i32
  }
  func.func @transform_8(%arg0: i32) -> (i32, i32) {
    %c0_i32 = arith.constant 0 : i32
    %c0_i32_0 = arith.constant 0 : i32
    %c0_i32_1 = arith.constant 0 : i32
    return %c0_i32, %c0_i32_0 : i32, i32
  }
  func.func @transform_9(%arg0: i32) -> (i32, i32, i32, i32) {
    %c0_i32 = arith.constant 0 : i32
    %c0_i32_0 = arith.constant 0 : i32
    %c0_i32_1 = arith.constant 0 : i32
    %c0_i32_2 = arith.constant 0 : i32
    %c0_i32_3 = arith.constant 0 : i32
    return %c0_i32, %c0_i32_0, %c0_i32_1, %c0_i32_2 : i32, i32, i32, i32
  }
  func.func @transform_10(%arg0: i32) -> (i32, i32, i32, i32) {
    %c0_i32 = arith.constant 0 : i32
    %c0_i32_0 = arith.constant 0 : i32
    %c0_i32_1 = arith.constant 0 : i32
    %c0_i32_2 = arith.constant 0 : i32
    %c0_i32_3 = arith.constant 0 : i32
    return %c0_i32, %c0_i32_0, %c0_i32_1, %c0_i32_2 : i32, i32, i32, i32
  }
  func.func @transform_11(%arg0: i32) -> (i32, i32, i32) {
    %c0_i32 = arith.constant 0 : i32
    %c0_i32_0 = arith.constant 0 : i32
    %c0_i32_1 = arith.constant 0 : i32
    %c0_i32_2 = arith.constant 0 : i32
    return %c0_i32, %c0_i32_0, %c0_i32_1 : i32, i32, i32
  }
  func.func @transform_12(%arg0: i32) -> (i32, i32, i32) {
    %c0_i32 = arith.constant 0 : i32
    %c0_i32_0 = arith.constant 0 : i32
    %c0_i32_1 = arith.constant 0 : i32
    %c0_i32_2 = arith.constant 0 : i32
    return %c0_i32, %c0_i32_0, %c0_i32_1 : i32, i32, i32
  }
  func.func @transform_13(%arg0: i32) -> (i32, i32) {
    %c0_i32 = arith.constant 0 : i32
    %c0_i32_0 = arith.constant 0 : i32
    %c0_i32_1 = arith.constant 0 : i32
    return %c0_i32, %c0_i32_0 : i32, i32
  }
  func.func @transform_14(%arg0: i32) -> (i32, i32) {
    %c0_i32 = arith.constant 0 : i32
    %c0_i32_0 = arith.constant 0 : i32
    %c0_i32_1 = arith.constant 0 : i32
    return %c0_i32, %c0_i32_0 : i32, i32
  }
  func.func @transform_15(%arg0: i32) -> (i32, i32) {
    %c0_i32 = arith.constant 0 : i32
    %c0_i32_0 = arith.constant 0 : i32
    %c0_i32_1 = arith.constant 0 : i32
    return %c0_i32, %c0_i32_0 : i32, i32
  }
  func.func @transform_16(%arg0: i32) -> (i32, i32) {
    %c0_i32 = arith.constant 0 : i32
    %c0_i32_0 = arith.constant 0 : i32
    %c0_i32_1 = arith.constant 0 : i32
    return %c0_i32, %c0_i32_0 : i32, i32
  }
  func.func @transform_17(%arg0: i32) -> (i32, i32, i32) {
    %c0_i32 = arith.constant 0 : i32
    %c0_i32_0 = arith.constant 0 : i32
    %c0_i32_1 = arith.constant 0 : i32
    return %arg0, %c0_i32, %c0_i32_0 : i32, i32, i32
  }
}

</mosaic_0001>

<llo_original>
// kernel: net_forward.1
$region0: #{net_forward.1}
  #allocation0 [shape = 'u32[]', space=smem, size = 0x4, offset = 0x4, fixed_abs, tag = 'smem constant byte address 0x4 - core index']
  #allocation1 [shape = 'u32[144,128]{1,0:T(1,128)}', space=vmem, size = 0x12000, scoped, tag = 'internal scratch']
  #allocation2 [shape = 'f32[20,128]{1,0:T(8,128)}', space=vmem, size = 0x3000, scoped, tag = 'scratch operand']
  #allocation3 [shape = 'f32[20,128]{1,0:T(8,128)}', space=vmem, size = 0x3000, scoped, tag = 'scratch operand']
  %s0 = inlined_call_operand.vmem [shape: f32[2,28,256], index: 0, kind: input, shape index: {}]
  %s1 = inlined_call_operand.vmem [shape: f32[2,1,4], index: 1, kind: input, shape index: {}]
  %s2 = inlined_call_operand.vmem [shape: f32[20,28], index: 2, kind: input, shape index: {}]
  %s3 = inlined_call_operand.vmem [shape: f32[20,4], index: 3, kind: input, shape index: {}]
  %s4 = inlined_call_operand.vmem [shape: f32[20,1], index: 4, kind: input, shape index: {}]
  %s5 = inlined_call_operand.vmem [shape: bf16[256,128], index: 5, kind: input, shape index: {}]
  %s6 = inlined_call_operand.vmem [shape: bf16[256,128], index: 6, kind: input, shape index: {}]
  %s7 = inlined_call_operand.vmem [shape: bf16[128,256], index: 7, kind: input, shape index: {}]
  %s8 = inlined_call_operand.vmem [shape: bf16[128,256], index: 8, kind: input, shape index: {}]
  %s9 = inlined_call_operand.vmem [shape: f32[3,20,20,128], index: 9, kind: input, shape index: {}]
  %s10 = inlined_call_operand.hbm [shape: f32[3,20,20,128], index: 10, kind: input, shape index: {}]
  %s11 = inlined_call_operand.hbm [shape: f32[3,20,20], index: 11, kind: input, shape index: {}]
  %s12 = inlined_call_operand.vmem [shape: f32[3,20,1], index: 12, kind: input, shape index: {}]
  %s13 = inlined_call_operand.vmem [shape: f32[128,20], index: 13, kind: input, shape index: {}]
  %s14 = inlined_call_operand.vmem [shape: f32[128,1], index: 14, kind: input, shape index: {}]
  %s15 = inlined_call_operand.vmem [shape: f32[3,128], index: 15, kind: input, shape index: {}]
  %s16 = inlined_call_operand.vmem [shape: f32[3,1], index: 16, kind: input, shape index: {}]
  %s17 = inlined_call_operand.vmem [shape: f32[2,3,256], index: 17, kind: output, shape index: {}]
  %s18 = sld [smem:[#allocation0]]
  $region109: #{net_forward.1} parent=0
    _
  %s20 = ssub.s32 1, %s18
  %s21 = scalar_select 0, %s20, %s18
  $region1: #{net_forward.1} parent=0
    #allocation4 [shape = 'u8[737280]{0}', space=vmem, size = 0xb4000, scoped, tag = 'input window, operand 10, single buffered']
    #allocation5 [shape = 's32[2]{0}', space=sflag, size = 0x8, scoped, tag = 'scoped memory for net_forward.1']
    #allocation6 [shape = 'u8[36864]{0}', space=vmem, size = 0x9000, scoped, tag = 'input window, operand 11, single buffered']
    #allocation7 [shape = 's32[1]{0}', space=sflag, size = 0x4, scoped, tag = 'scoped memory for net_forward.1']
    %22 = vsyncpa [#allocation5], 0
    %23 = vsyncpa [#allocation7], 0
    loop: start=0, step=1, limit=4
    $region2: #{net_forward.1} parent=1 // loop_pre_header
      _
    $region3: #{net_forward.1} parent=1 // loop_header
      %s25 = sphi 0, %s29
      %p26 = scmp.ge.s32.totalorder %s25, 4
      %s35 = sphi 0, %s37
      %s38 = sphi 0, %s35
      %s39 = sphi 0, %s38
      %s55 = sphi 0, %s39
      %s61 = sphi 0, %s63
      %s64 = sphi 0, %s61
      %s65 = sphi 0, %s64
      %s81 = sphi 0, %s65
      %s85 = sphi 0, %s85
      %s87 = sphi 0, %s85
      %s88 = sphi 0, %s87
      %s102 = sphi 0, %s88
      %s106 = sphi 0, %s106
      %s108 = sphi 0, %s106
      %s109 = sphi 0, %s108
      %s123 = sphi 0, %s109
      %s127 = sphi 0, %s127
      %s129 = sphi 0, %s127
      %s130 = sphi 0, %s129
      %s144 = sphi 0, %s130
      %s148 = sphi 0, %s148
      %s150 = sphi 0, %s148
      %s151 = sphi 0, %s150
      %s165 = sphi 0, %s151
      %s169 = sphi 0, %s169
      %s171 = sphi 0, %s169
      %s172 = sphi 0, %s171
      %s186 = sphi 0, %s172
      %s190 = sphi 0, %s190
      %s192 = sphi 0, %s190
      %s193 = sphi 0, %s192
      %s207 = sphi 0, %s193
      %s211 = sphi 0, %s211
      %s213 = sphi 0, %s211
      %s214 = sphi 0, %s213
      %s228 = sphi 0, %s214
      %s232 = sphi 0, %s232
      %s234 = sphi 0, %s232
      %s235 = sphi 0, %s234
      %s249 = sphi 0, %s235
      %s253 = sphi 0, %s253
      %s255 = sphi 0, %s253
      %s256 = sphi 0, %s255
      %s270 = sphi 0, %s256
      %s274 = sphi 0, %s274
      %s276 = sphi 0, %s274
      %s277 = sphi 0, %s276
      %s291 = sphi 0, %s277
      %s295 = sphi 0, %s295
      %s297 = sphi 0, %s295
      %s298 = sphi 0, %s297
      %s312 = sphi 0, %s298
      %s316 = sphi 0, %s316
      %s318 = sphi 0, %s316
      %s319 = sphi 0, %s318
      %s333 = sphi 0, %s319
      %s337 = sphi 0, %s337
      %s339 = sphi 0, %s337
      %s340 = sphi 0, %s339
      %s354 = sphi 0, %s340
      %s358 = sphi 0, %s358
      %s360 = sphi 0, %s358
      %s361 = sphi 0, %s360
      %s375 = sphi 0, %s361
      %s379 = sphi 0, %s379
      %s381 = sphi 0, %s379
      %s382 = sphi 0, %s381
      %s396 = sphi 0, %s382
      %s402 = sphi 0, %s404
      %s405 = sphi 0, %s402
      %s406 = sphi 0, %s405
      %s422 = sphi 0, %s406
    $region4: #{net_forward.1} parent=1 // loop_header_branch
      %28 = sbr.rel (%p26) target = $region8
    $region5: #{net_forward.1} parent=1 // loop_body
      %s30 = ssub.s32 %s25, 1
      %s31 = ssub.s32 %s25, 2
      %s32 = sadd.s32 %s25, 1
      %s33 = ssub.s32 %s25, %s32
      %p34 = scmp.eq.s32.totalorder %s33, 0
      %s36 = sadd.s32 %s35, 1
      %s37 = scalar_select %p34, %s35, %s36
      %p40 = pneg %p34
      %p41 = scmp.eq.s32.totalorder %s25, 1
      %p42 = por %p40, %p41
      %p43 = scmp.ne.s32.totalorder %s35, %s38
      %p44 = scmp.eq.s32.totalorder %s25, 0
      %p45 = por %p43, %p44
      %p46 = scmp.ne.s32.totalorder %s35, %s38
      %p47 = scmp.eq.s32.totalorder %s30, 1
      %p48 = por %p46, %p47
      %p49 = scmp.ne.s32.totalorder %s38, %s39
      %p50 = scmp.eq.s32.totalorder %s30, 0
      %p51 = por %p49, %p50
      %p52 = scmp.ne.s32.totalorder %s38, %s39
      %p53 = scmp.eq.s32.totalorder %s31, 1
      %p54 = por %p52, %p53
      %p56 = scmp.ne.s32.totalorder %s39, %s55
      %p57 = scmp.eq.s32.totalorder %s31, 0
      %p58 = por %p56, %p57
      %s59 = ssub.s32 %s25, %s32
      %p60 = scmp.eq.s32.totalorder %s59, 0
      %s62 = sadd.s32 %s61, 1
      %s63 = scalar_select %p60, %s61, %s62
      %p66 = pneg %p60
      %p67 = scmp.eq.s32.totalorder %s25, 1
      %p68 = por %p66, %p67
      %p69 = scmp.ne.s32.totalorder %s61, %s64
      %p70 = scmp.eq.s32.totalorder %s25, 0
      %p71 = por %p69, %p70
      %p72 = scmp.ne.s32.totalorder %s61, %s64
      %p73 = scmp.eq.s32.totalorder %s30, 1
      %p74 = por %p72, %p73
      %p75 = scmp.ne.s32.totalorder %s64, %s65
      %p76 = scmp.eq.s32.totalorder %s30, 0
      %p77 = por %p75, %p76
      %p78 = scmp.ne.s32.totalorder %s64, %s65
      %p79 = scmp.eq.s32.totalorder %s31, 1
      %p80 = por %p78, %p79
      %p82 = scmp.ne.s32.totalorder %s65, %s81
      %p83 = scmp.eq.s32.totalorder %s31, 0
      %p84 = por %p82, %p83
      %s86 = sadd.s32 %s85, 1
      %p89 = scmp.eq.s32.totalorder %s25, 1
      %p90 = scmp.ne.s32.totalorder %s85, %s87
      %p91 = scmp.eq.s32.totalorder %s25, 0
      %p92 = por %p90, %p91
      %p93 = scmp.ne.s32.totalorder %s85, %s87
      %p94 = scmp.eq.s32.totalorder %s30, 1
      %p95 = por %p93, %p94
      %p96 = scmp.ne.s32.totalorder %s87, %s88
      %p97 = scmp.eq.s32.totalorder %s30, 0
      %p98 = por %p96, %p97
      %p99 = scmp.ne.s32.totalorder %s87, %s88
      %p100 = scmp.eq.s32.totalorder %s31, 1
      %p101 = por %p99, %p100
      %p103 = scmp.ne.s32.totalorder %s88, %s102
      %p104 = scmp.eq.s32.totalorder %s31, 0
      %p105 = por %p103, %p104
      %s107 = sadd.s32 %s106, 1
      %p110 = scmp.eq.s32.totalorder %s25, 1
      %p111 = scmp.ne.s32.totalorder %s106, %s108
      %p112 = scmp.eq.s32.totalorder %s25, 0
      %p113 = por %p111, %p112
      %p114 = scmp.ne.s32.totalorder %s106, %s108
      %p115 = scmp.eq.s32.totalorder %s30, 1
      %p116 = por %p114, %p115
      %p117 = scmp.ne.s32.totalorder %s108, %s109
      %p118 = scmp.eq.s32.totalorder %s30, 0
      %p119 = por %p117, %p118
      %p120 = scmp.ne.s32.totalorder %s108, %s109
      %p121 = scmp.eq.s32.totalorder %s31, 1
      %p122 = por %p120, %p121
      %p124 = scmp.ne.s32.totalorder %s109, %s123
      %p125 = scmp.eq.s32.totalorder %s31, 0
      %p126 = por %p124, %p125
      %s128 = sadd.s32 %s127, 1
      %p131 = scmp.eq.s32.totalorder %s25, 1
      %p132 = scmp.ne.s32.totalorder %s127, %s129
      %p133 = scmp.eq.s32.totalorder %s25, 0
      %p134 = por %p132, %p133
      %p135 = scmp.ne.s32.totalorder %s127, %s129
      %p136 = scmp.eq.s32.totalorder %s30, 1
      %p137 = por %p135, %p136
      %p138 = scmp.ne.s32.totalorder %s129, %s130
      %p139 = scmp.eq.s32.totalorder %s30, 0
      %p140 = por %p138, %p139
      %p141 = scmp.ne.s32.totalorder %s129, %s130
      %p142 = scmp.eq.s32.totalorder %s31, 1
      %p143 = por %p141, %p142
      %p145 = scmp.ne.s32.totalorder %s130, %s144
      %p146 = scmp.eq.s32.totalorder %s31, 0
      %p147 = por %p145, %p146
      %s149 = sadd.s32 %s148, 1
      %p152 = scmp.eq.s32.totalorder %s25, 1
      %p153 = scmp.ne.s32.totalorder %s148, %s150
      %p154 = scmp.eq.s32.totalorder %s25, 0
      %p155 = por %p153, %p154
      %p156 = scmp.ne.s32.totalorder %s148, %s150
      %p157 = scmp.eq.s32.totalorder %s30, 1
      %p158 = por %p156, %p157
      %p159 = scmp.ne.s32.totalorder %s150, %s151
      %p160 = scmp.eq.s32.totalorder %s30, 0
      %p161 = por %p159, %p160
      %p162 = scmp.ne.s32.totalorder %s150, %s151
      %p163 = scmp.eq.s32.totalorder %s31, 1
      %p164 = por %p162, %p163
      %p166 = scmp.ne.s32.totalorder %s151, %s165
      %p167 = scmp.eq.s32.totalorder %s31, 0
      %p168 = por %p166, %p167
      %s170 = sadd.s32 %s169, 1
      %p173 = scmp.eq.s32.totalorder %s25, 1
      %p174 = scmp.ne.s32.totalorder %s169, %s171
      %p175 = scmp.eq.s32.totalorder %s25, 0
      %p176 = por %p174, %p175
      %p177 = scmp.ne.s32.totalorder %s169, %s171
      %p178 = scmp.eq.s32.totalorder %s30, 1
      %p179 = por %p177, %p178
      %p180 = scmp.ne.s32.totalorder %s171, %s172
      %p181 = scmp.eq.s32.totalorder %s30, 0
      %p182 = por %p180, %p181
      %p183 = scmp.ne.s32.totalorder %s171, %s172
      %p184 = scmp.eq.s32.totalorder %s31, 1
      %p185 = por %p183, %p184
      %p187 = scmp.ne.s32.totalorder %s172, %s186
      %p188 = scmp.eq.s32.totalorder %s31, 0
      %p189 = por %p187, %p188
      %s191 = sadd.s32 %s190, 1
      %p194 = scmp.eq.s32.totalorder %s25, 1
      %p195 = scmp.ne.s32.totalorder %s190, %s192
      %p196 = scmp.eq.s32.totalorder %s25, 0
      %p197 = por %p195, %p196
      %p198 = scmp.ne.s32.totalorder %s190, %s192
      %p199 = scmp.eq.s32.totalorder %s30, 1
      %p200 = por %p198, %p199
      %p201 = scmp.ne.s32.totalorder %s192, %s193
      %p202 = scmp.eq.s32.totalorder %s30, 0
      %p203 = por %p201, %p202
      %p204 = scmp.ne.s32.totalorder %s192, %s193
      %p205 = scmp.eq.s32.totalorder %s31, 1
      %p206 = por %p204, %p205
      %p208 = scmp.ne.s32.totalorder %s193, %s207
      %p209 = scmp.eq.s32.totalorder %s31, 0
      %p210 = por %p208, %p209
      %s212 = sadd.s32 %s211, 1
      %p215 = scmp.eq.s32.totalorder %s25, 1
      %p216 = scmp.ne.s32.totalorder %s211, %s213
      %p217 = scmp.eq.s32.totalorder %s25, 0
      %p218 = por %p216, %p217
      %p219 = scmp.ne.s32.totalorder %s211, %s213
      %p220 = scmp.eq.s32.totalorder %s30, 1
      %p221 = por %p219, %p220
      %p222 = scmp.ne.s32.totalorder %s213, %s214
      %p223 = scmp.eq.s32.totalorder %s30, 0
      %p224 = por %p222, %p223
      %p225 = scmp.ne.s32.totalorder %s213, %s214
      %p226 = scmp.eq.s32.totalorder %s31, 1
      %p227 = por %p225, %p226
      %p229 = scmp.ne.s32.totalorder %s214, %s228
      %p230 = scmp.eq.s32.totalorder %s31, 0
      %p231 = por %p229, %p230
      %s233 = sadd.s32 %s232, 1
      %p236 = scmp.eq.s32.totalorder %s25, 1
      %p237 = scmp.ne.s32.totalorder %s232, %s234
      %p238 = scmp.eq.s32.totalorder %s25, 0
      %p239 = por %p237, %p238
      %p240 = scmp.ne.s32.totalorder %s232, %s234
      %p241 = scmp.eq.s32.totalorder %s30, 1
      %p242 = por %p240, %p241
      %p243 = scmp.ne.s32.totalorder %s234, %s235
      %p244 = scmp.eq.s32.totalorder %s30, 0
      %p245 = por %p243, %p244
      %p246 = scmp.ne.s32.totalorder %s234, %s235
      %p247 = scmp.eq.s32.totalorder %s31, 1
      %p248 = por %p246, %p247
      %p250 = scmp.ne.s32.totalorder %s235, %s249
      %p251 = scmp.eq.s32.totalorder %s31, 0
      %p252 = por %p250, %p251
      %s254 = sadd.s32 %s253, 1
      %p257 = scmp.eq.s32.totalorder %s25, 1
      %p258 = scmp.ne.s32.totalorder %s253, %s255
      %p259 = scmp.eq.s32.totalorder %s25, 0
      %p260 = por %p258, %p259
      %p261 = scmp.ne.s32.totalorder %s253, %s255
      %p262 = scmp.eq.s32.totalorder %s30, 1
      %p263 = por %p261, %p262
      %p264 = scmp.ne.s32.totalorder %s255, %s256
      %p265 = scmp.eq.s32.totalorder %s30, 0
      %p266 = por %p264, %p265
      %p267 = scmp.ne.s32.totalorder %s255, %s256
      %p268 = scmp.eq.s32.totalorder %s31, 1
      %p269 = por %p267, %p268
      %p271 = scmp.ne.s32.totalorder %s256, %s270
      %p272 = scmp.eq.s32.totalorder %s31, 0
      %p273 = por %p271, %p272
      %s275 = sadd.s32 %s274, 1
      %p278 = scmp.eq.s32.totalorder %s25, 1
      %p279 = scmp.ne.s32.totalorder %s274, %s276
      %p280 = scmp.eq.s32.totalorder %s25, 0
      %p281 = por %p279, %p280
      %p282 = scmp.ne.s32.totalorder %s274, %s276
      %p283 = scmp.eq.s32.totalorder %s30, 1
      %p284 = por %p282, %p283
      %p285 = scmp.ne.s32.totalorder %s276, %s277
      %p286 = scmp.eq.s32.totalorder %s30, 0
      %p287 = por %p285, %p286
      %p288 = scmp.ne.s32.totalorder %s276, %s277
      %p289 = scmp.eq.s32.totalorder %s31, 1
      %p290 = por %p288, %p289
      %p292 = scmp.ne.s32.totalorder %s277, %s291
      %p293 = scmp.eq.s32.totalorder %s31, 0
      %p294 = por %p292, %p293
      %s296 = sadd.s32 %s295, 1
      %p299 = scmp.eq.s32.totalorder %s25, 1
      %p300 = scmp.ne.s32.totalorder %s295, %s297
      %p301 = scmp.eq.s32.totalorder %s25, 0
      %p302 = por %p300, %p301
      %p303 = scmp.ne.s32.totalorder %s295, %s297
      %p304 = scmp.eq.s32.totalorder %s30, 1
      %p305 = por %p303, %p304
      %p306 = scmp.ne.s32.totalorder %s297, %s298
      %p307 = scmp.eq.s32.totalorder %s30, 0
      %p308 = por %p306, %p307
      %p309 = scmp.ne.s32.totalorder %s297, %s298
      %p310 = scmp.eq.s32.totalorder %s31, 1
      %p311 = por %p309, %p310
      %p313 = scmp.ne.s32.totalorder %s298, %s312
      %p314 = scmp.eq.s32.totalorder %s31, 0
      %p315 = por %p313, %p314
      %s317 = sadd.s32 %s316, 1
      %p320 = scmp.eq.s32.totalorder %s25, 1
      %p321 = scmp.ne.s32.totalorder %s316, %s318
      %p322 = scmp.eq.s32.totalorder %s25, 0
      %p323 = por %p321, %p322
      %p324 = scmp.ne.s32.totalorder %s316, %s318
      %p325 = scmp.eq.s32.totalorder %s30, 1
      %p326 = por %p324, %p325
      %p327 = scmp.ne.s32.totalorder %s318, %s319
      %p328 = scmp.eq.s32.totalorder %s30, 0
      %p329 = por %p327, %p328
      %p330 = scmp.ne.s32.totalorder %s318, %s319
      %p331 = scmp.eq.s32.totalorder %s31, 1
      %p332 = por %p330, %p331
      %p334 = scmp.ne.s32.totalorder %s319, %s333
      %p335 = scmp.eq.s32.totalorder %s31, 0
      %p336 = por %p334, %p335
      %s338 = sadd.s32 %s337, 1
      %p341 = scmp.eq.s32.totalorder %s25, 1
      %p342 = scmp.ne.s32.totalorder %s337, %s339
      %p343 = scmp.eq.s32.totalorder %s25, 0
      %p344 = por %p342, %p343
      %p345 = scmp.ne.s32.totalorder %s337, %s339
      %p346 = scmp.eq.s32.totalorder %s30, 1
      %p347 = por %p345, %p346
      %p348 = scmp.ne.s32.totalorder %s339, %s340
      %p349 = scmp.eq.s32.totalorder %s30, 0
      %p350 = por %p348, %p349
      %p351 = scmp.ne.s32.totalorder %s339, %s340
      %p352 = scmp.eq.s32.totalorder %s31, 1
      %p353 = por %p351, %p352
      %p355 = scmp.ne.s32.totalorder %s340, %s354
      %p356 = scmp.eq.s32.totalorder %s31, 0
      %p357 = por %p355, %p356
      %s359 = sadd.s32 %s358, 1
      %p362 = scmp.eq.s32.totalorder %s25, 1
      %p363 = scmp.ne.s32.totalorder %s358, %s360
      %p364 = scmp.eq.s32.totalorder %s25, 0
      %p365 = por %p363, %p364
      %p366 = scmp.ne.s32.totalorder %s358, %s360
      %p367 = scmp.eq.s32.totalorder %s30, 1
      %p368 = por %p366, %p367
      %p369 = scmp.ne.s32.totalorder %s360, %s361
      %p370 = scmp.eq.s32.totalorder %s30, 0
      %p371 = por %p369, %p370
      %p372 = scmp.ne.s32.totalorder %s360, %s361
      %p373 = scmp.eq.s32.totalorder %s31, 1
      %p374 = por %p372, %p373
      %p376 = scmp.ne.s32.totalorder %s361, %s375
      %p377 = scmp.eq.s32.totalorder %s31, 0
      %p378 = por %p376, %p377
      %s380 = sadd.s32 %s379, 1
      %p383 = scmp.eq.s32.totalorder %s25, 1
      %p384 = scmp.ne.s32.totalorder %s379, %s381
      %p385 = scmp.eq.s32.totalorder %s25, 0
      %p386 = por %p384, %p385
      %p387 = scmp.ne.s32.totalorder %s379, %s381
      %p388 = scmp.eq.s32.totalorder %s30, 1
      %p389 = por %p387, %p388
      %p390 = scmp.ne.s32.totalorder %s381, %s382
      %p391 = scmp.eq.s32.totalorder %s30, 0
      %p392 = por %p390, %p391
      %p393 = scmp.ne.s32.totalorder %s381, %s382
      %p394 = scmp.eq.s32.totalorder %s31, 1
      %p395 = por %p393, %p394
      %p397 = scmp.ne.s32.totalorder %s382, %s396
      %p398 = scmp.eq.s32.totalorder %s31, 0
      %p399 = por %p397, %p398
      %s400 = ssub.s32 %s25, %s32
      %p401 = scmp.eq.s32.totalorder %s400, 0
      %s403 = sadd.s32 %s402, 1
      %s404 = scalar_select %p401, %s402, %s403
      %p407 = pneg %p401
      %p408 = scmp.eq.s32.totalorder %s25, 1
      %p409 = por %p407, %p408
      %p410 = scmp.ne.s32.totalorder %s402, %s405
      %p411 = scmp.eq.s32.totalorder %s25, 0
      %p412 = por %p410, %p411
      %p413 = scmp.ne.s32.totalorder %s402, %s405
      %p414 = scmp.eq.s32.totalorder %s30, 1
      %p415 = por %p413, %p414
      %p416 = scmp.ne.s32.totalorder %s405, %s406
      %p417 = scmp.eq.s32.totalorder %s30, 0
      %p418 = por %p416, %p417
      %p419 = scmp.ne.s32.totalorder %s405, %s406
      %p420 = scmp.eq.s32.totalorder %s31, 1
      %p421 = por %p419, %p420
      %p423 = scmp.ne.s32.totalorder %s406, %s422
      %p424 = scmp.eq.s32.totalorder %s31, 0
      %p425 = por %p423, %p424
      %p426 = scmp.le.s32.totalorder 1, %s25
      %p427 = scmp.lt.s32.totalorder %s25, 3
      %p428 = pnand %p426, %p427
      %p429 = pneg %p428
      // Predicated region
      $region9: #{net_forward.1} parent=5 // pred_check
        _
      $region10: #{net_forward.1} parent=5 // pred_check_branch
        %431 = sbr.rel (%p428) target = $region12
      $region11: #{net_forward.1} parent=5 // pred_region
        %s432 = ssub.s32 %s25, 1
        // Predicated region
        $region13: #{net_forward.1} parent=11 // pred_check
          %p433 = pneg %p98
        $region14: #{net_forward.1} parent=11 // pred_check_branch
          %435 = sbr.rel (%p433) target = $region16
        $region15: #{net_forward.1} parent=11 // pred_region
          _
        $region16: #{net_forward.1} parent=11 // pred_fallthru
          _
        // Predicated region
        $region17: #{net_forward.1} parent=11 // pred_check
          %p436 = pneg %p119
        $region18: #{net_forward.1} parent=11 // pred_check_branch
          %438 = sbr.rel (%p436) target = $region20
        $region19: #{net_forward.1} parent=11 // pred_region
          _
        $region20: #{net_forward.1} parent=11 // pred_fallthru
          _
        // Predicated region
        $region21: #{net_forward.1} parent=11 // pred_check
          %p439 = pneg %p140
        $region22: #{net_forward.1} parent=11 // pred_check_branch
          %441 = sbr.rel (%p439) target = $region24
        $region23: #{net_forward.1} parent=11 // pred_region
          _
        $region24: #{net_forward.1} parent=11 // pred_fallthru
          _
        // Predicated region
        $region25: #{net_forward.1} parent=11 // pred_check
          %p442 = pneg %p161
        $region26: #{net_forward.1} parent=11 // pred_check_branch
          %444 = sbr.rel (%p442) target = $region28
        $region27: #{net_forward.1} parent=11 // pred_region
          _
        $region28: #{net_forward.1} parent=11 // pred_fallthru
          _
        // Predicated region
        $region29: #{net_forward.1} parent=11 // pred_check
          %p445 = pneg %p182
        $region30: #{net_forward.1} parent=11 // pred_check_branch
          %447 = sbr.rel (%p445) target = $region32
        $region31: #{net_forward.1} parent=11 // pred_region
          _
        $region32: #{net_forward.1} parent=11 // pred_fallthru
          _
        // Predicated region
        $region33: #{net_forward.1} parent=11 // pred_check
          %p448 = pneg %p203
        $region34: #{net_forward.1} parent=11 // pred_check_branch
          %450 = sbr.rel (%p448) target = $region36
        $region35: #{net_forward.1} parent=11 // pred_region
          _
        $region36: #{net_forward.1} parent=11 // pred_fallthru
          _
        // Predicated region
        $region37: #{net_forward.1} parent=11 // pred_check
          %p451 = pneg %p224
        $region38: #{net_forward.1} parent=11 // pred_check_branch
          %453 = sbr.rel (%p451) target = $region40
        $region39: #{net_forward.1} parent=11 // pred_region
          _
        $region40: #{net_forward.1} parent=11 // pred_fallthru
          _
        // Predicated region
        $region41: #{net_forward.1} parent=11 // pred_check
          %p454 = pneg %p245
        $region42: #{net_forward.1} parent=11 // pred_check_branch
          %456 = sbr.rel (%p454) target = $region44
        $region43: #{net_forward.1} parent=11 // pred_region
          _
        $region44: #{net_forward.1} parent=11 // pred_fallthru
          _
        // Predicated region
        $region45: #{net_forward.1} parent=11 // pred_check
          %p457 = pneg %p266
        $region46: #{net_forward.1} parent=11 // pred_check_branch
          %459 = sbr.rel (%p457) target = $region48
        $region47: #{net_forward.1} parent=11 // pred_region
          %s461 = ssub.s32 23040, 23040
          %462 = vsyncadd [#allocation5], %s461
          %s463 = sshll.u32 [#allocation4], 4
          %s464 = int_to_ptr.vmem [resolvable:$true] %s463
          %469 = dma.hbm_to_vmem [thread:$0]  %s10, 23040, %s464, [#allocation5], 128, 128, 8
        $region48: #{net_forward.1} parent=11 // pred_fallthru
          _
        // Predicated region
        $region49: #{net_forward.1} parent=11 // pred_check
          %p470 = pneg %p287
        $region50: #{net_forward.1} parent=11 // pred_check_branch
          %472 = sbr.rel (%p470) target = $region52
        $region51: #{net_forward.1} parent=11 // pred_region
          %s474 = ssub.s32 1152, 1152
          %475 = vsyncadd [#allocation7], %s474
          %s476 = sshll.u32 [#allocation6], 4
          %s477 = int_to_ptr.vmem [resolvable:$true] %s476
          %482 = dma.hbm_to_vmem [thread:$0]  %s11, 1152, %s477, [#allocation7], 128, 128, 8
        $region52: #{net_forward.1} parent=11 // pred_fallthru
          _
        // Predicated region
        $region53: #{net_forward.1} parent=11 // pred_check
          %p483 = pneg %p308
        $region54: #{net_forward.1} parent=11 // pred_check_branch
          %485 = sbr.rel (%p483) target = $region56
        $region55: #{net_forward.1} parent=11 // pred_region
          _
        $region56: #{net_forward.1} parent=11 // pred_fallthru
          _
        // Predicated region
        $region57: #{net_forward.1} parent=11 // pred_check
          %p486 = pneg %p329
        $region58: #{net_forward.1} parent=11 // pred_check_branch
          %488 = sbr.rel (%p486) target = $region60
        $region59: #{net_forward.1} parent=11 // pred_region
          _
        $region60: #{net_forward.1} parent=11 // pred_fallthru
          _
        // Predicated region
        $region61: #{net_forward.1} parent=11 // pred_check
          %p489 = pneg %p350
        $region62: #{net_forward.1} parent=11 // pred_check_branch
          %491 = sbr.rel (%p489) target = $region64
        $region63: #{net_forward.1} parent=11 // pred_region
          _
        $region64: #{net_forward.1} parent=11 // pred_fallthru
          _
        // Predicated region
        $region65: #{net_forward.1} parent=11 // pred_check
          %p492 = pneg %p371
        $region66: #{net_forward.1} parent=11 // pred_check_branch
          %494 = sbr.rel (%p492) target = $region68
        $region67: #{net_forward.1} parent=11 // pred_region
          _
        $region68: #{net_forward.1} parent=11 // pred_fallthru
          _
        // Predicated region
        $region69: #{net_forward.1} parent=11 // pred_check
          %p495 = pneg %p392
        $region70: #{net_forward.1} parent=11 // pred_check_branch
          %497 = sbr.rel (%p495) target = $region72
        $region71: #{net_forward.1} parent=11 // pred_region
          _
        $region72: #{net_forward.1} parent=11 // pred_fallthru
          _
      $region12: #{net_forward.1} parent=5 // pred_fallthru
        _
      %p498 = scmp.lt.s32.totalorder %s25, 2
      // Predicated region
      $region73: #{net_forward.1} parent=5 // pred_check
        %p499 = pneg %p498
      $region74: #{net_forward.1} parent=5 // pred_check_branch
        %501 = sbr.rel (%p499) target = $region76
      $region75: #{net_forward.1} parent=5 // pred_region
        // Predicated region
        $region77: #{net_forward.1} parent=75 // pred_check
          %p502 = pneg %p45
        $region78: #{net_forward.1} parent=75 // pred_check_branch
          %504 = sbr.rel (%p502) target = $region80
        $region79: #{net_forward.1} parent=75 // pred_region
          %p505 = scmp.lt.s32.totalorder %s25, 1
          %s506 = scalar_select %p505, %s25, 1
          %s507 = smul.addr %s506, 8
          %s508 = smul.addr %s507, 8
          %s509 = scalar_lea.vmem %s0, %s508
        $region80: #{net_forward.1} parent=75 // pred_fallthru
          _
        // Predicated region
        $region81: #{net_forward.1} parent=75 // pred_check
          %p510 = pneg %p71
        $region82: #{net_forward.1} parent=75 // pred_check_branch
          %512 = sbr.rel (%p510) target = $region84
        $region83: #{net_forward.1} parent=75 // pred_region
          %p513 = scmp.lt.s32.totalorder %s25, 1
          %s514 = scalar_select %p513, %s25, 1
          %s515 = scalar_lea.vmem %s1, %s514
        $region84: #{net_forward.1} parent=75 // pred_fallthru
          _
      $region76: #{net_forward.1} parent=5 // pred_fallthru
        _
      %p516 = scmp.le.s32.totalorder 1, %s25
      %p517 = scmp.lt.s32.totalorder %s25, 3
      %p518 = pnand %p516, %p517
      %p519 = pneg %p518
      // Predicated region
      $region85: #{net_forward.1} parent=5 // pred_check
        _
      $region86: #{net_forward.1} parent=5 // pred_check_branch
        %521 = sbr.rel (%p518) target = $region88
      $region87: #{net_forward.1} parent=5 // pred_region
        %s522 = ssub.s32 %s25, 1
        // Predicated region
        $region89: #{net_forward.1} parent=87 // pred_check
          %p523 = pneg %p266
        $region90: #{net_forward.1} parent=87 // pred_check_branch
          %525 = sbr.rel (%p523) target = $region92
        $region91: #{net_forward.1} parent=87 // pred_region
          %526 = dma.done [#allocation5], 23040
        $region92: #{net_forward.1} parent=87 // pred_fallthru
          _
        // Predicated region
        $region93: #{net_forward.1} parent=87 // pred_check
          %p527 = pneg %p287
        $region94: #{net_forward.1} parent=87 // pred_check_branch
          %529 = sbr.rel (%p527) target = $region96
        $region95: #{net_forward.1} parent=87 // pred_region
          %530 = dma.done [#allocation7], 1152
        $region96: #{net_forward.1} parent=87 // pred_fallthru
          _
        %p531 = scmp.lt.s32.totalorder %s30, 1
        %s532 = scalar_select %p531, %s30, 1
        %s533 = smul.addr %s532, 8
        %s534 = smul.addr %s533, 8
        %s535 = scalar_lea.vmem %s0, %s534
        %p536 = pneg %p51
        %p537 = pneg %p48
        %p538 = scmp.lt.s32.totalorder %s30, 1
        %s539 = scalar_select %p538, %s30, 1
        %s540 = scalar_lea.vmem %s1, %s539
        %p541 = pneg %p77
        %p542 = pneg %p74
        %p543 = pneg %p98
        %p544 = pneg %p95
        %p545 = pneg %p119
        %p546 = pneg %p116
        %p547 = pneg %p140
        %p548 = pneg %p137
        %p549 = pneg %p161
        %p550 = pneg %p158
        %p551 = pneg %p182
        %p552 = pneg %p179
        %p553 = pneg %p203
        %p554 = pneg %p200
        %p555 = pneg %p224
        %p556 = pneg %p221
        %p557 = pneg %p245
        %p558 = pneg %p242
        %p559 = pneg %p266
        %p560 = pneg %p263
        %p561 = pneg %p287
        %p562 = pneg %p284
        %p563 = pneg %p308
        %p564 = pneg %p305
        %p565 = pneg %p329
        %p566 = pneg %p326
        %p567 = pneg %p350
        %p568 = pneg %p347
        %p569 = pneg %p371
        %p570 = pneg %p368
        %p571 = pneg %p392
        %p572 = pneg %p389
        %p573 = pneg %p418
        %p574 = pneg %p415
        %p575 = scmp.lt.s32.totalorder %s30, 1
        %s576 = scalar_select %p575, %s30, 1
        %s577 = smul.addr %s576, 2
        %s578 = smul.addr %s577, 4
        %s579 = scalar_lea.vmem %s17, %s578
        %p580 = scmp.lt.s32.totalorder %s30, 1
        %s581 = scalar_select %p580, %s30, 1
        %s582 = smul.addr %s581, 8
        %s583 = smul.addr %s582, 8
        %s584 = scalar_lea.vmem %s0, %s583
        %p585 = scmp.lt.s32.totalorder %s30, 1
        %s586 = scalar_select %p585, %s30, 1
        %s587 = scalar_lea.vmem %s1, %s586
        %p588 = scmp.lt.s32.totalorder %s30, 1
        %s589 = scalar_select %p588, %s30, 1
        %s590 = smul.addr %s589, 2
        %s591 = smul.addr %s590, 4
        %s592 = scalar_lea.vmem %s17, %s591
        %v594 = vld [vmem:[%s587] sm:$0x1]
        %v595 = vmul.f32 %v594, %v594
        %vm596 = vcmask 24576
        %v597 = vsel %vm596, %v595, 0.0
        %598 = vadd.xlane.f32.xlu0 %v597
        %v599 = vpop.xlane.xlu0 %598
        %v600 = vrsqrt.pop %v599
        %v601 = vmul.f32 %v599, %v600
        %vm602 = vcmp.eq.f32.partialorder %v599, inf
        %v603 = vsel %vm602, %v599, %v601
        %vm604 = vcmp.eq.f32.partialorder %v599, 0.0
        %v605 = vand.u32 %v599, 2147483648
        %v606 = vsel %vm604, %v605, %v603
        %v607 = vmax.f32 %v606, 1e-12
        %v608 = vrcp.pop %v607
        %v609 = vmul.f32 %v594, %v608
        %v610 = vld [vmem:[%s3] sm:$0xff]
        %v611 = vld [vmem:[%s3 + $0x8] sm:$0xff]
        %v612 = vld [vmem:[%s3 + $0x10] sm:$0xf]
        %v614 = vlaneseq
        %v615 = vshrl.u32 %v614, 7
        %v616 = vsub.s32 0, %v615
        %v617 = vrot.slane %v609, %v616
        %v619 = vmul.f32 %v610, %v617
        %v620 = vmul.f32 %v611, %v617
        %v621 = vmul.f32 %v612, %v617
        %vm622 = vcmask 31744
        %v623 = vsel %vm622, %v619, 0.0
        %624 = vadd.xlane.f32.xlu0 %v623
        %v625 = vpop.xlane.xlu0 %624
        %v626 = vsel %vm622, %v620, 0.0
        %627 = vadd.xlane.f32.xlu0 %v626
        %v628 = vpop.xlane.xlu0 %627
        %vm629 = vcmask 27648
        %v630 = vsel %vm629, %v621, 0.0
        %631 = vadd.xlane.f32.xlu0 %v630
        %v632 = vpop.xlane.xlu0 %631
        %v633 = vld [vmem:[%s2] sm:$0xff]
        %v634 = vld [vmem:[%s2 + $0x8] sm:$0xff]
        %v635 = vld [vmem:[%s2 + $0x10] sm:$0xf]
        %v636 = vld [vmem:[%s584] sm:$0xff]
        %v637 = vld [vmem:[%s584 + $0x8] sm:$0xff]
        %v638 = vld [vmem:[%s584 + $0x10] sm:$0xff]
        %v639 = vld [vmem:[%s584 + $0x18] sm:$0xff]
        %v640 = vld [vmem:[%s584 + $0x20] sm:$0xff]
        %v641 = vld [vmem:[%s584 + $0x28] sm:$0xff]
        %v642 = vld [vmem:[%s584 + $0x30] sm:$0xf]
        %v643 = vld [vmem:[%s584 + $0x38] sm:$0xf]
        %vm644 = vcmask 228352
        %v646 = vsel %vm644, %v633, 0
        %v649 = vsel %vm644, %v634, 0
        %v652 = vsel %vm644, %v635, 0
        %vm654 = vcmask 1043456
        %v656 = vsel %vm654, %v642, 0
        %v659 = vsel %vm654, %v643, 0
        %661 = vmatprep.subr.mxu0 %v637
        %662 = vmatpush1.msra.mxu0 %v636
        %663 = vmatprep.subr.mxu0 %v639
        %664 = vmatpush1.msra.mxu0 %v638
        %665 = vmatprep.subr.mxu0 %v641
        %666 = vmatpush1.msra.mxu0 %v640
        %667 = vmatprep.subr.mxu0 %v659
        %668 = vmatpush1.msra.mxu0 %v656
        %669 = vmatprep.subr.mxu0 0.0
        %670 = vmatpush1.msra.mxu0 0.0
        %671 = vmatprep.subr.mxu0 0.0
        %672 = vmatpush1.msra.mxu0 0.0
        %673 = vmatprep.subr.mxu0 0.0
        %674 = vmatpush1.msra.mxu0 0.0
        %675 = vmatprep.subr.mxu0 0.0
        %676 = vmatpush1.msra.mxu0 0.0
        %677 = vmatprep.subr.mxu0 0.0
        %678 = vmatpush1.msra.mxu0 0.0
        %679 = vmatprep.subr.mxu0 0.0
        %680 = vmatpush1.msra.mxu0 0.0
        %681 = vmatprep.subr.mxu0 0.0
        %682 = vmatpush1.msra.mxu0 0.0
        %683 = vmatprep.subr.mxu0 0.0
        %684 = vmatpush1.msra.mxu0 0.0
        %685 = vmatprep.subr.mxu0 0.0
        %686 = vmatpush1.msra.mxu0 0.0
        %687 = vmatprep.subr.mxu0 0.0
        %688 = vmatpush1.msra.mxu0 0.0
        %689 = vmatprep.subr.mxu0 0.0
        %690 = vmatpush1.msra.mxu0 0.0
        %691 = vmatprep.subr.mxu0 0.0
        %692 = vmatpush1.msra.mxu0 0.0
        %693 = vmatprep.subr.mxu0 0.0
        %694 = vmatpush1.msra.mxu0 0.0
        %695 = vmatprep.subr.mxu0 0.0
        %696 = vmatpush1.msra.mxu0 0.0
        %697 = vmatprep.subr.mxu0 0.0
        %698 = vmatpush1.msra.mxu0 0.0
        %699 = vmatprep.subr.mxu0 0.0
        %700 = vmatpush1.msra.mxu0 0.0
        %701 = vmatprep.subr.mxu0 0.0
        %702 = vmatpush1.msra.mxu0 0.0
        %703 = vmatprep.subr.mxu0 0.0
        %704 = vmatpush1.msra.mxu0 0.0
        %705 = vmatprep.subr.mxu0 0.0
        %706 = vmatpush1.msra.mxu0 0.0
        %707 = vmatprep.subr.mxu0 0.0
        %708 = vmatpush1.msra.mxu0 0.0
        %709 = vmatprep.subr.mxu0 0.0
        %710 = vmatpush1.msra.mxu0 0.0
        %711 = vmatprep.subr.mxu0 0.0
        %712 = vmatpush1.msra.mxu0 0.0
        %713 = vmatprep.subr.mxu0 0.0
        %714 = vmatpush1.msra.mxu0 0.0
        %715 = vmatprep.subr.mxu0 0.0
        %716 = vmatpush1.msra.mxu0 0.0
        %717 = vmatprep.subr.mxu0 0.0
        %718 = vmatpush1.msra.mxu0 0.0
        %719 = vmatprep.subr.mxu0 0.0
        %720 = vmatpush1.msra.mxu0 0.0
        %721 = vmatprep.subr.mxu0 0.0
        %722 = vmatpush1.msra.mxu0 0.0
        %723 = vmatprep.subr.mxu0 0.0
        %724 = vmatpush1.msra.mxu0 0.0
        %725 = vmatprep.mubr.f32.mxu0 0.0
        %726 = vmatmul.mubr.f32.gmra.mrb[0].mxu0 %v646
        %v727 = vpop.f32.mrb[0].mxu0
        %v728 = vadd.f32 %v625, %v727
        %v729 = vpop.f32.mrb[0].mxu0
        %v730 = vadd.f32 %v625, %v729
        %731 = vmatprep.mubr.f32.mxu0 0.0
        %732 = vmatmul.mubr.f32.gmra.mrb[0].mxu0 %v649
        %v733 = vpop.f32.mrb[0].mxu0
        %v734 = vadd.f32 %v628, %v733
        %v735 = vpop.f32.mrb[0].mxu0
        %v736 = vadd.f32 %v628, %v735
        %737 = vmatprep.mubr.f32.mxu0 0.0
        %738 = vmatmul.mubr.f32.gmra.mrb[0].mxu0 %v652
        %v739 = vpop.f32.mrb[0].mxu0
        %v740 = vadd.f32 %v632, %v739
        %v741 = vpop.f32.mrb[0].mxu0
        %v742 = vadd.f32 %v632, %v741
        %743 = vdwg.mxu0
        %v744 = vld [vmem:[%s4] sm:$0xff]
        %v745 = vld [vmem:[%s4 + $0x8] sm:$0xff]
        %v746 = vld [vmem:[%s4 + $0x10] sm:$0xf]
        %748 = vset.pattern.permute.xlu0 0
        %749 = vperm.xlu0 %748, %v744
        %v750 = vpop.permute.xlu0 %749
        %753 = vset.pattern.permute.xlu0 0
        %754 = vperm.xlu0 %753, %v745
        %v755 = vpop.permute.xlu0 %754
        %758 = vset.pattern.permute.xlu0 0
        %759 = vperm.xlu0 %758, %v746
        %v760 = vpop.permute.xlu0 %759
        %v762 = vadd.f32 %v728, %v750
        %v763 = vadd.f32 %v730, %v750
        %v764 = vadd.f32 %v734, %v755
        %v765 = vadd.f32 %v736, %v755
        %v766 = vadd.f32 %v740, %v760
        %v767 = vadd.f32 %v742, %v760
        %v768 = vld [vmem:[%s5] sm:$0xf]
        %v769 = vld [vmem:[%s5 + $0x4] sm:$0xf]
        %v770 = vld [vmem:[%s5 + $0x8] sm:$0xf]
        %v771 = vld [vmem:[%s5 + $0xc] sm:$0xf]
        %v772 = vld [vmem:[%s5 + $0x10] sm:$0xf]
        %v773 = vld [vmem:[%s5 + $0x14] sm:$0xf]
        %v774 = vld [vmem:[%s5 + $0x18] sm:$0xf]
        %v775 = vld [vmem:[%s5 + $0x1c] sm:$0xf]
        %v776 = vld [vmem:[%s5 + $0x20] sm:$0xf]
        %v777 = vld [vmem:[%s5 + $0x24] sm:$0xf]
        %v778 = vld [vmem:[%s5 + $0x28] sm:$0xf]
        %v779 = vld [vmem:[%s5 + $0x2c] sm:$0xf]
        %v780 = vld [vmem:[%s5 + $0x30] sm:$0xf]
        %v781 = vld [vmem:[%s5 + $0x34] sm:$0xf]
        %v782 = vld [vmem:[%s5 + $0x38] sm:$0xf]
        %v783 = vld [vmem:[%s5 + $0x3c] sm:$0xf]
        %v784 = vld [vmem:[%s5 + $0x40] sm:$0xf]
        %v785 = vld [vmem:[%s5 + $0x44] sm:$0xf]
        %v786 = vld [vmem:[%s5 + $0x48] sm:$0xf]
        %v787 = vld [vmem:[%s5 + $0x4c] sm:$0xf]
        %v788 = vld [vmem:[%s5 + $0x50] sm:$0xf]
        %v789 = vld [vmem:[%s5 + $0x54] sm:$0xf]
        %v790 = vld [vmem:[%s5 + $0x58] sm:$0xf]
        %v791 = vld [vmem:[%s5 + $0x5c] sm:$0xf]
        %v792 = vld [vmem:[%s5 + $0x60] sm:$0xf]
        %v793 = vld [vmem:[%s5 + $0x64] sm:$0xf]
        %v794 = vld [vmem:[%s5 + $0x68] sm:$0xf]
        %v795 = vld [vmem:[%s5 + $0x6c] sm:$0xf]
        %v796 = vld [vmem:[%s5 + $0x70] sm:$0xf]
        %v797 = vld [vmem:[%s5 + $0x74] sm:$0xf]
        %v798 = vld [vmem:[%s5 + $0x78] sm:$0xf]
        %v799 = vld [vmem:[%s5 + $0x7c] sm:$0xf]
        %v800 = vld [vmem:[%s6] sm:$0xf]
        %v801 = vld [vmem:[%s6 + $0x4] sm:$0xf]
        %v802 = vld [vmem:[%s6 + $0x8] sm:$0xf]
        %v803 = vld [vmem:[%s6 + $0xc] sm:$0xf]
        %v804 = vld [vmem:[%s6 + $0x10] sm:$0xf]
        %v805 = vld [vmem:[%s6 + $0x14] sm:$0xf]
        %v806 = vld [vmem:[%s6 + $0x18] sm:$0xf]
        %v807 = vld [vmem:[%s6 + $0x1c] sm:$0xf]
        %v808 = vld [vmem:[%s6 + $0x20] sm:$0xf]
        %v809 = vld [vmem:[%s6 + $0x24] sm:$0xf]
        %v810 = vld [vmem:[%s6 + $0x28] sm:$0xf]
        %v811 = vld [vmem:[%s6 + $0x2c] sm:$0xf]
        %v812 = vld [vmem:[%s6 + $0x30] sm:$0xf]
        %v813 = vld [vmem:[%s6 + $0x34] sm:$0xf]
        %v814 = vld [vmem:[%s6 + $0x38] sm:$0xf]
        %v815 = vld [vmem:[%s6 + $0x3c] sm:$0xf]
        %v816 = vld [vmem:[%s6 + $0x40] sm:$0xf]
        %v817 = vld [vmem:[%s6 + $0x44] sm:$0xf]
        %v818 = vld [vmem:[%s6 + $0x48] sm:$0xf]
        %v819 = vld [vmem:[%s6 + $0x4c] sm:$0xf]
        %v820 = vld [vmem:[%s6 + $0x50] sm:$0xf]
        %v821 = vld [vmem:[%s6 + $0x54] sm:$0xf]
        %v822 = vld [vmem:[%s6 + $0x58] sm:$0xf]
        %v823 = vld [vmem:[%s6 + $0x5c] sm:$0xf]
        %v824 = vld [vmem:[%s6 + $0x60] sm:$0xf]
        %v825 = vld [vmem:[%s6 + $0x64] sm:$0xf]
        %v826 = vld [vmem:[%s6 + $0x68] sm:$0xf]
        %v827 = vld [vmem:[%s6 + $0x6c] sm:$0xf]
        %v828 = vld [vmem:[%s6 + $0x70] sm:$0xf]
        %v829 = vld [vmem:[%s6 + $0x74] sm:$0xf]
        %v830 = vld [vmem:[%s6 + $0x78] sm:$0xf]
        %v831 = vld [vmem:[%s6 + $0x7c] sm:$0xf]
        %v832 = vld [vmem:[%s7] sm:$0xff]
        %v833 = vld [vmem:[%s7 + $0x8] sm:$0xff]
        %v834 = vld [vmem:[%s7 + $0x10] sm:$0xff]
        %v835 = vld [vmem:[%s7 + $0x18] sm:$0xff]
        %v836 = vld [vmem:[%s7 + $0x20] sm:$0xff]
        %v837 = vld [vmem:[%s7 + $0x28] sm:$0xff]
        %v838 = vld [vmem:[%s7 + $0x30] sm:$0xff]
        %v839 = vld [vmem:[%s7 + $0x38] sm:$0xff]
        %v840 = vld [vmem:[%s7 + $0x40] sm:$0xff]
        %v841 = vld [vmem:[%s7 + $0x48] sm:$0xff]
        %v842 = vld [vmem:[%s7 + $0x50] sm:$0xff]
        %v843 = vld [vmem:[%s7 + $0x58] sm:$0xff]
        %v844 = vld [vmem:[%s7 + $0x60] sm:$0xff]
        %v845 = vld [vmem:[%s7 + $0x68] sm:$0xff]
        %v846 = vld [vmem:[%s7 + $0x70] sm:$0xff]
        %v847 = vld [vmem:[%s7 + $0x78] sm:$0xff]
        %v848 = vld [vmem:[%s8] sm:$0xff]
        %v849 = vld [vmem:[%s8 + $0x8] sm:$0xff]
        %v850 = vld [vmem:[%s8 + $0x10] sm:$0xff]
        %v851 = vld [vmem:[%s8 + $0x18] sm:$0xff]
        %v852 = vld [vmem:[%s8 + $0x20] sm:$0xff]
        %v853 = vld [vmem:[%s8 + $0x28] sm:$0xff]
        %v854 = vld [vmem:[%s8 + $0x30] sm:$0xff]
        %v855 = vld [vmem:[%s8 + $0x38] sm:$0xff]
        %v856 = vld [vmem:[%s8 + $0x40] sm:$0xff]
        %v857 = vld [vmem:[%s8 + $0x48] sm:$0xff]
        %v858 = vld [vmem:[%s8 + $0x50] sm:$0xff]
        %v859 = vld [vmem:[%s8 + $0x58] sm:$0xff]
        %v860 = vld [vmem:[%s8 + $0x60] sm:$0xff]
        %v861 = vld [vmem:[%s8 + $0x68] sm:$0xff]
        %v862 = vld [vmem:[%s8 + $0x70] sm:$0xff]
        %v863 = vld [vmem:[%s8 + $0x78] sm:$0xff]
        %v864 = vpack.c.bf16 %v764, %v762
        %v865 = vpack.c.bf16 %v765, %v763
        %v866 = vpack.c.bf16 %v766, %v766
        %v867 = vpack.c.bf16 %v767, %v767
        %v900 = vunpack.c.l.b16 %v768
        %v901 = vunpack.c.l.b16 %v769
        %v902 = vunpack.c.l.b16 %v770
        %v903 = vunpack.c.l.b16 %v771
        %v904 = vunpack.c.l.b16 %v772
        %v905 = vunpack.c.l.b16 %v773
        %v906 = vunpack.c.l.b16 %v774
        %v907 = vunpack.c.l.b16 %v775
        %v908 = vunpack.c.l.b16 %v776
        %v909 = vunpack.c.l.b16 %v777
        %v910 = vunpack.c.l.b16 %v778
        %v911 = vunpack.c.l.b16 %v779
        %v912 = vunpack.c.l.b16 %v780
        %v913 = vunpack.c.l.b16 %v781
        %v914 = vunpack.c.l.b16 %v782
        %v915 = vunpack.c.l.b16 %v783
        %v916 = vunpack.c.l.b16 %v784
        %v917 = vunpack.c.l.b16 %v785
        %v918 = vunpack.c.l.b16 %v786
        %v919 = vunpack.c.l.b16 %v787
        %v920 = vunpack.c.l.b16 %v788
        %v921 = vunpack.c.l.b16 %v789
        %v922 = vunpack.c.l.b16 %v790
        %v923 = vunpack.c.l.b16 %v791
        %v924 = vunpack.c.l.b16 %v792
        %v925 = vunpack.c.l.b16 %v793
        %v926 = vunpack.c.l.b16 %v794
        %v927 = vunpack.c.l.b16 %v795
        %v928 = vunpack.c.l.b16 %v796
        %v929 = vunpack.c.l.b16 %v797
        %v930 = vunpack.c.l.b16 %v798
        %v931 = vunpack.c.l.b16 %v799
        %v932 = vpack.c.b16 %v901, %v900
        %v933 = vpack.c.b16 %v903, %v902
        %v934 = vpack.c.b16 %v905, %v904
        %v935 = vpack.c.b16 %v907, %v906
        %v936 = vpack.c.b16 %v909, %v908
        %v937 = vpack.c.b16 %v911, %v910
        %v938 = vpack.c.b16 %v913, %v912
        %v939 = vpack.c.b16 %v915, %v914
        %v940 = vpack.c.b16 %v917, %v916
        %v941 = vpack.c.b16 %v919, %v918
        %v942 = vpack.c.b16 %v921, %v920
        %v943 = vpack.c.b16 %v923, %v922
        %v944 = vpack.c.b16 %v925, %v924
        %v945 = vpack.c.b16 %v927, %v926
        %v946 = vpack.c.b16 %v929, %v928
        %v947 = vpack.c.b16 %v931, %v930
        %964 = vmatprep.subr.bf16.mxu0 0
        %965 = vmatpush1.bf16.msra.mxu0 %v932
        %966 = vmatprep.subr.bf16.mxu0 0
        %967 = vmatpush1.bf16.msra.mxu0 %v933
        %968 = vmatprep.subr.bf16.mxu0 0
        %969 = vmatpush1.bf16.msra.mxu0 %v934
        %970 = vmatprep.subr.bf16.mxu0 0
        %971 = vmatpush1.bf16.msra.mxu0 %v935
        %972 = vmatprep.subr.bf16.mxu0 0
        %973 = vmatpush1.bf16.msra.mxu0 %v936
        %974 = vmatprep.subr.bf16.mxu0 0
        %975 = vmatpush1.bf16.msra.mxu0 %v937
        %976 = vmatprep.subr.bf16.mxu0 0
        %977 = vmatpush1.bf16.msra.mxu0 %v938
        %978 = vmatprep.subr.bf16.mxu0 0
        %979 = vmatpush1.bf16.msra.mxu0 %v939
        %980 = vmatprep.subr.bf16.mxu0 0
        %981 = vmatpush1.bf16.msra.mxu0 %v940
        %982 = vmatprep.subr.bf16.mxu0 0
        %983 = vmatpush1.bf16.msra.mxu0 %v941
        %984 = vmatprep.subr.bf16.mxu0 0
        %985 = vmatpush1.bf16.msra.mxu0 %v942
        %986 = vmatprep.subr.bf16.mxu0 0
        %987 = vmatpush1.bf16.msra.mxu0 %v943
        %988 = vmatprep.subr.bf16.mxu0 0
        %989 = vmatpush1.bf16.msra.mxu0 %v944
        %990 = vmatprep.subr.bf16.mxu0 0
        %991 = vmatpush1.bf16.msra.mxu0 %v945
        %992 = vmatprep.subr.bf16.mxu0 0
        %993 = vmatpush1.bf16.msra.mxu0 %v946
        %994 = vmatprep.subr.bf16.mxu0 0
        %995 = vmatpush1.bf16.msra.mxu0 %v947
        %996 = vmatprep.mubr.bf16.mxu0 %v865
        %997 = vmatmul.mubr.bf16.gmra.mrb[0].mxu0 %v864
        %v998 = vpop.f32.mrb[0].mxu0
        %v999 = vadd.f32 0.0, %v998
        %v1000 = vpop.f32.mrb[0].mxu0
        %v1001 = vpop.f32.mrb[0].mxu0
        %v1002 = vadd.f32 0.0, %v1001
        %v1003 = vpop.f32.mrb[0].mxu0
        %1004 = vmatprep.mubr.bf16.mxu0 %v867
        %1005 = vmatmul.mubr.bf16.gmra.mrb[0].mxu0 %v866
        %v1006 = vpop.f32.mrb[0].mxu0
        %v1007 = vadd.f32 0.0, %v1006
        %v1008 = vpop.f32.mrb[0].mxu0
        %v1009 = vpop.f32.mrb[0].mxu0
        %v1010 = vpop.f32.mrb[0].mxu0
        %1011 = vdwg.mxu0
        %1012 = vst [vmem:[#allocation2] sm:$0xff] %v999
        %1013 = vst [vmem:[#allocation2 + $0x8] sm:$0xff] %v1002
        %1014 = vst [vmem:[#allocation2 + $0x10] sm:$0xf] %v1007
        %v1047 = vunpack.c.l.b16 %v800
        %v1048 = vunpack.c.l.b16 %v801
        %v1049 = vunpack.c.l.b16 %v802
        %v1050 = vunpack.c.l.b16 %v803
        %v1051 = vunpack.c.l.b16 %v804
        %v1052 = vunpack.c.l.b16 %v805
        %v1053 = vunpack.c.l.b16 %v806
        %v1054 = vunpack.c.l.b16 %v807
        %v1055 = vunpack.c.l.b16 %v808
        %v1056 = vunpack.c.l.b16 %v809
        %v1057 = vunpack.c.l.b16 %v810
        %v1058 = vunpack.c.l.b16 %v811
        %v1059 = vunpack.c.l.b16 %v812
        %v1060 = vunpack.c.l.b16 %v813
        %v1061 = vunpack.c.l.b16 %v814
        %v1062 = vunpack.c.l.b16 %v815
        %v1063 = vunpack.c.l.b16 %v816
        %v1064 = vunpack.c.l.b16 %v817
        %v1065 = vunpack.c.l.b16 %v818
        %v1066 = vunpack.c.l.b16 %v819
        %v1067 = vunpack.c.l.b16 %v820
        %v1068 = vunpack.c.l.b16 %v821
        %v1069 = vunpack.c.l.b16 %v822
        %v1070 = vunpack.c.l.b16 %v823
        %v1071 = vunpack.c.l.b16 %v824
        %v1072 = vunpack.c.l.b16 %v825
        %v1073 = vunpack.c.l.b16 %v826
        %v1074 = vunpack.c.l.b16 %v827
        %v1075 = vunpack.c.l.b16 %v828
        %v1076 = vunpack.c.l.b16 %v829
        %v1077 = vunpack.c.l.b16 %v830
        %v1078 = vunpack.c.l.b16 %v831
        %v1079 = vpack.c.b16 %v1048, %v1047
        %v1080 = vpack.c.b16 %v1050, %v1049
        %v1081 = vpack.c.b16 %v1052, %v1051
        %v1082 = vpack.c.b16 %v1054, %v1053
        %v1083 = vpack.c.b16 %v1056, %v1055
        %v1084 = vpack.c.b16 %v1058, %v1057
        %v1085 = vpack.c.b16 %v1060, %v1059
        %v1086 = vpack.c.b16 %v1062, %v1061
        %v1087 = vpack.c.b16 %v1064, %v1063
        %v1088 = vpack.c.b16 %v1066, %v1065
        %v1089 = vpack.c.b16 %v1068, %v1067
        %v1090 = vpack.c.b16 %v1070, %v1069
        %v1091 = vpack.c.b16 %v1072, %v1071
        %v1092 = vpack.c.b16 %v1074, %v1073
        %v1093 = vpack.c.b16 %v1076, %v1075
        %v1094 = vpack.c.b16 %v1078, %v1077
        %1111 = vmatprep.subr.bf16.mxu0 0
        %1112 = vmatpush1.bf16.msra.mxu0 %v1079
        %1113 = vmatprep.subr.bf16.mxu0 0
        %1114 = vmatpush1.bf16.msra.mxu0 %v1080
        %1115 = vmatprep.subr.bf16.mxu0 0
        %1116 = vmatpush1.bf16.msra.mxu0 %v1081
        %1117 = vmatprep.subr.bf16.mxu0 0
        %1118 = vmatpush1.bf16.msra.mxu0 %v1082
        %1119 = vmatprep.subr.bf16.mxu0 0
        %1120 = vmatpush1.bf16.msra.mxu0 %v1083
        %1121 = vmatprep.subr.bf16.mxu0 0
        %1122 = vmatpush1.bf16.msra.mxu0 %v1084
        %1123 = vmatprep.subr.bf16.mxu0 0
        %1124 = vmatpush1.bf16.msra.mxu0 %v1085
        %1125 = vmatprep.subr.bf16.mxu0 0
        %1126 = vmatpush1.bf16.msra.mxu0 %v1086
        %1127 = vmatprep.subr.bf16.mxu0 0
        %1128 = vmatpush1.bf16.msra.mxu0 %v1087
        %1129 = vmatprep.subr.bf16.mxu0 0
        %1130 = vmatpush1.bf16.msra.mxu0 %v1088
        %1131 = vmatprep.subr.bf16.mxu0 0
        %1132 = vmatpush1.bf16.msra.mxu0 %v1089
        %1133 = vmatprep.subr.bf16.mxu0 0
        %1134 = vmatpush1.bf16.msra.mxu0 %v1090
        %1135 = vmatprep.subr.bf16.mxu0 0
        %1136 = vmatpush1.bf16.msra.mxu0 %v1091
        %1137 = vmatprep.subr.bf16.mxu0 0
        %1138 = vmatpush1.bf16.msra.mxu0 %v1092
        %1139 = vmatprep.subr.bf16.mxu0 0
        %1140 = vmatpush1.bf16.msra.mxu0 %v1093
        %1141 = vmatprep.subr.bf16.mxu0 0
        %1142 = vmatpush1.bf16.msra.mxu0 %v1094
        %1143 = vmatprep.mubr.bf16.mxu0 %v865
        %1144 = vmatmul.mubr.bf16.gmra.mrb[0].mxu0 %v864
        %v1145 = vpop.f32.mrb[0].mxu0
        %v1146 = vadd.f32 0.0, %v1145
        %v1147 = vpop.f32.mrb[0].mxu0
        %v1148 = vpop.f32.mrb[0].mxu0
        %v1149 = vadd.f32 0.0, %v1148
        %v1150 = vpop.f32.mrb[0].mxu0
        %1151 = vmatprep.mubr.bf16.mxu0 %v867
        %1152 = vmatmul.mubr.bf16.gmra.mrb[0].mxu0 %v866
        %v1153 = vpop.f32.mrb[0].mxu0
        %v1154 = vadd.f32 0.0, %v1153
        %v1155 = vpop.f32.mrb[0].mxu0
        %v1156 = vpop.f32.mrb[0].mxu0
        %v1157 = vpop.f32.mrb[0].mxu0
        %1158 = vdwg.mxu0
        %1159 = vst [vmem:[#allocation3] sm:$0xff] %v1146
        %1160 = vst [vmem:[#allocation3 + $0x8] sm:$0xff] %v1149
        %1161 = vst [vmem:[#allocation3 + $0x10] sm:$0xf] %v1154
        %v1162 = vld [vmem:[#allocation2] sm:$0x1]
        %v1163 = vld [vmem:[#allocation3] sm:$0x1]
        %v1164 = vld [vmem:[%s9] sm:$0xff]
        %v1165 = vld [vmem:[%s9 + $0x8] sm:$0xff]
        %v1166 = vld [vmem:[%s9 + $0x10] sm:$0xf]
        %v1167 = vld [vmem:[#allocation4] sm:$0xff]
        %v1168 = vld [vmem:[#allocation4 + $0x8] sm:$0xff]
        %v1169 = vld [vmem:[#allocation4 + $0x10] sm:$0xf]
        %v1170 = vlaneseq
        %v1171 = vshrl.u32 %v1170, 7
        %v1172 = vsub.s32 0, %v1171
        %v1173 = vrot.slane %v1162, %v1172
        %v1174 = vmul.f32 %v1173, %v1164
        %v1175 = vmul.f32 %v1173, %v1165
        %v1176 = vmul.f32 %v1173, %v1166
        %v1177 = vlaneseq
        %v1178 = vshrl.u32 %v1177, 7
        %v1179 = vsub.s32 0, %v1178
        %v1180 = vrot.slane %v1163, %v1179
        %v1181 = vmul.f32 %v1180, %v1167
        %v1182 = vmul.f32 %v1180, %v1168
        %v1183 = vmul.f32 %v1180, %v1169
        %v1184 = vsub.f32 %v1174, %v1181
        %v1185 = vsub.f32 %v1175, %v1182
        %v1186 = vsub.f32 %v1176, %v1183
        %v1187 = vmul.f32 %v1173, %v1167
        %v1188 = vmul.f32 %v1173, %v1168
        %v1189 = vmul.f32 %v1173, %v1169
        %v1190 = vmul.f32 %v1180, %v1164
        %v1191 = vmul.f32 %v1180, %v1165
        %v1192 = vmul.f32 %v1180, %v1166
        %v1193 = vadd.f32 %v1187, %v1190
        %v1194 = vadd.f32 %v1188, %v1191
        %v1195 = vadd.f32 %v1189, %v1192
        %v1196 = vld [vmem:[#allocation2 + $0x1] sm:$0x1]
        %v1197 = vld [vmem:[#allocation3 + $0x1] sm:$0x1]
        %s1198 = scalar_lea.vmem %s9, 24
        %v1199 = vld [vmem:[%s1198] sm:$0xff]
        %v1200 = vld [vmem:[%s1198 + $0x8] sm:$0xff]
        %v1201 = vld [vmem:[%s1198 + $0x10] sm:$0xf]
        %s1202 = scalar_lea.vmem [#allocation4], 24
        %v1203 = vld [vmem:[%s1202] sm:$0xff]
        %v1204 = vld [vmem:[%s1202 + $0x8] sm:$0xff]
        %v1205 = vld [vmem:[%s1202 + $0x10] sm:$0xf]
        %v1206 = vlaneseq
        %v1207 = vshrl.u32 %v1206, 7
        %v1208 = vsub.s32 0, %v1207
        %v1209 = vrot.slane %v1196, %v1208
        %v1210 = vmul.f32 %v1209, %v1199
        %v1211 = vmul.f32 %v1209, %v1200
        %v1212 = vmul.f32 %v1209, %v1201
        %v1213 = vlaneseq
        %v1214 = vshrl.u32 %v1213, 7
        %v1215 = vsub.s32 0, %v1214
        %v1216 = vrot.slane %v1197, %v1215
        %v1217 = vmul.f32 %v1216, %v1203
        %v1218 = vmul.f32 %v1216, %v1204
        %v1219 = vmul.f32 %v1216, %v1205
        %v1220 = vsub.f32 %v1210, %v1217
        %v1221 = vsub.f32 %v1211, %v1218
        %v1222 = vsub.f32 %v1212, %v1219
        %v1223 = vmul.f32 %v1209, %v1203
        %v1224 = vmul.f32 %v1209, %v1204
        %v1225 = vmul.f32 %v1209, %v1205
        %v1226 = vmul.f32 %v1216, %v1199
        %v1227 = vmul.f32 %v1216, %v1200
        %v1228 = vmul.f32 %v1216, %v1201
        %v1229 = vadd.f32 %v1223, %v1226
        %v1230 = vadd.f32 %v1224, %v1227
        %v1231 = vadd.f32 %v1225, %v1228
        %v1232 = vadd.f32 %v1184, %v1220
        %v1233 = vadd.f32 %v1185, %v1221
        %v1234 = vadd.f32 %v1186, %v1222
        %v1235 = vadd.f32 %v1193, %v1229
        %v1236 = vadd.f32 %v1194, %v1230
        %v1237 = vadd.f32 %v1195, %v1231
        %v1238 = vld [vmem:[#allocation2 + $0x2] sm:$0x1]
        %v1239 = vld [vmem:[#allocation3 + $0x2] sm:$0x1]
        %s1240 = scalar_lea.vmem %s9, 48
        %v1241 = vld [vmem:[%s1240] sm:$0xff]
        %v1242 = vld [vmem:[%s1240 + $0x8] sm:$0xff]
        %v1243 = vld [vmem:[%s1240 + $0x10] sm:$0xf]
        %s1244 = scalar_lea.vmem [#allocation4], 48
        %v1245 = vld [vmem:[%s1244] sm:$0xff]
        %v1246 = vld [vmem:[%s1244 + $0x8] sm:$0xff]
        %v1247 = vld [vmem:[%s1244 + $0x10] sm:$0xf]
        %v1248 = vlaneseq
        %v1249 = vshrl.u32 %v1248, 7
        %v1250 = vsub.s32 0, %v1249
        %v1251 = vrot.slane %v1238, %v1250
        %v1252 = vmul.f32 %v1251, %v1241
        %v1253 = vmul.f32 %v1251, %v1242
        %v1254 = vmul.f32 %v1251, %v1243
        %v1255 = vlaneseq
        %v1256 = vshrl.u32 %v1255, 7
        %v1257 = vsub.s32 0, %v1256
        %v1258 = vrot.slane %v1239, %v1257
        %v1259 = vmul.f32 %v1258, %v1245
        %v1260 = vmul.f32 %v1258, %v1246
        %v1261 = vmul.f32 %v1258, %v1247
        %v1262 = vsub.f32 %v1252, %v1259
        %v1263 = vsub.f32 %v1253, %v1260
        %v1264 = vsub.f32 %v1254, %v1261
        %v1265 = vmul.f32 %v1251, %v1245
        %v1266 = vmul.f32 %v1251, %v1246
        %v1267 = vmul.f32 %v1251, %v1247
        %v1268 = vmul.f32 %v1258, %v1241
        %v1269 = vmul.f32 %v1258, %v1242
        %v1270 = vmul.f32 %v1258, %v1243
        %v1271 = vadd.f32 %v1265, %v1268
        %v1272 = vadd.f32 %v1266, %v1269
        %v1273 = vadd.f32 %v1267, %v1270
        %v1274 = vadd.f32 %v1232, %v1262
        %v1275 = vadd.f32 %v1233, %v1263
        %v1276 = vadd.f32 %v1234, %v1264
        %v1277 = vadd.f32 %v1235, %v1271
        %v1278 = vadd.f32 %v1236, %v1272
        %v1279 = vadd.f32 %v1237, %v1273
        %v1280 = vld [vmem:[#allocation2 + $0x3] sm:$0x1]
        %v1281 = vld [vmem:[#allocation3 + $0x3] sm:$0x1]
        %s1282 = scalar_lea.vmem %s9, 72
        %v1283 = vld [vmem:[%s1282] sm:$0xff]
        %v1284 = vld [vmem:[%s1282 + $0x8] sm:$0xff]
        %v1285 = vld [vmem:[%s1282 + $0x10] sm:$0xf]
        %s1286 = scalar_lea.vmem [#allocation4], 72
        %v1287 = vld [vmem:[%s1286] sm:$0xff]
        %v1288 = vld [vmem:[%s1286 + $0x8] sm:$0xff]
        %v1289 = vld [vmem:[%s1286 + $0x10] sm:$0xf]
        %v1290 = vlaneseq
        %v1291 = vshrl.u32 %v1290, 7
        %v1292 = vsub.s32 0, %v1291
        %v1293 = vrot.slane %v1280, %v1292
        %v1294 = vmul.f32 %v1293, %v1283
        %v1295 = vmul.f32 %v1293, %v1284
        %v1296 = vmul.f32 %v1293, %v1285
        %v1297 = vlaneseq
        %v1298 = vshrl.u32 %v1297, 7
        %v1299 = vsub.s32 0, %v1298
        %v1300 = vrot.slane %v1281, %v1299
        %v1301 = vmul.f32 %v1300, %v1287
        %v1302 = vmul.f32 %v1300, %v1288
        %v1303 = vmul.f32 %v1300, %v1289
        %v1304 = vsub.f32 %v1294, %v1301
        %v1305 = vsub.f32 %v1295, %v1302
        %v1306 = vsub.f32 %v1296, %v1303
        %v1307 = vmul.f32 %v1293, %v1287
        %v1308 = vmul.f32 %v1293, %v1288
        %v1309 = vmul.f32 %v1293, %v1289
        %v1310 = vmul.f32 %v1300, %v1283
        %v1311 = vmul.f32 %v1300, %v1284
        %v1312 = vmul.f32 %v1300, %v1285
        %v1313 = vadd.f32 %v1307, %v1310
        %v1314 = vadd.f32 %v1308, %v1311
        %v1315 = vadd.f32 %v1309, %v1312
        %v1316 = vadd.f32 %v1274, %v1304
        %v1317 = vadd.f32 %v1275, %v1305
        %v1318 = vadd.f32 %v1276, %v1306
        %v1319 = vadd.f32 %v1277, %v1313
        %v1320 = vadd.f32 %v1278, %v1314
        %v1321 = vadd.f32 %v1279, %v1315
        %v1322 = vld [vmem:[#allocation2 + $0x4] sm:$0x1]
        %v1323 = vld [vmem:[#allocation3 + $0x4] sm:$0x1]
        %s1324 = scalar_lea.vmem %s9, 96
        %v1325 = vld [vmem:[%s1324] sm:$0xff]
        %v1326 = vld [vmem:[%s1324 + $0x8] sm:$0xff]
        %v1327 = vld [vmem:[%s1324 + $0x10] sm:$0xf]
        %s1328 = scalar_lea.vmem [#allocation4], 96
        %v1329 = vld [vmem:[%s1328] sm:$0xff]
        %v1330 = vld [vmem:[%s1328 + $0x8] sm:$0xff]
        %v1331 = vld [vmem:[%s1328 + $0x10] sm:$0xf]
        %v1332 = vlaneseq
        %v1333 = vshrl.u32 %v1332, 7
        %v1334 = vsub.s32 0, %v1333
        %v1335 = vrot.slane %v1322, %v1334
        %v1336 = vmul.f32 %v1335, %v1325
        %v1337 = vmul.f32 %v1335, %v1326
        %v1338 = vmul.f32 %v1335, %v1327
        %v1339 = vlaneseq
        %v1340 = vshrl.u32 %v1339, 7
        %v1341 = vsub.s32 0, %v1340
        %v1342 = vrot.slane %v1323, %v1341
        %v1343 = vmul.f32 %v1342, %v1329
        %v1344 = vmul.f32 %v1342, %v1330
        %v1345 = vmul.f32 %v1342, %v1331
        %v1346 = vsub.f32 %v1336, %v1343
        %v1347 = vsub.f32 %v1337, %v1344
        %v1348 = vsub.f32 %v1338, %v1345
        %v1349 = vmul.f32 %v1335, %v1329
        %v1350 = vmul.f32 %v1335, %v1330
        %v1351 = vmul.f32 %v1335, %v1331
        %v1352 = vmul.f32 %v1342, %v1325
        %v1353 = vmul.f32 %v1342, %v1326
        %v1354 = vmul.f32 %v1342, %v1327
        %v1355 = vadd.f32 %v1349, %v1352
        %v1356 = vadd.f32 %v1350, %v1353
        %v1357 = vadd.f32 %v1351, %v1354
        %v1358 = vadd.f32 %v1316, %v1346
        %v1359 = vadd.f32 %v1317, %v1347
        %v1360 = vadd.f32 %v1318, %v1348
        %v1361 = vadd.f32 %v1319, %v1355
        %v1362 = vadd.f32 %v1320, %v1356
        %v1363 = vadd.f32 %v1321, %v1357
        %v1364 = vld [vmem:[#allocation2 + $0x5] sm:$0x1]
        %v1365 = vld [vmem:[#allocation3 + $0x5] sm:$0x1]
        %s1366 = scalar_lea.vmem %s9, 120
        %v1367 = vld [vmem:[%s1366] sm:$0xff]
        %v1368 = vld [vmem:[%s1366 + $0x8] sm:$0xff]
        %v1369 = vld [vmem:[%s1366 + $0x10] sm:$0xf]
        %s1370 = scalar_lea.vmem [#allocation4], 120
        %v1371 = vld [vmem:[%s1370] sm:$0xff]
        %v1372 = vld [vmem:[%s1370 + $0x8] sm:$0xff]
        %v1373 = vld [vmem:[%s1370 + $0x10] sm:$0xf]
        %v1374 = vlaneseq
        %v1375 = vshrl.u32 %v1374, 7
        %v1376 = vsub.s32 0, %v1375
        %v1377 = vrot.slane %v1364, %v1376
        %v1378 = vmul.f32 %v1377, %v1367
        %v1379 = vmul.f32 %v1377, %v1368
        %v1380 = vmul.f32 %v1377, %v1369
        %v1381 = vlaneseq
        %v1382 = vshrl.u32 %v1381, 7
        %v1383 = vsub.s32 0, %v1382
        %v1384 = vrot.slane %v1365, %v1383
        %v1385 = vmul.f32 %v1384, %v1371
        %v1386 = vmul.f32 %v1384, %v1372
        %v1387 = vmul.f32 %v1384, %v1373
        %v1388 = vsub.f32 %v1378, %v1385
        %v1389 = vsub.f32 %v1379, %v1386
        %v1390 = vsub.f32 %v1380, %v1387
        %v1391 = vmul.f32 %v1377, %v1371
        %v1392 = vmul.f32 %v1377, %v1372
        %v1393 = vmul.f32 %v1377, %v1373
        %v1394 = vmul.f32 %v1384, %v1367
        %v1395 = vmul.f32 %v1384, %v1368
        %v1396 = vmul.f32 %v1384, %v1369
        %v1397 = vadd.f32 %v1391, %v1394
        %v1398 = vadd.f32 %v1392, %v1395
        %v1399 = vadd.f32 %v1393, %v1396
        %v1400 = vadd.f32 %v1358, %v1388
        %v1401 = vadd.f32 %v1359, %v1389
        %v1402 = vadd.f32 %v1360, %v1390
        %v1403 = vadd.f32 %v1361, %v1397
        %v1404 = vadd.f32 %v1362, %v1398
        %v1405 = vadd.f32 %v1363, %v1399
        %v1406 = vld [vmem:[#allocation2 + $0x6] sm:$0x1]
        %v1407 = vld [vmem:[#allocation3 + $0x6] sm:$0x1]
        %s1408 = scalar_lea.vmem %s9, 144
        %v1409 = vld [vmem:[%s1408] sm:$0xff]
        %v1410 = vld [vmem:[%s1408 + $0x8] sm:$0xff]
        %v1411 = vld [vmem:[%s1408 + $0x10] sm:$0xf]
        %s1412 = scalar_lea.vmem [#allocation4], 144
        %v1413 = vld [vmem:[%s1412] sm:$0xff]
        %v1414 = vld [vmem:[%s1412 + $0x8] sm:$0xff]
        %v1415 = vld [vmem:[%s1412 + $0x10] sm:$0xf]
        %v1416 = vlaneseq
        %v1417 = vshrl.u32 %v1416, 7
        %v1418 = vsub.s32 0, %v1417
        %v1419 = vrot.slane %v1406, %v1418
        %v1420 = vmul.f32 %v1419, %v1409
        %v1421 = vmul.f32 %v1419, %v1410
        %v1422 = vmul.f32 %v1419, %v1411
        %v1423 = vlaneseq
        %v1424 = vshrl.u32 %v1423, 7
        %v1425 = vsub.s32 0, %v1424
        %v1426 = vrot.slane %v1407, %v1425
        %v1427 = vmul.f32 %v1426, %v1413
        %v1428 = vmul.f32 %v1426, %v1414
        %v1429 = vmul.f32 %v1426, %v1415
        %v1430 = vsub.f32 %v1420, %v1427
        %v1431 = vsub.f32 %v1421, %v1428
        %v1432 = vsub.f32 %v1422, %v1429
        %v1433 = vmul.f32 %v1419, %v1413
        %v1434 = vmul.f32 %v1419, %v1414
        %v1435 = vmul.f32 %v1419, %v1415
        %v1436 = vmul.f32 %v1426, %v1409
        %v1437 = vmul.f32 %v1426, %v1410
        %v1438 = vmul.f32 %v1426, %v1411
        %v1439 = vadd.f32 %v1433, %v1436
        %v1440 = vadd.f32 %v1434, %v1437
        %v1441 = vadd.f32 %v1435, %v1438
        %v1442 = vadd.f32 %v1400, %v1430
        %v1443 = vadd.f32 %v1401, %v1431
        %v1444 = vadd.f32 %v1402, %v1432
        %v1445 = vadd.f32 %v1403, %v1439
        %v1446 = vadd.f32 %v1404, %v1440
        %v1447 = vadd.f32 %v1405, %v1441
        %v1448 = vld [vmem:[#allocation2 + $0x7] sm:$0x1]
        %v1449 = vld [vmem:[#allocation3 + $0x7] sm:$0x1]
        %s1450 = scalar_lea.vmem %s9, 168
        %v1451 = vld [vmem:[%s1450] sm:$0xff]
        %v1452 = vld [vmem:[%s1450 + $0x8] sm:$0xff]
        %v1453 = vld [vmem:[%s1450 + $0x10] sm:$0xf]
        %s1454 = scalar_lea.vmem [#allocation4], 168
        %v1455 = vld [vmem:[%s1454] sm:$0xff]
        %v1456 = vld [vmem:[%s1454 + $0x8] sm:$0xff]
        %v1457 = vld [vmem:[%s1454 + $0x10] sm:$0xf]
        %v1458 = vlaneseq
        %v1459 = vshrl.u32 %v1458, 7
        %v1460 = vsub.s32 0, %v1459
        %v1461 = vrot.slane %v1448, %v1460
        %v1462 = vmul.f32 %v1461, %v1451
        %v1463 = vmul.f32 %v1461, %v1452
        %v1464 = vmul.f32 %v1461, %v1453
        %v1465 = vlaneseq
        %v1466 = vshrl.u32 %v1465, 7
        %v1467 = vsub.s32 0, %v1466
        %v1468 = vrot.slane %v1449, %v1467
        %v1469 = vmul.f32 %v1468, %v1455
        %v1470 = vmul.f32 %v1468, %v1456
        %v1471 = vmul.f32 %v1468, %v1457
        %v1472 = vsub.f32 %v1462, %v1469
        %v1473 = vsub.f32 %v1463, %v1470
        %v1474 = vsub.f32 %v1464, %v1471
        %v1475 = vmul.f32 %v1461, %v1455
        %v1476 = vmul.f32 %v1461, %v1456
        %v1477 = vmul.f32 %v1461, %v1457
        %v1478 = vmul.f32 %v1468, %v1451
        %v1479 = vmul.f32 %v1468, %v1452
        %v1480 = vmul.f32 %v1468, %v1453
        %v1481 = vadd.f32 %v1475, %v1478
        %v1482 = vadd.f32 %v1476, %v1479
        %v1483 = vadd.f32 %v1477, %v1480
        %v1484 = vadd.f32 %v1442, %v1472
        %v1485 = vadd.f32 %v1443, %v1473
        %v1486 = vadd.f32 %v1444, %v1474
        %v1487 = vadd.f32 %v1445, %v1481
        %v1488 = vadd.f32 %v1446, %v1482
        %v1489 = vadd.f32 %v1447, %v1483
        %v1490 = vld [vmem:[#allocation2 + $0x8] sm:$0x1]
        %v1491 = vld [vmem:[#allocation3 + $0x8] sm:$0x1]
        %s1492 = scalar_lea.vmem %s9, 192
        %v1493 = vld [vmem:[%s1492] sm:$0xff]
        %v1494 = vld [vmem:[%s1492 + $0x8] sm:$0xff]
        %v1495 = vld [vmem:[%s1492 + $0x10] sm:$0xf]
        %s1496 = scalar_lea.vmem [#allocation4], 192
        %v1497 = vld [vmem:[%s1496] sm:$0xff]
        %v1498 = vld [vmem:[%s1496 + $0x8] sm:$0xff]
        %v1499 = vld [vmem:[%s1496 + $0x10] sm:$0xf]
        %v1500 = vlaneseq
        %v1501 = vshrl.u32 %v1500, 7
        %v1502 = vsub.s32 0, %v1501
        %v1503 = vrot.slane %v1490, %v1502
        %v1504 = vmul.f32 %v1503, %v1493
        %v1505 = vmul.f32 %v1503, %v1494
        %v1506 = vmul.f32 %v1503, %v1495
        %v1507 = vlaneseq
        %v1508 = vshrl.u32 %v1507, 7
        %v1509 = vsub.s32 0, %v1508
        %v1510 = vrot.slane %v1491, %v1509
        %v1511 = vmul.f32 %v1510, %v1497
        %v1512 = vmul.f32 %v1510, %v1498
        %v1513 = vmul.f32 %v1510, %v1499
        %v1514 = vsub.f32 %v1504, %v1511
        %v1515 = vsub.f32 %v1505, %v1512
        %v1516 = vsub.f32 %v1506, %v1513
        %v1517 = vmul.f32 %v1503, %v1497
        %v1518 = vmul.f32 %v1503, %v1498
        %v1519 = vmul.f32 %v1503, %v1499
        %v1520 = vmul.f32 %v1510, %v1493
        %v1521 = vmul.f32 %v1510, %v1494
        %v1522 = vmul.f32 %v1510, %v1495
        %v1523 = vadd.f32 %v1517, %v1520
        %v1524 = vadd.f32 %v1518, %v1521
        %v1525 = vadd.f32 %v1519, %v1522
        %v1526 = vadd.f32 %v1484, %v1514
        %v1527 = vadd.f32 %v1485, %v1515
        %v1528 = vadd.f32 %v1486, %v1516
        %v1529 = vadd.f32 %v1487, %v1523
        %v1530 = vadd.f32 %v1488, %v1524
        %v1531 = vadd.f32 %v1489, %v1525
        %v1532 = vld [vmem:[#allocation2 + $0x9] sm:$0x1]
        %v1533 = vld [vmem:[#allocation3 + $0x9] sm:$0x1]
        %s1534 = scalar_lea.vmem %s9, 216
        %v1535 = vld [vmem:[%s1534] sm:$0xff]
        %v1536 = vld [vmem:[%s1534 + $0x8] sm:$0xff]
        %v1537 = vld [vmem:[%s1534 + $0x10] sm:$0xf]
        %s1538 = scalar_lea.vmem [#allocation4], 216
        %v1539 = vld [vmem:[%s1538] sm:$0xff]
        %v1540 = vld [vmem:[%s1538 + $0x8] sm:$0xff]
        %v1541 = vld [vmem:[%s1538 + $0x10] sm:$0xf]
        %v1542 = vlaneseq
        %v1543 = vshrl.u32 %v1542, 7
        %v1544 = vsub.s32 0, %v1543
        %v1545 = vrot.slane %v1532, %v1544
        %v1546 = vmul.f32 %v1545, %v1535
        %v1547 = vmul.f32 %v1545, %v1536
        %v1548 = vmul.f32 %v1545, %v1537
        %v1549 = vlaneseq
        %v1550 = vshrl.u32 %v1549, 7
        %v1551 = vsub.s32 0, %v1550
        %v1552 = vrot.slane %v1533, %v1551
        %v1553 = vmul.f32 %v1552, %v1539
        %v1554 = vmul.f32 %v1552, %v1540
        %v1555 = vmul.f32 %v1552, %v1541
        %v1556 = vsub.f32 %v1546, %v1553
        %v1557 = vsub.f32 %v1547, %v1554
        %v1558 = vsub.f32 %v1548, %v1555
        %v1559 = vmul.f32 %v1545, %v1539
        %v1560 = vmul.f32 %v1545, %v1540
        %v1561 = vmul.f32 %v1545, %v1541
        %v1562 = vmul.f32 %v1552, %v1535
        %v1563 = vmul.f32 %v1552, %v1536
        %v1564 = vmul.f32 %v1552, %v1537
        %v1565 = vadd.f32 %v1559, %v1562
        %v1566 = vadd.f32 %v1560, %v1563
        %v1567 = vadd.f32 %v1561, %v1564
        %v1568 = vadd.f32 %v1526, %v1556
        %v1569 = vadd.f32 %v1527, %v1557
        %v1570 = vadd.f32 %v1528, %v1558
        %v1571 = vadd.f32 %v1529, %v1565
        %v1572 = vadd.f32 %v1530, %v1566
        %v1573 = vadd.f32 %v1531, %v1567
        %v1574 = vld [vmem:[#allocation2 + $0xa] sm:$0x1]
        %v1575 = vld [vmem:[#allocation3 + $0xa] sm:$0x1]
        %s1576 = scalar_lea.vmem %s9, 240
        %v1577 = vld [vmem:[%s1576] sm:$0xff]
        %v1578 = vld [vmem:[%s1576 + $0x8] sm:$0xff]
        %v1579 = vld [vmem:[%s1576 + $0x10] sm:$0xf]
        %s1580 = scalar_lea.vmem [#allocation4], 240
        %v1581 = vld [vmem:[%s1580] sm:$0xff]
        %v1582 = vld [vmem:[%s1580 + $0x8] sm:$0xff]
        %v1583 = vld [vmem:[%s1580 + $0x10] sm:$0xf]
        %v1584 = vlaneseq
        %v1585 = vshrl.u32 %v1584, 7
        %v1586 = vsub.s32 0, %v1585
        %v1587 = vrot.slane %v1574, %v1586
        %v1588 = vmul.f32 %v1587, %v1577
        %v1589 = vmul.f32 %v1587, %v1578
        %v1590 = vmul.f32 %v1587, %v1579
        %v1591 = vlaneseq
        %v1592 = vshrl.u32 %v1591, 7
        %v1593 = vsub.s32 0, %v1592
        %v1594 = vrot.slane %v1575, %v1593
        %v1595 = vmul.f32 %v1594, %v1581
        %v1596 = vmul.f32 %v1594, %v1582
        %v1597 = vmul.f32 %v1594, %v1583
        %v1598 = vsub.f32 %v1588, %v1595
        %v1599 = vsub.f32 %v1589, %v1596
        %v1600 = vsub.f32 %v1590, %v1597
        %v1601 = vmul.f32 %v1587, %v1581
        %v1602 = vmul.f32 %v1587, %v1582
        %v1603 = vmul.f32 %v1587, %v1583
        %v1604 = vmul.f32 %v1594, %v1577
        %v1605 = vmul.f32 %v1594, %v1578
        %v1606 = vmul.f32 %v1594, %v1579
        %v1607 = vadd.f32 %v1601, %v1604
        %v1608 = vadd.f32 %v1602, %v1605
        %v1609 = vadd.f32 %v1603, %v1606
        %v1610 = vadd.f32 %v1568, %v1598
        %v1611 = vadd.f32 %v1569, %v1599
        %v1612 = vadd.f32 %v1570, %v1600
        %v1613 = vadd.f32 %v1571, %v1607
        %v1614 = vadd.f32 %v1572, %v1608
        %v1615 = vadd.f32 %v1573, %v1609
        %v1616 = vld [vmem:[#allocation2 + $0xb] sm:$0x1]
        %v1617 = vld [vmem:[#allocation3 + $0xb] sm:$0x1]
        %s1618 = scalar_lea.vmem %s9, 264
        %v1619 = vld [vmem:[%s1618] sm:$0xff]
        %v1620 = vld [vmem:[%s1618 + $0x8] sm:$0xff]
        %v1621 = vld [vmem:[%s1618 + $0x10] sm:$0xf]
        %s1622 = scalar_lea.vmem [#allocation4], 264
        %v1623 = vld [vmem:[%s1622] sm:$0xff]
        %v1624 = vld [vmem:[%s1622 + $0x8] sm:$0xff]
        %v1625 = vld [vmem:[%s1622 + $0x10] sm:$0xf]
        %v1626 = vlaneseq
        %v1627 = vshrl.u32 %v1626, 7
        %v1628 = vsub.s32 0, %v1627
        %v1629 = vrot.slane %v1616, %v1628
        %v1630 = vmul.f32 %v1629, %v1619
        %v1631 = vmul.f32 %v1629, %v1620
        %v1632 = vmul.f32 %v1629, %v1621
        %v1633 = vlaneseq
        %v1634 = vshrl.u32 %v1633, 7
        %v1635 = vsub.s32 0, %v1634
        %v1636 = vrot.slane %v1617, %v1635
        %v1637 = vmul.f32 %v1636, %v1623
        %v1638 = vmul.f32 %v1636, %v1624
        %v1639 = vmul.f32 %v1636, %v1625
        %v1640 = vsub.f32 %v1630, %v1637
        %v1641 = vsub.f32 %v1631, %v1638
        %v1642 = vsub.f32 %v1632, %v1639
        %v1643 = vmul.f32 %v1629, %v1623
        %v1644 = vmul.f32 %v1629, %v1624
        %v1645 = vmul.f32 %v1629, %v1625
        %v1646 = vmul.f32 %v1636, %v1619
        %v1647 = vmul.f32 %v1636, %v1620
        %v1648 = vmul.f32 %v1636, %v1621
        %v1649 = vadd.f32 %v1643, %v1646
        %v1650 = vadd.f32 %v1644, %v1647
        %v1651 = vadd.f32 %v1645, %v1648
        %v1652 = vadd.f32 %v1610, %v1640
        %v1653 = vadd.f32 %v1611, %v1641
        %v1654 = vadd.f32 %v1612, %v1642
        %v1655 = vadd.f32 %v1613, %v1649
        %v1656 = vadd.f32 %v1614, %v1650
        %v1657 = vadd.f32 %v1615, %v1651
        %v1658 = vld [vmem:[#allocation2 + $0xc] sm:$0x1]
        %v1659 = vld [vmem:[#allocation3 + $0xc] sm:$0x1]
        %s1660 = scalar_lea.vmem %s9, 288
        %v1661 = vld [vmem:[%s1660] sm:$0xff]
        %v1662 = vld [vmem:[%s1660 + $0x8] sm:$0xff]
        %v1663 = vld [vmem:[%s1660 + $0x10] sm:$0xf]
        %s1664 = scalar_lea.vmem [#allocation4], 288
        %v1665 = vld [vmem:[%s1664] sm:$0xff]
        %v1666 = vld [vmem:[%s1664 + $0x8] sm:$0xff]
        %v1667 = vld [vmem:[%s1664 + $0x10] sm:$0xf]
        %v1668 = vlaneseq
        %v1669 = vshrl.u32 %v1668, 7
        %v1670 = vsub.s32 0, %v1669
        %v1671 = vrot.slane %v1658, %v1670
        %v1672 = vmul.f32 %v1671, %v1661
        %v1673 = vmul.f32 %v1671, %v1662
        %v1674 = vmul.f32 %v1671, %v1663
        %v1675 = vlaneseq
        %v1676 = vshrl.u32 %v1675, 7
        %v1677 = vsub.s32 0, %v1676
        %v1678 = vrot.slane %v1659, %v1677
        %v1679 = vmul.f32 %v1678, %v1665
        %v1680 = vmul.f32 %v1678, %v1666
        %v1681 = vmul.f32 %v1678, %v1667
        %v1682 = vsub.f32 %v1672, %v1679
        %v1683 = vsub.f32 %v1673, %v1680
        %v1684 = vsub.f32 %v1674, %v1681
        %v1685 = vmul.f32 %v1671, %v1665
        %v1686 = vmul.f32 %v1671, %v1666
        %v1687 = vmul.f32 %v1671, %v1667
        %v1688 = vmul.f32 %v1678, %v1661
        %v1689 = vmul.f32 %v1678, %v1662
        %v1690 = vmul.f32 %v1678, %v1663
        %v1691 = vadd.f32 %v1685, %v1688
        %v1692 = vadd.f32 %v1686, %v1689
        %v1693 = vadd.f32 %v1687, %v1690
        %v1694 = vadd.f32 %v1652, %v1682
        %v1695 = vadd.f32 %v1653, %v1683
        %v1696 = vadd.f32 %v1654, %v1684
        %v1697 = vadd.f32 %v1655, %v1691
        %v1698 = vadd.f32 %v1656, %v1692
        %v1699 = vadd.f32 %v1657, %v1693
        %v1700 = vld [vmem:[#allocation2 + $0xd] sm:$0x1]
        %v1701 = vld [vmem:[#allocation3 + $0xd] sm:$0x1]
        %s1702 = scalar_lea.vmem %s9, 312
        %v1703 = vld [vmem:[%s1702] sm:$0xff]
        %v1704 = vld [vmem:[%s1702 + $0x8] sm:$0xff]
        %v1705 = vld [vmem:[%s1702 + $0x10] sm:$0xf]
        %s1706 = scalar_lea.vmem [#allocation4], 312
        %v1707 = vld [vmem:[%s1706] sm:$0xff]
        %v1708 = vld [vmem:[%s1706 + $0x8] sm:$0xff]
        %v1709 = vld [vmem:[%s1706 + $0x10] sm:$0xf]
        %v1710 = vlaneseq
        %v1711 = vshrl.u32 %v1710, 7
        %v1712 = vsub.s32 0, %v1711
        %v1713 = vrot.slane %v1700, %v1712
        %v1714 = vmul.f32 %v1713, %v1703
        %v1715 = vmul.f32 %v1713, %v1704
        %v1716 = vmul.f32 %v1713, %v1705
        %v1717 = vlaneseq
        %v1718 = vshrl.u32 %v1717, 7
        %v1719 = vsub.s32 0, %v1718
        %v1720 = vrot.slane %v1701, %v1719
        %v1721 = vmul.f32 %v1720, %v1707
        %v1722 = vmul.f32 %v1720, %v1708
        %v1723 = vmul.f32 %v1720, %v1709
        %v1724 = vsub.f32 %v1714, %v1721
        %v1725 = vsub.f32 %v1715, %v1722
        %v1726 = vsub.f32 %v1716, %v1723
        %v1727 = vmul.f32 %v1713, %v1707
        %v1728 = vmul.f32 %v1713, %v1708
        %v1729 = vmul.f32 %v1713, %v1709
        %v1730 = vmul.f32 %v1720, %v1703
        %v1731 = vmul.f32 %v1720, %v1704
        %v1732 = vmul.f32 %v1720, %v1705
        %v1733 = vadd.f32 %v1727, %v1730
        %v1734 = vadd.f32 %v1728, %v1731
        %v1735 = vadd.f32 %v1729, %v1732
        %v1736 = vadd.f32 %v1694, %v1724
        %v1737 = vadd.f32 %v1695, %v1725
        %v1738 = vadd.f32 %v1696, %v1726
        %v1739 = vadd.f32 %v1697, %v1733
        %v1740 = vadd.f32 %v1698, %v1734
        %v1741 = vadd.f32 %v1699, %v1735
        %v1742 = vld [vmem:[#allocation2 + $0xe] sm:$0x1]
        %v1743 = vld [vmem:[#allocation3 + $0xe] sm:$0x1]
        %s1744 = scalar_lea.vmem %s9, 336
        %v1745 = vld [vmem:[%s1744] sm:$0xff]
        %v1746 = vld [vmem:[%s1744 + $0x8] sm:$0xff]
        %v1747 = vld [vmem:[%s1744 + $0x10] sm:$0xf]
        %s1748 = scalar_lea.vmem [#allocation4], 336
        %v1749 = vld [vmem:[%s1748] sm:$0xff]
        %v1750 = vld [vmem:[%s1748 + $0x8] sm:$0xff]
        %v1751 = vld [vmem:[%s1748 + $0x10] sm:$0xf]
        %v1752 = vlaneseq
        %v1753 = vshrl.u32 %v1752, 7
        %v1754 = vsub.s32 0, %v1753
        %v1755 = vrot.slane %v1742, %v1754
        %v1756 = vmul.f32 %v1755, %v1745
        %v1757 = vmul.f32 %v1755, %v1746
        %v1758 = vmul.f32 %v1755, %v1747
        %v1759 = vlaneseq
        %v1760 = vshrl.u32 %v1759, 7
        %v1761 = vsub.s32 0, %v1760
        %v1762 = vrot.slane %v1743, %v1761
        %v1763 = vmul.f32 %v1762, %v1749
        %v1764 = vmul.f32 %v1762, %v1750
        %v1765 = vmul.f32 %v1762, %v1751
        %v1766 = vsub.f32 %v1756, %v1763
        %v1767 = vsub.f32 %v1757, %v1764
        %v1768 = vsub.f32 %v1758, %v1765
        %v1769 = vmul.f32 %v1755, %v1749
        %v1770 = vmul.f32 %v1755, %v1750
        %v1771 = vmul.f32 %v1755, %v1751
        %v1772 = vmul.f32 %v1762, %v1745
        %v1773 = vmul.f32 %v1762, %v1746
        %v1774 = vmul.f32 %v1762, %v1747
        %v1775 = vadd.f32 %v1769, %v1772
        %v1776 = vadd.f32 %v1770, %v1773
        %v1777 = vadd.f32 %v1771, %v1774
        %v1778 = vadd.f32 %v1736, %v1766
        %v1779 = vadd.f32 %v1737, %v1767
        %v1780 = vadd.f32 %v1738, %v1768
        %v1781 = vadd.f32 %v1739, %v1775
        %v1782 = vadd.f32 %v1740, %v1776
        %v1783 = vadd.f32 %v1741, %v1777
        %v1784 = vld [vmem:[#allocation2 + $0xf] sm:$0x1]
        %v1785 = vld [vmem:[#allocation3 + $0xf] sm:$0x1]
        %s1786 = scalar_lea.vmem %s9, 360
        %v1787 = vld [vmem:[%s1786] sm:$0xff]
        %v1788 = vld [vmem:[%s1786 + $0x8] sm:$0xff]
        %v1789 = vld [vmem:[%s1786 + $0x10] sm:$0xf]
        %s1790 = scalar_lea.vmem [#allocation4], 360
        %v1791 = vld [vmem:[%s1790] sm:$0xff]
        %v1792 = vld [vmem:[%s1790 + $0x8] sm:$0xff]
        %v1793 = vld [vmem:[%s1790 + $0x10] sm:$0xf]
        %v1794 = vlaneseq
        %v1795 = vshrl.u32 %v1794, 7
        %v1796 = vsub.s32 0, %v1795
        %v1797 = vrot.slane %v1784, %v1796
        %v1798 = vmul.f32 %v1797, %v1787
        %v1799 = vmul.f32 %v1797, %v1788
        %v1800 = vmul.f32 %v1797, %v1789
        %v1801 = vlaneseq
        %v1802 = vshrl.u32 %v1801, 7
        %v1803 = vsub.s32 0, %v1802
        %v1804 = vrot.slane %v1785, %v1803
        %v1805 = vmul.f32 %v1804, %v1791
        %v1806 = vmul.f32 %v1804, %v1792
        %v1807 = vmul.f32 %v1804, %v1793
        %v1808 = vsub.f32 %v1798, %v1805
        %v1809 = vsub.f32 %v1799, %v1806
        %v1810 = vsub.f32 %v1800, %v1807
        %v1811 = vmul.f32 %v1797, %v1791
        %v1812 = vmul.f32 %v1797, %v1792
        %v1813 = vmul.f32 %v1797, %v1793
        %v1814 = vmul.f32 %v1804, %v1787
        %v1815 = vmul.f32 %v1804, %v1788
        %v1816 = vmul.f32 %v1804, %v1789
        %v1817 = vadd.f32 %v1811, %v1814
        %v1818 = vadd.f32 %v1812, %v1815
        %v1819 = vadd.f32 %v1813, %v1816
        %v1820 = vadd.f32 %v1778, %v1808
        %v1821 = vadd.f32 %v1779, %v1809
        %v1822 = vadd.f32 %v1780, %v1810
        %v1823 = vadd.f32 %v1781, %v1817
        %v1824 = vadd.f32 %v1782, %v1818
        %v1825 = vadd.f32 %v1783, %v1819
        %v1826 = vld [vmem:[#allocation2 + $0x10] sm:$0x1]
        %v1827 = vld [vmem:[#allocation3 + $0x10] sm:$0x1]
        %s1828 = scalar_lea.vmem %s9, 384
        %v1829 = vld [vmem:[%s1828] sm:$0xff]
        %v1830 = vld [vmem:[%s1828 + $0x8] sm:$0xff]
        %v1831 = vld [vmem:[%s1828 + $0x10] sm:$0xf]
        %s1832 = scalar_lea.vmem [#allocation4], 384
        %v1833 = vld [vmem:[%s1832] sm:$0xff]
        %v1834 = vld [vmem:[%s1832 + $0x8] sm:$0xff]
        %v1835 = vld [vmem:[%s1832 + $0x10] sm:$0xf]
        %v1836 = vlaneseq
        %v1837 = vshrl.u32 %v1836, 7
        %v1838 = vsub.s32 0, %v1837
        %v1839 = vrot.slane %v1826, %v1838
        %v1840 = vmul.f32 %v1839, %v1829
        %v1841 = vmul.f32 %v1839, %v1830
        %v1842 = vmul.f32 %v1839, %v1831
        %v1843 = vlaneseq
        %v1844 = vshrl.u32 %v1843, 7
        %v1845 = vsub.s32 0, %v1844
        %v1846 = vrot.slane %v1827, %v1845
        %v1847 = vmul.f32 %v1846, %v1833
        %v1848 = vmul.f32 %v1846, %v1834
        %v1849 = vmul.f32 %v1846, %v1835
        %v1850 = vsub.f32 %v1840, %v1847
        %v1851 = vsub.f32 %v1841, %v1848
        %v1852 = vsub.f32 %v1842, %v1849
        %v1853 = vmul.f32 %v1839, %v1833
        %v1854 = vmul.f32 %v1839, %v1834
        %v1855 = vmul.f32 %v1839, %v1835
        %v1856 = vmul.f32 %v1846, %v1829
        %v1857 = vmul.f32 %v1846, %v1830
        %v1858 = vmul.f32 %v1846, %v1831
        %v1859 = vadd.f32 %v1853, %v1856
        %v1860 = vadd.f32 %v1854, %v1857
        %v1861 = vadd.f32 %v1855, %v1858
        %v1862 = vadd.f32 %v1820, %v1850
        %v1863 = vadd.f32 %v1821, %v1851
        %v1864 = vadd.f32 %v1822, %v1852
        %v1865 = vadd.f32 %v1823, %v1859
        %v1866 = vadd.f32 %v1824, %v1860
        %v1867 = vadd.f32 %v1825, %v1861
        %v1868 = vld [vmem:[#allocation2 + $0x11] sm:$0x1]
        %v1869 = vld [vmem:[#allocation3 + $0x11] sm:$0x1]
        %s1870 = scalar_lea.vmem %s9, 408
        %v1871 = vld [vmem:[%s1870] sm:$0xff]
        %v1872 = vld [vmem:[%s1870 + $0x8] sm:$0xff]
        %v1873 = vld [vmem:[%s1870 + $0x10] sm:$0xf]
        %s1874 = scalar_lea.vmem [#allocation4], 408
        %v1875 = vld [vmem:[%s1874] sm:$0xff]
        %v1876 = vld [vmem:[%s1874 + $0x8] sm:$0xff]
        %v1877 = vld [vmem:[%s1874 + $0x10] sm:$0xf]
        %v1878 = vlaneseq
        %v1879 = vshrl.u32 %v1878, 7
        %v1880 = vsub.s32 0, %v1879
        %v1881 = vrot.slane %v1868, %v1880
        %v1882 = vmul.f32 %v1881, %v1871
        %v1883 = vmul.f32 %v1881, %v1872
        %v1884 = vmul.f32 %v1881, %v1873
        %v1885 = vlaneseq
        %v1886 = vshrl.u32 %v1885, 7
        %v1887 = vsub.s32 0, %v1886
        %v1888 = vrot.slane %v1869, %v1887
        %v1889 = vmul.f32 %v1888, %v1875
        %v1890 = vmul.f32 %v1888, %v1876
        %v1891 = vmul.f32 %v1888, %v1877
        %v1892 = vsub.f32 %v1882, %v1889
        %v1893 = vsub.f32 %v1883, %v1890
        %v1894 = vsub.f32 %v1884, %v1891
        %v1895 = vmul.f32 %v1881, %v1875
        %v1896 = vmul.f32 %v1881, %v1876
        %v1897 = vmul.f32 %v1881, %v1877
        %v1898 = vmul.f32 %v1888, %v1871
        %v1899 = vmul.f32 %v1888, %v1872
        %v1900 = vmul.f32 %v1888, %v1873
        %v1901 = vadd.f32 %v1895, %v1898
        %v1902 = vadd.f32 %v1896, %v1899
        %v1903 = vadd.f32 %v1897, %v1900
        %v1904 = vadd.f32 %v1862, %v1892
        %v1905 = vadd.f32 %v1863, %v1893
        %v1906 = vadd.f32 %v1864, %v1894
        %v1907 = vadd.f32 %v1865, %v1901
        %v1908 = vadd.f32 %v1866, %v1902
        %v1909 = vadd.f32 %v1867, %v1903
        %v1910 = vld [vmem:[#allocation2 + $0x12] sm:$0x1]
        %v1911 = vld [vmem:[#allocation3 + $0x12] sm:$0x1]
        %s1912 = scalar_lea.vmem %s9, 432
        %v1913 = vld [vmem:[%s1912] sm:$0xff]
        %v1914 = vld [vmem:[%s1912 + $0x8] sm:$0xff]
        %v1915 = vld [vmem:[%s1912 + $0x10] sm:$0xf]
        %s1916 = scalar_lea.vmem [#allocation4], 432
        %v1917 = vld [vmem:[%s1916] sm:$0xff]
        %v1918 = vld [vmem:[%s1916 + $0x8] sm:$0xff]
        %v1919 = vld [vmem:[%s1916 + $0x10] sm:$0xf]
        %v1920 = vlaneseq
        %v1921 = vshrl.u32 %v1920, 7
        %v1922 = vsub.s32 0, %v1921
        %v1923 = vrot.slane %v1910, %v1922
        %v1924 = vmul.f32 %v1923, %v1913
        %v1925 = vmul.f32 %v1923, %v1914
        %v1926 = vmul.f32 %v1923, %v1915
        %v1927 = vlaneseq
        %v1928 = vshrl.u32 %v1927, 7
        %v1929 = vsub.s32 0, %v1928
        %v1930 = vrot.slane %v1911, %v1929
        %v1931 = vmul.f32 %v1930, %v1917
        %v1932 = vmul.f32 %v1930, %v1918
        %v1933 = vmul.f32 %v1930, %v1919
        %v1934 = vsub.f32 %v1924, %v1931
        %v1935 = vsub.f32 %v1925, %v1932
        %v1936 = vsub.f32 %v1926, %v1933
        %v1937 = vmul.f32 %v1923, %v1917
        %v1938 = vmul.f32 %v1923, %v1918
        %v1939 = vmul.f32 %v1923, %v1919
        %v1940 = vmul.f32 %v1930, %v1913
        %v1941 = vmul.f32 %v1930, %v1914
        %v1942 = vmul.f32 %v1930, %v1915
        %v1943 = vadd.f32 %v1937, %v1940
        %v1944 = vadd.f32 %v1938, %v1941
        %v1945 = vadd.f32 %v1939, %v1942
        %v1946 = vadd.f32 %v1904, %v1934
        %v1947 = vadd.f32 %v1905, %v1935
        %v1948 = vadd.f32 %v1906, %v1936
        %v1949 = vadd.f32 %v1907, %v1943
        %v1950 = vadd.f32 %v1908, %v1944
        %v1951 = vadd.f32 %v1909, %v1945
        %v1952 = vld [vmem:[#allocation2 + $0x13] sm:$0x1]
        %v1953 = vld [vmem:[#allocation3 + $0x13] sm:$0x1]
        %s1954 = scalar_lea.vmem %s9, 456
        %v1955 = vld [vmem:[%s1954] sm:$0xff]
        %v1956 = vld [vmem:[%s1954 + $0x8] sm:$0xff]
        %v1957 = vld [vmem:[%s1954 + $0x10] sm:$0xf]
        %s1958 = scalar_lea.vmem [#allocation4], 456
        %v1959 = vld [vmem:[%s1958] sm:$0xff]
        %v1960 = vld [vmem:[%s1958 + $0x8] sm:$0xff]
        %v1961 = vld [vmem:[%s1958 + $0x10] sm:$0xf]
        %v1962 = vlaneseq
        %v1963 = vshrl.u32 %v1962, 7
        %v1964 = vsub.s32 0, %v1963
        %v1965 = vrot.slane %v1952, %v1964
        %v1966 = vmul.f32 %v1965, %v1955
        %v1967 = vmul.f32 %v1965, %v1956
        %v1968 = vmul.f32 %v1965, %v1957
        %v1969 = vlaneseq
        %v1970 = vshrl.u32 %v1969, 7
        %v1971 = vsub.s32 0, %v1970
        %v1972 = vrot.slane %v1953, %v1971
        %v1973 = vmul.f32 %v1972, %v1959
        %v1974 = vmul.f32 %v1972, %v1960
        %v1975 = vmul.f32 %v1972, %v1961
        %v1976 = vsub.f32 %v1966, %v1973
        %v1977 = vsub.f32 %v1967, %v1974
        %v1978 = vsub.f32 %v1968, %v1975
        %v1979 = vmul.f32 %v1965, %v1959
        %v1980 = vmul.f32 %v1965, %v1960
        %v1981 = vmul.f32 %v1965, %v1961
        %v1982 = vmul.f32 %v1972, %v1955
        %v1983 = vmul.f32 %v1972, %v1956
        %v1984 = vmul.f32 %v1972, %v1957
        %v1985 = vadd.f32 %v1979, %v1982
        %v1986 = vadd.f32 %v1980, %v1983
        %v1987 = vadd.f32 %v1981, %v1984
        %v1988 = vadd.f32 %v1946, %v1976
        %v1989 = vadd.f32 %v1947, %v1977
        %v1990 = vadd.f32 %v1948, %v1978
        %v1991 = vadd.f32 %v1949, %v1985
        %v1992 = vadd.f32 %v1950, %v1986
        %v1993 = vadd.f32 %v1951, %v1987
        %v1994 = vpack.c.bf16 %v1989, %v1988
        %v1995 = vpack.c.bf16 %v1990, %v1990
        %v1996 = vpack.c.bf16 %v1992, %v1991
        %v1997 = vpack.c.bf16 %v1993, %v1993
        %v2014 = vunpack.c.l.b16 %v848
        %v2015 = vunpack.c.h.b16 %v848
        %v2016 = vunpack.c.l.b16 %v849
        %v2017 = vunpack.c.h.b16 %v849
        %v2018 = vunpack.c.l.b16 %v850
        %v2019 = vunpack.c.h.b16 %v850
        %v2020 = vunpack.c.l.b16 %v851
        %v2021 = vunpack.c.h.b16 %v851
        %v2022 = vunpack.c.l.b16 %v852
        %v2023 = vunpack.c.h.b16 %v852
        %v2024 = vunpack.c.l.b16 %v853
        %v2025 = vunpack.c.h.b16 %v853
        %v2026 = vunpack.c.l.b16 %v854
        %v2027 = vunpack.c.h.b16 %v854
        %v2028 = vunpack.c.l.b16 %v855
        %v2029 = vunpack.c.h.b16 %v855
        %v2030 = vunpack.c.l.b16 %v856
        %v2031 = vunpack.c.h.b16 %v856
        %v2032 = vunpack.c.l.b16 %v857
        %v2033 = vunpack.c.h.b16 %v857
        %v2034 = vunpack.c.l.b16 %v858
        %v2035 = vunpack.c.h.b16 %v858
        %v2036 = vunpack.c.l.b16 %v859
        %v2037 = vunpack.c.h.b16 %v859
        %v2038 = vunpack.c.l.b16 %v860
        %v2039 = vunpack.c.h.b16 %v860
        %v2040 = vunpack.c.l.b16 %v861
        %v2041 = vunpack.c.h.b16 %v861
        %v2042 = vunpack.c.l.b16 %v862
        %v2043 = vunpack.c.h.b16 %v862
        %v2044 = vunpack.c.l.b16 %v863
        %v2045 = vunpack.c.h.b16 %v863
        %v2046 = vpack.c.b16 %v2016, %v2014
        %v2047 = vpack.c.b16 %v2017, %v2015
        %v2048 = vpack.c.b16 %v2020, %v2018
        %v2049 = vpack.c.b16 %v2021, %v2019
        %v2050 = vpack.c.b16 %v2024, %v2022
        %v2051 = vpack.c.b16 %v2025, %v2023
        %v2052 = vpack.c.b16 %v2028, %v2026
        %v2053 = vpack.c.b16 %v2029, %v2027
        %v2054 = vpack.c.b16 %v2032, %v2030
        %v2055 = vpack.c.b16 %v2033, %v2031
        %v2056 = vpack.c.b16 %v2036, %v2034
        %v2057 = vpack.c.b16 %v2037, %v2035
        %v2058 = vpack.c.b16 %v2040, %v2038
        %v2059 = vpack.c.b16 %v2041, %v2039
        %v2060 = vpack.c.b16 %v2044, %v2042
        %v2061 = vpack.c.b16 %v2045, %v2043
        %2078 = vmatprep.subr.bf16.mxu0 %v2047
        %2079 = vmatpush1.bf16.msra.mxu0 %v2046
        %2080 = vmatprep.subr.bf16.mxu0 %v2049
        %2081 = vmatpush1.bf16.msra.mxu0 %v2048
        %2082 = vmatprep.subr.bf16.mxu0 %v2051
        %2083 = vmatpush1.bf16.msra.mxu0 %v2050
        %2084 = vmatprep.subr.bf16.mxu0 %v2053
        %2085 = vmatpush1.bf16.msra.mxu0 %v2052
        %2086 = vmatprep.subr.bf16.mxu0 %v2055
        %2087 = vmatpush1.bf16.msra.mxu0 %v2054
        %2088 = vmatprep.subr.bf16.mxu0 %v2057
        %2089 = vmatpush1.bf16.msra.mxu0 %v2056
        %2090 = vmatprep.subr.bf16.mxu0 %v2059
        %2091 = vmatpush1.bf16.msra.mxu0 %v2058
        %2092 = vmatprep.subr.bf16.mxu0 %v2061
        %2093 = vmatpush1.bf16.msra.mxu0 %v2060
        %2094 = vmatprep.subr.bf16.mxu0 0
        %2095 = vmatpush1.bf16.msra.mxu0 0
        %2096 = vmatprep.subr.bf16.mxu0 0
        %2097 = vmatpush1.bf16.msra.mxu0 0
        %2098 = vmatprep.subr.bf16.mxu0 0
        %2099 = vmatpush1.bf16.msra.mxu0 0
        %2100 = vmatprep.subr.bf16.mxu0 0
        %2101 = vmatpush1.bf16.msra.mxu0 0
        %2102 = vmatprep.subr.bf16.mxu0 0
        %2103 = vmatpush1.bf16.msra.mxu0 0
        %2104 = vmatprep.subr.bf16.mxu0 0
        %2105 = vmatpush1.bf16.msra.mxu0 0
        %2106 = vmatprep.subr.bf16.mxu0 0
        %2107 = vmatpush1.bf16.msra.mxu0 0
        %2108 = vmatprep.subr.bf16.mxu0 0
        %2109 = vmatpush1.bf16.msra.mxu0 0
        %2110 = vmatprep.mubr.bf16.mxu0 0
        %2111 = vmatmul.mubr.bf16.gmra.mrb[0].mxu0 %v1996
        %v2112 = vpop.f32.mrb[0].mxu0
        %v2113 = vadd.f32 0.0, %v2112
        %v2114 = vpop.f32.mrb[0].mxu0
        %v2115 = vadd.f32 0.0, %v2114
        %v2116 = vpop.f32.mrb[0].mxu0
        %v2117 = vadd.f32 0.0, %v2116
        %v2118 = vpop.f32.mrb[0].mxu0
        %v2119 = vadd.f32 0.0, %v2118
        %2120 = vmatprep.mubr.bf16.mxu0 0
        %2121 = vmatmul.mubr.bf16.gmra.mrb[0].mxu0 %v1997
        %v2122 = vpop.f32.mrb[0].mxu0
        %v2123 = vadd.f32 0.0, %v2122
        %v2124 = vpop.f32.mrb[0].mxu0
        %v2125 = vadd.f32 0.0, %v2124
        %v2126 = vpop.f32.mrb[0].mxu0
        %v2127 = vpop.f32.mrb[0].mxu0
        %2128 = vdwg.mxu0
        %v2145 = vunpack.c.l.b16 %v832
        %v2146 = vunpack.c.h.b16 %v832
        %v2147 = vunpack.c.l.b16 %v833
        %v2148 = vunpack.c.h.b16 %v833
        %v2149 = vunpack.c.l.b16 %v834
        %v2150 = vunpack.c.h.b16 %v834
        %v2151 = vunpack.c.l.b16 %v835
        %v2152 = vunpack.c.h.b16 %v835
        %v2153 = vunpack.c.l.b16 %v836
        %v2154 = vunpack.c.h.b16 %v836
        %v2155 = vunpack.c.l.b16 %v837
        %v2156 = vunpack.c.h.b16 %v837
        %v2157 = vunpack.c.l.b16 %v838
        %v2158 = vunpack.c.h.b16 %v838
        %v2159 = vunpack.c.l.b16 %v839
        %v2160 = vunpack.c.h.b16 %v839
        %v2161 = vunpack.c.l.b16 %v840
        %v2162 = vunpack.c.h.b16 %v840
        %v2163 = vunpack.c.l.b16 %v841
        %v2164 = vunpack.c.h.b16 %v841
        %v2165 = vunpack.c.l.b16 %v842
        %v2166 = vunpack.c.h.b16 %v842
        %v2167 = vunpack.c.l.b16 %v843
        %v2168 = vunpack.c.h.b16 %v843
        %v2169 = vunpack.c.l.b16 %v844
        %v2170 = vunpack.c.h.b16 %v844
        %v2171 = vunpack.c.l.b16 %v845
        %v2172 = vunpack.c.h.b16 %v845
        %v2173 = vunpack.c.l.b16 %v846
        %v2174 = vunpack.c.h.b16 %v846
        %v2175 = vunpack.c.l.b16 %v847
        %v2176 = vunpack.c.h.b16 %v847
        %v2177 = vpack.c.b16 %v2147, %v2145
        %v2178 = vpack.c.b16 %v2148, %v2146
        %v2179 = vpack.c.b16 %v2151, %v2149
        %v2180 = vpack.c.b16 %v2152, %v2150
        %v2181 = vpack.c.b16 %v2155, %v2153
        %v2182 = vpack.c.b16 %v2156, %v2154
        %v2183 = vpack.c.b16 %v2159, %v2157
        %v2184 = vpack.c.b16 %v2160, %v2158
        %v2185 = vpack.c.b16 %v2163, %v2161
        %v2186 = vpack.c.b16 %v2164, %v2162
        %v2187 = vpack.c.b16 %v2167, %v2165
        %v2188 = vpack.c.b16 %v2168, %v2166
        %v2189 = vpack.c.b16 %v2171, %v2169
        %v2190 = vpack.c.b16 %v2172, %v2170
        %v2191 = vpack.c.b16 %v2175, %v2173
        %v2192 = vpack.c.b16 %v2176, %v2174
        %2209 = vmatprep.subr.bf16.mxu0 %v2178
        %2210 = vmatpush1.bf16.msra.mxu0 %v2177
        %2211 = vmatprep.subr.bf16.mxu0 %v2180
        %2212 = vmatpush1.bf16.msra.mxu0 %v2179
        %2213 = vmatprep.subr.bf16.mxu0 %v2182
        %2214 = vmatpush1.bf16.msra.mxu0 %v2181
        %2215 = vmatprep.subr.bf16.mxu0 %v2184
        %2216 = vmatpush1.bf16.msra.mxu0 %v2183
        %2217 = vmatprep.subr.bf16.mxu0 %v2186
        %2218 = vmatpush1.bf16.msra.mxu0 %v2185
        %2219 = vmatprep.subr.bf16.mxu0 %v2188
        %2220 = vmatpush1.bf16.msra.mxu0 %v2187
        %2221 = vmatprep.subr.bf16.mxu0 %v2190
        %2222 = vmatpush1.bf16.msra.mxu0 %v2189
        %2223 = vmatprep.subr.bf16.mxu0 %v2192
        %2224 = vmatpush1.bf16.msra.mxu0 %v2191
        %2225 = vmatprep.subr.bf16.mxu0 0
        %2226 = vmatpush1.bf16.msra.mxu0 0
        %2227 = vmatprep.subr.bf16.mxu0 0
        %2228 = vmatpush1.bf16.msra.mxu0 0
        %2229 = vmatprep.subr.bf16.mxu0 0
        %2230 = vmatpush1.bf16.msra.mxu0 0
        %2231 = vmatprep.subr.bf16.mxu0 0
        %2232 = vmatpush1.bf16.msra.mxu0 0
        %2233 = vmatprep.subr.bf16.mxu0 0
        %2234 = vmatpush1.bf16.msra.mxu0 0
        %2235 = vmatprep.subr.bf16.mxu0 0
        %2236 = vmatpush1.bf16.msra.mxu0 0
        %2237 = vmatprep.subr.bf16.mxu0 0
        %2238 = vmatpush1.bf16.msra.mxu0 0
        %2239 = vmatprep.subr.bf16.mxu0 0
        %2240 = vmatpush1.bf16.msra.mxu0 0
        %2241 = vmatprep.mubr.bf16.mxu0 0
        %2242 = vmatmul.mubr.bf16.gmra.mrb[0].mxu0 %v1994
        %v2243 = vpop.f32.mrb[0].mxu0
        %v2244 = vadd.f32 %v2113, %v2243
        %v2245 = vpop.f32.mrb[0].mxu0
        %v2246 = vadd.f32 %v2115, %v2245
        %v2247 = vpop.f32.mrb[0].mxu0
        %v2248 = vadd.f32 %v2117, %v2247
        %v2249 = vpop.f32.mrb[0].mxu0
        %v2250 = vadd.f32 %v2119, %v2249
        %2251 = vmatprep.mubr.bf16.mxu0 0
        %2252 = vmatmul.mubr.bf16.gmra.mrb[0].mxu0 %v1995
        %v2253 = vpop.f32.mrb[0].mxu0
        %v2254 = vadd.f32 %v2123, %v2253
        %v2255 = vpop.f32.mrb[0].mxu0
        %v2256 = vadd.f32 %v2125, %v2255
        %v2257 = vpop.f32.mrb[0].mxu0
        %v2258 = vpop.f32.mrb[0].mxu0
        %2259 = vdwg.mxu0
        %v2260 = vld [vmem:[#allocation6] sm:$0xff]
        %v2261 = vld [vmem:[#allocation6 + $0x8] sm:$0xff]
        %v2262 = vld [vmem:[#allocation6 + $0x10] sm:$0xf]
        %v2263 = vld [vmem:[%s12] sm:$0xff]
        %v2264 = vld [vmem:[%s12 + $0x8] sm:$0xff]
        %v2265 = vld [vmem:[%s12 + $0x10] sm:$0xf]
        %2267 = vset.pattern.permute.xlu0 0
        %2268 = vperm.xlu0 %2267, %v2263
        %v2269 = vpop.permute.xlu0 %2268
        %2272 = vset.pattern.permute.xlu0 0
        %2273 = vperm.xlu0 %2272, %v2264
        %v2274 = vpop.permute.xlu0 %2273
        %2277 = vset.pattern.permute.xlu0 0
        %2278 = vperm.xlu0 %2277, %v2265
        %v2279 = vpop.permute.xlu0 %2278
        %vm2281 = vcmask 162816
        %v2283 = vsel %vm2281, %v2260, 0
        %v2286 = vsel %vm2281, %v2261, 0
        %v2289 = vsel %vm2281, %v2262, 0
        %v2292 = vsel %vm654, %v766, 0
        %v2295 = vsel %vm654, %v767, 0
        %2297 = vmatprep.subr.mxu0 %v763
        %2298 = vmatpush1.msra.mxu0 %v762
        %2299 = vmatprep.subr.mxu0 %v765
        %2300 = vmatpush1.msra.mxu0 %v764
        %2301 = vmatprep.subr.mxu0 %v2295
        %2302 = vmatpush1.msra.mxu0 %v2292
        %2303 = vmatprep.subr.mxu0 0.0
        %2304 = vmatpush1.msra.mxu0 0.0
        %2305 = vmatprep.subr.mxu0 0.0
        %2306 = vmatpush1.msra.mxu0 0.0
        %2307 = vmatprep.subr.mxu0 0.0
        %2308 = vmatpush1.msra.mxu0 0.0
        %2309 = vmatprep.subr.mxu0 0.0
        %2310 = vmatpush1.msra.mxu0 0.0
        %2311 = vmatprep.subr.mxu0 0.0
        %2312 = vmatpush1.msra.mxu0 0.0
        %2313 = vmatprep.subr.mxu0 0.0
        %2314 = vmatpush1.msra.mxu0 0.0
        %2315 = vmatprep.subr.mxu0 0.0
        %2316 = vmatpush1.msra.mxu0 0.0
        %2317 = vmatprep.subr.mxu0 0.0
        %2318 = vmatpush1.msra.mxu0 0.0
        %2319 = vmatprep.subr.mxu0 0.0
        %2320 = vmatpush1.msra.mxu0 0.0
        %2321 = vmatprep.subr.mxu0 0.0
        %2322 = vmatpush1.msra.mxu0 0.0
        %2323 = vmatprep.subr.mxu0 0.0
        %2324 = vmatpush1.msra.mxu0 0.0
        %2325 = vmatprep.subr.mxu0 0.0
        %2326 = vmatpush1.msra.mxu0 0.0
        %2327 = vmatprep.subr.mxu0 0.0
        %2328 = vmatpush1.msra.mxu0 0.0
        %2329 = vmatprep.subr.mxu0 0.0
        %2330 = vmatpush1.msra.mxu0 0.0
        %2331 = vmatprep.subr.mxu0 0.0
        %2332 = vmatpush1.msra.mxu0 0.0
        %2333 = vmatprep.subr.mxu0 0.0
        %2334 = vmatpush1.msra.mxu0 0.0
        %2335 = vmatprep.subr.mxu0 0.0
        %2336 = vmatpush1.msra.mxu0 0.0
        %2337 = vmatprep.subr.mxu0 0.0
        %2338 = vmatpush1.msra.mxu0 0.0
        %2339 = vmatprep.subr.mxu0 0.0
        %2340 = vmatpush1.msra.mxu0 0.0
        %2341 = vmatprep.subr.mxu0 0.0
        %2342 = vmatpush1.msra.mxu0 0.0
        %2343 = vmatprep.subr.mxu0 0.0
        %2344 = vmatpush1.msra.mxu0 0.0
        %2345 = vmatprep.subr.mxu0 0.0
        %2346 = vmatpush1.msra.mxu0 0.0
        %2347 = vmatprep.subr.mxu0 0.0
        %2348 = vmatpush1.msra.mxu0 0.0
        %2349 = vmatprep.subr.mxu0 0.0
        %2350 = vmatpush1.msra.mxu0 0.0
        %2351 = vmatprep.subr.mxu0 0.0
        %2352 = vmatpush1.msra.mxu0 0.0
        %2353 = vmatprep.subr.mxu0 0.0
        %2354 = vmatpush1.msra.mxu0 0.0
        %2355 = vmatprep.subr.mxu0 0.0
        %2356 = vmatpush1.msra.mxu0 0.0
        %2357 = vmatprep.subr.mxu0 0.0
        %2358 = vmatpush1.msra.mxu0 0.0
        %2359 = vmatprep.subr.mxu0 0.0
        %2360 = vmatpush1.msra.mxu0 0.0
        %2361 = vmatprep.mubr.f32.mxu0 0.0
        %2362 = vmatmul.mubr.f32.gmra.mrb[0].mxu0 %v2283
        %v2363 = vpop.f32.mrb[0].mxu0
        %v2364 = vadd.f32 %v2269, %v2363
        %v2365 = vpop.f32.mrb[0].mxu0
        %v2366 = vadd.f32 %v2269, %v2365
        %2367 = vmatprep.mubr.f32.mxu0 0.0
        %2368 = vmatmul.mubr.f32.gmra.mrb[0].mxu0 %v2286
        %v2369 = vpop.f32.mrb[0].mxu0
        %v2370 = vadd.f32 %v2274, %v2369
        %v2371 = vpop.f32.mrb[0].mxu0
        %v2372 = vadd.f32 %v2274, %v2371
        %2373 = vmatprep.mubr.f32.mxu0 0.0
        %2374 = vmatmul.mubr.f32.gmra.mrb[0].mxu0 %v2289
        %v2375 = vpop.f32.mrb[0].mxu0
        %v2376 = vadd.f32 %v2279, %v2375
        %v2377 = vpop.f32.mrb[0].mxu0
        %v2378 = vadd.f32 %v2279, %v2377
        %2379 = vdwg.mxu0
        %v2380 = vadd.f32 %v2244, %v2364
        %v2381 = vadd.f32 %v2246, %v2366
        %v2382 = vadd.f32 %v2248, %v2370
        %v2383 = vadd.f32 %v2250, %v2372
        %v2384 = vadd.f32 %v2254, %v2376
        %v2385 = vadd.f32 %v2256, %v2378
        %v2386 = vmul.f32 %v2380, %v2380
        %v2387 = vmul.f32 %v2381, %v2381
        %v2388 = vmul.f32 %v2382, %v2382
        %v2389 = vmul.f32 %v2383, %v2383
        %v2390 = vmul.f32 %v2384, %v2384
        %v2391 = vmul.f32 %v2385, %v2385
        %v2392 = vmul.f32 %v2380, %v2386
        %v2393 = vmul.f32 %v2381, %v2387
        %v2394 = vmul.f32 %v2382, %v2388
        %v2395 = vmul.f32 %v2383, %v2389
        %v2396 = vmul.f32 %v2384, %v2390
        %v2397 = vmul.f32 %v2385, %v2391
        %v2398 = vmul.f32 %v2392, 0.044715
        %v2399 = vmul.f32 %v2393, 0.044715
        %v2400 = vmul.f32 %v2394, 0.044715
        %v2401 = vmul.f32 %v2395, 0.044715
        %v2402 = vmul.f32 %v2396, 0.044715
        %v2403 = vmul.f32 %v2397, 0.044715
        %v2404 = vadd.f32 %v2380, %v2398
        %v2405 = vadd.f32 %v2381, %v2399
        %v2406 = vadd.f32 %v2382, %v2400
        %v2407 = vadd.f32 %v2383, %v2401
        %v2408 = vadd.f32 %v2384, %v2402
        %v2409 = vadd.f32 %v2385, %v2403
        %v2410 = vmul.f32 %v2404, 0.7978846
        %v2411 = vmul.f32 %v2405, 0.7978846
        %v2412 = vmul.f32 %v2406, 0.7978846
        %v2413 = vmul.f32 %v2407, 0.7978846
        %v2414 = vmul.f32 %v2408, 0.7978846
        %v2415 = vmul.f32 %v2409, 0.7978846
        %v2416 = vtanh.pop %v2410
        %v2417 = vtanh.pop %v2411
        %v2418 = vtanh.pop %v2412
        %v2419 = vtanh.pop %v2413
        %v2420 = vtanh.pop %v2414
        %v2421 = vtanh.pop %v2415
        %v2422 = vadd.f32 %v2416, 1.0
        %v2423 = vadd.f32 %v2417, 1.0
        %v2424 = vadd.f32 %v2418, 1.0
        %v2425 = vadd.f32 %v2419, 1.0
        %v2426 = vadd.f32 %v2420, 1.0
        %v2427 = vadd.f32 %v2421, 1.0
        %v2428 = vmul.f32 %v2422, 0.5
        %v2429 = vmul.f32 %v2423, 0.5
        %v2430 = vmul.f32 %v2424, 0.5
        %v2431 = vmul.f32 %v2425, 0.5
        %v2432 = vmul.f32 %v2426, 0.5
        %v2433 = vmul.f32 %v2427, 0.5
        %v2434 = vmul.f32 %v2380, %v2428
        %v2435 = vmul.f32 %v2381, %v2429
        %v2436 = vmul.f32 %v2382, %v2430
        %v2437 = vmul.f32 %v2383, %v2431
        %v2438 = vmul.f32 %v2384, %v2432
        %v2439 = vmul.f32 %v2385, %v2433
        %v2440 = vpack.c.bf16 %v2436, %v2434
        %v2441 = vpack.c.bf16 %v2437, %v2435
        %v2442 = vpack.c.bf16 %v2438, %v2438
        %v2443 = vpack.c.bf16 %v2439, %v2439
        %2444 = vmatprep.subr.bf16.mxu0 0
        %2445 = vmatpush1.bf16.msra.mxu0 %v932
        %2446 = vmatprep.subr.bf16.mxu0 0
        %2447 = vmatpush1.bf16.msra.mxu0 %v933
        %2448 = vmatprep.subr.bf16.mxu0 0
        %2449 = vmatpush1.bf16.msra.mxu0 %v934
        %2450 = vmatprep.subr.bf16.mxu0 0
        %2451 = vmatpush1.bf16.msra.mxu0 %v935
        %2452 = vmatprep.subr.bf16.mxu0 0
        %2453 = vmatpush1.bf16.msra.mxu0 %v936
        %2454 = vmatprep.subr.bf16.mxu0 0
        %2455 = vmatpush1.bf16.msra.mxu0 %v937
        %2456 = vmatprep.subr.bf16.mxu0 0
        %2457 = vmatpush1.bf16.msra.mxu0 %v938
        %2458 = vmatprep.subr.bf16.mxu0 0
        %2459 = vmatpush1.bf16.msra.mxu0 %v939
        %2460 = vmatprep.subr.bf16.mxu0 0
        %2461 = vmatpush1.bf16.msra.mxu0 %v940
        %2462 = vmatprep.subr.bf16.mxu0 0
        %2463 = vmatpush1.bf16.msra.mxu0 %v941
        %2464 = vmatprep.subr.bf16.mxu0 0
        %2465 = vmatpush1.bf16.msra.mxu0 %v942
        %2466 = vmatprep.subr.bf16.mxu0 0
        %2467 = vmatpush1.bf16.msra.mxu0 %v943
        %2468 = vmatprep.subr.bf16.mxu0 0
        %2469 = vmatpush1.bf16.msra.mxu0 %v944
        %2470 = vmatprep.subr.bf16.mxu0 0
        %2471 = vmatpush1.bf16.msra.mxu0 %v945
        %2472 = vmatprep.subr.bf16.mxu0 0
        %2473 = vmatpush1.bf16.msra.mxu0 %v946
        %2474 = vmatprep.subr.bf16.mxu0 0
        %2475 = vmatpush1.bf16.msra.mxu0 %v947
        %2476 = vmatprep.mubr.bf16.mxu0 %v2441
        %2477 = vmatmul.mubr.bf16.gmra.mrb[0].mxu0 %v2440
        %v2478 = vpop.f32.mrb[0].mxu0
        %v2479 = vadd.f32 0.0, %v2478
        %v2480 = vpop.f32.mrb[0].mxu0
        %v2481 = vpop.f32.mrb[0].mxu0
        %v2482 = vadd.f32 0.0, %v2481
        %v2483 = vpop.f32.mrb[0].mxu0
        %2484 = vmatprep.mubr.bf16.mxu0 %v2443
        %2485 = vmatmul.mubr.bf16.gmra.mrb[0].mxu0 %v2442
        %v2486 = vpop.f32.mrb[0].mxu0
        %v2487 = vadd.f32 0.0, %v2486
        %v2488 = vpop.f32.mrb[0].mxu0
        %v2489 = vpop.f32.mrb[0].mxu0
        %v2490 = vpop.f32.mrb[0].mxu0
        %2491 = vdwg.mxu0
        %2492 = vst [vmem:[#allocation2] sm:$0xff] %v2479
        %2493 = vst [vmem:[#allocation2 + $0x8] sm:$0xff] %v2482
        %2494 = vst [vmem:[#allocation2 + $0x10] sm:$0xf] %v2487
        %2495 = vmatprep.subr.bf16.mxu0 0
        %2496 = vmatpush1.bf16.msra.mxu0 %v1079
        %2497 = vmatprep.subr.bf16.mxu0 0
        %2498 = vmatpush1.bf16.msra.mxu0 %v1080
        %2499 = vmatprep.subr.bf16.mxu0 0
        %2500 = vmatpush1.bf16.msra.mxu0 %v1081
        %2501 = vmatprep.subr.bf16.mxu0 0
        %2502 = vmatpush1.bf16.msra.mxu0 %v1082
        %2503 = vmatprep.subr.bf16.mxu0 0
        %2504 = vmatpush1.bf16.msra.mxu0 %v1083
        %2505 = vmatprep.subr.bf16.mxu0 0
        %2506 = vmatpush1.bf16.msra.mxu0 %v1084
        %2507 = vmatprep.subr.bf16.mxu0 0
        %2508 = vmatpush1.bf16.msra.mxu0 %v1085
        %2509 = vmatprep.subr.bf16.mxu0 0
        %2510 = vmatpush1.bf16.msra.mxu0 %v1086
        %2511 = vmatprep.subr.bf16.mxu0 0
        %2512 = vmatpush1.bf16.msra.mxu0 %v1087
        %2513 = vmatprep.subr.bf16.mxu0 0
        %2514 = vmatpush1.bf16.msra.mxu0 %v1088
        %2515 = vmatprep.subr.bf16.mxu0 0
        %2516 = vmatpush1.bf16.msra.mxu0 %v1089
        %2517 = vmatprep.subr.bf16.mxu0 0
        %2518 = vmatpush1.bf16.msra.mxu0 %v1090
        %2519 = vmatprep.subr.bf16.mxu0 0
        %2520 = vmatpush1.bf16.msra.mxu0 %v1091
        %2521 = vmatprep.subr.bf16.mxu0 0
        %2522 = vmatpush1.bf16.msra.mxu0 %v1092
        %2523 = vmatprep.subr.bf16.mxu0 0
        %2524 = vmatpush1.bf16.msra.mxu0 %v1093
        %2525 = vmatprep.subr.bf16.mxu0 0
        %2526 = vmatpush1.bf16.msra.mxu0 %v1094
        %2527 = vmatprep.mubr.bf16.mxu0 %v2441
        %2528 = vmatmul.mubr.bf16.gmra.mrb[0].mxu0 %v2440
        %v2529 = vpop.f32.mrb[0].mxu0
        %v2530 = vadd.f32 0.0, %v2529
        %v2531 = vpop.f32.mrb[0].mxu0
        %v2532 = vpop.f32.mrb[0].mxu0
        %v2533 = vadd.f32 0.0, %v2532
        %v2534 = vpop.f32.mrb[0].mxu0
        %2535 = vmatprep.mubr.bf16.mxu0 %v2443
        %2536 = vmatmul.mubr.bf16.gmra.mrb[0].mxu0 %v2442
        %v2537 = vpop.f32.mrb[0].mxu0
        %v2538 = vadd.f32 0.0, %v2537
        %v2539 = vpop.f32.mrb[0].mxu0
        %v2540 = vpop.f32.mrb[0].mxu0
        %v2541 = vpop.f32.mrb[0].mxu0
        %2542 = vdwg.mxu0
        %2543 = vst [vmem:[#allocation3] sm:$0xff] %v2530
        %2544 = vst [vmem:[#allocation3 + $0x8] sm:$0xff] %v2533
        %2545 = vst [vmem:[#allocation3 + $0x10] sm:$0xf] %v2538
        %v2546 = vld [vmem:[#allocation2] sm:$0x1]
        %v2547 = vld [vmem:[#allocation3] sm:$0x1]
        %s2548 = scalar_lea.vmem %s9, 480
        %v2549 = vld [vmem:[%s2548] sm:$0xff]
        %v2550 = vld [vmem:[%s2548 + $0x8] sm:$0xff]
        %v2551 = vld [vmem:[%s2548 + $0x10] sm:$0xf]
        %s2552 = scalar_lea.vmem [#allocation4], 480
        %v2553 = vld [vmem:[%s2552] sm:$0xff]
        %v2554 = vld [vmem:[%s2552 + $0x8] sm:$0xff]
        %v2555 = vld [vmem:[%s2552 + $0x10] sm:$0xf]
        %v2556 = vlaneseq
        %v2557 = vshrl.u32 %v2556, 7
        %v2558 = vsub.s32 0, %v2557
        %v2559 = vrot.slane %v2546, %v2558
        %v2560 = vmul.f32 %v2559, %v2549
        %v2561 = vmul.f32 %v2559, %v2550
        %v2562 = vmul.f32 %v2559, %v2551
        %v2563 = vlaneseq
        %v2564 = vshrl.u32 %v2563, 7
        %v2565 = vsub.s32 0, %v2564
        %v2566 = vrot.slane %v2547, %v2565
        %v2567 = vmul.f32 %v2566, %v2553
        %v2568 = vmul.f32 %v2566, %v2554
        %v2569 = vmul.f32 %v2566, %v2555
        %v2570 = vsub.f32 %v2560, %v2567
        %v2571 = vsub.f32 %v2561, %v2568
        %v2572 = vsub.f32 %v2562, %v2569
        %v2573 = vmul.f32 %v2559, %v2553
        %v2574 = vmul.f32 %v2559, %v2554
        %v2575 = vmul.f32 %v2559, %v2555
        %v2576 = vmul.f32 %v2566, %v2549
        %v2577 = vmul.f32 %v2566, %v2550
        %v2578 = vmul.f32 %v2566, %v2551
        %v2579 = vadd.f32 %v2573, %v2576
        %v2580 = vadd.f32 %v2574, %v2577
        %v2581 = vadd.f32 %v2575, %v2578
        %v2582 = vld [vmem:[#allocation2 + $0x1] sm:$0x1]
        %v2583 = vld [vmem:[#allocation3 + $0x1] sm:$0x1]
        %s2584 = scalar_lea.vmem %s9, 504
        %v2585 = vld [vmem:[%s2584] sm:$0xff]
        %v2586 = vld [vmem:[%s2584 + $0x8] sm:$0xff]
        %v2587 = vld [vmem:[%s2584 + $0x10] sm:$0xf]
        %s2588 = scalar_lea.vmem [#allocation4], 504
        %v2589 = vld [vmem:[%s2588] sm:$0xff]
        %v2590 = vld [vmem:[%s2588 + $0x8] sm:$0xff]
        %v2591 = vld [vmem:[%s2588 + $0x10] sm:$0xf]
        %v2592 = vlaneseq
        %v2593 = vshrl.u32 %v2592, 7
        %v2594 = vsub.s32 0, %v2593
        %v2595 = vrot.slane %v2582, %v2594
        %v2596 = vmul.f32 %v2595, %v2585
        %v2597 = vmul.f32 %v2595, %v2586
        %v2598 = vmul.f32 %v2595, %v2587
        %v2599 = vlaneseq
        %v2600 = vshrl.u32 %v2599, 7
        %v2601 = vsub.s32 0, %v2600
        %v2602 = vrot.slane %v2583, %v2601
        %v2603 = vmul.f32 %v2602, %v2589
        %v2604 = vmul.f32 %v2602, %v2590
        %v2605 = vmul.f32 %v2602, %v2591
        %v2606 = vsub.f32 %v2596, %v2603
        %v2607 = vsub.f32 %v2597, %v2604
        %v2608 = vsub.f32 %v2598, %v2605
        %v2609 = vmul.f32 %v2595, %v2589
        %v2610 = vmul.f32 %v2595, %v2590
        %v2611 = vmul.f32 %v2595, %v2591
        %v2612 = vmul.f32 %v2602, %v2585
        %v2613 = vmul.f32 %v2602, %v2586
        %v2614 = vmul.f32 %v2602, %v2587
        %v2615 = vadd.f32 %v2609, %v2612
        %v2616 = vadd.f32 %v2610, %v2613
        %v2617 = vadd.f32 %v2611, %v2614
        %v2618 = vadd.f32 %v2570, %v2606
        %v2619 = vadd.f32 %v2571, %v2607
        %v2620 = vadd.f32 %v2572, %v2608
        %v2621 = vadd.f32 %v2579, %v2615
        %v2622 = vadd.f32 %v2580, %v2616
        %v2623 = vadd.f32 %v2581, %v2617
        %v2624 = vld [vmem:[#allocation2 + $0x2] sm:$0x1]
        %v2625 = vld [vmem:[#allocation3 + $0x2] sm:$0x1]
        %s2626 = scalar_lea.vmem %s9, 528
        %v2627 = vld [vmem:[%s2626] sm:$0xff]
        %v2628 = vld [vmem:[%s2626 + $0x8] sm:$0xff]
        %v2629 = vld [vmem:[%s2626 + $0x10] sm:$0xf]
        %s2630 = scalar_lea.vmem [#allocation4], 528
        %v2631 = vld [vmem:[%s2630] sm:$0xff]
        %v2632 = vld [vmem:[%s2630 + $0x8] sm:$0xff]
        %v2633 = vld [vmem:[%s2630 + $0x10] sm:$0xf]
        %v2634 = vlaneseq
        %v2635 = vshrl.u32 %v2634, 7
        %v2636 = vsub.s32 0, %v2635
        %v2637 = vrot.slane %v2624, %v2636
        %v2638 = vmul.f32 %v2637, %v2627
        %v2639 = vmul.f32 %v2637, %v2628
        %v2640 = vmul.f32 %v2637, %v2629
        %v2641 = vlaneseq
        %v2642 = vshrl.u32 %v2641, 7
        %v2643 = vsub.s32 0, %v2642
        %v2644 = vrot.slane %v2625, %v2643
        %v2645 = vmul.f32 %v2644, %v2631
        %v2646 = vmul.f32 %v2644, %v2632
        %v2647 = vmul.f32 %v2644, %v2633
        %v2648 = vsub.f32 %v2638, %v2645
        %v2649 = vsub.f32 %v2639, %v2646
        %v2650 = vsub.f32 %v2640, %v2647
        %v2651 = vmul.f32 %v2637, %v2631
        %v2652 = vmul.f32 %v2637, %v2632
        %v2653 = vmul.f32 %v2637, %v2633
        %v2654 = vmul.f32 %v2644, %v2627
        %v2655 = vmul.f32 %v2644, %v2628
        %v2656 = vmul.f32 %v2644, %v2629
        %v2657 = vadd.f32 %v2651, %v2654
        %v2658 = vadd.f32 %v2652, %v2655
        %v2659 = vadd.f32 %v2653, %v2656
        %v2660 = vadd.f32 %v2618, %v2648
        %v2661 = vadd.f32 %v2619, %v2649
        %v2662 = vadd.f32 %v2620, %v2650
        %v2663 = vadd.f32 %v2621, %v2657
        %v2664 = vadd.f32 %v2622, %v2658
        %v2665 = vadd.f32 %v2623, %v2659
        %v2666 = vld [vmem:[#allocation2 + $0x3] sm:$0x1]
        %v2667 = vld [vmem:[#allocation3 + $0x3] sm:$0x1]
        %s2668 = scalar_lea.vmem %s9, 552
        %v2669 = vld [vmem:[%s2668] sm:$0xff]
        %v2670 = vld [vmem:[%s2668 + $0x8] sm:$0xff]
        %v2671 = vld [vmem:[%s2668 + $0x10] sm:$0xf]
        %s2672 = scalar_lea.vmem [#allocation4], 552
        %v2673 = vld [vmem:[%s2672] sm:$0xff]
        %v2674 = vld [vmem:[%s2672 + $0x8] sm:$0xff]
        %v2675 = vld [vmem:[%s2672 + $0x10] sm:$0xf]
        %v2676 = vlaneseq
        %v2677 = vshrl.u32 %v2676, 7
        %v2678 = vsub.s32 0, %v2677
        %v2679 = vrot.slane %v2666, %v2678
        %v2680 = vmul.f32 %v2679, %v2669
        %v2681 = vmul.f32 %v2679, %v2670
        %v2682 = vmul.f32 %v2679, %v2671
        %v2683 = vlaneseq
        %v2684 = vshrl.u32 %v2683, 7
        %v2685 = vsub.s32 0, %v2684
        %v2686 = vrot.slane %v2667, %v2685
        %v2687 = vmul.f32 %v2686, %v2673
        %v2688 = vmul.f32 %v2686, %v2674
        %v2689 = vmul.f32 %v2686, %v2675
        %v2690 = vsub.f32 %v2680, %v2687
        %v2691 = vsub.f32 %v2681, %v2688
        %v2692 = vsub.f32 %v2682, %v2689
        %v2693 = vmul.f32 %v2679, %v2673
        %v2694 = vmul.f32 %v2679, %v2674
        %v2695 = vmul.f32 %v2679, %v2675
        %v2696 = vmul.f32 %v2686, %v2669
        %v2697 = vmul.f32 %v2686, %v2670
        %v2698 = vmul.f32 %v2686, %v2671
        %v2699 = vadd.f32 %v2693, %v2696
        %v2700 = vadd.f32 %v2694, %v2697
        %v2701 = vadd.f32 %v2695, %v2698
        %v2702 = vadd.f32 %v2660, %v2690
        %v2703 = vadd.f32 %v2661, %v2691
        %v2704 = vadd.f32 %v2662, %v2692
        %v2705 = vadd.f32 %v2663, %v2699
        %v2706 = vadd.f32 %v2664, %v2700
        %v2707 = vadd.f32 %v2665, %v2701
        %v2708 = vld [vmem:[#allocation2 + $0x4] sm:$0x1]
        %v2709 = vld [vmem:[#allocation3 + $0x4] sm:$0x1]
        %s2710 = scalar_lea.vmem %s9, 576
        %v2711 = vld [vmem:[%s2710] sm:$0xff]
        %v2712 = vld [vmem:[%s2710 + $0x8] sm:$0xff]
        %v2713 = vld [vmem:[%s2710 + $0x10] sm:$0xf]
        %s2714 = scalar_lea.vmem [#allocation4], 576
        %v2715 = vld [vmem:[%s2714] sm:$0xff]
        %v2716 = vld [vmem:[%s2714 + $0x8] sm:$0xff]
        %v2717 = vld [vmem:[%s2714 + $0x10] sm:$0xf]
        %v2718 = vlaneseq
        %v2719 = vshrl.u32 %v2718, 7
        %v2720 = vsub.s32 0, %v2719
        %v2721 = vrot.slane %v2708, %v2720
        %v2722 = vmul.f32 %v2721, %v2711
        %v2723 = vmul.f32 %v2721, %v2712
        %v2724 = vmul.f32 %v2721, %v2713
        %v2725 = vlaneseq
        %v2726 = vshrl.u32 %v2725, 7
        %v2727 = vsub.s32 0, %v2726
        %v2728 = vrot.slane %v2709, %v2727
        %v2729 = vmul.f32 %v2728, %v2715
        %v2730 = vmul.f32 %v2728, %v2716
        %v2731 = vmul.f32 %v2728, %v2717
        %v2732 = vsub.f32 %v2722, %v2729
        %v2733 = vsub.f32 %v2723, %v2730
        %v2734 = vsub.f32 %v2724, %v2731
        %v2735 = vmul.f32 %v2721, %v2715
        %v2736 = vmul.f32 %v2721, %v2716
        %v2737 = vmul.f32 %v2721, %v2717
        %v2738 = vmul.f32 %v2728, %v2711
        %v2739 = vmul.f32 %v2728, %v2712
        %v2740 = vmul.f32 %v2728, %v2713
        %v2741 = vadd.f32 %v2735, %v2738
        %v2742 = vadd.f32 %v2736, %v2739
        %v2743 = vadd.f32 %v2737, %v2740
        %v2744 = vadd.f32 %v2702, %v2732
        %v2745 = vadd.f32 %v2703, %v2733
        %v2746 = vadd.f32 %v2704, %v2734
        %v2747 = vadd.f32 %v2705, %v2741
        %v2748 = vadd.f32 %v2706, %v2742
        %v2749 = vadd.f32 %v2707, %v2743
        %v2750 = vld [vmem:[#allocation2 + $0x5] sm:$0x1]
        %v2751 = vld [vmem:[#allocation3 + $0x5] sm:$0x1]
        %s2752 = scalar_lea.vmem %s9, 600
        %v2753 = vld [vmem:[%s2752] sm:$0xff]
        %v2754 = vld [vmem:[%s2752 + $0x8] sm:$0xff]
        %v2755 = vld [vmem:[%s2752 + $0x10] sm:$0xf]
        %s2756 = scalar_lea.vmem [#allocation4], 600
        %v2757 = vld [vmem:[%s2756] sm:$0xff]
        %v2758 = vld [vmem:[%s2756 + $0x8] sm:$0xff]
        %v2759 = vld [vmem:[%s2756 + $0x10] sm:$0xf]
        %v2760 = vlaneseq
        %v2761 = vshrl.u32 %v2760, 7
        %v2762 = vsub.s32 0, %v2761
        %v2763 = vrot.slane %v2750, %v2762
        %v2764 = vmul.f32 %v2763, %v2753
        %v2765 = vmul.f32 %v2763, %v2754
        %v2766 = vmul.f32 %v2763, %v2755
        %v2767 = vlaneseq
        %v2768 = vshrl.u32 %v2767, 7
        %v2769 = vsub.s32 0, %v2768
        %v2770 = vrot.slane %v2751, %v2769
        %v2771 = vmul.f32 %v2770, %v2757
        %v2772 = vmul.f32 %v2770, %v2758
        %v2773 = vmul.f32 %v2770, %v2759
        %v2774 = vsub.f32 %v2764, %v2771
        %v2775 = vsub.f32 %v2765, %v2772
        %v2776 = vsub.f32 %v2766, %v2773
        %v2777 = vmul.f32 %v2763, %v2757
        %v2778 = vmul.f32 %v2763, %v2758
        %v2779 = vmul.f32 %v2763, %v2759
        %v2780 = vmul.f32 %v2770, %v2753
        %v2781 = vmul.f32 %v2770, %v2754
        %v2782 = vmul.f32 %v2770, %v2755
        %v2783 = vadd.f32 %v2777, %v2780
        %v2784 = vadd.f32 %v2778, %v2781
        %v2785 = vadd.f32 %v2779, %v2782
        %v2786 = vadd.f32 %v2744, %v2774
        %v2787 = vadd.f32 %v2745, %v2775
        %v2788 = vadd.f32 %v2746, %v2776
        %v2789 = vadd.f32 %v2747, %v2783
        %v2790 = vadd.f32 %v2748, %v2784
        %v2791 = vadd.f32 %v2749, %v2785
        %v2792 = vld [vmem:[#allocation2 + $0x6] sm:$0x1]
        %v2793 = vld [vmem:[#allocation3 + $0x6] sm:$0x1]
        %s2794 = scalar_lea.vmem %s9, 624
        %v2795 = vld [vmem:[%s2794] sm:$0xff]
        %v2796 = vld [vmem:[%s2794 + $0x8] sm:$0xff]
        %v2797 = vld [vmem:[%s2794 + $0x10] sm:$0xf]
        %s2798 = scalar_lea.vmem [#allocation4], 624
        %v2799 = vld [vmem:[%s2798] sm:$0xff]
        %v2800 = vld [vmem:[%s2798 + $0x8] sm:$0xff]
        %v2801 = vld [vmem:[%s2798 + $0x10] sm:$0xf]
        %v2802 = vlaneseq
        %v2803 = vshrl.u32 %v2802, 7
        %v2804 = vsub.s32 0, %v2803
        %v2805 = vrot.slane %v2792, %v2804
        %v2806 = vmul.f32 %v2805, %v2795
        %v2807 = vmul.f32 %v2805, %v2796
        %v2808 = vmul.f32 %v2805, %v2797
        %v2809 = vlaneseq
        %v2810 = vshrl.u32 %v2809, 7
        %v2811 = vsub.s32 0, %v2810
        %v2812 = vrot.slane %v2793, %v2811
        %v2813 = vmul.f32 %v2812, %v2799
        %v2814 = vmul.f32 %v2812, %v2800
        %v2815 = vmul.f32 %v2812, %v2801
        %v2816 = vsub.f32 %v2806, %v2813
        %v2817 = vsub.f32 %v2807, %v2814
        %v2818 = vsub.f32 %v2808, %v2815
        %v2819 = vmul.f32 %v2805, %v2799
        %v2820 = vmul.f32 %v2805, %v2800
        %v2821 = vmul.f32 %v2805, %v2801
        %v2822 = vmul.f32 %v2812, %v2795
        %v2823 = vmul.f32 %v2812, %v2796
        %v2824 = vmul.f32 %v2812, %v2797
        %v2825 = vadd.f32 %v2819, %v2822
        %v2826 = vadd.f32 %v2820, %v2823
        %v2827 = vadd.f32 %v2821, %v2824
        %v2828 = vadd.f32 %v2786, %v2816
        %v2829 = vadd.f32 %v2787, %v2817
        %v2830 = vadd.f32 %v2788, %v2818
        %v2831 = vadd.f32 %v2789, %v2825
        %v2832 = vadd.f32 %v2790, %v2826
        %v2833 = vadd.f32 %v2791, %v2827
        %v2834 = vld [vmem:[#allocation2 + $0x7] sm:$0x1]
        %v2835 = vld [vmem:[#allocation3 + $0x7] sm:$0x1]
        %s2836 = scalar_lea.vmem %s9, 648
        %v2837 = vld [vmem:[%s2836] sm:$0xff]
        %v2838 = vld [vmem:[%s2836 + $0x8] sm:$0xff]
        %v2839 = vld [vmem:[%s2836 + $0x10] sm:$0xf]
        %s2840 = scalar_lea.vmem [#allocation4], 648
        %v2841 = vld [vmem:[%s2840] sm:$0xff]
        %v2842 = vld [vmem:[%s2840 + $0x8] sm:$0xff]
        %v2843 = vld [vmem:[%s2840 + $0x10] sm:$0xf]
        %v2844 = vlaneseq
        %v2845 = vshrl.u32 %v2844, 7
        %v2846 = vsub.s32 0, %v2845
        %v2847 = vrot.slane %v2834, %v2846
        %v2848 = vmul.f32 %v2847, %v2837
        %v2849 = vmul.f32 %v2847, %v2838
        %v2850 = vmul.f32 %v2847, %v2839
        %v2851 = vlaneseq
        %v2852 = vshrl.u32 %v2851, 7
        %v2853 = vsub.s32 0, %v2852
        %v2854 = vrot.slane %v2835, %v2853
        %v2855 = vmul.f32 %v2854, %v2841
        %v2856 = vmul.f32 %v2854, %v2842
        %v2857 = vmul.f32 %v2854, %v2843
        %v2858 = vsub.f32 %v2848, %v2855
        %v2859 = vsub.f32 %v2849, %v2856
        %v2860 = vsub.f32 %v2850, %v2857
        %v2861 = vmul.f32 %v2847, %v2841
        %v2862 = vmul.f32 %v2847, %v2842
        %v2863 = vmul.f32 %v2847, %v2843
        %v2864 = vmul.f32 %v2854, %v2837
        %v2865 = vmul.f32 %v2854, %v2838
        %v2866 = vmul.f32 %v2854, %v2839
        %v2867 = vadd.f32 %v2861, %v2864
        %v2868 = vadd.f32 %v2862, %v2865
        %v2869 = vadd.f32 %v2863, %v2866
        %v2870 = vadd.f32 %v2828, %v2858
        %v2871 = vadd.f32 %v2829, %v2859
        %v2872 = vadd.f32 %v2830, %v2860
        %v2873 = vadd.f32 %v2831, %v2867
        %v2874 = vadd.f32 %v2832, %v2868
        %v2875 = vadd.f32 %v2833, %v2869
        %v2876 = vld [vmem:[#allocation2 + $0x8] sm:$0x1]
        %v2877 = vld [vmem:[#allocation3 + $0x8] sm:$0x1]
        %s2878 = scalar_lea.vmem %s9, 672
        %v2879 = vld [vmem:[%s2878] sm:$0xff]
        %v2880 = vld [vmem:[%s2878 + $0x8] sm:$0xff]
        %v2881 = vld [vmem:[%s2878 + $0x10] sm:$0xf]
        %s2882 = scalar_lea.vmem [#allocation4], 672
        %v2883 = vld [vmem:[%s2882] sm:$0xff]
        %v2884 = vld [vmem:[%s2882 + $0x8] sm:$0xff]
        %v2885 = vld [vmem:[%s2882 + $0x10] sm:$0xf]
        %v2886 = vlaneseq
        %v2887 = vshrl.u32 %v2886, 7
        %v2888 = vsub.s32 0, %v2887
        %v2889 = vrot.slane %v2876, %v2888
        %v2890 = vmul.f32 %v2889, %v2879
        %v2891 = vmul.f32 %v2889, %v2880
        %v2892 = vmul.f32 %v2889, %v2881
        %v2893 = vlaneseq
        %v2894 = vshrl.u32 %v2893, 7
        %v2895 = vsub.s32 0, %v2894
        %v2896 = vrot.slane %v2877, %v2895
        %v2897 = vmul.f32 %v2896, %v2883
        %v2898 = vmul.f32 %v2896, %v2884
        %v2899 = vmul.f32 %v2896, %v2885
        %v2900 = vsub.f32 %v2890, %v2897
        %v2901 = vsub.f32 %v2891, %v2898
        %v2902 = vsub.f32 %v2892, %v2899
        %v2903 = vmul.f32 %v2889, %v2883
        %v2904 = vmul.f32 %v2889, %v2884
        %v2905 = vmul.f32 %v2889, %v2885
        %v2906 = vmul.f32 %v2896, %v2879
        %v2907 = vmul.f32 %v2896, %v2880
        %v2908 = vmul.f32 %v2896, %v2881
        %v2909 = vadd.f32 %v2903, %v2906
        %v2910 = vadd.f32 %v2904, %v2907
        %v2911 = vadd.f32 %v2905, %v2908
        %v2912 = vadd.f32 %v2870, %v2900
        %v2913 = vadd.f32 %v2871, %v2901
        %v2914 = vadd.f32 %v2872, %v2902
        %v2915 = vadd.f32 %v2873, %v2909
        %v2916 = vadd.f32 %v2874, %v2910
        %v2917 = vadd.f32 %v2875, %v2911
        %v2918 = vld [vmem:[#allocation2 + $0x9] sm:$0x1]
        %v2919 = vld [vmem:[#allocation3 + $0x9] sm:$0x1]
        %s2920 = scalar_lea.vmem %s9, 696
        %v2921 = vld [vmem:[%s2920] sm:$0xff]
        %v2922 = vld [vmem:[%s2920 + $0x8] sm:$0xff]
        %v2923 = vld [vmem:[%s2920 + $0x10] sm:$0xf]
        %s2924 = scalar_lea.vmem [#allocation4], 696
        %v2925 = vld [vmem:[%s2924] sm:$0xff]
        %v2926 = vld [vmem:[%s2924 + $0x8] sm:$0xff]
        %v2927 = vld [vmem:[%s2924 + $0x10] sm:$0xf]
        %v2928 = vlaneseq
        %v2929 = vshrl.u32 %v2928, 7
        %v2930 = vsub.s32 0, %v2929
        %v2931 = vrot.slane %v2918, %v2930
        %v2932 = vmul.f32 %v2931, %v2921
        %v2933 = vmul.f32 %v2931, %v2922
        %v2934 = vmul.f32 %v2931, %v2923
        %v2935 = vlaneseq
        %v2936 = vshrl.u32 %v2935, 7
        %v2937 = vsub.s32 0, %v2936
        %v2938 = vrot.slane %v2919, %v2937
        %v2939 = vmul.f32 %v2938, %v2925
        %v2940 = vmul.f32 %v2938, %v2926
        %v2941 = vmul.f32 %v2938, %v2927
        %v2942 = vsub.f32 %v2932, %v2939
        %v2943 = vsub.f32 %v2933, %v2940
        %v2944 = vsub.f32 %v2934, %v2941
        %v2945 = vmul.f32 %v2931, %v2925
        %v2946 = vmul.f32 %v2931, %v2926
        %v2947 = vmul.f32 %v2931, %v2927
        %v2948 = vmul.f32 %v2938, %v2921
        %v2949 = vmul.f32 %v2938, %v2922
        %v2950 = vmul.f32 %v2938, %v2923
        %v2951 = vadd.f32 %v2945, %v2948
        %v2952 = vadd.f32 %v2946, %v2949
        %v2953 = vadd.f32 %v2947, %v2950
        %v2954 = vadd.f32 %v2912, %v2942
        %v2955 = vadd.f32 %v2913, %v2943
        %v2956 = vadd.f32 %v2914, %v2944
        %v2957 = vadd.f32 %v2915, %v2951
        %v2958 = vadd.f32 %v2916, %v2952
        %v2959 = vadd.f32 %v2917, %v2953
        %v2960 = vld [vmem:[#allocation2 + $0xa] sm:$0x1]
        %v2961 = vld [vmem:[#allocation3 + $0xa] sm:$0x1]
        %s2962 = scalar_lea.vmem %s9, 720
        %v2963 = vld [vmem:[%s2962] sm:$0xff]
        %v2964 = vld [vmem:[%s2962 + $0x8] sm:$0xff]
        %v2965 = vld [vmem:[%s2962 + $0x10] sm:$0xf]
        %s2966 = scalar_lea.vmem [#allocation4], 720
        %v2967 = vld [vmem:[%s2966] sm:$0xff]
        %v2968 = vld [vmem:[%s2966 + $0x8] sm:$0xff]
        %v2969 = vld [vmem:[%s2966 + $0x10] sm:$0xf]
        %v2970 = vlaneseq
        %v2971 = vshrl.u32 %v2970, 7
        %v2972 = vsub.s32 0, %v2971
        %v2973 = vrot.slane %v2960, %v2972
        %v2974 = vmul.f32 %v2973, %v2963
        %v2975 = vmul.f32 %v2973, %v2964
        %v2976 = vmul.f32 %v2973, %v2965
        %v2977 = vlaneseq
        %v2978 = vshrl.u32 %v2977, 7
        %v2979 = vsub.s32 0, %v2978
        %v2980 = vrot.slane %v2961, %v2979
        %v2981 = vmul.f32 %v2980, %v2967
        %v2982 = vmul.f32 %v2980, %v2968
        %v2983 = vmul.f32 %v2980, %v2969
        %v2984 = vsub.f32 %v2974, %v2981
        %v2985 = vsub.f32 %v2975, %v2982
        %v2986 = vsub.f32 %v2976, %v2983
        %v2987 = vmul.f32 %v2973, %v2967
        %v2988 = vmul.f32 %v2973, %v2968
        %v2989 = vmul.f32 %v2973, %v2969
        %v2990 = vmul.f32 %v2980, %v2963
        %v2991 = vmul.f32 %v2980, %v2964
        %v2992 = vmul.f32 %v2980, %v2965
        %v2993 = vadd.f32 %v2987, %v2990
        %v2994 = vadd.f32 %v2988, %v2991
        %v2995 = vadd.f32 %v2989, %v2992
        %v2996 = vadd.f32 %v2954, %v2984
        %v2997 = vadd.f32 %v2955, %v2985
        %v2998 = vadd.f32 %v2956, %v2986
        %v2999 = vadd.f32 %v2957, %v2993
        %v3000 = vadd.f32 %v2958, %v2994
        %v3001 = vadd.f32 %v2959, %v2995
        %v3002 = vld [vmem:[#allocation2 + $0xb] sm:$0x1]
        %v3003 = vld [vmem:[#allocation3 + $0xb] sm:$0x1]
        %s3004 = scalar_lea.vmem %s9, 744
        %v3005 = vld [vmem:[%s3004] sm:$0xff]
        %v3006 = vld [vmem:[%s3004 + $0x8] sm:$0xff]
        %v3007 = vld [vmem:[%s3004 + $0x10] sm:$0xf]
        %s3008 = scalar_lea.vmem [#allocation4], 744
        %v3009 = vld [vmem:[%s3008] sm:$0xff]
        %v3010 = vld [vmem:[%s3008 + $0x8] sm:$0xff]
        %v3011 = vld [vmem:[%s3008 + $0x10] sm:$0xf]
        %v3012 = vlaneseq
        %v3013 = vshrl.u32 %v3012, 7
        %v3014 = vsub.s32 0, %v3013
        %v3015 = vrot.slane %v3002, %v3014
        %v3016 = vmul.f32 %v3015, %v3005
        %v3017 = vmul.f32 %v3015, %v3006
        %v3018 = vmul.f32 %v3015, %v3007
        %v3019 = vlaneseq
        %v3020 = vshrl.u32 %v3019, 7
        %v3021 = vsub.s32 0, %v3020
        %v3022 = vrot.slane %v3003, %v3021
        %v3023 = vmul.f32 %v3022, %v3009
        %v3024 = vmul.f32 %v3022, %v3010
        %v3025 = vmul.f32 %v3022, %v3011
        %v3026 = vsub.f32 %v3016, %v3023
        %v3027 = vsub.f32 %v3017, %v3024
        %v3028 = vsub.f32 %v3018, %v3025
        %v3029 = vmul.f32 %v3015, %v3009
        %v3030 = vmul.f32 %v3015, %v3010
        %v3031 = vmul.f32 %v3015, %v3011
        %v3032 = vmul.f32 %v3022, %v3005
        %v3033 = vmul.f32 %v3022, %v3006
        %v3034 = vmul.f32 %v3022, %v3007
        %v3035 = vadd.f32 %v3029, %v3032
        %v3036 = vadd.f32 %v3030, %v3033
        %v3037 = vadd.f32 %v3031, %v3034
        %v3038 = vadd.f32 %v2996, %v3026
        %v3039 = vadd.f32 %v2997, %v3027
        %v3040 = vadd.f32 %v2998, %v3028
        %v3041 = vadd.f32 %v2999, %v3035
        %v3042 = vadd.f32 %v3000, %v3036
        %v3043 = vadd.f32 %v3001, %v3037
        %v3044 = vld [vmem:[#allocation2 + $0xc] sm:$0x1]
        %v3045 = vld [vmem:[#allocation3 + $0xc] sm:$0x1]
        %s3046 = scalar_lea.vmem %s9, 768
        %v3047 = vld [vmem:[%s3046] sm:$0xff]
        %v3048 = vld [vmem:[%s3046 + $0x8] sm:$0xff]
        %v3049 = vld [vmem:[%s3046 + $0x10] sm:$0xf]
        %s3050 = scalar_lea.vmem [#allocation4], 768
        %v3051 = vld [vmem:[%s3050] sm:$0xff]
        %v3052 = vld [vmem:[%s3050 + $0x8] sm:$0xff]
        %v3053 = vld [vmem:[%s3050 + $0x10] sm:$0xf]
        %v3054 = vlaneseq
        %v3055 = vshrl.u32 %v3054, 7
        %v3056 = vsub.s32 0, %v3055
        %v3057 = vrot.slane %v3044, %v3056
        %v3058 = vmul.f32 %v3057, %v3047
        %v3059 = vmul.f32 %v3057, %v3048
        %v3060 = vmul.f32 %v3057, %v3049
        %v3061 = vlaneseq
        %v3062 = vshrl.u32 %v3061, 7
        %v3063 = vsub.s32 0, %v3062
        %v3064 = vrot.slane %v3045, %v3063
        %v3065 = vmul.f32 %v3064, %v3051
        %v3066 = vmul.f32 %v3064, %v3052
        %v3067 = vmul.f32 %v3064, %v3053
        %v3068 = vsub.f32 %v3058, %v3065
        %v3069 = vsub.f32 %v3059, %v3066
        %v3070 = vsub.f32 %v3060, %v3067
        %v3071 = vmul.f32 %v3057, %v3051
        %v3072 = vmul.f32 %v3057, %v3052
        %v3073 = vmul.f32 %v3057, %v3053
        %v3074 = vmul.f32 %v3064, %v3047
        %v3075 = vmul.f32 %v3064, %v3048
        %v3076 = vmul.f32 %v3064, %v3049
        %v3077 = vadd.f32 %v3071, %v3074
        %v3078 = vadd.f32 %v3072, %v3075
        %v3079 = vadd.f32 %v3073, %v3076
        %v3080 = vadd.f32 %v3038, %v3068
        %v3081 = vadd.f32 %v3039, %v3069
        %v3082 = vadd.f32 %v3040, %v3070
        %v3083 = vadd.f32 %v3041, %v3077
        %v3084 = vadd.f32 %v3042, %v3078
        %v3085 = vadd.f32 %v3043, %v3079
        %v3086 = vld [vmem:[#allocation2 + $0xd] sm:$0x1]
        %v3087 = vld [vmem:[#allocation3 + $0xd] sm:$0x1]
        %s3088 = scalar_lea.vmem %s9, 792
        %v3089 = vld [vmem:[%s3088] sm:$0xff]
        %v3090 = vld [vmem:[%s3088 + $0x8] sm:$0xff]
        %v3091 = vld [vmem:[%s3088 + $0x10] sm:$0xf]
        %s3092 = scalar_lea.vmem [#allocation4], 792
        %v3093 = vld [vmem:[%s3092] sm:$0xff]
        %v3094 = vld [vmem:[%s3092 + $0x8] sm:$0xff]
        %v3095 = vld [vmem:[%s3092 + $0x10] sm:$0xf]
        %v3096 = vlaneseq
        %v3097 = vshrl.u32 %v3096, 7
        %v3098 = vsub.s32 0, %v3097
        %v3099 = vrot.slane %v3086, %v3098
        %v3100 = vmul.f32 %v3099, %v3089
        %v3101 = vmul.f32 %v3099, %v3090
        %v3102 = vmul.f32 %v3099, %v3091
        %v3103 = vlaneseq
        %v3104 = vshrl.u32 %v3103, 7
        %v3105 = vsub.s32 0, %v3104
        %v3106 = vrot.slane %v3087, %v3105
        %v3107 = vmul.f32 %v3106, %v3093
        %v3108 = vmul.f32 %v3106, %v3094
        %v3109 = vmul.f32 %v3106, %v3095
        %v3110 = vsub.f32 %v3100, %v3107
        %v3111 = vsub.f32 %v3101, %v3108
        %v3112 = vsub.f32 %v3102, %v3109
        %v3113 = vmul.f32 %v3099, %v3093
        %v3114 = vmul.f32 %v3099, %v3094
        %v3115 = vmul.f32 %v3099, %v3095
        %v3116 = vmul.f32 %v3106, %v3089
        %v3117 = vmul.f32 %v3106, %v3090
        %v3118 = vmul.f32 %v3106, %v3091
        %v3119 = vadd.f32 %v3113, %v3116
        %v3120 = vadd.f32 %v3114, %v3117
        %v3121 = vadd.f32 %v3115, %v3118
        %v3122 = vadd.f32 %v3080, %v3110
        %v3123 = vadd.f32 %v3081, %v3111
        %v3124 = vadd.f32 %v3082, %v3112
        %v3125 = vadd.f32 %v3083, %v3119
        %v3126 = vadd.f32 %v3084, %v3120
        %v3127 = vadd.f32 %v3085, %v3121
        %v3128 = vld [vmem:[#allocation2 + $0xe] sm:$0x1]
        %v3129 = vld [vmem:[#allocation3 + $0xe] sm:$0x1]
        %s3130 = scalar_lea.vmem %s9, 816
        %v3131 = vld [vmem:[%s3130] sm:$0xff]
        %v3132 = vld [vmem:[%s3130 + $0x8] sm:$0xff]
        %v3133 = vld [vmem:[%s3130 + $0x10] sm:$0xf]
        %s3134 = scalar_lea.vmem [#allocation4], 816
        %v3135 = vld [vmem:[%s3134] sm:$0xff]
        %v3136 = vld [vmem:[%s3134 + $0x8] sm:$0xff]
        %v3137 = vld [vmem:[%s3134 + $0x10] sm:$0xf]
        %v3138 = vlaneseq
        %v3139 = vshrl.u32 %v3138, 7
        %v3140 = vsub.s32 0, %v3139
        %v3141 = vrot.slane %v3128, %v3140
        %v3142 = vmul.f32 %v3141, %v3131
        %v3143 = vmul.f32 %v3141, %v3132
        %v3144 = vmul.f32 %v3141, %v3133
        %v3145 = vlaneseq
        %v3146 = vshrl.u32 %v3145, 7
        %v3147 = vsub.s32 0, %v3146
        %v3148 = vrot.slane %v3129, %v3147
        %v3149 = vmul.f32 %v3148, %v3135
        %v3150 = vmul.f32 %v3148, %v3136
        %v3151 = vmul.f32 %v3148, %v3137
        %v3152 = vsub.f32 %v3142, %v3149
        %v3153 = vsub.f32 %v3143, %v3150
        %v3154 = vsub.f32 %v3144, %v3151
        %v3155 = vmul.f32 %v3141, %v3135
        %v3156 = vmul.f32 %v3141, %v3136
        %v3157 = vmul.f32 %v3141, %v3137
        %v3158 = vmul.f32 %v3148, %v3131
        %v3159 = vmul.f32 %v3148, %v3132
        %v3160 = vmul.f32 %v3148, %v3133
        %v3161 = vadd.f32 %v3155, %v3158
        %v3162 = vadd.f32 %v3156, %v3159
        %v3163 = vadd.f32 %v3157, %v3160
        %v3164 = vadd.f32 %v3122, %v3152
        %v3165 = vadd.f32 %v3123, %v3153
        %v3166 = vadd.f32 %v3124, %v3154
        %v3167 = vadd.f32 %v3125, %v3161
        %v3168 = vadd.f32 %v3126, %v3162
        %v3169 = vadd.f32 %v3127, %v3163
        %v3170 = vld [vmem:[#allocation2 + $0xf] sm:$0x1]
        %v3171 = vld [vmem:[#allocation3 + $0xf] sm:$0x1]
        %s3172 = scalar_lea.vmem %s9, 840
        %v3173 = vld [vmem:[%s3172] sm:$0xff]
        %v3174 = vld [vmem:[%s3172 + $0x8] sm:$0xff]
        %v3175 = vld [vmem:[%s3172 + $0x10] sm:$0xf]
        %s3176 = scalar_lea.vmem [#allocation4], 840
        %v3177 = vld [vmem:[%s3176] sm:$0xff]
        %v3178 = vld [vmem:[%s3176 + $0x8] sm:$0xff]
        %v3179 = vld [vmem:[%s3176 + $0x10] sm:$0xf]
        %v3180 = vlaneseq
        %v3181 = vshrl.u32 %v3180, 7
        %v3182 = vsub.s32 0, %v3181
        %v3183 = vrot.slane %v3170, %v3182
        %v3184 = vmul.f32 %v3183, %v3173
        %v3185 = vmul.f32 %v3183, %v3174
        %v3186 = vmul.f32 %v3183, %v3175
        %v3187 = vlaneseq
        %v3188 = vshrl.u32 %v3187, 7
        %v3189 = vsub.s32 0, %v3188
        %v3190 = vrot.slane %v3171, %v3189
        %v3191 = vmul.f32 %v3190, %v3177
        %v3192 = vmul.f32 %v3190, %v3178
        %v3193 = vmul.f32 %v3190, %v3179
        %v3194 = vsub.f32 %v3184, %v3191
        %v3195 = vsub.f32 %v3185, %v3192
        %v3196 = vsub.f32 %v3186, %v3193
        %v3197 = vmul.f32 %v3183, %v3177
        %v3198 = vmul.f32 %v3183, %v3178
        %v3199 = vmul.f32 %v3183, %v3179
        %v3200 = vmul.f32 %v3190, %v3173
        %v3201 = vmul.f32 %v3190, %v3174
        %v3202 = vmul.f32 %v3190, %v3175
        %v3203 = vadd.f32 %v3197, %v3200
        %v3204 = vadd.f32 %v3198, %v3201
        %v3205 = vadd.f32 %v3199, %v3202
        %v3206 = vadd.f32 %v3164, %v3194
        %v3207 = vadd.f32 %v3165, %v3195
        %v3208 = vadd.f32 %v3166, %v3196
        %v3209 = vadd.f32 %v3167, %v3203
        %v3210 = vadd.f32 %v3168, %v3204
        %v3211 = vadd.f32 %v3169, %v3205
        %v3212 = vld [vmem:[#allocation2 + $0x10] sm:$0x1]
        %v3213 = vld [vmem:[#allocation3 + $0x10] sm:$0x1]
        %s3214 = scalar_lea.vmem %s9, 864
        %v3215 = vld [vmem:[%s3214] sm:$0xff]
        %v3216 = vld [vmem:[%s3214 + $0x8] sm:$0xff]
        %v3217 = vld [vmem:[%s3214 + $0x10] sm:$0xf]
        %s3218 = scalar_lea.vmem [#allocation4], 864
        %v3219 = vld [vmem:[%s3218] sm:$0xff]
        %v3220 = vld [vmem:[%s3218 + $0x8] sm:$0xff]
        %v3221 = vld [vmem:[%s3218 + $0x10] sm:$0xf]
        %v3222 = vlaneseq
        %v3223 = vshrl.u32 %v3222, 7
        %v3224 = vsub.s32 0, %v3223
        %v3225 = vrot.slane %v3212, %v3224
        %v3226 = vmul.f32 %v3225, %v3215
        %v3227 = vmul.f32 %v3225, %v3216
        %v3228 = vmul.f32 %v3225, %v3217
        %v3229 = vlaneseq
        %v3230 = vshrl.u32 %v3229, 7
        %v3231 = vsub.s32 0, %v3230
        %v3232 = vrot.slane %v3213, %v3231
        %v3233 = vmul.f32 %v3232, %v3219
        %v3234 = vmul.f32 %v3232, %v3220
        %v3235 = vmul.f32 %v3232, %v3221
        %v3236 = vsub.f32 %v3226, %v3233
        %v3237 = vsub.f32 %v3227, %v3234
        %v3238 = vsub.f32 %v3228, %v3235
        %v3239 = vmul.f32 %v3225, %v3219
        %v3240 = vmul.f32 %v3225, %v3220
        %v3241 = vmul.f32 %v3225, %v3221
        %v3242 = vmul.f32 %v3232, %v3215
        %v3243 = vmul.f32 %v3232, %v3216
        %v3244 = vmul.f32 %v3232, %v3217
        %v3245 = vadd.f32 %v3239, %v3242
        %v3246 = vadd.f32 %v3240, %v3243
        %v3247 = vadd.f32 %v3241, %v3244
        %v3248 = vadd.f32 %v3206, %v3236
        %v3249 = vadd.f32 %v3207, %v3237
        %v3250 = vadd.f32 %v3208, %v3238
        %v3251 = vadd.f32 %v3209, %v3245
        %v3252 = vadd.f32 %v3210, %v3246
        %v3253 = vadd.f32 %v3211, %v3247
        %v3254 = vld [vmem:[#allocation2 + $0x11] sm:$0x1]
        %v3255 = vld [vmem:[#allocation3 + $0x11] sm:$0x1]
        %s3256 = scalar_lea.vmem %s9, 888
        %v3257 = vld [vmem:[%s3256] sm:$0xff]
        %v3258 = vld [vmem:[%s3256 + $0x8] sm:$0xff]
        %v3259 = vld [vmem:[%s3256 + $0x10] sm:$0xf]
        %s3260 = scalar_lea.vmem [#allocation4], 888
        %v3261 = vld [vmem:[%s3260] sm:$0xff]
        %v3262 = vld [vmem:[%s3260 + $0x8] sm:$0xff]
        %v3263 = vld [vmem:[%s3260 + $0x10] sm:$0xf]
        %v3264 = vlaneseq
        %v3265 = vshrl.u32 %v3264, 7
        %v3266 = vsub.s32 0, %v3265
        %v3267 = vrot.slane %v3254, %v3266
        %v3268 = vmul.f32 %v3267, %v3257
        %v3269 = vmul.f32 %v3267, %v3258
        %v3270 = vmul.f32 %v3267, %v3259
        %v3271 = vlaneseq
        %v3272 = vshrl.u32 %v3271, 7
        %v3273 = vsub.s32 0, %v3272
        %v3274 = vrot.slane %v3255, %v3273
        %v3275 = vmul.f32 %v3274, %v3261
        %v3276 = vmul.f32 %v3274, %v3262
        %v3277 = vmul.f32 %v3274, %v3263
        %v3278 = vsub.f32 %v3268, %v3275
        %v3279 = vsub.f32 %v3269, %v3276
        %v3280 = vsub.f32 %v3270, %v3277
        %v3281 = vmul.f32 %v3267, %v3261
        %v3282 = vmul.f32 %v3267, %v3262
        %v3283 = vmul.f32 %v3267, %v3263
        %v3284 = vmul.f32 %v3274, %v3257
        %v3285 = vmul.f32 %v3274, %v3258
        %v3286 = vmul.f32 %v3274, %v3259
        %v3287 = vadd.f32 %v3281, %v3284
        %v3288 = vadd.f32 %v3282, %v3285
        %v3289 = vadd.f32 %v3283, %v3286
        %v3290 = vadd.f32 %v3248, %v3278
        %v3291 = vadd.f32 %v3249, %v3279
        %v3292 = vadd.f32 %v3250, %v3280
        %v3293 = vadd.f32 %v3251, %v3287
        %v3294 = vadd.f32 %v3252, %v3288
        %v3295 = vadd.f32 %v3253, %v3289
        %v3296 = vld [vmem:[#allocation2 + $0x12] sm:$0x1]
        %v3297 = vld [vmem:[#allocation3 + $0x12] sm:$0x1]
        %s3298 = scalar_lea.vmem %s9, 912
        %v3299 = vld [vmem:[%s3298] sm:$0xff]
        %v3300 = vld [vmem:[%s3298 + $0x8] sm:$0xff]
        %v3301 = vld [vmem:[%s3298 + $0x10] sm:$0xf]
        %s3302 = scalar_lea.vmem [#allocation4], 912
        %v3303 = vld [vmem:[%s3302] sm:$0xff]
        %v3304 = vld [vmem:[%s3302 + $0x8] sm:$0xff]
        %v3305 = vld [vmem:[%s3302 + $0x10] sm:$0xf]
        %v3306 = vlaneseq
        %v3307 = vshrl.u32 %v3306, 7
        %v3308 = vsub.s32 0, %v3307
        %v3309 = vrot.slane %v3296, %v3308
        %v3310 = vmul.f32 %v3309, %v3299
        %v3311 = vmul.f32 %v3309, %v3300
        %v3312 = vmul.f32 %v3309, %v3301
        %v3313 = vlaneseq
        %v3314 = vshrl.u32 %v3313, 7
        %v3315 = vsub.s32 0, %v3314
        %v3316 = vrot.slane %v3297, %v3315
        %v3317 = vmul.f32 %v3316, %v3303
        %v3318 = vmul.f32 %v3316, %v3304
        %v3319 = vmul.f32 %v3316, %v3305
        %v3320 = vsub.f32 %v3310, %v3317
        %v3321 = vsub.f32 %v3311, %v3318
        %v3322 = vsub.f32 %v3312, %v3319
        %v3323 = vmul.f32 %v3309, %v3303
        %v3324 = vmul.f32 %v3309, %v3304
        %v3325 = vmul.f32 %v3309, %v3305
        %v3326 = vmul.f32 %v3316, %v3299
        %v3327 = vmul.f32 %v3316, %v3300
        %v3328 = vmul.f32 %v3316, %v3301
        %v3329 = vadd.f32 %v3323, %v3326
        %v3330 = vadd.f32 %v3324, %v3327
        %v3331 = vadd.f32 %v3325, %v3328
        %v3332 = vadd.f32 %v3290, %v3320
        %v3333 = vadd.f32 %v3291, %v3321
        %v3334 = vadd.f32 %v3292, %v3322
        %v3335 = vadd.f32 %v3293, %v3329
        %v3336 = vadd.f32 %v3294, %v3330
        %v3337 = vadd.f32 %v3295, %v3331
        %v3338 = vld [vmem:[#allocation2 + $0x13] sm:$0x1]
        %v3339 = vld [vmem:[#allocation3 + $0x13] sm:$0x1]
        %s3340 = scalar_lea.vmem %s9, 936
        %v3341 = vld [vmem:[%s3340] sm:$0xff]
        %v3342 = vld [vmem:[%s3340 + $0x8] sm:$0xff]
        %v3343 = vld [vmem:[%s3340 + $0x10] sm:$0xf]
        %s3344 = scalar_lea.vmem [#allocation4], 936
        %v3345 = vld [vmem:[%s3344] sm:$0xff]
        %v3346 = vld [vmem:[%s3344 + $0x8] sm:$0xff]
        %v3347 = vld [vmem:[%s3344 + $0x10] sm:$0xf]
        %v3348 = vlaneseq
        %v3349 = vshrl.u32 %v3348, 7
        %v3350 = vsub.s32 0, %v3349
        %v3351 = vrot.slane %v3338, %v3350
        %v3352 = vmul.f32 %v3351, %v3341
        %v3353 = vmul.f32 %v3351, %v3342
        %v3354 = vmul.f32 %v3351, %v3343
        %v3355 = vlaneseq
        %v3356 = vshrl.u32 %v3355, 7
        %v3357 = vsub.s32 0, %v3356
        %v3358 = vrot.slane %v3339, %v3357
        %v3359 = vmul.f32 %v3358, %v3345
        %v3360 = vmul.f32 %v3358, %v3346
        %v3361 = vmul.f32 %v3358, %v3347
        %v3362 = vsub.f32 %v3352, %v3359
        %v3363 = vsub.f32 %v3353, %v3360
        %v3364 = vsub.f32 %v3354, %v3361
        %v3365 = vmul.f32 %v3351, %v3345
        %v3366 = vmul.f32 %v3351, %v3346
        %v3367 = vmul.f32 %v3351, %v3347
        %v3368 = vmul.f32 %v3358, %v3341
        %v3369 = vmul.f32 %v3358, %v3342
        %v3370 = vmul.f32 %v3358, %v3343
        %v3371 = vadd.f32 %v3365, %v3368
        %v3372 = vadd.f32 %v3366, %v3369
        %v3373 = vadd.f32 %v3367, %v3370
        %v3374 = vadd.f32 %v3332, %v3362
        %v3375 = vadd.f32 %v3333, %v3363
        %v3376 = vadd.f32 %v3334, %v3364
        %v3377 = vadd.f32 %v3335, %v3371
        %v3378 = vadd.f32 %v3336, %v3372
        %v3379 = vadd.f32 %v3337, %v3373
        %v3380 = vpack.c.bf16 %v3375, %v3374
        %v3381 = vpack.c.bf16 %v3376, %v3376
        %v3382 = vpack.c.bf16 %v3378, %v3377
        %v3383 = vpack.c.bf16 %v3379, %v3379
        %3384 = vmatprep.subr.bf16.mxu0 %v2047
        %3385 = vmatpush1.bf16.msra.mxu0 %v2046
        %3386 = vmatprep.subr.bf16.mxu0 %v2049
        %3387 = vmatpush1.bf16.msra.mxu0 %v2048
        %3388 = vmatprep.subr.bf16.mxu0 %v2051
        %3389 = vmatpush1.bf16.msra.mxu0 %v2050
        %3390 = vmatprep.subr.bf16.mxu0 %v2053
        %3391 = vmatpush1.bf16.msra.mxu0 %v2052
        %3392 = vmatprep.subr.bf16.mxu0 %v2055
        %3393 = vmatpush1.bf16.msra.mxu0 %v2054
        %3394 = vmatprep.subr.bf16.mxu0 %v2057
        %3395 = vmatpush1.bf16.msra.mxu0 %v2056
        %3396 = vmatprep.subr.bf16.mxu0 %v2059
        %3397 = vmatpush1.bf16.msra.mxu0 %v2058
        %3398 = vmatprep.subr.bf16.mxu0 %v2061
        %3399 = vmatpush1.bf16.msra.mxu0 %v2060
        %3400 = vmatprep.subr.bf16.mxu0 0
        %3401 = vmatpush1.bf16.msra.mxu0 0
        %3402 = vmatprep.subr.bf16.mxu0 0
        %3403 = vmatpush1.bf16.msra.mxu0 0
        %3404 = vmatprep.subr.bf16.mxu0 0
        %3405 = vmatpush1.bf16.msra.mxu0 0
        %3406 = vmatprep.subr.bf16.mxu0 0
        %3407 = vmatpush1.bf16.msra.mxu0 0
        %3408 = vmatprep.subr.bf16.mxu0 0
        %3409 = vmatpush1.bf16.msra.mxu0 0
        %3410 = vmatprep.subr.bf16.mxu0 0
        %3411 = vmatpush1.bf16.msra.mxu0 0
        %3412 = vmatprep.subr.bf16.mxu0 0
        %3413 = vmatpush1.bf16.msra.mxu0 0
        %3414 = vmatprep.subr.bf16.mxu0 0
        %3415 = vmatpush1.bf16.msra.mxu0 0
        %3416 = vmatprep.mubr.bf16.mxu0 0
        %3417 = vmatmul.mubr.bf16.gmra.mrb[0].mxu0 %v3382
        %v3418 = vpop.f32.mrb[0].mxu0
        %v3419 = vadd.f32 0.0, %v3418
        %v3420 = vpop.f32.mrb[0].mxu0
        %v3421 = vadd.f32 0.0, %v3420
        %v3422 = vpop.f32.mrb[0].mxu0
        %v3423 = vadd.f32 0.0, %v3422
        %v3424 = vpop.f32.mrb[0].mxu0
        %v3425 = vadd.f32 0.0, %v3424
        %3426 = vmatprep.mubr.bf16.mxu0 0
        %3427 = vmatmul.mubr.bf16.gmra.mrb[0].mxu0 %v3383
        %v3428 = vpop.f32.mrb[0].mxu0
        %v3429 = vadd.f32 0.0, %v3428
        %v3430 = vpop.f32.mrb[0].mxu0
        %v3431 = vadd.f32 0.0, %v3430
        %v3432 = vpop.f32.mrb[0].mxu0
        %v3433 = vpop.f32.mrb[0].mxu0
        %3434 = vdwg.mxu0
        %3435 = vmatprep.subr.bf16.mxu0 %v2178
        %3436 = vmatpush1.bf16.msra.mxu0 %v2177
        %3437 = vmatprep.subr.bf16.mxu0 %v2180
        %3438 = vmatpush1.bf16.msra.mxu0 %v2179
        %3439 = vmatprep.subr.bf16.mxu0 %v2182
        %3440 = vmatpush1.bf16.msra.mxu0 %v2181
        %3441 = vmatprep.subr.bf16.mxu0 %v2184
        %3442 = vmatpush1.bf16.msra.mxu0 %v2183
        %3443 = vmatprep.subr.bf16.mxu0 %v2186
        %3444 = vmatpush1.bf16.msra.mxu0 %v2185
        %3445 = vmatprep.subr.bf16.mxu0 %v2188
        %3446 = vmatpush1.bf16.msra.mxu0 %v2187
        %3447 = vmatprep.subr.bf16.mxu0 %v2190
        %3448 = vmatpush1.bf16.msra.mxu0 %v2189
        %3449 = vmatprep.subr.bf16.mxu0 %v2192
        %3450 = vmatpush1.bf16.msra.mxu0 %v2191
        %3451 = vmatprep.subr.bf16.mxu0 0
        %3452 = vmatpush1.bf16.msra.mxu0 0
        %3453 = vmatprep.subr.bf16.mxu0 0
        %3454 = vmatpush1.bf16.msra.mxu0 0
        %3455 = vmatprep.subr.bf16.mxu0 0
        %3456 = vmatpush1.bf16.msra.mxu0 0
        %3457 = vmatprep.subr.bf16.mxu0 0
        %3458 = vmatpush1.bf16.msra.mxu0 0
        %3459 = vmatprep.subr.bf16.mxu0 0
        %3460 = vmatpush1.bf16.msra.mxu0 0
        %3461 = vmatprep.subr.bf16.mxu0 0
        %3462 = vmatpush1.bf16.msra.mxu0 0
        %3463 = vmatprep.subr.bf16.mxu0 0
        %3464 = vmatpush1.bf16.msra.mxu0 0
        %3465 = vmatprep.subr.bf16.mxu0 0
        %3466 = vmatpush1.bf16.msra.mxu0 0
        %3467 = vmatprep.mubr.bf16.mxu0 0
        %3468 = vmatmul.mubr.bf16.gmra.mrb[0].mxu0 %v3380
        %v3469 = vpop.f32.mrb[0].mxu0
        %v3470 = vadd.f32 %v3419, %v3469
        %v3471 = vpop.f32.mrb[0].mxu0
        %v3472 = vadd.f32 %v3421, %v3471
        %v3473 = vpop.f32.mrb[0].mxu0
        %v3474 = vadd.f32 %v3423, %v3473
        %v3475 = vpop.f32.mrb[0].mxu0
        %v3476 = vadd.f32 %v3425, %v3475
        %3477 = vmatprep.mubr.bf16.mxu0 0
        %3478 = vmatmul.mubr.bf16.gmra.mrb[0].mxu0 %v3381
        %v3479 = vpop.f32.mrb[0].mxu0
        %v3480 = vadd.f32 %v3429, %v3479
        %v3481 = vpop.f32.mrb[0].mxu0
        %v3482 = vadd.f32 %v3431, %v3481
        %v3483 = vpop.f32.mrb[0].mxu0
        %v3484 = vpop.f32.mrb[0].mxu0
        %3485 = vdwg.mxu0
        %s3486 = scalar_lea.vmem [#allocation6], 24
        %v3487 = vld [vmem:[%s3486] sm:$0xff]
        %v3488 = vld [vmem:[%s3486 + $0x8] sm:$0xff]
        %v3489 = vld [vmem:[%s3486 + $0x10] sm:$0xf]
        %s3490 = scalar_lea.vmem %s12, 24
        %v3491 = vld [vmem:[%s3490] sm:$0xff]
        %v3492 = vld [vmem:[%s3490 + $0x8] sm:$0xff]
        %v3493 = vld [vmem:[%s3490 + $0x10] sm:$0xf]
        %3495 = vset.pattern.permute.xlu0 0
        %3496 = vperm.xlu0 %3495, %v3491
        %v3497 = vpop.permute.xlu0 %3496
        %3500 = vset.pattern.permute.xlu0 0
        %3501 = vperm.xlu0 %3500, %v3492
        %v3502 = vpop.permute.xlu0 %3501
        %3505 = vset.pattern.permute.xlu0 0
        %3506 = vperm.xlu0 %3505, %v3493
        %v3507 = vpop.permute.xlu0 %3506
        %v3510 = vsel %vm2281, %v3487, 0
        %v3513 = vsel %vm2281, %v3488, 0
        %v3516 = vsel %vm2281, %v3489, 0
        %v3519 = vsel %vm654, %v2438, 0
        %v3522 = vsel %vm654, %v2439, 0
        %3524 = vmatprep.subr.mxu0 %v2435
        %3525 = vmatpush1.msra.mxu0 %v2434
        %3526 = vmatprep.subr.mxu0 %v2437
        %3527 = vmatpush1.msra.mxu0 %v2436
        %3528 = vmatprep.subr.mxu0 %v3522
        %3529 = vmatpush1.msra.mxu0 %v3519
        %3530 = vmatprep.subr.mxu0 0.0
        %3531 = vmatpush1.msra.mxu0 0.0
        %3532 = vmatprep.subr.mxu0 0.0
        %3533 = vmatpush1.msra.mxu0 0.0
        %3534 = vmatprep.subr.mxu0 0.0
        %3535 = vmatpush1.msra.mxu0 0.0
        %3536 = vmatprep.subr.mxu0 0.0
        %3537 = vmatpush1.msra.mxu0 0.0
        %3538 = vmatprep.subr.mxu0 0.0
        %3539 = vmatpush1.msra.mxu0 0.0
        %3540 = vmatprep.subr.mxu0 0.0
        %3541 = vmatpush1.msra.mxu0 0.0
        %3542 = vmatprep.subr.mxu0 0.0
        %3543 = vmatpush1.msra.mxu0 0.0
        %3544 = vmatprep.subr.mxu0 0.0
        %3545 = vmatpush1.msra.mxu0 0.0
        %3546 = vmatprep.subr.mxu0 0.0
        %3547 = vmatpush1.msra.mxu0 0.0
        %3548 = vmatprep.subr.mxu0 0.0
        %3549 = vmatpush1.msra.mxu0 0.0
        %3550 = vmatprep.subr.mxu0 0.0
        %3551 = vmatpush1.msra.mxu0 0.0
        %3552 = vmatprep.subr.mxu0 0.0
        %3553 = vmatpush1.msra.mxu0 0.0
        %3554 = vmatprep.subr.mxu0 0.0
        %3555 = vmatpush1.msra.mxu0 0.0
        %3556 = vmatprep.subr.mxu0 0.0
        %3557 = vmatpush1.msra.mxu0 0.0
        %3558 = vmatprep.subr.mxu0 0.0
        %3559 = vmatpush1.msra.mxu0 0.0
        %3560 = vmatprep.subr.mxu0 0.0
        %3561 = vmatpush1.msra.mxu0 0.0
        %3562 = vmatprep.subr.mxu0 0.0
        %3563 = vmatpush1.msra.mxu0 0.0
        %3564 = vmatprep.subr.mxu0 0.0
        %3565 = vmatpush1.msra.mxu0 0.0
        %3566 = vmatprep.subr.mxu0 0.0
        %3567 = vmatpush1.msra.mxu0 0.0
        %3568 = vmatprep.subr.mxu0 0.0
        %3569 = vmatpush1.msra.mxu0 0.0
        %3570 = vmatprep.subr.mxu0 0.0
        %3571 = vmatpush1.msra.mxu0 0.0
        %3572 = vmatprep.subr.mxu0 0.0
        %3573 = vmatpush1.msra.mxu0 0.0
        %3574 = vmatprep.subr.mxu0 0.0
        %3575 = vmatpush1.msra.mxu0 0.0
        %3576 = vmatprep.subr.mxu0 0.0
        %3577 = vmatpush1.msra.mxu0 0.0
        %3578 = vmatprep.subr.mxu0 0.0
        %3579 = vmatpush1.msra.mxu0 0.0
        %3580 = vmatprep.subr.mxu0 0.0
        %3581 = vmatpush1.msra.mxu0 0.0
        %3582 = vmatprep.subr.mxu0 0.0
        %3583 = vmatpush1.msra.mxu0 0.0
        %3584 = vmatprep.subr.mxu0 0.0
        %3585 = vmatpush1.msra.mxu0 0.0
        %3586 = vmatprep.subr.mxu0 0.0
        %3587 = vmatpush1.msra.mxu0 0.0
        %3588 = vmatprep.mubr.f32.mxu0 0.0
        %3589 = vmatmul.mubr.f32.gmra.mrb[0].mxu0 %v3510
        %v3590 = vpop.f32.mrb[0].mxu0
        %v3591 = vadd.f32 %v3497, %v3590
        %v3592 = vpop.f32.mrb[0].mxu0
        %v3593 = vadd.f32 %v3497, %v3592
        %3594 = vmatprep.mubr.f32.mxu0 0.0
        %3595 = vmatmul.mubr.f32.gmra.mrb[0].mxu0 %v3513
        %v3596 = vpop.f32.mrb[0].mxu0
        %v3597 = vadd.f32 %v3502, %v3596
        %v3598 = vpop.f32.mrb[0].mxu0
        %v3599 = vadd.f32 %v3502, %v3598
        %3600 = vmatprep.mubr.f32.mxu0 0.0
        %3601 = vmatmul.mubr.f32.gmra.mrb[0].mxu0 %v3516
        %v3602 = vpop.f32.mrb[0].mxu0
        %v3603 = vadd.f32 %v3507, %v3602
        %v3604 = vpop.f32.mrb[0].mxu0
        %v3605 = vadd.f32 %v3507, %v3604
        %3606 = vdwg.mxu0
        %v3607 = vadd.f32 %v3470, %v3591
        %v3608 = vadd.f32 %v3472, %v3593
        %v3609 = vadd.f32 %v3474, %v3597
        %v3610 = vadd.f32 %v3476, %v3599
        %v3611 = vadd.f32 %v3480, %v3603
        %v3612 = vadd.f32 %v3482, %v3605
        %v3613 = vmul.f32 %v3607, %v3607
        %v3614 = vmul.f32 %v3608, %v3608
        %v3615 = vmul.f32 %v3609, %v3609
        %v3616 = vmul.f32 %v3610, %v3610
        %v3617 = vmul.f32 %v3611, %v3611
        %v3618 = vmul.f32 %v3612, %v3612
        %v3619 = vmul.f32 %v3607, %v3613
        %v3620 = vmul.f32 %v3608, %v3614
        %v3621 = vmul.f32 %v3609, %v3615
        %v3622 = vmul.f32 %v3610, %v3616
        %v3623 = vmul.f32 %v3611, %v3617
        %v3624 = vmul.f32 %v3612, %v3618
        %v3625 = vmul.f32 %v3619, 0.044715
        %v3626 = vmul.f32 %v3620, 0.044715
        %v3627 = vmul.f32 %v3621, 0.044715
        %v3628 = vmul.f32 %v3622, 0.044715
        %v3629 = vmul.f32 %v3623, 0.044715
        %v3630 = vmul.f32 %v3624, 0.044715
        %v3631 = vadd.f32 %v3607, %v3625
        %v3632 = vadd.f32 %v3608, %v3626
        %v3633 = vadd.f32 %v3609, %v3627
        %v3634 = vadd.f32 %v3610, %v3628
        %v3635 = vadd.f32 %v3611, %v3629
        %v3636 = vadd.f32 %v3612, %v3630
        %v3637 = vmul.f32 %v3631, 0.7978846
        %v3638 = vmul.f32 %v3632, 0.7978846
        %v3639 = vmul.f32 %v3633, 0.7978846
        %v3640 = vmul.f32 %v3634, 0.7978846
        %v3641 = vmul.f32 %v3635, 0.7978846
        %v3642 = vmul.f32 %v3636, 0.7978846
        %v3643 = vtanh.pop %v3637
        %v3644 = vtanh.pop %v3638
        %v3645 = vtanh.pop %v3639
        %v3646 = vtanh.pop %v3640
        %v3647 = vtanh.pop %v3641
        %v3648 = vtanh.pop %v3642
        %v3649 = vadd.f32 %v3643, 1.0
        %v3650 = vadd.f32 %v3644, 1.0
        %v3651 = vadd.f32 %v3645, 1.0
        %v3652 = vadd.f32 %v3646, 1.0
        %v3653 = vadd.f32 %v3647, 1.0
        %v3654 = vadd.f32 %v3648, 1.0
        %v3655 = vmul.f32 %v3649, 0.5
        %v3656 = vmul.f32 %v3650, 0.5
        %v3657 = vmul.f32 %v3651, 0.5
        %v3658 = vmul.f32 %v3652, 0.5
        %v3659 = vmul.f32 %v3653, 0.5
        %v3660 = vmul.f32 %v3654, 0.5
        %v3661 = vmul.f32 %v3607, %v3655
        %v3662 = vmul.f32 %v3608, %v3656
        %v3663 = vmul.f32 %v3609, %v3657
        %v3664 = vmul.f32 %v3610, %v3658
        %v3665 = vmul.f32 %v3611, %v3659
        %v3666 = vmul.f32 %v3612, %v3660
        %v3667 = vpack.c.bf16 %v3663, %v3661
        %v3668 = vpack.c.bf16 %v3664, %v3662
        %v3669 = vpack.c.bf16 %v3665, %v3665
        %v3670 = vpack.c.bf16 %v3666, %v3666
        %3671 = vmatprep.subr.bf16.mxu0 0
        %3672 = vmatpush1.bf16.msra.mxu0 %v932
        %3673 = vmatprep.subr.bf16.mxu0 0
        %3674 = vmatpush1.bf16.msra.mxu0 %v933
        %3675 = vmatprep.subr.bf16.mxu0 0
        %3676 = vmatpush1.bf16.msra.mxu0 %v934
        %3677 = vmatprep.subr.bf16.mxu0 0
        %3678 = vmatpush1.bf16.msra.mxu0 %v935
        %3679 = vmatprep.subr.bf16.mxu0 0
        %3680 = vmatpush1.bf16.msra.mxu0 %v936
        %3681 = vmatprep.subr.bf16.mxu0 0
        %3682 = vmatpush1.bf16.msra.mxu0 %v937
        %3683 = vmatprep.subr.bf16.mxu0 0
        %3684 = vmatpush1.bf16.msra.mxu0 %v938
        %3685 = vmatprep.subr.bf16.mxu0 0
        %3686 = vmatpush1.bf16.msra.mxu0 %v939
        %3687 = vmatprep.subr.bf16.mxu0 0
        %3688 = vmatpush1.bf16.msra.mxu0 %v940
        %3689 = vmatprep.subr.bf16.mxu0 0
        %3690 = vmatpush1.bf16.msra.mxu0 %v941
        %3691 = vmatprep.subr.bf16.mxu0 0
        %3692 = vmatpush1.bf16.msra.mxu0 %v942
        %3693 = vmatprep.subr.bf16.mxu0 0
        %3694 = vmatpush1.bf16.msra.mxu0 %v943
        %3695 = vmatprep.subr.bf16.mxu0 0
        %3696 = vmatpush1.bf16.msra.mxu0 %v944
        %3697 = vmatprep.subr.bf16.mxu0 0
        %3698 = vmatpush1.bf16.msra.mxu0 %v945
        %3699 = vmatprep.subr.bf16.mxu0 0
        %3700 = vmatpush1.bf16.msra.mxu0 %v946
        %3701 = vmatprep.subr.bf16.mxu0 0
        %3702 = vmatpush1.bf16.msra.mxu0 %v947
        %3703 = vmatprep.mubr.bf16.mxu0 %v3668
        %3704 = vmatmul.mubr.bf16.gmra.mrb[0].mxu0 %v3667
        %v3705 = vpop.f32.mrb[0].mxu0
        %v3706 = vadd.f32 0.0, %v3705
        %v3707 = vpop.f32.mrb[0].mxu0
        %v3708 = vpop.f32.mrb[0].mxu0
        %v3709 = vadd.f32 0.0, %v3708
        %v3710 = vpop.f32.mrb[0].mxu0
        %3711 = vmatprep.mubr.bf16.mxu0 %v3670
        %3712 = vmatmul.mubr.bf16.gmra.mrb[0].mxu0 %v3669
        %v3713 = vpop.f32.mrb[0].mxu0
        %v3714 = vadd.f32 0.0, %v3713
        %v3715 = vpop.f32.mrb[0].mxu0
        %v3716 = vpop.f32.mrb[0].mxu0
        %v3717 = vpop.f32.mrb[0].mxu0
        %3718 = vdwg.mxu0
        %3719 = vst [vmem:[#allocation2] sm:$0xff] %v3706
        %3720 = vst [vmem:[#allocation2 + $0x8] sm:$0xff] %v3709
        %3721 = vst [vmem:[#allocation2 + $0x10] sm:$0xf] %v3714
        %3722 = vmatprep.subr.bf16.mxu0 0
        %3723 = vmatpush1.bf16.msra.mxu0 %v1079
        %3724 = vmatprep.subr.bf16.mxu0 0
        %3725 = vmatpush1.bf16.msra.mxu0 %v1080
        %3726 = vmatprep.subr.bf16.mxu0 0
        %3727 = vmatpush1.bf16.msra.mxu0 %v1081
        %3728 = vmatprep.subr.bf16.mxu0 0
        %3729 = vmatpush1.bf16.msra.mxu0 %v1082
        %3730 = vmatprep.subr.bf16.mxu0 0
        %3731 = vmatpush1.bf16.msra.mxu0 %v1083
        %3732 = vmatprep.subr.bf16.mxu0 0
        %3733 = vmatpush1.bf16.msra.mxu0 %v1084
        %3734 = vmatprep.subr.bf16.mxu0 0
        %3735 = vmatpush1.bf16.msra.mxu0 %v1085
        %3736 = vmatprep.subr.bf16.mxu0 0
        %3737 = vmatpush1.bf16.msra.mxu0 %v1086
        %3738 = vmatprep.subr.bf16.mxu0 0
        %3739 = vmatpush1.bf16.msra.mxu0 %v1087
        %3740 = vmatprep.subr.bf16.mxu0 0
        %3741 = vmatpush1.bf16.msra.mxu0 %v1088
        %3742 = vmatprep.subr.bf16.mxu0 0
        %3743 = vmatpush1.bf16.msra.mxu0 %v1089
        %3744 = vmatprep.subr.bf16.mxu0 0
        %3745 = vmatpush1.bf16.msra.mxu0 %v1090
        %3746 = vmatprep.subr.bf16.mxu0 0
        %3747 = vmatpush1.bf16.msra.mxu0 %v1091
        %3748 = vmatprep.subr.bf16.mxu0 0
        %3749 = vmatpush1.bf16.msra.mxu0 %v1092
        %3750 = vmatprep.subr.bf16.mxu0 0
        %3751 = vmatpush1.bf16.msra.mxu0 %v1093
        %3752 = vmatprep.subr.bf16.mxu0 0
        %3753 = vmatpush1.bf16.msra.mxu0 %v1094
        %3754 = vmatprep.mubr.bf16.mxu0 %v3668
        %3755 = vmatmul.mubr.bf16.gmra.mrb[0].mxu0 %v3667
        %v3756 = vpop.f32.mrb[0].mxu0
        %v3757 = vadd.f32 0.0, %v3756
        %v3758 = vpop.f32.mrb[0].mxu0
        %v3759 = vpop.f32.mrb[0].mxu0
        %v3760 = vadd.f32 0.0, %v3759
        %v3761 = vpop.f32.mrb[0].mxu0
        %3762 = vmatprep.mubr.bf16.mxu0 %v3670
        %3763 = vmatmul.mubr.bf16.gmra.mrb[0].mxu0 %v3669
        %v3764 = vpop.f32.mrb[0].mxu0
        %v3765 = vadd.f32 0.0, %v3764
        %v3766 = vpop.f32.mrb[0].mxu0
        %v3767 = vpop.f32.mrb[0].mxu0
        %v3768 = vpop.f32.mrb[0].mxu0
        %3769 = vdwg.mxu0
        %3770 = vst [vmem:[#allocation3] sm:$0xff] %v3757
        %3771 = vst [vmem:[#allocation3 + $0x8] sm:$0xff] %v3760
        %3772 = vst [vmem:[#allocation3 + $0x10] sm:$0xf] %v3765
        %v3773 = vld [vmem:[#allocation2] sm:$0x1]
        %v3774 = vld [vmem:[#allocation3] sm:$0x1]
        %s3775 = scalar_lea.vmem %s9, 960
        %v3776 = vld [vmem:[%s3775] sm:$0xff]
        %v3777 = vld [vmem:[%s3775 + $0x8] sm:$0xff]
        %v3778 = vld [vmem:[%s3775 + $0x10] sm:$0xf]
        %s3779 = scalar_lea.vmem [#allocation4], 960
        %v3780 = vld [vmem:[%s3779] sm:$0xff]
        %v3781 = vld [vmem:[%s3779 + $0x8] sm:$0xff]
        %v3782 = vld [vmem:[%s3779 + $0x10] sm:$0xf]
        %v3783 = vlaneseq
        %v3784 = vshrl.u32 %v3783, 7
        %v3785 = vsub.s32 0, %v3784
        %v3786 = vrot.slane %v3773, %v3785
        %v3787 = vmul.f32 %v3786, %v3776
        %v3788 = vmul.f32 %v3786, %v3777
        %v3789 = vmul.f32 %v3786, %v3778
        %v3790 = vlaneseq
        %v3791 = vshrl.u32 %v3790, 7
        %v3792 = vsub.s32 0, %v3791
        %v3793 = vrot.slane %v3774, %v3792
        %v3794 = vmul.f32 %v3793, %v3780
        %v3795 = vmul.f32 %v3793, %v3781
        %v3796 = vmul.f32 %v3793, %v3782
        %v3797 = vsub.f32 %v3787, %v3794
        %v3798 = vsub.f32 %v3788, %v3795
        %v3799 = vsub.f32 %v3789, %v3796
        %v3800 = vmul.f32 %v3786, %v3780
        %v3801 = vmul.f32 %v3786, %v3781
        %v3802 = vmul.f32 %v3786, %v3782
        %v3803 = vmul.f32 %v3793, %v3776
        %v3804 = vmul.f32 %v3793, %v3777
        %v3805 = vmul.f32 %v3793, %v3778
        %v3806 = vadd.f32 %v3800, %v3803
        %v3807 = vadd.f32 %v3801, %v3804
        %v3808 = vadd.f32 %v3802, %v3805
        %v3809 = vld [vmem:[#allocation2 + $0x1] sm:$0x1]
        %v3810 = vld [vmem:[#allocation3 + $0x1] sm:$0x1]
        %s3811 = scalar_lea.vmem %s9, 984
        %v3812 = vld [vmem:[%s3811] sm:$0xff]
        %v3813 = vld [vmem:[%s3811 + $0x8] sm:$0xff]
        %v3814 = vld [vmem:[%s3811 + $0x10] sm:$0xf]
        %s3815 = scalar_lea.vmem [#allocation4], 984
        %v3816 = vld [vmem:[%s3815] sm:$0xff]
        %v3817 = vld [vmem:[%s3815 + $0x8] sm:$0xff]
        %v3818 = vld [vmem:[%s3815 + $0x10] sm:$0xf]
        %v3819 = vlaneseq
        %v3820 = vshrl.u32 %v3819, 7
        %v3821 = vsub.s32 0, %v3820
        %v3822 = vrot.slane %v3809, %v3821
        %v3823 = vmul.f32 %v3822, %v3812
        %v3824 = vmul.f32 %v3822, %v3813
        %v3825 = vmul.f32 %v3822, %v3814
        %v3826 = vlaneseq
        %v3827 = vshrl.u32 %v3826, 7
        %v3828 = vsub.s32 0, %v3827
        %v3829 = vrot.slane %v3810, %v3828
        %v3830 = vmul.f32 %v3829, %v3816
        %v3831 = vmul.f32 %v3829, %v3817
        %v3832 = vmul.f32 %v3829, %v3818
        %v3833 = vsub.f32 %v3823, %v3830
        %v3834 = vsub.f32 %v3824, %v3831
        %v3835 = vsub.f32 %v3825, %v3832
        %v3836 = vmul.f32 %v3822, %v3816
        %v3837 = vmul.f32 %v3822, %v3817
        %v3838 = vmul.f32 %v3822, %v3818
        %v3839 = vmul.f32 %v3829, %v3812
        %v3840 = vmul.f32 %v3829, %v3813
        %v3841 = vmul.f32 %v3829, %v3814
        %v3842 = vadd.f32 %v3836, %v3839
        %v3843 = vadd.f32 %v3837, %v3840
        %v3844 = vadd.f32 %v3838, %v3841
        %v3845 = vadd.f32 %v3797, %v3833
        %v3846 = vadd.f32 %v3798, %v3834
        %v3847 = vadd.f32 %v3799, %v3835
        %v3848 = vadd.f32 %v3806, %v3842
        %v3849 = vadd.f32 %v3807, %v3843
        %v3850 = vadd.f32 %v3808, %v3844
        %v3851 = vld [vmem:[#allocation2 + $0x2] sm:$0x1]
        %v3852 = vld [vmem:[#allocation3 + $0x2] sm:$0x1]
        %s3853 = scalar_lea.vmem %s9, 1008
        %v3854 = vld [vmem:[%s3853] sm:$0xff]
        %v3855 = vld [vmem:[%s3853 + $0x8] sm:$0xff]
        %v3856 = vld [vmem:[%s3853 + $0x10] sm:$0xf]
        %s3857 = scalar_lea.vmem [#allocation4], 1008
        %v3858 = vld [vmem:[%s3857] sm:$0xff]
        %v3859 = vld [vmem:[%s3857 + $0x8] sm:$0xff]
        %v3860 = vld [vmem:[%s3857 + $0x10] sm:$0xf]
        %v3861 = vlaneseq
        %v3862 = vshrl.u32 %v3861, 7
        %v3863 = vsub.s32 0, %v3862
        %v3864 = vrot.slane %v3851, %v3863
        %v3865 = vmul.f32 %v3864, %v3854
        %v3866 = vmul.f32 %v3864, %v3855
        %v3867 = vmul.f32 %v3864, %v3856
        %v3868 = vlaneseq
        %v3869 = vshrl.u32 %v3868, 7
        %v3870 = vsub.s32 0, %v3869
        %v3871 = vrot.slane %v3852, %v3870
        %v3872 = vmul.f32 %v3871, %v3858
        %v3873 = vmul.f32 %v3871, %v3859
        %v3874 = vmul.f32 %v3871, %v3860
        %v3875 = vsub.f32 %v3865, %v3872
        %v3876 = vsub.f32 %v3866, %v3873
        %v3877 = vsub.f32 %v3867, %v3874
        %v3878 = vmul.f32 %v3864, %v3858
        %v3879 = vmul.f32 %v3864, %v3859
        %v3880 = vmul.f32 %v3864, %v3860
        %v3881 = vmul.f32 %v3871, %v3854
        %v3882 = vmul.f32 %v3871, %v3855
        %v3883 = vmul.f32 %v3871, %v3856
        %v3884 = vadd.f32 %v3878, %v3881
        %v3885 = vadd.f32 %v3879, %v3882
        %v3886 = vadd.f32 %v3880, %v3883
        %v3887 = vadd.f32 %v3845, %v3875
        %v3888 = vadd.f32 %v3846, %v3876
        %v3889 = vadd.f32 %v3847, %v3877
        %v3890 = vadd.f32 %v3848, %v3884
        %v3891 = vadd.f32 %v3849, %v3885
        %v3892 = vadd.f32 %v3850, %v3886
        %v3893 = vld [vmem:[#allocation2 + $0x3] sm:$0x1]
        %v3894 = vld [vmem:[#allocation3 + $0x3] sm:$0x1]
        %s3895 = scalar_lea.vmem %s9, 1032
        %v3896 = vld [vmem:[%s3895] sm:$0xff]
        %v3897 = vld [vmem:[%s3895 + $0x8] sm:$0xff]
        %v3898 = vld [vmem:[%s3895 + $0x10] sm:$0xf]
        %s3899 = scalar_lea.vmem [#allocation4], 1032
        %v3900 = vld [vmem:[%s3899] sm:$0xff]
        %v3901 = vld [vmem:[%s3899 + $0x8] sm:$0xff]
        %v3902 = vld [vmem:[%s3899 + $0x10] sm:$0xf]
        %v3903 = vlaneseq
        %v3904 = vshrl.u32 %v3903, 7
        %v3905 = vsub.s32 0, %v3904
        %v3906 = vrot.slane %v3893, %v3905
        %v3907 = vmul.f32 %v3906, %v3896
        %v3908 = vmul.f32 %v3906, %v3897
        %v3909 = vmul.f32 %v3906, %v3898
        %v3910 = vlaneseq
        %v3911 = vshrl.u32 %v3910, 7
        %v3912 = vsub.s32 0, %v3911
        %v3913 = vrot.slane %v3894, %v3912
        %v3914 = vmul.f32 %v3913, %v3900
        %v3915 = vmul.f32 %v3913, %v3901
        %v3916 = vmul.f32 %v3913, %v3902
        %v3917 = vsub.f32 %v3907, %v3914
        %v3918 = vsub.f32 %v3908, %v3915
        %v3919 = vsub.f32 %v3909, %v3916
        %v3920 = vmul.f32 %v3906, %v3900
        %v3921 = vmul.f32 %v3906, %v3901
        %v3922 = vmul.f32 %v3906, %v3902
        %v3923 = vmul.f32 %v3913, %v3896
        %v3924 = vmul.f32 %v3913, %v3897
        %v3925 = vmul.f32 %v3913, %v3898
        %v3926 = vadd.f32 %v3920, %v3923
        %v3927 = vadd.f32 %v3921, %v3924
        %v3928 = vadd.f32 %v3922, %v3925
        %v3929 = vadd.f32 %v3887, %v3917
        %v3930 = vadd.f32 %v3888, %v3918
        %v3931 = vadd.f32 %v3889, %v3919
        %v3932 = vadd.f32 %v3890, %v3926
        %v3933 = vadd.f32 %v3891, %v3927
        %v3934 = vadd.f32 %v3892, %v3928
        %v3935 = vld [vmem:[#allocation2 + $0x4] sm:$0x1]
        %v3936 = vld [vmem:[#allocation3 + $0x4] sm:$0x1]
        %s3937 = scalar_lea.vmem %s9, 1056
        %v3938 = vld [vmem:[%s3937] sm:$0xff]
        %v3939 = vld [vmem:[%s3937 + $0x8] sm:$0xff]
        %v3940 = vld [vmem:[%s3937 + $0x10] sm:$0xf]
        %s3941 = scalar_lea.vmem [#allocation4], 1056
        %v3942 = vld [vmem:[%s3941] sm:$0xff]
        %v3943 = vld [vmem:[%s3941 + $0x8] sm:$0xff]
        %v3944 = vld [vmem:[%s3941 + $0x10] sm:$0xf]
        %v3945 = vlaneseq
        %v3946 = vshrl.u32 %v3945, 7
        %v3947 = vsub.s32 0, %v3946
        %v3948 = vrot.slane %v3935, %v3947
        %v3949 = vmul.f32 %v3948, %v3938
        %v3950 = vmul.f32 %v3948, %v3939
        %v3951 = vmul.f32 %v3948, %v3940
        %v3952 = vlaneseq
        %v3953 = vshrl.u32 %v3952, 7
        %v3954 = vsub.s32 0, %v3953
        %v3955 = vrot.slane %v3936, %v3954
        %v3956 = vmul.f32 %v3955, %v3942
        %v3957 = vmul.f32 %v3955, %v3943
        %v3958 = vmul.f32 %v3955, %v3944
        %v3959 = vsub.f32 %v3949, %v3956
        %v3960 = vsub.f32 %v3950, %v3957
        %v3961 = vsub.f32 %v3951, %v3958
        %v3962 = vmul.f32 %v3948, %v3942
        %v3963 = vmul.f32 %v3948, %v3943
        %v3964 = vmul.f32 %v3948, %v3944
        %v3965 = vmul.f32 %v3955, %v3938
        %v3966 = vmul.f32 %v3955, %v3939
        %v3967 = vmul.f32 %v3955, %v3940
        %v3968 = vadd.f32 %v3962, %v3965
        %v3969 = vadd.f32 %v3963, %v3966
        %v3970 = vadd.f32 %v3964, %v3967
        %v3971 = vadd.f32 %v3929, %v3959
        %v3972 = vadd.f32 %v3930, %v3960
        %v3973 = vadd.f32 %v3931, %v3961
        %v3974 = vadd.f32 %v3932, %v3968
        %v3975 = vadd.f32 %v3933, %v3969
        %v3976 = vadd.f32 %v3934, %v3970
        %v3977 = vld [vmem:[#allocation2 + $0x5] sm:$0x1]
        %v3978 = vld [vmem:[#allocation3 + $0x5] sm:$0x1]
        %s3979 = scalar_lea.vmem %s9, 1080
        %v3980 = vld [vmem:[%s3979] sm:$0xff]
        %v3981 = vld [vmem:[%s3979 + $0x8] sm:$0xff]
        %v3982 = vld [vmem:[%s3979 + $0x10] sm:$0xf]
        %s3983 = scalar_lea.vmem [#allocation4], 1080
        %v3984 = vld [vmem:[%s3983] sm:$0xff]
        %v3985 = vld [vmem:[%s3983 + $0x8] sm:$0xff]
        %v3986 = vld [vmem:[%s3983 + $0x10] sm:$0xf]
        %v3987 = vlaneseq
        %v3988 = vshrl.u32 %v3987, 7
        %v3989 = vsub.s32 0, %v3988
        %v3990 = vrot.slane %v3977, %v3989
        %v3991 = vmul.f32 %v3990, %v3980
        %v3992 = vmul.f32 %v3990, %v3981
        %v3993 = vmul.f32 %v3990, %v3982
        %v3994 = vlaneseq
        %v3995 = vshrl.u32 %v3994, 7
        %v3996 = vsub.s32 0, %v3995
        %v3997 = vrot.slane %v3978, %v3996
        %v3998 = vmul.f32 %v3997, %v3984
        %v3999 = vmul.f32 %v3997, %v3985
        %v4000 = vmul.f32 %v3997, %v3986
        %v4001 = vsub.f32 %v3991, %v3998
        %v4002 = vsub.f32 %v3992, %v3999
        %v4003 = vsub.f32 %v3993, %v4000
        %v4004 = vmul.f32 %v3990, %v3984
        %v4005 = vmul.f32 %v3990, %v3985
        %v4006 = vmul.f32 %v3990, %v3986
        %v4007 = vmul.f32 %v3997, %v3980
        %v4008 = vmul.f32 %v3997, %v3981
        %v4009 = vmul.f32 %v3997, %v3982
        %v4010 = vadd.f32 %v4004, %v4007
        %v4011 = vadd.f32 %v4005, %v4008
        %v4012 = vadd.f32 %v4006, %v4009
        %v4013 = vadd.f32 %v3971, %v4001
        %v4014 = vadd.f32 %v3972, %v4002
        %v4015 = vadd.f32 %v3973, %v4003
        %v4016 = vadd.f32 %v3974, %v4010
        %v4017 = vadd.f32 %v3975, %v4011
        %v4018 = vadd.f32 %v3976, %v4012
        %v4019 = vld [vmem:[#allocation2 + $0x6] sm:$0x1]
        %v4020 = vld [vmem:[#allocation3 + $0x6] sm:$0x1]
        %s4021 = scalar_lea.vmem %s9, 1104
        %v4022 = vld [vmem:[%s4021] sm:$0xff]
        %v4023 = vld [vmem:[%s4021 + $0x8] sm:$0xff]
        %v4024 = vld [vmem:[%s4021 + $0x10] sm:$0xf]
        %s4025 = scalar_lea.vmem [#allocation4], 1104
        %v4026 = vld [vmem:[%s4025] sm:$0xff]
        %v4027 = vld [vmem:[%s4025 + $0x8] sm:$0xff]
        %v4028 = vld [vmem:[%s4025 + $0x10] sm:$0xf]
        %v4029 = vlaneseq
        %v4030 = vshrl.u32 %v4029, 7
        %v4031 = vsub.s32 0, %v4030
        %v4032 = vrot.slane %v4019, %v4031
        %v4033 = vmul.f32 %v4032, %v4022
        %v4034 = vmul.f32 %v4032, %v4023
        %v4035 = vmul.f32 %v4032, %v4024
        %v4036 = vlaneseq
        %v4037 = vshrl.u32 %v4036, 7
        %v4038 = vsub.s32 0, %v4037
        %v4039 = vrot.slane %v4020, %v4038
        %v4040 = vmul.f32 %v4039, %v4026
        %v4041 = vmul.f32 %v4039, %v4027
        %v4042 = vmul.f32 %v4039, %v4028
        %v4043 = vsub.f32 %v4033, %v4040
        %v4044 = vsub.f32 %v4034, %v4041
        %v4045 = vsub.f32 %v4035, %v4042
        %v4046 = vmul.f32 %v4032, %v4026
        %v4047 = vmul.f32 %v4032, %v4027
        %v4048 = vmul.f32 %v4032, %v4028
        %v4049 = vmul.f32 %v4039, %v4022
        %v4050 = vmul.f32 %v4039, %v4023
        %v4051 = vmul.f32 %v4039, %v4024
        %v4052 = vadd.f32 %v4046, %v4049
        %v4053 = vadd.f32 %v4047, %v4050
        %v4054 = vadd.f32 %v4048, %v4051
        %v4055 = vadd.f32 %v4013, %v4043
        %v4056 = vadd.f32 %v4014, %v4044
        %v4057 = vadd.f32 %v4015, %v4045
        %v4058 = vadd.f32 %v4016, %v4052
        %v4059 = vadd.f32 %v4017, %v4053
        %v4060 = vadd.f32 %v4018, %v4054
        %v4061 = vld [vmem:[#allocation2 + $0x7] sm:$0x1]
        %v4062 = vld [vmem:[#allocation3 + $0x7] sm:$0x1]
        %s4063 = scalar_lea.vmem %s9, 1128
        %v4064 = vld [vmem:[%s4063] sm:$0xff]
        %v4065 = vld [vmem:[%s4063 + $0x8] sm:$0xff]
        %v4066 = vld [vmem:[%s4063 + $0x10] sm:$0xf]
        %s4067 = scalar_lea.vmem [#allocation4], 1128
        %v4068 = vld [vmem:[%s4067] sm:$0xff]
        %v4069 = vld [vmem:[%s4067 + $0x8] sm:$0xff]
        %v4070 = vld [vmem:[%s4067 + $0x10] sm:$0xf]
        %v4071 = vlaneseq
        %v4072 = vshrl.u32 %v4071, 7
        %v4073 = vsub.s32 0, %v4072
        %v4074 = vrot.slane %v4061, %v4073
        %v4075 = vmul.f32 %v4074, %v4064
        %v4076 = vmul.f32 %v4074, %v4065
        %v4077 = vmul.f32 %v4074, %v4066
        %v4078 = vlaneseq
        %v4079 = vshrl.u32 %v4078, 7
        %v4080 = vsub.s32 0, %v4079
        %v4081 = vrot.slane %v4062, %v4080
        %v4082 = vmul.f32 %v4081, %v4068
        %v4083 = vmul.f32 %v4081, %v4069
        %v4084 = vmul.f32 %v4081, %v4070
        %v4085 = vsub.f32 %v4075, %v4082
        %v4086 = vsub.f32 %v4076, %v4083
        %v4087 = vsub.f32 %v4077, %v4084
        %v4088 = vmul.f32 %v4074, %v4068
        %v4089 = vmul.f32 %v4074, %v4069
        %v4090 = vmul.f32 %v4074, %v4070
        %v4091 = vmul.f32 %v4081, %v4064
        %v4092 = vmul.f32 %v4081, %v4065
        %v4093 = vmul.f32 %v4081, %v4066
        %v4094 = vadd.f32 %v4088, %v4091
        %v4095 = vadd.f32 %v4089, %v4092
        %v4096 = vadd.f32 %v4090, %v4093
        %v4097 = vadd.f32 %v4055, %v4085
        %v4098 = vadd.f32 %v4056, %v4086
        %v4099 = vadd.f32 %v4057, %v4087
        %v4100 = vadd.f32 %v4058, %v4094
        %v4101 = vadd.f32 %v4059, %v4095
        %v4102 = vadd.f32 %v4060, %v4096
        %v4103 = vld [vmem:[#allocation2 + $0x8] sm:$0x1]
        %v4104 = vld [vmem:[#allocation3 + $0x8] sm:$0x1]
        %s4105 = scalar_lea.vmem %s9, 1152
        %v4106 = vld [vmem:[%s4105] sm:$0xff]
        %v4107 = vld [vmem:[%s4105 + $0x8] sm:$0xff]
        %v4108 = vld [vmem:[%s4105 + $0x10] sm:$0xf]
        %s4109 = scalar_lea.vmem [#allocation4], 1152
        %v4110 = vld [vmem:[%s4109] sm:$0xff]
        %v4111 = vld [vmem:[%s4109 + $0x8] sm:$0xff]
        %v4112 = vld [vmem:[%s4109 + $0x10] sm:$0xf]
        %v4113 = vlaneseq
        %v4114 = vshrl.u32 %v4113, 7
        %v4115 = vsub.s32 0, %v4114
        %v4116 = vrot.slane %v4103, %v4115
        %v4117 = vmul.f32 %v4116, %v4106
        %v4118 = vmul.f32 %v4116, %v4107
        %v4119 = vmul.f32 %v4116, %v4108
        %v4120 = vlaneseq
        %v4121 = vshrl.u32 %v4120, 7
        %v4122 = vsub.s32 0, %v4121
        %v4123 = vrot.slane %v4104, %v4122
        %v4124 = vmul.f32 %v4123, %v4110
        %v4125 = vmul.f32 %v4123, %v4111
        %v4126 = vmul.f32 %v4123, %v4112
        %v4127 = vsub.f32 %v4117, %v4124
        %v4128 = vsub.f32 %v4118, %v4125
        %v4129 = vsub.f32 %v4119, %v4126
        %v4130 = vmul.f32 %v4116, %v4110
        %v4131 = vmul.f32 %v4116, %v4111
        %v4132 = vmul.f32 %v4116, %v4112
        %v4133 = vmul.f32 %v4123, %v4106
        %v4134 = vmul.f32 %v4123, %v4107
        %v4135 = vmul.f32 %v4123, %v4108
        %v4136 = vadd.f32 %v4130, %v4133
        %v4137 = vadd.f32 %v4131, %v4134
        %v4138 = vadd.f32 %v4132, %v4135
        %v4139 = vadd.f32 %v4097, %v4127
        %v4140 = vadd.f32 %v4098, %v4128
        %v4141 = vadd.f32 %v4099, %v4129
        %v4142 = vadd.f32 %v4100, %v4136
        %v4143 = vadd.f32 %v4101, %v4137
        %v4144 = vadd.f32 %v4102, %v4138
        %v4145 = vld [vmem:[#allocation2 + $0x9] sm:$0x1]
        %v4146 = vld [vmem:[#allocation3 + $0x9] sm:$0x1]
        %s4147 = scalar_lea.vmem %s9, 1176
        %v4148 = vld [vmem:[%s4147] sm:$0xff]
        %v4149 = vld [vmem:[%s4147 + $0x8] sm:$0xff]
        %v4150 = vld [vmem:[%s4147 + $0x10] sm:$0xf]
        %s4151 = scalar_lea.vmem [#allocation4], 1176
        %v4152 = vld [vmem:[%s4151] sm:$0xff]
        %v4153 = vld [vmem:[%s4151 + $0x8] sm:$0xff]
        %v4154 = vld [vmem:[%s4151 + $0x10] sm:$0xf]
        %v4155 = vlaneseq
        %v4156 = vshrl.u32 %v4155, 7
        %v4157 = vsub.s32 0, %v4156
        %v4158 = vrot.slane %v4145, %v4157
        %v4159 = vmul.f32 %v4158, %v4148
        %v4160 = vmul.f32 %v4158, %v4149
        %v4161 = vmul.f32 %v4158, %v4150
        %v4162 = vlaneseq
        %v4163 = vshrl.u32 %v4162, 7
        %v4164 = vsub.s32 0, %v4163
        %v4165 = vrot.slane %v4146, %v4164
        %v4166 = vmul.f32 %v4165, %v4152
        %v4167 = vmul.f32 %v4165, %v4153
        %v4168 = vmul.f32 %v4165, %v4154
        %v4169 = vsub.f32 %v4159, %v4166
        %v4170 = vsub.f32 %v4160, %v4167
        %v4171 = vsub.f32 %v4161, %v4168
        %v4172 = vmul.f32 %v4158, %v4152
        %v4173 = vmul.f32 %v4158, %v4153
        %v4174 = vmul.f32 %v4158, %v4154
        %v4175 = vmul.f32 %v4165, %v4148
        %v4176 = vmul.f32 %v4165, %v4149
        %v4177 = vmul.f32 %v4165, %v4150
        %v4178 = vadd.f32 %v4172, %v4175
        %v4179 = vadd.f32 %v4173, %v4176
        %v4180 = vadd.f32 %v4174, %v4177
        %v4181 = vadd.f32 %v4139, %v4169
        %v4182 = vadd.f32 %v4140, %v4170
        %v4183 = vadd.f32 %v4141, %v4171
        %v4184 = vadd.f32 %v4142, %v4178
        %v4185 = vadd.f32 %v4143, %v4179
        %v4186 = vadd.f32 %v4144, %v4180
        %v4187 = vld [vmem:[#allocation2 + $0xa] sm:$0x1]
        %v4188 = vld [vmem:[#allocation3 + $0xa] sm:$0x1]
        %s4189 = scalar_lea.vmem %s9, 1200
        %v4190 = vld [vmem:[%s4189] sm:$0xff]
        %v4191 = vld [vmem:[%s4189 + $0x8] sm:$0xff]
        %v4192 = vld [vmem:[%s4189 + $0x10] sm:$0xf]
        %s4193 = scalar_lea.vmem [#allocation4], 1200
        %v4194 = vld [vmem:[%s4193] sm:$0xff]
        %v4195 = vld [vmem:[%s4193 + $0x8] sm:$0xff]
        %v4196 = vld [vmem:[%s4193 + $0x10] sm:$0xf]
        %v4197 = vlaneseq
        %v4198 = vshrl.u32 %v4197, 7
        %v4199 = vsub.s32 0, %v4198
        %v4200 = vrot.slane %v4187, %v4199
        %v4201 = vmul.f32 %v4200, %v4190
        %v4202 = vmul.f32 %v4200, %v4191
        %v4203 = vmul.f32 %v4200, %v4192
        %v4204 = vlaneseq
        %v4205 = vshrl.u32 %v4204, 7
        %v4206 = vsub.s32 0, %v4205
        %v4207 = vrot.slane %v4188, %v4206
        %v4208 = vmul.f32 %v4207, %v4194
        %v4209 = vmul.f32 %v4207, %v4195
        %v4210 = vmul.f32 %v4207, %v4196
        %v4211 = vsub.f32 %v4201, %v4208
        %v4212 = vsub.f32 %v4202, %v4209
        %v4213 = vsub.f32 %v4203, %v4210
        %v4214 = vmul.f32 %v4200, %v4194
        %v4215 = vmul.f32 %v4200, %v4195
        %v4216 = vmul.f32 %v4200, %v4196
        %v4217 = vmul.f32 %v4207, %v4190
        %v4218 = vmul.f32 %v4207, %v4191
        %v4219 = vmul.f32 %v4207, %v4192
        %v4220 = vadd.f32 %v4214, %v4217
        %v4221 = vadd.f32 %v4215, %v4218
        %v4222 = vadd.f32 %v4216, %v4219
        %v4223 = vadd.f32 %v4181, %v4211
        %v4224 = vadd.f32 %v4182, %v4212
        %v4225 = vadd.f32 %v4183, %v4213
        %v4226 = vadd.f32 %v4184, %v4220
        %v4227 = vadd.f32 %v4185, %v4221
        %v4228 = vadd.f32 %v4186, %v4222
        %v4229 = vld [vmem:[#allocation2 + $0xb] sm:$0x1]
        %v4230 = vld [vmem:[#allocation3 + $0xb] sm:$0x1]
        %s4231 = scalar_lea.vmem %s9, 1224
        %v4232 = vld [vmem:[%s4231] sm:$0xff]
        %v4233 = vld [vmem:[%s4231 + $0x8] sm:$0xff]
        %v4234 = vld [vmem:[%s4231 + $0x10] sm:$0xf]
        %s4235 = scalar_lea.vmem [#allocation4], 1224
        %v4236 = vld [vmem:[%s4235] sm:$0xff]
        %v4237 = vld [vmem:[%s4235 + $0x8] sm:$0xff]
        %v4238 = vld [vmem:[%s4235 + $0x10] sm:$0xf]
        %v4239 = vlaneseq
        %v4240 = vshrl.u32 %v4239, 7
        %v4241 = vsub.s32 0, %v4240
        %v4242 = vrot.slane %v4229, %v4241
        %v4243 = vmul.f32 %v4242, %v4232
        %v4244 = vmul.f32 %v4242, %v4233
        %v4245 = vmul.f32 %v4242, %v4234
        %v4246 = vlaneseq
        %v4247 = vshrl.u32 %v4246, 7
        %v4248 = vsub.s32 0, %v4247
        %v4249 = vrot.slane %v4230, %v4248
        %v4250 = vmul.f32 %v4249, %v4236
        %v4251 = vmul.f32 %v4249, %v4237
        %v4252 = vmul.f32 %v4249, %v4238
        %v4253 = vsub.f32 %v4243, %v4250
        %v4254 = vsub.f32 %v4244, %v4251
        %v4255 = vsub.f32 %v4245, %v4252
        %v4256 = vmul.f32 %v4242, %v4236
        %v4257 = vmul.f32 %v4242, %v4237
        %v4258 = vmul.f32 %v4242, %v4238
        %v4259 = vmul.f32 %v4249, %v4232
        %v4260 = vmul.f32 %v4249, %v4233
        %v4261 = vmul.f32 %v4249, %v4234
        %v4262 = vadd.f32 %v4256, %v4259
        %v4263 = vadd.f32 %v4257, %v4260
        %v4264 = vadd.f32 %v4258, %v4261
        %v4265 = vadd.f32 %v4223, %v4253
        %v4266 = vadd.f32 %v4224, %v4254
        %v4267 = vadd.f32 %v4225, %v4255
        %v4268 = vadd.f32 %v4226, %v4262
        %v4269 = vadd.f32 %v4227, %v4263
        %v4270 = vadd.f32 %v4228, %v4264
        %v4271 = vld [vmem:[#allocation2 + $0xc] sm:$0x1]
        %v4272 = vld [vmem:[#allocation3 + $0xc] sm:$0x1]
        %s4273 = scalar_lea.vmem %s9, 1248
        %v4274 = vld [vmem:[%s4273] sm:$0xff]
        %v4275 = vld [vmem:[%s4273 + $0x8] sm:$0xff]
        %v4276 = vld [vmem:[%s4273 + $0x10] sm:$0xf]
        %s4277 = scalar_lea.vmem [#allocation4], 1248
        %v4278 = vld [vmem:[%s4277] sm:$0xff]
        %v4279 = vld [vmem:[%s4277 + $0x8] sm:$0xff]
        %v4280 = vld [vmem:[%s4277 + $0x10] sm:$0xf]
        %v4281 = vlaneseq
        %v4282 = vshrl.u32 %v4281, 7
        %v4283 = vsub.s32 0, %v4282
        %v4284 = vrot.slane %v4271, %v4283
        %v4285 = vmul.f32 %v4284, %v4274
        %v4286 = vmul.f32 %v4284, %v4275
        %v4287 = vmul.f32 %v4284, %v4276
        %v4288 = vlaneseq
        %v4289 = vshrl.u32 %v4288, 7
        %v4290 = vsub.s32 0, %v4289
        %v4291 = vrot.slane %v4272, %v4290
        %v4292 = vmul.f32 %v4291, %v4278
        %v4293 = vmul.f32 %v4291, %v4279
        %v4294 = vmul.f32 %v4291, %v4280
        %v4295 = vsub.f32 %v4285, %v4292
        %v4296 = vsub.f32 %v4286, %v4293
        %v4297 = vsub.f32 %v4287, %v4294
        %v4298 = vmul.f32 %v4284, %v4278
        %v4299 = vmul.f32 %v4284, %v4279
        %v4300 = vmul.f32 %v4284, %v4280
        %v4301 = vmul.f32 %v4291, %v4274
        %v4302 = vmul.f32 %v4291, %v4275
        %v4303 = vmul.f32 %v4291, %v4276
        %v4304 = vadd.f32 %v4298, %v4301
        %v4305 = vadd.f32 %v4299, %v4302
        %v4306 = vadd.f32 %v4300, %v4303
        %v4307 = vadd.f32 %v4265, %v4295
        %v4308 = vadd.f32 %v4266, %v4296
        %v4309 = vadd.f32 %v4267, %v4297
        %v4310 = vadd.f32 %v4268, %v4304
        %v4311 = vadd.f32 %v4269, %v4305
        %v4312 = vadd.f32 %v4270, %v4306
        %v4313 = vld [vmem:[#allocation2 + $0xd] sm:$0x1]
        %v4314 = vld [vmem:[#allocation3 + $0xd] sm:$0x1]
        %s4315 = scalar_lea.vmem %s9, 1272
        %v4316 = vld [vmem:[%s4315] sm:$0xff]
        %v4317 = vld [vmem:[%s4315 + $0x8] sm:$0xff]
        %v4318 = vld [vmem:[%s4315 + $0x10] sm:$0xf]
        %s4319 = scalar_lea.vmem [#allocation4], 1272
        %v4320 = vld [vmem:[%s4319] sm:$0xff]
        %v4321 = vld [vmem:[%s4319 + $0x8] sm:$0xff]
        %v4322 = vld [vmem:[%s4319 + $0x10] sm:$0xf]
        %v4323 = vlaneseq
        %v4324 = vshrl.u32 %v4323, 7
        %v4325 = vsub.s32 0, %v4324
        %v4326 = vrot.slane %v4313, %v4325
        %v4327 = vmul.f32 %v4326, %v4316
        %v4328 = vmul.f32 %v4326, %v4317
        %v4329 = vmul.f32 %v4326, %v4318
        %v4330 = vlaneseq
        %v4331 = vshrl.u32 %v4330, 7
        %v4332 = vsub.s32 0, %v4331
        %v4333 = vrot.slane %v4314, %v4332
        %v4334 = vmul.f32 %v4333, %v4320
        %v4335 = vmul.f32 %v4333, %v4321
        %v4336 = vmul.f32 %v4333, %v4322
        %v4337 = vsub.f32 %v4327, %v4334
        %v4338 = vsub.f32 %v4328, %v4335
        %v4339 = vsub.f32 %v4329, %v4336
        %v4340 = vmul.f32 %v4326, %v4320
        %v4341 = vmul.f32 %v4326, %v4321
        %v4342 = vmul.f32 %v4326, %v4322
        %v4343 = vmul.f32 %v4333, %v4316
        %v4344 = vmul.f32 %v4333, %v4317
        %v4345 = vmul.f32 %v4333, %v4318
        %v4346 = vadd.f32 %v4340, %v4343
        %v4347 = vadd.f32 %v4341, %v4344
        %v4348 = vadd.f32 %v4342, %v4345
        %v4349 = vadd.f32 %v4307, %v4337
        %v4350 = vadd.f32 %v4308, %v4338
        %v4351 = vadd.f32 %v4309, %v4339
        %v4352 = vadd.f32 %v4310, %v4346
        %v4353 = vadd.f32 %v4311, %v4347
        %v4354 = vadd.f32 %v4312, %v4348
        %v4355 = vld [vmem:[#allocation2 + $0xe] sm:$0x1]
        %v4356 = vld [vmem:[#allocation3 + $0xe] sm:$0x1]
        %s4357 = scalar_lea.vmem %s9, 1296
        %v4358 = vld [vmem:[%s4357] sm:$0xff]
        %v4359 = vld [vmem:[%s4357 + $0x8] sm:$0xff]
        %v4360 = vld [vmem:[%s4357 + $0x10] sm:$0xf]
        %s4361 = scalar_lea.vmem [#allocation4], 1296
        %v4362 = vld [vmem:[%s4361] sm:$0xff]
        %v4363 = vld [vmem:[%s4361 + $0x8] sm:$0xff]
        %v4364 = vld [vmem:[%s4361 + $0x10] sm:$0xf]
        %v4365 = vlaneseq
        %v4366 = vshrl.u32 %v4365, 7
        %v4367 = vsub.s32 0, %v4366
        %v4368 = vrot.slane %v4355, %v4367
        %v4369 = vmul.f32 %v4368, %v4358
        %v4370 = vmul.f32 %v4368, %v4359
        %v4371 = vmul.f32 %v4368, %v4360
        %v4372 = vlaneseq
        %v4373 = vshrl.u32 %v4372, 7
        %v4374 = vsub.s32 0, %v4373
        %v4375 = vrot.slane %v4356, %v4374
        %v4376 = vmul.f32 %v4375, %v4362
        %v4377 = vmul.f32 %v4375, %v4363
        %v4378 = vmul.f32 %v4375, %v4364
        %v4379 = vsub.f32 %v4369, %v4376
        %v4380 = vsub.f32 %v4370, %v4377
        %v4381 = vsub.f32 %v4371, %v4378
        %v4382 = vmul.f32 %v4368, %v4362
        %v4383 = vmul.f32 %v4368, %v4363
        %v4384 = vmul.f32 %v4368, %v4364
        %v4385 = vmul.f32 %v4375, %v4358
        %v4386 = vmul.f32 %v4375, %v4359
        %v4387 = vmul.f32 %v4375, %v4360
        %v4388 = vadd.f32 %v4382, %v4385
        %v4389 = vadd.f32 %v4383, %v4386
        %v4390 = vadd.f32 %v4384, %v4387
        %v4391 = vadd.f32 %v4349, %v4379
        %v4392 = vadd.f32 %v4350, %v4380
        %v4393 = vadd.f32 %v4351, %v4381
        %v4394 = vadd.f32 %v4352, %v4388
        %v4395 = vadd.f32 %v4353, %v4389
        %v4396 = vadd.f32 %v4354, %v4390
        %v4397 = vld [vmem:[#allocation2 + $0xf] sm:$0x1]
        %v4398 = vld [vmem:[#allocation3 + $0xf] sm:$0x1]
        %s4399 = scalar_lea.vmem %s9, 1320
        %v4400 = vld [vmem:[%s4399] sm:$0xff]
        %v4401 = vld [vmem:[%s4399 + $0x8] sm:$0xff]
        %v4402 = vld [vmem:[%s4399 + $0x10] sm:$0xf]
        %s4403 = scalar_lea.vmem [#allocation4], 1320
        %v4404 = vld [vmem:[%s4403] sm:$0xff]
        %v4405 = vld [vmem:[%s4403 + $0x8] sm:$0xff]
        %v4406 = vld [vmem:[%s4403 + $0x10] sm:$0xf]
        %v4407 = vlaneseq
        %v4408 = vshrl.u32 %v4407, 7
        %v4409 = vsub.s32 0, %v4408
        %v4410 = vrot.slane %v4397, %v4409
        %v4411 = vmul.f32 %v4410, %v4400
        %v4412 = vmul.f32 %v4410, %v4401
        %v4413 = vmul.f32 %v4410, %v4402
        %v4414 = vlaneseq
        %v4415 = vshrl.u32 %v4414, 7
        %v4416 = vsub.s32 0, %v4415
        %v4417 = vrot.slane %v4398, %v4416
        %v4418 = vmul.f32 %v4417, %v4404
        %v4419 = vmul.f32 %v4417, %v4405
        %v4420 = vmul.f32 %v4417, %v4406
        %v4421 = vsub.f32 %v4411, %v4418
        %v4422 = vsub.f32 %v4412, %v4419
        %v4423 = vsub.f32 %v4413, %v4420
        %v4424 = vmul.f32 %v4410, %v4404
        %v4425 = vmul.f32 %v4410, %v4405
        %v4426 = vmul.f32 %v4410, %v4406
        %v4427 = vmul.f32 %v4417, %v4400
        %v4428 = vmul.f32 %v4417, %v4401
        %v4429 = vmul.f32 %v4417, %v4402
        %v4430 = vadd.f32 %v4424, %v4427
        %v4431 = vadd.f32 %v4425, %v4428
        %v4432 = vadd.f32 %v4426, %v4429
        %v4433 = vadd.f32 %v4391, %v4421
        %v4434 = vadd.f32 %v4392, %v4422
        %v4435 = vadd.f32 %v4393, %v4423
        %v4436 = vadd.f32 %v4394, %v4430
        %v4437 = vadd.f32 %v4395, %v4431
        %v4438 = vadd.f32 %v4396, %v4432
        %v4439 = vld [vmem:[#allocation2 + $0x10] sm:$0x1]
        %v4440 = vld [vmem:[#allocation3 + $0x10] sm:$0x1]
        %s4441 = scalar_lea.vmem %s9, 1344
        %v4442 = vld [vmem:[%s4441] sm:$0xff]
        %v4443 = vld [vmem:[%s4441 + $0x8] sm:$0xff]
        %v4444 = vld [vmem:[%s4441 + $0x10] sm:$0xf]
        %s4445 = scalar_lea.vmem [#allocation4], 1344
        %v4446 = vld [vmem:[%s4445] sm:$0xff]
        %v4447 = vld [vmem:[%s4445 + $0x8] sm:$0xff]
        %v4448 = vld [vmem:[%s4445 + $0x10] sm:$0xf]
        %v4449 = vlaneseq
        %v4450 = vshrl.u32 %v4449, 7
        %v4451 = vsub.s32 0, %v4450
        %v4452 = vrot.slane %v4439, %v4451
        %v4453 = vmul.f32 %v4452, %v4442
        %v4454 = vmul.f32 %v4452, %v4443
        %v4455 = vmul.f32 %v4452, %v4444
        %v4456 = vlaneseq
        %v4457 = vshrl.u32 %v4456, 7
        %v4458 = vsub.s32 0, %v4457
        %v4459 = vrot.slane %v4440, %v4458
        %v4460 = vmul.f32 %v4459, %v4446
        %v4461 = vmul.f32 %v4459, %v4447
        %v4462 = vmul.f32 %v4459, %v4448
        %v4463 = vsub.f32 %v4453, %v4460
        %v4464 = vsub.f32 %v4454, %v4461
        %v4465 = vsub.f32 %v4455, %v4462
        %v4466 = vmul.f32 %v4452, %v4446
        %v4467 = vmul.f32 %v4452, %v4447
        %v4468 = vmul.f32 %v4452, %v4448
        %v4469 = vmul.f32 %v4459, %v4442
        %v4470 = vmul.f32 %v4459, %v4443
        %v4471 = vmul.f32 %v4459, %v4444
        %v4472 = vadd.f32 %v4466, %v4469
        %v4473 = vadd.f32 %v4467, %v4470
        %v4474 = vadd.f32 %v4468, %v4471
        %v4475 = vadd.f32 %v4433, %v4463
        %v4476 = vadd.f32 %v4434, %v4464
        %v4477 = vadd.f32 %v4435, %v4465
        %v4478 = vadd.f32 %v4436, %v4472
        %v4479 = vadd.f32 %v4437, %v4473
        %v4480 = vadd.f32 %v4438, %v4474
        %v4481 = vld [vmem:[#allocation2 + $0x11] sm:$0x1]
        %v4482 = vld [vmem:[#allocation3 + $0x11] sm:$0x1]
        %s4483 = scalar_lea.vmem %s9, 1368
        %v4484 = vld [vmem:[%s4483] sm:$0xff]
        %v4485 = vld [vmem:[%s4483 + $0x8] sm:$0xff]
        %v4486 = vld [vmem:[%s4483 + $0x10] sm:$0xf]
        %s4487 = scalar_lea.vmem [#allocation4], 1368
        %v4488 = vld [vmem:[%s4487] sm:$0xff]
        %v4489 = vld [vmem:[%s4487 + $0x8] sm:$0xff]
        %v4490 = vld [vmem:[%s4487 + $0x10] sm:$0xf]
        %v4491 = vlaneseq
        %v4492 = vshrl.u32 %v4491, 7
        %v4493 = vsub.s32 0, %v4492
        %v4494 = vrot.slane %v4481, %v4493
        %v4495 = vmul.f32 %v4494, %v4484
        %v4496 = vmul.f32 %v4494, %v4485
        %v4497 = vmul.f32 %v4494, %v4486
        %v4498 = vlaneseq
        %v4499 = vshrl.u32 %v4498, 7
        %v4500 = vsub.s32 0, %v4499
        %v4501 = vrot.slane %v4482, %v4500
        %v4502 = vmul.f32 %v4501, %v4488
        %v4503 = vmul.f32 %v4501, %v4489
        %v4504 = vmul.f32 %v4501, %v4490
        %v4505 = vsub.f32 %v4495, %v4502
        %v4506 = vsub.f32 %v4496, %v4503
        %v4507 = vsub.f32 %v4497, %v4504
        %v4508 = vmul.f32 %v4494, %v4488
        %v4509 = vmul.f32 %v4494, %v4489
        %v4510 = vmul.f32 %v4494, %v4490
        %v4511 = vmul.f32 %v4501, %v4484
        %v4512 = vmul.f32 %v4501, %v4485
        %v4513 = vmul.f32 %v4501, %v4486
        %v4514 = vadd.f32 %v4508, %v4511
        %v4515 = vadd.f32 %v4509, %v4512
        %v4516 = vadd.f32 %v4510, %v4513
        %v4517 = vadd.f32 %v4475, %v4505
        %v4518 = vadd.f32 %v4476, %v4506
        %v4519 = vadd.f32 %v4477, %v4507
        %v4520 = vadd.f32 %v4478, %v4514
        %v4521 = vadd.f32 %v4479, %v4515
        %v4522 = vadd.f32 %v4480, %v4516
        %v4523 = vld [vmem:[#allocation2 + $0x12] sm:$0x1]
        %v4524 = vld [vmem:[#allocation3 + $0x12] sm:$0x1]
        %s4525 = scalar_lea.vmem %s9, 1392
        %v4526 = vld [vmem:[%s4525] sm:$0xff]
        %v4527 = vld [vmem:[%s4525 + $0x8] sm:$0xff]
        %v4528 = vld [vmem:[%s4525 + $0x10] sm:$0xf]
        %s4529 = scalar_lea.vmem [#allocation4], 1392
        %v4530 = vld [vmem:[%s4529] sm:$0xff]
        %v4531 = vld [vmem:[%s4529 + $0x8] sm:$0xff]
        %v4532 = vld [vmem:[%s4529 + $0x10] sm:$0xf]
        %v4533 = vlaneseq
        %v4534 = vshrl.u32 %v4533, 7
        %v4535 = vsub.s32 0, %v4534
        %v4536 = vrot.slane %v4523, %v4535
        %v4537 = vmul.f32 %v4536, %v4526
        %v4538 = vmul.f32 %v4536, %v4527
        %v4539 = vmul.f32 %v4536, %v4528
        %v4540 = vlaneseq
        %v4541 = vshrl.u32 %v4540, 7
        %v4542 = vsub.s32 0, %v4541
        %v4543 = vrot.slane %v4524, %v4542
        %v4544 = vmul.f32 %v4543, %v4530
        %v4545 = vmul.f32 %v4543, %v4531
        %v4546 = vmul.f32 %v4543, %v4532
        %v4547 = vsub.f32 %v4537, %v4544
        %v4548 = vsub.f32 %v4538, %v4545
        %v4549 = vsub.f32 %v4539, %v4546
        %v4550 = vmul.f32 %v4536, %v4530
        %v4551 = vmul.f32 %v4536, %v4531
        %v4552 = vmul.f32 %v4536, %v4532
        %v4553 = vmul.f32 %v4543, %v4526
        %v4554 = vmul.f32 %v4543, %v4527
        %v4555 = vmul.f32 %v4543, %v4528
        %v4556 = vadd.f32 %v4550, %v4553
        %v4557 = vadd.f32 %v4551, %v4554
        %v4558 = vadd.f32 %v4552, %v4555
        %v4559 = vadd.f32 %v4517, %v4547
        %v4560 = vadd.f32 %v4518, %v4548
        %v4561 = vadd.f32 %v4519, %v4549
        %v4562 = vadd.f32 %v4520, %v4556
        %v4563 = vadd.f32 %v4521, %v4557
        %v4564 = vadd.f32 %v4522, %v4558
        %v4565 = vld [vmem:[#allocation2 + $0x13] sm:$0x1]
        %v4566 = vld [vmem:[#allocation3 + $0x13] sm:$0x1]
        %s4567 = scalar_lea.vmem %s9, 1416
        %v4568 = vld [vmem:[%s4567] sm:$0xff]
        %v4569 = vld [vmem:[%s4567 + $0x8] sm:$0xff]
        %v4570 = vld [vmem:[%s4567 + $0x10] sm:$0xf]
        %s4571 = scalar_lea.vmem [#allocation4], 1416
        %v4572 = vld [vmem:[%s4571] sm:$0xff]
        %v4573 = vld [vmem:[%s4571 + $0x8] sm:$0xff]
        %v4574 = vld [vmem:[%s4571 + $0x10] sm:$0xf]
        %v4575 = vlaneseq
        %v4576 = vshrl.u32 %v4575, 7
        %v4577 = vsub.s32 0, %v4576
        %v4578 = vrot.slane %v4565, %v4577
        %v4579 = vmul.f32 %v4578, %v4568
        %v4580 = vmul.f32 %v4578, %v4569
        %v4581 = vmul.f32 %v4578, %v4570
        %v4582 = vlaneseq
        %v4583 = vshrl.u32 %v4582, 7
        %v4584 = vsub.s32 0, %v4583
        %v4585 = vrot.slane %v4566, %v4584
        %v4586 = vmul.f32 %v4585, %v4572
        %v4587 = vmul.f32 %v4585, %v4573
        %v4588 = vmul.f32 %v4585, %v4574
        %v4589 = vsub.f32 %v4579, %v4586
        %v4590 = vsub.f32 %v4580, %v4587
        %v4591 = vsub.f32 %v4581, %v4588
        %v4592 = vmul.f32 %v4578, %v4572
        %v4593 = vmul.f32 %v4578, %v4573
        %v4594 = vmul.f32 %v4578, %v4574
        %v4595 = vmul.f32 %v4585, %v4568
        %v4596 = vmul.f32 %v4585, %v4569
        %v4597 = vmul.f32 %v4585, %v4570
        %v4598 = vadd.f32 %v4592, %v4595
        %v4599 = vadd.f32 %v4593, %v4596
        %v4600 = vadd.f32 %v4594, %v4597
        %v4601 = vadd.f32 %v4559, %v4589
        %v4602 = vadd.f32 %v4560, %v4590
        %v4603 = vadd.f32 %v4561, %v4591
        %v4604 = vadd.f32 %v4562, %v4598
        %v4605 = vadd.f32 %v4563, %v4599
        %v4606 = vadd.f32 %v4564, %v4600
        %v4607 = vpack.c.bf16 %v4602, %v4601
        %v4608 = vpack.c.bf16 %v4603, %v4603
        %v4609 = vpack.c.bf16 %v4605, %v4604
        %v4610 = vpack.c.bf16 %v4606, %v4606
        %4611 = vmatprep.subr.bf16.mxu0 %v2047
        %4612 = vmatpush1.bf16.msra.mxu0 %v2046
        %4613 = vmatprep.subr.bf16.mxu0 %v2049
        %4614 = vmatpush1.bf16.msra.mxu0 %v2048
        %4615 = vmatprep.subr.bf16.mxu0 %v2051
        %4616 = vmatpush1.bf16.msra.mxu0 %v2050
        %4617 = vmatprep.subr.bf16.mxu0 %v2053
        %4618 = vmatpush1.bf16.msra.mxu0 %v2052
        %4619 = vmatprep.subr.bf16.mxu0 %v2055
        %4620 = vmatpush1.bf16.msra.mxu0 %v2054
        %4621 = vmatprep.subr.bf16.mxu0 %v2057
        %4622 = vmatpush1.bf16.msra.mxu0 %v2056
        %4623 = vmatprep.subr.bf16.mxu0 %v2059
        %4624 = vmatpush1.bf16.msra.mxu0 %v2058
        %4625 = vmatprep.subr.bf16.mxu0 %v2061
        %4626 = vmatpush1.bf16.msra.mxu0 %v2060
        %4627 = vmatprep.subr.bf16.mxu0 0
        %4628 = vmatpush1.bf16.msra.mxu0 0
        %4629 = vmatprep.subr.bf16.mxu0 0
        %4630 = vmatpush1.bf16.msra.mxu0 0
        %4631 = vmatprep.subr.bf16.mxu0 0
        %4632 = vmatpush1.bf16.msra.mxu0 0
        %4633 = vmatprep.subr.bf16.mxu0 0
        %4634 = vmatpush1.bf16.msra.mxu0 0
        %4635 = vmatprep.subr.bf16.mxu0 0
        %4636 = vmatpush1.bf16.msra.mxu0 0
        %4637 = vmatprep.subr.bf16.mxu0 0
        %4638 = vmatpush1.bf16.msra.mxu0 0
        %4639 = vmatprep.subr.bf16.mxu0 0
        %4640 = vmatpush1.bf16.msra.mxu0 0
        %4641 = vmatprep.subr.bf16.mxu0 0
        %4642 = vmatpush1.bf16.msra.mxu0 0
        %4643 = vmatprep.mubr.bf16.mxu0 0
        %4644 = vmatmul.mubr.bf16.gmra.mrb[0].mxu0 %v4609
        %v4645 = vpop.f32.mrb[0].mxu0
        %v4646 = vadd.f32 0.0, %v4645
        %v4647 = vpop.f32.mrb[0].mxu0
        %v4648 = vadd.f32 0.0, %v4647
        %v4649 = vpop.f32.mrb[0].mxu0
        %v4650 = vadd.f32 0.0, %v4649
        %v4651 = vpop.f32.mrb[0].mxu0
        %v4652 = vadd.f32 0.0, %v4651
        %4653 = vmatprep.mubr.bf16.mxu0 0
        %4654 = vmatmul.mubr.bf16.gmra.mrb[0].mxu0 %v4610
        %v4655 = vpop.f32.mrb[0].mxu0
        %v4656 = vadd.f32 0.0, %v4655
        %v4657 = vpop.f32.mrb[0].mxu0
        %v4658 = vadd.f32 0.0, %v4657
        %v4659 = vpop.f32.mrb[0].mxu0
        %v4660 = vpop.f32.mrb[0].mxu0
        %4661 = vdwg.mxu0
        %4662 = vmatprep.subr.bf16.mxu0 %v2178
        %4663 = vmatpush1.bf16.msra.mxu0 %v2177
        %4664 = vmatprep.subr.bf16.mxu0 %v2180
        %4665 = vmatpush1.bf16.msra.mxu0 %v2179
        %4666 = vmatprep.subr.bf16.mxu0 %v2182
        %4667 = vmatpush1.bf16.msra.mxu0 %v2181
        %4668 = vmatprep.subr.bf16.mxu0 %v2184
        %4669 = vmatpush1.bf16.msra.mxu0 %v2183
        %4670 = vmatprep.subr.bf16.mxu0 %v2186
        %4671 = vmatpush1.bf16.msra.mxu0 %v2185
        %4672 = vmatprep.subr.bf16.mxu0 %v2188
        %4673 = vmatpush1.bf16.msra.mxu0 %v2187
        %4674 = vmatprep.subr.bf16.mxu0 %v2190
        %4675 = vmatpush1.bf16.msra.mxu0 %v2189
        %4676 = vmatprep.subr.bf16.mxu0 %v2192
        %4677 = vmatpush1.bf16.msra.mxu0 %v2191
        %4678 = vmatprep.subr.bf16.mxu0 0
        %4679 = vmatpush1.bf16.msra.mxu0 0
        %4680 = vmatprep.subr.bf16.mxu0 0
        %4681 = vmatpush1.bf16.msra.mxu0 0
        %4682 = vmatprep.subr.bf16.mxu0 0
        %4683 = vmatpush1.bf16.msra.mxu0 0
        %4684 = vmatprep.subr.bf16.mxu0 0
        %4685 = vmatpush1.bf16.msra.mxu0 0
        %4686 = vmatprep.subr.bf16.mxu0 0
        %4687 = vmatpush1.bf16.msra.mxu0 0
        %4688 = vmatprep.subr.bf16.mxu0 0
        %4689 = vmatpush1.bf16.msra.mxu0 0
        %4690 = vmatprep.subr.bf16.mxu0 0
        %4691 = vmatpush1.bf16.msra.mxu0 0
        %4692 = vmatprep.subr.bf16.mxu0 0
        %4693 = vmatpush1.bf16.msra.mxu0 0
        %4694 = vmatprep.mubr.bf16.mxu0 0
        %4695 = vmatmul.mubr.bf16.gmra.mrb[0].mxu0 %v4607
        %v4696 = vpop.f32.mrb[0].mxu0
        %v4697 = vadd.f32 %v4646, %v4696
        %v4698 = vpop.f32.mrb[0].mxu0
        %v4699 = vadd.f32 %v4648, %v4698
        %v4700 = vpop.f32.mrb[0].mxu0
        %v4701 = vadd.f32 %v4650, %v4700
        %v4702 = vpop.f32.mrb[0].mxu0
        %v4703 = vadd.f32 %v4652, %v4702
        %4704 = vmatprep.mubr.bf16.mxu0 0
        %4705 = vmatmul.mubr.bf16.gmra.mrb[0].mxu0 %v4608
        %v4706 = vpop.f32.mrb[0].mxu0
        %v4707 = vadd.f32 %v4656, %v4706
        %v4708 = vpop.f32.mrb[0].mxu0
        %v4709 = vadd.f32 %v4658, %v4708
        %v4710 = vpop.f32.mrb[0].mxu0
        %v4711 = vpop.f32.mrb[0].mxu0
        %4712 = vdwg.mxu0
        %s4713 = scalar_lea.vmem [#allocation6], 48
        %v4714 = vld [vmem:[%s4713] sm:$0xff]
        %v4715 = vld [vmem:[%s4713 + $0x8] sm:$0xff]
        %v4716 = vld [vmem:[%s4713 + $0x10] sm:$0xf]
        %s4717 = scalar_lea.vmem %s12, 48
        %v4718 = vld [vmem:[%s4717] sm:$0xff]
        %v4719 = vld [vmem:[%s4717 + $0x8] sm:$0xff]
        %v4720 = vld [vmem:[%s4717 + $0x10] sm:$0xf]
        %4722 = vset.pattern.permute.xlu0 0
        %4723 = vperm.xlu0 %4722, %v4718
        %v4724 = vpop.permute.xlu0 %4723
        %4727 = vset.pattern.permute.xlu0 0
        %4728 = vperm.xlu0 %4727, %v4719
        %v4729 = vpop.permute.xlu0 %4728
        %4732 = vset.pattern.permute.xlu0 0
        %4733 = vperm.xlu0 %4732, %v4720
        %v4734 = vpop.permute.xlu0 %4733
        %v4737 = vsel %vm2281, %v4714, 0
        %v4740 = vsel %vm2281, %v4715, 0
        %v4743 = vsel %vm2281, %v4716, 0
        %v4746 = vsel %vm654, %v3665, 0
        %v4749 = vsel %vm654, %v3666, 0
        %4751 = vmatprep.subr.mxu0 %v3662
        %4752 = vmatpush1.msra.mxu0 %v3661
        %4753 = vmatprep.subr.mxu0 %v3664
        %4754 = vmatpush1.msra.mxu0 %v3663
        %4755 = vmatprep.subr.mxu0 %v4749
        %4756 = vmatpush1.msra.mxu0 %v4746
        %4757 = vmatprep.subr.mxu0 0.0
        %4758 = vmatpush1.msra.mxu0 0.0
        %4759 = vmatprep.subr.mxu0 0.0
        %4760 = vmatpush1.msra.mxu0 0.0
        %4761 = vmatprep.subr.mxu0 0.0
        %4762 = vmatpush1.msra.mxu0 0.0
        %4763 = vmatprep.subr.mxu0 0.0
        %4764 = vmatpush1.msra.mxu0 0.0
        %4765 = vmatprep.subr.mxu0 0.0
        %4766 = vmatpush1.msra.mxu0 0.0
        %4767 = vmatprep.subr.mxu0 0.0
        %4768 = vmatpush1.msra.mxu0 0.0
        %4769 = vmatprep.subr.mxu0 0.0
        %4770 = vmatpush1.msra.mxu0 0.0
        %4771 = vmatprep.subr.mxu0 0.0
        %4772 = vmatpush1.msra.mxu0 0.0
        %4773 = vmatprep.subr.mxu0 0.0
        %4774 = vmatpush1.msra.mxu0 0.0
        %4775 = vmatprep.subr.mxu0 0.0
        %4776 = vmatpush1.msra.mxu0 0.0
        %4777 = vmatprep.subr.mxu0 0.0
        %4778 = vmatpush1.msra.mxu0 0.0
        %4779 = vmatprep.subr.mxu0 0.0
        %4780 = vmatpush1.msra.mxu0 0.0
        %4781 = vmatprep.subr.mxu0 0.0
        %4782 = vmatpush1.msra.mxu0 0.0
        %4783 = vmatprep.subr.mxu0 0.0
        %4784 = vmatpush1.msra.mxu0 0.0
        %4785 = vmatprep.subr.mxu0 0.0
        %4786 = vmatpush1.msra.mxu0 0.0
        %4787 = vmatprep.subr.mxu0 0.0
        %4788 = vmatpush1.msra.mxu0 0.0
        %4789 = vmatprep.subr.mxu0 0.0
        %4790 = vmatpush1.msra.mxu0 0.0
        %4791 = vmatprep.subr.mxu0 0.0
        %4792 = vmatpush1.msra.mxu0 0.0
        %4793 = vmatprep.subr.mxu0 0.0
        %4794 = vmatpush1.msra.mxu0 0.0
        %4795 = vmatprep.subr.mxu0 0.0
        %4796 = vmatpush1.msra.mxu0 0.0
        %4797 = vmatprep.subr.mxu0 0.0
        %4798 = vmatpush1.msra.mxu0 0.0
        %4799 = vmatprep.subr.mxu0 0.0
        %4800 = vmatpush1.msra.mxu0 0.0
        %4801 = vmatprep.subr.mxu0 0.0
        %4802 = vmatpush1.msra.mxu0 0.0
        %4803 = vmatprep.subr.mxu0 0.0
        %4804 = vmatpush1.msra.mxu0 0.0
        %4805 = vmatprep.subr.mxu0 0.0
        %4806 = vmatpush1.msra.mxu0 0.0
        %4807 = vmatprep.subr.mxu0 0.0
        %4808 = vmatpush1.msra.mxu0 0.0
        %4809 = vmatprep.subr.mxu0 0.0
        %4810 = vmatpush1.msra.mxu0 0.0
        %4811 = vmatprep.subr.mxu0 0.0
        %4812 = vmatpush1.msra.mxu0 0.0
        %4813 = vmatprep.subr.mxu0 0.0
        %4814 = vmatpush1.msra.mxu0 0.0
        %4815 = vmatprep.mubr.f32.mxu0 0.0
        %4816 = vmatmul.mubr.f32.gmra.mrb[0].mxu0 %v4737
        %v4817 = vpop.f32.mrb[0].mxu0
        %v4818 = vadd.f32 %v4724, %v4817
        %v4819 = vpop.f32.mrb[0].mxu0
        %v4820 = vadd.f32 %v4724, %v4819
        %4821 = vmatprep.mubr.f32.mxu0 0.0
        %4822 = vmatmul.mubr.f32.gmra.mrb[0].mxu0 %v4740
        %v4823 = vpop.f32.mrb[0].mxu0
        %v4824 = vadd.f32 %v4729, %v4823
        %v4825 = vpop.f32.mrb[0].mxu0
        %v4826 = vadd.f32 %v4729, %v4825
        %4827 = vmatprep.mubr.f32.mxu0 0.0
        %4828 = vmatmul.mubr.f32.gmra.mrb[0].mxu0 %v4743
        %v4829 = vpop.f32.mrb[0].mxu0
        %v4830 = vadd.f32 %v4734, %v4829
        %v4831 = vpop.f32.mrb[0].mxu0
        %v4832 = vadd.f32 %v4734, %v4831
        %4833 = vdwg.mxu0
        %v4834 = vadd.f32 %v4697, %v4818
        %v4835 = vadd.f32 %v4699, %v4820
        %v4836 = vadd.f32 %v4701, %v4824
        %v4837 = vadd.f32 %v4703, %v4826
        %v4838 = vadd.f32 %v4707, %v4830
        %v4839 = vadd.f32 %v4709, %v4832
        %v4840 = vld [vmem:[%s13] sm:$0xff]
        %v4841 = vld [vmem:[%s13 + $0x8] sm:$0xff]
        %v4842 = vld [vmem:[%s13 + $0x10] sm:$0xff]
        %v4843 = vld [vmem:[%s13 + $0x18] sm:$0xff]
        %v4844 = vld [vmem:[%s13 + $0x20] sm:$0xff]
        %v4845 = vld [vmem:[%s13 + $0x28] sm:$0xff]
        %v4846 = vld [vmem:[%s13 + $0x30] sm:$0xff]
        %v4847 = vld [vmem:[%s13 + $0x38] sm:$0xff]
        %v4848 = vld [vmem:[%s13 + $0x40] sm:$0xff]
        %v4849 = vld [vmem:[%s13 + $0x48] sm:$0xff]
        %v4850 = vld [vmem:[%s13 + $0x50] sm:$0xff]
        %v4851 = vld [vmem:[%s13 + $0x58] sm:$0xff]
        %v4852 = vld [vmem:[%s13 + $0x60] sm:$0xff]
        %v4853 = vld [vmem:[%s13 + $0x68] sm:$0xff]
        %v4854 = vld [vmem:[%s13 + $0x70] sm:$0xff]
        %v4855 = vld [vmem:[%s13 + $0x78] sm:$0xff]
        %v4856 = vld [vmem:[%s14] sm:$0xff]
        %v4857 = vld [vmem:[%s14 + $0x8] sm:$0xff]
        %v4858 = vld [vmem:[%s14 + $0x10] sm:$0xff]
        %v4859 = vld [vmem:[%s14 + $0x18] sm:$0xff]
        %v4860 = vld [vmem:[%s14 + $0x20] sm:$0xff]
        %v4861 = vld [vmem:[%s14 + $0x28] sm:$0xff]
        %v4862 = vld [vmem:[%s14 + $0x30] sm:$0xff]
        %v4863 = vld [vmem:[%s14 + $0x38] sm:$0xff]
        %v4864 = vld [vmem:[%s14 + $0x40] sm:$0xff]
        %v4865 = vld [vmem:[%s14 + $0x48] sm:$0xff]
        %v4866 = vld [vmem:[%s14 + $0x50] sm:$0xff]
        %v4867 = vld [vmem:[%s14 + $0x58] sm:$0xff]
        %v4868 = vld [vmem:[%s14 + $0x60] sm:$0xff]
        %v4869 = vld [vmem:[%s14 + $0x68] sm:$0xff]
        %v4870 = vld [vmem:[%s14 + $0x70] sm:$0xff]
        %v4871 = vld [vmem:[%s14 + $0x78] sm:$0xff]
        %4873 = vset.pattern.permute.xlu0 0
        %4874 = vperm.xlu0 %4873, %v4856
        %v4875 = vpop.permute.xlu0 %4874
        %4878 = vset.pattern.permute.xlu0 0
        %4879 = vperm.xlu0 %4878, %v4857
        %v4880 = vpop.permute.xlu0 %4879
        %4883 = vset.pattern.permute.xlu0 0
        %4884 = vperm.xlu0 %4883, %v4858
        %v4885 = vpop.permute.xlu0 %4884
        %4888 = vset.pattern.permute.xlu0 0
        %4889 = vperm.xlu0 %4888, %v4859
        %v4890 = vpop.permute.xlu0 %4889
        %4893 = vset.pattern.permute.xlu0 0
        %4894 = vperm.xlu0 %4893, %v4860
        %v4895 = vpop.permute.xlu0 %4894
        %4898 = vset.pattern.permute.xlu0 0
        %4899 = vperm.xlu0 %4898, %v4861
        %v4900 = vpop.permute.xlu0 %4899
        %4903 = vset.pattern.permute.xlu0 0
        %4904 = vperm.xlu0 %4903, %v4862
        %v4905 = vpop.permute.xlu0 %4904
        %4908 = vset.pattern.permute.xlu0 0
        %4909 = vperm.xlu0 %4908, %v4863
        %v4910 = vpop.permute.xlu0 %4909
        %4913 = vset.pattern.permute.xlu0 0
        %4914 = vperm.xlu0 %4913, %v4864
        %v4915 = vpop.permute.xlu0 %4914
        %4918 = vset.pattern.permute.xlu0 0
        %4919 = vperm.xlu0 %4918, %v4865
        %v4920 = vpop.permute.xlu0 %4919
        %4923 = vset.pattern.permute.xlu0 0
        %4924 = vperm.xlu0 %4923, %v4866
        %v4925 = vpop.permute.xlu0 %4924
        %4928 = vset.pattern.permute.xlu0 0
        %4929 = vperm.xlu0 %4928, %v4867
        %v4930 = vpop.permute.xlu0 %4929
        %4933 = vset.pattern.permute.xlu0 0
        %4934 = vperm.xlu0 %4933, %v4868
        %v4935 = vpop.permute.xlu0 %4934
        %4938 = vset.pattern.permute.xlu0 0
        %4939 = vperm.xlu0 %4938, %v4869
        %v4940 = vpop.permute.xlu0 %4939
        %4943 = vset.pattern.permute.xlu0 0
        %4944 = vperm.xlu0 %4943, %v4870
        %v4945 = vpop.permute.xlu0 %4944
        %4948 = vset.pattern.permute.xlu0 0
        %4949 = vperm.xlu0 %4948, %v4871
        %v4950 = vpop.permute.xlu0 %4949
        %v4953 = vsel %vm2281, %v4840, 0
        %v4956 = vsel %vm2281, %v4841, 0
        %v4959 = vsel %vm2281, %v4842, 0
        %v4962 = vsel %vm2281, %v4843, 0
        %v4965 = vsel %vm2281, %v4844, 0
        %v4968 = vsel %vm2281, %v4845, 0
        %v4971 = vsel %vm2281, %v4846, 0
        %v4974 = vsel %vm2281, %v4847, 0
        %v4977 = vsel %vm2281, %v4848, 0
        %v4980 = vsel %vm2281, %v4849, 0
        %v4983 = vsel %vm2281, %v4850, 0
        %v4986 = vsel %vm2281, %v4851, 0
        %v4989 = vsel %vm2281, %v4852, 0
        %v4992 = vsel %vm2281, %v4853, 0
        %v4995 = vsel %vm2281, %v4854, 0
        %v4998 = vsel %vm2281, %v4855, 0
        %v5001 = vsel %vm654, %v4838, 0
        %v5004 = vsel %vm654, %v4839, 0
        %5006 = vmatprep.subr.mxu0 %v4835
        %5007 = vmatpush1.msra.mxu0 %v4834
        %5008 = vmatprep.subr.mxu0 %v4837
        %5009 = vmatpush1.msra.mxu0 %v4836
        %5010 = vmatprep.subr.mxu0 %v5004
        %5011 = vmatpush1.msra.mxu0 %v5001
        %5012 = vmatprep.subr.mxu0 0.0
        %5013 = vmatpush1.msra.mxu0 0.0
        %5014 = vmatprep.subr.mxu0 0.0
        %5015 = vmatpush1.msra.mxu0 0.0
        %5016 = vmatprep.subr.mxu0 0.0
        %5017 = vmatpush1.msra.mxu0 0.0
        %5018 = vmatprep.subr.mxu0 0.0
        %5019 = vmatpush1.msra.mxu0 0.0
        %5020 = vmatprep.subr.mxu0 0.0
        %5021 = vmatpush1.msra.mxu0 0.0
        %5022 = vmatprep.subr.mxu0 0.0
        %5023 = vmatpush1.msra.mxu0 0.0
        %5024 = vmatprep.subr.mxu0 0.0
        %5025 = vmatpush1.msra.mxu0 0.0
        %5026 = vmatprep.subr.mxu0 0.0
        %5027 = vmatpush1.msra.mxu0 0.0
        %5028 = vmatprep.subr.mxu0 0.0
        %5029 = vmatpush1.msra.mxu0 0.0
        %5030 = vmatprep.subr.mxu0 0.0
        %5031 = vmatpush1.msra.mxu0 0.0
        %5032 = vmatprep.subr.mxu0 0.0
        %5033 = vmatpush1.msra.mxu0 0.0
        %5034 = vmatprep.subr.mxu0 0.0
        %5035 = vmatpush1.msra.mxu0 0.0
        %5036 = vmatprep.subr.mxu0 0.0
        %5037 = vmatpush1.msra.mxu0 0.0
        %5038 = vmatprep.subr.mxu0 0.0
        %5039 = vmatpush1.msra.mxu0 0.0
        %5040 = vmatprep.subr.mxu0 0.0
        %5041 = vmatpush1.msra.mxu0 0.0
        %5042 = vmatprep.subr.mxu0 0.0
        %5043 = vmatpush1.msra.mxu0 0.0
        %5044 = vmatprep.subr.mxu0 0.0
        %5045 = vmatpush1.msra.mxu0 0.0
        %5046 = vmatprep.subr.mxu0 0.0
        %5047 = vmatpush1.msra.mxu0 0.0
        %5048 = vmatprep.subr.mxu0 0.0
        %5049 = vmatpush1.msra.mxu0 0.0
        %5050 = vmatprep.subr.mxu0 0.0
        %5051 = vmatpush1.msra.mxu0 0.0
        %5052 = vmatprep.subr.mxu0 0.0
        %5053 = vmatpush1.msra.mxu0 0.0
        %5054 = vmatprep.subr.mxu0 0.0
        %5055 = vmatpush1.msra.mxu0 0.0
        %5056 = vmatprep.subr.mxu0 0.0
        %5057 = vmatpush1.msra.mxu0 0.0
        %5058 = vmatprep.subr.mxu0 0.0
        %5059 = vmatpush1.msra.mxu0 0.0
        %5060 = vmatprep.subr.mxu0 0.0
        %5061 = vmatpush1.msra.mxu0 0.0
        %5062 = vmatprep.subr.mxu0 0.0
        %5063 = vmatpush1.msra.mxu0 0.0
        %5064 = vmatprep.subr.mxu0 0.0
        %5065 = vmatpush1.msra.mxu0 0.0
        %5066 = vmatprep.subr.mxu0 0.0
        %5067 = vmatpush1.msra.mxu0 0.0
        %5068 = vmatprep.subr.mxu0 0.0
        %5069 = vmatpush1.msra.mxu0 0.0
        %5070 = vmatprep.mubr.f32.mxu0 0.0
        %5071 = vmatmul.mubr.f32.gmra.mrb[0].mxu0 %v4953
        %v5072 = vpop.f32.mrb[0].mxu0
        %v5073 = vadd.f32 %v4875, %v5072
        %v5074 = vpop.f32.mrb[0].mxu0
        %v5075 = vadd.f32 %v4875, %v5074
        %5076 = vmatprep.mubr.f32.mxu0 0.0
        %5077 = vmatmul.mubr.f32.gmra.mrb[0].mxu0 %v4956
        %v5078 = vpop.f32.mrb[0].mxu0
        %v5079 = vadd.f32 %v4880, %v5078
        %v5080 = vpop.f32.mrb[0].mxu0
        %v5081 = vadd.f32 %v4880, %v5080
        %5082 = vmatprep.mubr.f32.mxu0 0.0
        %5083 = vmatmul.mubr.f32.gmra.mrb[0].mxu0 %v4959
        %v5084 = vpop.f32.mrb[0].mxu0
        %v5085 = vadd.f32 %v4885, %v5084
        %v5086 = vpop.f32.mrb[0].mxu0
        %v5087 = vadd.f32 %v4885, %v5086
        %5088 = vmatprep.mubr.f32.mxu0 0.0
        %5089 = vmatmul.mubr.f32.gmra.mrb[0].mxu0 %v4962
        %v5090 = vpop.f32.mrb[0].mxu0
        %v5091 = vadd.f32 %v4890, %v5090
        %v5092 = vpop.f32.mrb[0].mxu0
        %v5093 = vadd.f32 %v4890, %v5092
        %5094 = vmatprep.mubr.f32.mxu0 0.0
        %5095 = vmatmul.mubr.f32.gmra.mrb[0].mxu0 %v4965
        %v5096 = vpop.f32.mrb[0].mxu0
        %v5097 = vadd.f32 %v4895, %v5096
        %v5098 = vpop.f32.mrb[0].mxu0
        %v5099 = vadd.f32 %v4895, %v5098
        %5100 = vmatprep.mubr.f32.mxu0 0.0
        %5101 = vmatmul.mubr.f32.gmra.mrb[0].mxu0 %v4968
        %v5102 = vpop.f32.mrb[0].mxu0
        %v5103 = vadd.f32 %v4900, %v5102
        %v5104 = vpop.f32.mrb[0].mxu0
        %v5105 = vadd.f32 %v4900, %v5104
        %5106 = vmatprep.mubr.f32.mxu0 0.0
        %5107 = vmatmul.mubr.f32.gmra.mrb[0].mxu0 %v4971
        %v5108 = vpop.f32.mrb[0].mxu0
        %v5109 = vadd.f32 %v4905, %v5108
        %v5110 = vpop.f32.mrb[0].mxu0
        %v5111 = vadd.f32 %v4905, %v5110
        %5112 = vmatprep.mubr.f32.mxu0 0.0
        %5113 = vmatmul.mubr.f32.gmra.mrb[0].mxu0 %v4974
        %v5114 = vpop.f32.mrb[0].mxu0
        %v5115 = vadd.f32 %v4910, %v5114
        %v5116 = vpop.f32.mrb[0].mxu0
        %v5117 = vadd.f32 %v4910, %v5116
        %5118 = vmatprep.mubr.f32.mxu0 0.0
        %5119 = vmatmul.mubr.f32.gmra.mrb[0].mxu0 %v4977
        %v5120 = vpop.f32.mrb[0].mxu0
        %v5121 = vadd.f32 %v4915, %v5120
        %v5122 = vpop.f32.mrb[0].mxu0
        %v5123 = vadd.f32 %v4915, %v5122
        %5124 = vmatprep.mubr.f32.mxu0 0.0
        %5125 = vmatmul.mubr.f32.gmra.mrb[0].mxu0 %v4980
        %v5126 = vpop.f32.mrb[0].mxu0
        %v5127 = vadd.f32 %v4920, %v5126
        %v5128 = vpop.f32.mrb[0].mxu0
        %v5129 = vadd.f32 %v4920, %v5128
        %5130 = vmatprep.mubr.f32.mxu0 0.0
        %5131 = vmatmul.mubr.f32.gmra.mrb[0].mxu0 %v4983
        %v5132 = vpop.f32.mrb[0].mxu0
        %v5133 = vadd.f32 %v4925, %v5132
        %v5134 = vpop.f32.mrb[0].mxu0
        %v5135 = vadd.f32 %v4925, %v5134
        %5136 = vmatprep.mubr.f32.mxu0 0.0
        %5137 = vmatmul.mubr.f32.gmra.mrb[0].mxu0 %v4986
        %v5138 = vpop.f32.mrb[0].mxu0
        %v5139 = vadd.f32 %v4930, %v5138
        %v5140 = vpop.f32.mrb[0].mxu0
        %v5141 = vadd.f32 %v4930, %v5140
        %5142 = vmatprep.mubr.f32.mxu0 0.0
        %5143 = vmatmul.mubr.f32.gmra.mrb[0].mxu0 %v4989
        %v5144 = vpop.f32.mrb[0].mxu0
        %v5145 = vadd.f32 %v4935, %v5144
        %v5146 = vpop.f32.mrb[0].mxu0
        %v5147 = vadd.f32 %v4935, %v5146
        %5148 = vmatprep.mubr.f32.mxu0 0.0
        %5149 = vmatmul.mubr.f32.gmra.mrb[0].mxu0 %v4992
        %v5150 = vpop.f32.mrb[0].mxu0
        %v5151 = vadd.f32 %v4940, %v5150
        %v5152 = vpop.f32.mrb[0].mxu0
        %v5153 = vadd.f32 %v4940, %v5152
        %5154 = vmatprep.mubr.f32.mxu0 0.0
        %5155 = vmatmul.mubr.f32.gmra.mrb[0].mxu0 %v4995
        %v5156 = vpop.f32.mrb[0].mxu0
        %v5157 = vadd.f32 %v4945, %v5156
        %v5158 = vpop.f32.mrb[0].mxu0
        %v5159 = vadd.f32 %v4945, %v5158
        %5160 = vmatprep.mubr.f32.mxu0 0.0
        %5161 = vmatmul.mubr.f32.gmra.mrb[0].mxu0 %v4998
        %v5162 = vpop.f32.mrb[0].mxu0
        %v5163 = vadd.f32 %v4950, %v5162
        %v5164 = vpop.f32.mrb[0].mxu0
        %v5165 = vadd.f32 %v4950, %v5164
        %5166 = vdwg.mxu0
        %v5167 = vmul.f32 %v5073, %v5073
        %v5168 = vmul.f32 %v5075, %v5075
        %v5169 = vmul.f32 %v5079, %v5079
        %v5170 = vmul.f32 %v5081, %v5081
        %v5171 = vmul.f32 %v5085, %v5085
        %v5172 = vmul.f32 %v5087, %v5087
        %v5173 = vmul.f32 %v5091, %v5091
        %v5174 = vmul.f32 %v5093, %v5093
        %v5175 = vmul.f32 %v5097, %v5097
        %v5176 = vmul.f32 %v5099, %v5099
        %v5177 = vmul.f32 %v5103, %v5103
        %v5178 = vmul.f32 %v5105, %v5105
        %v5179 = vmul.f32 %v5109, %v5109
        %v5180 = vmul.f32 %v5111, %v5111
        %v5181 = vmul.f32 %v5115, %v5115
        %v5182 = vmul.f32 %v5117, %v5117
        %v5183 = vmul.f32 %v5121, %v5121
        %v5184 = vmul.f32 %v5123, %v5123
        %v5185 = vmul.f32 %v5127, %v5127
        %v5186 = vmul.f32 %v5129, %v5129
        %v5187 = vmul.f32 %v5133, %v5133
        %v5188 = vmul.f32 %v5135, %v5135
        %v5189 = vmul.f32 %v5139, %v5139
        %v5190 = vmul.f32 %v5141, %v5141
        %v5191 = vmul.f32 %v5145, %v5145
        %v5192 = vmul.f32 %v5147, %v5147
        %v5193 = vmul.f32 %v5151, %v5151
        %v5194 = vmul.f32 %v5153, %v5153
        %v5195 = vmul.f32 %v5157, %v5157
        %v5196 = vmul.f32 %v5159, %v5159
        %v5197 = vmul.f32 %v5163, %v5163
        %v5198 = vmul.f32 %v5165, %v5165
        %v5199 = vmul.f32 %v5073, %v5167
        %v5200 = vmul.f32 %v5075, %v5168
        %v5201 = vmul.f32 %v5079, %v5169
        %v5202 = vmul.f32 %v5081, %v5170
        %v5203 = vmul.f32 %v5085, %v5171
        %v5204 = vmul.f32 %v5087, %v5172
        %v5205 = vmul.f32 %v5091, %v5173
        %v5206 = vmul.f32 %v5093, %v5174
        %v5207 = vmul.f32 %v5097, %v5175
        %v5208 = vmul.f32 %v5099, %v5176
        %v5209 = vmul.f32 %v5103, %v5177
        %v5210 = vmul.f32 %v5105, %v5178
        %v5211 = vmul.f32 %v5109, %v5179
        %v5212 = vmul.f32 %v5111, %v5180
        %v5213 = vmul.f32 %v5115, %v5181
        %v5214 = vmul.f32 %v5117, %v5182
        %v5215 = vmul.f32 %v5121, %v5183
        %v5216 = vmul.f32 %v5123, %v5184
        %v5217 = vmul.f32 %v5127, %v5185
        %v5218 = vmul.f32 %v5129, %v5186
        %v5219 = vmul.f32 %v5133, %v5187
        %v5220 = vmul.f32 %v5135, %v5188
        %v5221 = vmul.f32 %v5139, %v5189
        %v5222 = vmul.f32 %v5141, %v5190
        %v5223 = vmul.f32 %v5145, %v5191
        %v5224 = vmul.f32 %v5147, %v5192
        %v5225 = vmul.f32 %v5151, %v5193
        %v5226 = vmul.f32 %v5153, %v5194
        %v5227 = vmul.f32 %v5157, %v5195
        %v5228 = vmul.f32 %v5159, %v5196
        %v5229 = vmul.f32 %v5163, %v5197
        %v5230 = vmul.f32 %v5165, %v5198
        %v5231 = vmul.f32 %v5199, 0.044715
        %v5232 = vmul.f32 %v5200, 0.044715
        %v5233 = vmul.f32 %v5201, 0.044715
        %v5234 = vmul.f32 %v5202, 0.044715
        %v5235 = vmul.f32 %v5203, 0.044715
        %v5236 = vmul.f32 %v5204, 0.044715
        %v5237 = vmul.f32 %v5205, 0.044715
        %v5238 = vmul.f32 %v5206, 0.044715
        %v5239 = vmul.f32 %v5207, 0.044715
        %v5240 = vmul.f32 %v5208, 0.044715
        %v5241 = vmul.f32 %v5209, 0.044715
        %v5242 = vmul.f32 %v5210, 0.044715
        %v5243 = vmul.f32 %v5211, 0.044715
        %v5244 = vmul.f32 %v5212, 0.044715
        %v5245 = vmul.f32 %v5213, 0.044715
        %v5246 = vmul.f32 %v5214, 0.044715
        %v5247 = vmul.f32 %v5215, 0.044715
        %v5248 = vmul.f32 %v5216, 0.044715
        %v5249 = vmul.f32 %v5217, 0.044715
        %v5250 = vmul.f32 %v5218, 0.044715
        %v5251 = vmul.f32 %v5219, 0.044715
        %v5252 = vmul.f32 %v5220, 0.044715
        %v5253 = vmul.f32 %v5221, 0.044715
        %v5254 = vmul.f32 %v5222, 0.044715
        %v5255 = vmul.f32 %v5223, 0.044715
        %v5256 = vmul.f32 %v5224, 0.044715
        %v5257 = vmul.f32 %v5225, 0.044715
        %v5258 = vmul.f32 %v5226, 0.044715
        %v5259 = vmul.f32 %v5227, 0.044715
        %v5260 = vmul.f32 %v5228, 0.044715
        %v5261 = vmul.f32 %v5229, 0.044715
        %v5262 = vmul.f32 %v5230, 0.044715
        %v5263 = vadd.f32 %v5073, %v5231
        %v5264 = vadd.f32 %v5075, %v5232
        %v5265 = vadd.f32 %v5079, %v5233
        %v5266 = vadd.f32 %v5081, %v5234
        %v5267 = vadd.f32 %v5085, %v5235
        %v5268 = vadd.f32 %v5087, %v5236
        %v5269 = vadd.f32 %v5091, %v5237
        %v5270 = vadd.f32 %v5093, %v5238
        %v5271 = vadd.f32 %v5097, %v5239
        %v5272 = vadd.f32 %v5099, %v5240
        %v5273 = vadd.f32 %v5103, %v5241
        %v5274 = vadd.f32 %v5105, %v5242
        %v5275 = vadd.f32 %v5109, %v5243
        %v5276 = vadd.f32 %v5111, %v5244
        %v5277 = vadd.f32 %v5115, %v5245
        %v5278 = vadd.f32 %v5117, %v5246
        %v5279 = vadd.f32 %v5121, %v5247
        %v5280 = vadd.f32 %v5123, %v5248
        %v5281 = vadd.f32 %v5127, %v5249
        %v5282 = vadd.f32 %v5129, %v5250
        %v5283 = vadd.f32 %v5133, %v5251
        %v5284 = vadd.f32 %v5135, %v5252
        %v5285 = vadd.f32 %v5139, %v5253
        %v5286 = vadd.f32 %v5141, %v5254
        %v5287 = vadd.f32 %v5145, %v5255
        %v5288 = vadd.f32 %v5147, %v5256
        %v5289 = vadd.f32 %v5151, %v5257
        %v5290 = vadd.f32 %v5153, %v5258
        %v5291 = vadd.f32 %v5157, %v5259
        %v5292 = vadd.f32 %v5159, %v5260
        %v5293 = vadd.f32 %v5163, %v5261
        %v5294 = vadd.f32 %v5165, %v5262
        %v5295 = vmul.f32 %v5263, 0.7978846
        %v5296 = vmul.f32 %v5264, 0.7978846
        %v5297 = vmul.f32 %v5265, 0.7978846
        %v5298 = vmul.f32 %v5266, 0.7978846
        %v5299 = vmul.f32 %v5267, 0.7978846
        %v5300 = vmul.f32 %v5268, 0.7978846
        %v5301 = vmul.f32 %v5269, 0.7978846
        %v5302 = vmul.f32 %v5270, 0.7978846
        %v5303 = vmul.f32 %v5271, 0.7978846
        %v5304 = vmul.f32 %v5272, 0.7978846
        %v5305 = vmul.f32 %v5273, 0.7978846
        %v5306 = vmul.f32 %v5274, 0.7978846
        %v5307 = vmul.f32 %v5275, 0.7978846
        %v5308 = vmul.f32 %v5276, 0.7978846
        %v5309 = vmul.f32 %v5277, 0.7978846
        %v5310 = vmul.f32 %v5278, 0.7978846
        %v5311 = vmul.f32 %v5279, 0.7978846
        %v5312 = vmul.f32 %v5280, 0.7978846
        %v5313 = vmul.f32 %v5281, 0.7978846
        %v5314 = vmul.f32 %v5282, 0.7978846
        %v5315 = vmul.f32 %v5283, 0.7978846
        %v5316 = vmul.f32 %v5284, 0.7978846
        %v5317 = vmul.f32 %v5285, 0.7978846
        %v5318 = vmul.f32 %v5286, 0.7978846
        %v5319 = vmul.f32 %v5287, 0.7978846
        %v5320 = vmul.f32 %v5288, 0.7978846
        %v5321 = vmul.f32 %v5289, 0.7978846
        %v5322 = vmul.f32 %v5290, 0.7978846
        %v5323 = vmul.f32 %v5291, 0.7978846
        %v5324 = vmul.f32 %v5292, 0.7978846
        %v5325 = vmul.f32 %v5293, 0.7978846
        %v5326 = vmul.f32 %v5294, 0.7978846
        %v5327 = vtanh.pop %v5295
        %v5328 = vtanh.pop %v5296
        %v5329 = vtanh.pop %v5297
        %v5330 = vtanh.pop %v5298
        %v5331 = vtanh.pop %v5299
        %v5332 = vtanh.pop %v5300
        %v5333 = vtanh.pop %v5301
        %v5334 = vtanh.pop %v5302
        %v5335 = vtanh.pop %v5303
        %v5336 = vtanh.pop %v5304
        %v5337 = vtanh.pop %v5305
        %v5338 = vtanh.pop %v5306
        %v5339 = vtanh.pop %v5307
        %v5340 = vtanh.pop %v5308
        %v5341 = vtanh.pop %v5309
        %v5342 = vtanh.pop %v5310
        %v5343 = vtanh.pop %v5311
        %v5344 = vtanh.pop %v5312
        %v5345 = vtanh.pop %v5313
        %v5346 = vtanh.pop %v5314
        %v5347 = vtanh.pop %v5315
        %v5348 = vtanh.pop %v5316
        %v5349 = vtanh.pop %v5317
        %v5350 = vtanh.pop %v5318
        %v5351 = vtanh.pop %v5319
        %v5352 = vtanh.pop %v5320
        %v5353 = vtanh.pop %v5321
        %v5354 = vtanh.pop %v5322
        %v5355 = vtanh.pop %v5323
        %v5356 = vtanh.pop %v5324
        %v5357 = vtanh.pop %v5325
        %v5358 = vtanh.pop %v5326
        %v5359 = vadd.f32 %v5327, 1.0
        %v5360 = vadd.f32 %v5328, 1.0
        %v5361 = vadd.f32 %v5329, 1.0
        %v5362 = vadd.f32 %v5330, 1.0
        %v5363 = vadd.f32 %v5331, 1.0
        %v5364 = vadd.f32 %v5332, 1.0
        %v5365 = vadd.f32 %v5333, 1.0
        %v5366 = vadd.f32 %v5334, 1.0
        %v5367 = vadd.f32 %v5335, 1.0
        %v5368 = vadd.f32 %v5336, 1.0
        %v5369 = vadd.f32 %v5337, 1.0
        %v5370 = vadd.f32 %v5338, 1.0
        %v5371 = vadd.f32 %v5339, 1.0
        %v5372 = vadd.f32 %v5340, 1.0
        %v5373 = vadd.f32 %v5341, 1.0
        %v5374 = vadd.f32 %v5342, 1.0
        %v5375 = vadd.f32 %v5343, 1.0
        %v5376 = vadd.f32 %v5344, 1.0
        %v5377 = vadd.f32 %v5345, 1.0
        %v5378 = vadd.f32 %v5346, 1.0
        %v5379 = vadd.f32 %v5347, 1.0
        %v5380 = vadd.f32 %v5348, 1.0
        %v5381 = vadd.f32 %v5349, 1.0
        %v5382 = vadd.f32 %v5350, 1.0
        %v5383 = vadd.f32 %v5351, 1.0
        %v5384 = vadd.f32 %v5352, 1.0
        %v5385 = vadd.f32 %v5353, 1.0
        %v5386 = vadd.f32 %v5354, 1.0
        %v5387 = vadd.f32 %v5355, 1.0
        %v5388 = vadd.f32 %v5356, 1.0
        %v5389 = vadd.f32 %v5357, 1.0
        %v5390 = vadd.f32 %v5358, 1.0
        %v5391 = vmul.f32 %v5359, 0.5
        %v5392 = vmul.f32 %v5360, 0.5
        %v5393 = vmul.f32 %v5361, 0.5
        %v5394 = vmul.f32 %v5362, 0.5
        %v5395 = vmul.f32 %v5363, 0.5
        %v5396 = vmul.f32 %v5364, 0.5
        %v5397 = vmul.f32 %v5365, 0.5
        %v5398 = vmul.f32 %v5366, 0.5
        %v5399 = vmul.f32 %v5367, 0.5
        %v5400 = vmul.f32 %v5368, 0.5
        %v5401 = vmul.f32 %v5369, 0.5
        %v5402 = vmul.f32 %v5370, 0.5
        %v5403 = vmul.f32 %v5371, 0.5
        %v5404 = vmul.f32 %v5372, 0.5
        %v5405 = vmul.f32 %v5373, 0.5
        %v5406 = vmul.f32 %v5374, 0.5
        %v5407 = vmul.f32 %v5375, 0.5
        %v5408 = vmul.f32 %v5376, 0.5
        %v5409 = vmul.f32 %v5377, 0.5
        %v5410 = vmul.f32 %v5378, 0.5
        %v5411 = vmul.f32 %v5379, 0.5
        %v5412 = vmul.f32 %v5380, 0.5
        %v5413 = vmul.f32 %v5381, 0.5
        %v5414 = vmul.f32 %v5382, 0.5
        %v5415 = vmul.f32 %v5383, 0.5
        %v5416 = vmul.f32 %v5384, 0.5
        %v5417 = vmul.f32 %v5385, 0.5
        %v5418 = vmul.f32 %v5386, 0.5
        %v5419 = vmul.f32 %v5387, 0.5
        %v5420 = vmul.f32 %v5388, 0.5
        %v5421 = vmul.f32 %v5389, 0.5
        %v5422 = vmul.f32 %v5390, 0.5
        %v5423 = vmul.f32 %v5073, %v5391
        %v5424 = vmul.f32 %v5075, %v5392
        %v5425 = vmul.f32 %v5079, %v5393
        %v5426 = vmul.f32 %v5081, %v5394
        %v5427 = vmul.f32 %v5085, %v5395
        %v5428 = vmul.f32 %v5087, %v5396
        %v5429 = vmul.f32 %v5091, %v5397
        %v5430 = vmul.f32 %v5093, %v5398
        %v5431 = vmul.f32 %v5097, %v5399
        %v5432 = vmul.f32 %v5099, %v5400
        %v5433 = vmul.f32 %v5103, %v5401
        %v5434 = vmul.f32 %v5105, %v5402
        %v5435 = vmul.f32 %v5109, %v5403
        %v5436 = vmul.f32 %v5111, %v5404
        %v5437 = vmul.f32 %v5115, %v5405
        %v5438 = vmul.f32 %v5117, %v5406
        %v5439 = vmul.f32 %v5121, %v5407
        %v5440 = vmul.f32 %v5123, %v5408
        %v5441 = vmul.f32 %v5127, %v5409
        %v5442 = vmul.f32 %v5129, %v5410
        %v5443 = vmul.f32 %v5133, %v5411
        %v5444 = vmul.f32 %v5135, %v5412
        %v5445 = vmul.f32 %v5139, %v5413
        %v5446 = vmul.f32 %v5141, %v5414
        %v5447 = vmul.f32 %v5145, %v5415
        %v5448 = vmul.f32 %v5147, %v5416
        %v5449 = vmul.f32 %v5151, %v5417
        %v5450 = vmul.f32 %v5153, %v5418
        %v5451 = vmul.f32 %v5157, %v5419
        %v5452 = vmul.f32 %v5159, %v5420
        %v5453 = vmul.f32 %v5163, %v5421
        %v5454 = vmul.f32 %v5165, %v5422
        %v5455 = vld [vmem:[%s15] sm:$0x7]
        %v5456 = vld [vmem:[%s16] sm:$0x7]
        %5458 = vset.pattern.permute.xlu0 0
        %5459 = vperm.xlu0 %5458, %v5456
        %v5460 = vpop.permute.xlu0 %5459
        %5462 = vmatprep.subr.mxu0 %v5424
        %5463 = vmatpush1.msra.mxu0 %v5423
        %5464 = vmatprep.subr.mxu0 %v5426
        %5465 = vmatpush1.msra.mxu0 %v5425
        %5466 = vmatprep.subr.mxu0 %v5428
        %5467 = vmatpush1.msra.mxu0 %v5427
        %5468 = vmatprep.subr.mxu0 %v5430
        %5469 = vmatpush1.msra.mxu0 %v5429
        %5470 = vmatprep.subr.mxu0 %v5432
        %5471 = vmatpush1.msra.mxu0 %v5431
        %5472 = vmatprep.subr.mxu0 %v5434
        %5473 = vmatpush1.msra.mxu0 %v5433
        %5474 = vmatprep.subr.mxu0 %v5436
        %5475 = vmatpush1.msra.mxu0 %v5435
        %5476 = vmatprep.subr.mxu0 %v5438
        %5477 = vmatpush1.msra.mxu0 %v5437
        %5478 = vmatprep.subr.mxu0 %v5440
        %5479 = vmatpush1.msra.mxu0 %v5439
        %5480 = vmatprep.subr.mxu0 %v5442
        %5481 = vmatpush1.msra.mxu0 %v5441
        %5482 = vmatprep.subr.mxu0 %v5444
        %5483 = vmatpush1.msra.mxu0 %v5443
        %5484 = vmatprep.subr.mxu0 %v5446
        %5485 = vmatpush1.msra.mxu0 %v5445
        %5486 = vmatprep.subr.mxu0 %v5448
        %5487 = vmatpush1.msra.mxu0 %v5447
        %5488 = vmatprep.subr.mxu0 %v5450
        %5489 = vmatpush1.msra.mxu0 %v5449
        %5490 = vmatprep.subr.mxu0 %v5452
        %5491 = vmatpush1.msra.mxu0 %v5451
        %5492 = vmatprep.subr.mxu0 %v5454
        %5493 = vmatpush1.msra.mxu0 %v5453
        %5494 = vmatprep.subr.mxu0 0.0
        %5495 = vmatpush1.msra.mxu0 0.0
        %5496 = vmatprep.subr.mxu0 0.0
        %5497 = vmatpush1.msra.mxu0 0.0
        %5498 = vmatprep.subr.mxu0 0.0
        %5499 = vmatpush1.msra.mxu0 0.0
        %5500 = vmatprep.subr.mxu0 0.0
        %5501 = vmatpush1.msra.mxu0 0.0
        %5502 = vmatprep.subr.mxu0 0.0
        %5503 = vmatpush1.msra.mxu0 0.0
        %5504 = vmatprep.subr.mxu0 0.0
        %5505 = vmatpush1.msra.mxu0 0.0
        %5506 = vmatprep.subr.mxu0 0.0
        %5507 = vmatpush1.msra.mxu0 0.0
        %5508 = vmatprep.subr.mxu0 0.0
        %5509 = vmatpush1.msra.mxu0 0.0
        %5510 = vmatprep.subr.mxu0 0.0
        %5511 = vmatpush1.msra.mxu0 0.0
        %5512 = vmatprep.subr.mxu0 0.0
        %5513 = vmatpush1.msra.mxu0 0.0
        %5514 = vmatprep.subr.mxu0 0.0
        %5515 = vmatpush1.msra.mxu0 0.0
        %5516 = vmatprep.subr.mxu0 0.0
        %5517 = vmatpush1.msra.mxu0 0.0
        %5518 = vmatprep.subr.mxu0 0.0
        %5519 = vmatpush1.msra.mxu0 0.0
        %5520 = vmatprep.subr.mxu0 0.0
        %5521 = vmatpush1.msra.mxu0 0.0
        %5522 = vmatprep.subr.mxu0 0.0
        %5523 = vmatpush1.msra.mxu0 0.0
        %5524 = vmatprep.subr.mxu0 0.0
        %5525 = vmatpush1.msra.mxu0 0.0
        %5526 = vmatprep.mubr.f32.mxu0 0.0
        %5527 = vmatmul.mubr.f32.gmra.mrb[0].mxu0 %v5455
        %v5528 = vpop.f32.mrb[0].mxu0
        %v5529 = vadd.f32 %v5460, %v5528
        %v5530 = vpop.f32.mrb[0].mxu0
        %v5531 = vadd.f32 %v5460, %v5530
        %5532 = vdwg.mxu0
        %v5535 = vcombine.low %v5529, %v5531
        %5537 = vst [vmem:[%s592] sm:$0x77] %v5535
        %p5538 = scmp.lt.s32.totalorder %s30, 1
        %s5539 = scalar_select %p5538, %s30, 1
        %s5540 = smul.addr %s5539, 2
        %s5541 = smul.addr %s5540, 4
        %s5542 = scalar_lea.vmem %s17, %s5541
        // Predicated region
        $region97: #{net_forward.1} parent=87 // pred_check
          %p5543 = pneg %p415
        $region98: #{net_forward.1} parent=87 // pred_check_branch
          %5545 = sbr.rel (%p5543) target = $region100
        $region99: #{net_forward.1} parent=87 // pred_region
          _
        $region100: #{net_forward.1} parent=87 // pred_fallthru
          _
      $region88: #{net_forward.1} parent=5 // pred_fallthru
        _
      %p5546 = scmp.le.s32.totalorder 2, %s25
      // Predicated region
      $region101: #{net_forward.1} parent=5 // pred_check
        %p5547 = pneg %p5546
      $region102: #{net_forward.1} parent=5 // pred_check_branch
        %5549 = sbr.rel (%p5547) target = $region104
      $region103: #{net_forward.1} parent=5 // pred_region
        %s5550 = ssub.s32 %s25, 2
        // Predicated region
        $region105: #{net_forward.1} parent=103 // pred_check
          %p5551 = pneg %p421
        $region106: #{net_forward.1} parent=103 // pred_check_branch
          %5553 = sbr.rel (%p5551) target = $region108
        $region107: #{net_forward.1} parent=103 // pred_region
          %p5554 = scmp.lt.s32.totalorder %s31, 1
          %s5555 = scalar_select %p5554, %s31, 1
          %s5556 = smul.addr %s5555, 2
          %s5557 = smul.addr %s5556, 4
          %s5558 = scalar_lea.vmem %s17, %s5557
        $region108: #{net_forward.1} parent=103 // pred_fallthru
          _
      $region104: #{net_forward.1} parent=5 // pred_fallthru
        _
    $region6: #{net_forward.1} parent=1 // loop_footer
      %s29 = sadd.s32 1, %s25
    $region7: #{net_forward.1} parent=1 // loop_footer_branch
      %24 = sbr.rel target = $region3
    $region8: #{net_forward.1} parent=1 // loop_exit
      _
    %5559 = vsyncpa [#allocation5], 1
    %s5560 = scalar_lea.sflag [#allocation5], 1
    %5561 = vsyncpa %s5560, 1
    %5562 = vsyncpa [#allocation7], 1

</llo_original>
